<compile_context>
chip_gen: v7x
topology: tpu7x:2x2x1
jax: 0.10.0
libtpu: 0.0.40
codegen_flags: <defaults>
</compile_context>

<pallas_src>
import functools

import jax
import jax.numpy as jnp
from jax import lax
from jax.experimental import pallas as pl
from jax.experimental.pallas import tpu as pltpu

_EPS_BN = 1e-5        # nn.BatchNorm1d default eps
_EPS_LN = 1e-5        # F.layer_norm default eps
_MXU_MIN_CIN = 16     # contractions with Cin >= this are routed to the MXU


# ---------------------------------------------------------------------------
# In-kernel building blocks.  Layouts: vector (bt, 2, C, N), scalar (bt, C, N);
# sequence N on lanes, channels on sublanes.
# ---------------------------------------------------------------------------
def _matmul_ch(x, w):
    """(..., K, N) contracted with (Cout, K) -> (..., Cout, N) on the MXU.

    One 2-D jnp.dot per leading slice; K/N are already the minor dims so no
    relayout is needed."""
    if x.ndim == 2:
        return jnp.dot(w, x, preferred_element_type=jnp.float32)
    lead, n = x.shape[:-2], x.shape[-1]
    x2 = x.reshape((-1,) + x.shape[-2:])
    out = jnp.stack(
        [jnp.dot(w, x2[j], preferred_element_type=jnp.float32)
         for j in range(x2.shape[0])], axis=0)
    return out.reshape(lead + (w.shape[0], n))


def _contract_ch(x, w):
    """(..., Cin, N) x (Cout, Cin) -> (..., Cout, N).

    Cin >= _MXU_MIN_CIN -> MXU matmul; otherwise an unrolled VPU broadcast-MAC
    with several partial accumulators (exposes ILP to the 4 VALU slots)."""
    cout, cin = w.shape
    if cin >= _MXU_MIN_CIN:
        return _matmul_ch(x, w)
    n_acc = min(4, cin)
    accs = [x[..., c:c + 1, :] * w[:, c:c + 1] for c in range(n_acc)]
    for c in range(n_acc, cin):
        accs[c % n_acc] = accs[c % n_acc] + x[..., c:c + 1, :] * w[:, c:c + 1]
    while len(accs) > 1:
        nxt = [a + b for a, b in zip(accs[0::2], accs[1::2])]
        if len(accs) % 2:
            nxt.append(accs[-1])
        accs = nxt
    return accs[0]


def _conv_taps3(x):
    """(x[n-1], x[n], x[n+1]) along the lane (sequence) axis with replicate
    ('edge') boundary handling.
    TODO(synk): on hardware this could use pltpu.roll + edge select (XLU slot)
    instead of lane concatenation; kept jnp-only for portability."""
    xm1 = jnp.concatenate([x[..., :1], x[..., :-1]], axis=-1)
    xp1 = jnp.concatenate([x[..., 1:], x[..., -1:]], axis=-1)
    return xm1, x, xp1


def _conv3(taps, w):
    """3-tap sequence conv (kernel (3,1), replicate pad 1, stride 1).

    w is either (3, Cout, Cin) (VPU form) or the MXU pre-packed (Cout, 3*Cin)
    form, in which case the taps are stacked along channels and contracted in a
    single deep-K matmul."""
    if w.ndim == 2:
        return _matmul_ch(jnp.concatenate(taps, axis=-2), w)
    return (_contract_ch(taps[0], w[0]) + _contract_ch(taps[1], w[1])
            + _contract_ch(taps[2], w[2]))


def _orth(v):
    """orthogonal_input on the planar-component axis (axis 1): (x, y) -> (-y, x)."""
    return jnp.concatenate([-v[:, 1:2], v[:, 0:1]], axis=1)


def _comp_sq_norm(v):
    """Squared norm over the planar-component axis: (bt, 2, C, N) -> (bt, C, N)."""
    return v[:, 0] * v[:, 0] + v[:, 1] * v[:, 1]


def _norm_and_inv(v):
    """(max(|v|, 1e-4), 1/max(|v|, 1e-4)) from a single EUP rsqrt
    (VNBatchNorm's clamp; no divide, no extra sqrt)."""
    sq = _comp_sq_norm(v)
    inv = lax.rsqrt(jnp.maximum(sq, 1e-8))       # == 1 / max(|v|, 1e-4)
    return jnp.maximum(sq * inv, 1e-4), inv


def _nonlinearity(v, s, wn, dim_out):
    """NonLinearity: linear([|v|, s]) -> LayerNorm(gamma=1, beta=0) ->
    (gate * v_hat, scalar part).  One rsqrt serves |v| and 1/clamp(|v|, 1e-6).
    At production widths (3i >= 16) the linear is a single MXU matmul on the
    channel-concatenated input."""
    sq = _comp_sq_norm(v)                                      # (bt, i, N)
    r = lax.rsqrt(jnp.maximum(sq, 1e-12))                      # 1 / clamp(|v|, 1e-6)
    vnorm = sq * r                                             # |v|
    if wn.shape[1] >= _MXU_MIN_CIN:
        x = _matmul_ch(jnp.concatenate([vnorm, s], axis=-2), wn)
    else:
        x = _contract_ch(vnorm, wn[:, :dim_out]) + _contract_ch(s, wn[:, dim_out:])
    mu = jnp.mean(x, axis=-2, keepdims=True)                   # LayerNorm over channels
    var = jnp.mean((x - mu) * (x - mu), axis=-2, keepdims=True)
    x = (x - mu) * lax.rsqrt(var + _EPS_LN)
    gate = x[:, :dim_out] * r
    return v * gate[:, None], x[:, dim_out:]


def _vn_leaky_relu(v, wd, slope=0.2):
    """VNLeakyReLU with per-channel learned direction (share_nonlinearity=False).
    Exact division in the projection (dd ~ 1e-8 would amplify an approximate
    reciprocal's error)."""
    d = _contract_ch(v, wd)
    dot = jnp.sum(v * d, axis=1, keepdims=True)
    dd = jnp.sum(d * d, axis=1, keepdims=True) + 1e-8
    neg = v - (dot / dd) * d
    return slope * v + (1.0 - slope) * jnp.where(dot >= 0, v, neg)


def _apply_bn(s, st):
    """BatchNorm1d(affine=False) apply; st = (2, C, 1) [mean, inv_std]."""
    return (s - st[0]) * st[1]


def _apply_vn_bn(v, st):
    """VNBatchNorm apply; st = (2, C, 1) [mean, inv_std] of the clamped norms."""
    nrm, inv_n = _norm_and_inv(v)
    return v * (((nrm - st[0]) * st[1]) * inv_n)[:, None]


def _tile_stats(nrm, s):
    """Per-tile [sum, sum of squares] over (tile batch, N), packed (1, 2, 3i):
    columns [0, i) = vector-norm stats, [i, 3i) = scalar stats (float32)."""
    def red(x):
        x = x.astype(jnp.float32)
        return jnp.sum(jnp.sum(x, axis=-1), axis=0, keepdims=True)   # (1, C)
    row_s = jnp.concatenate([red(nrm), red(s)], axis=-1)
    row_q = jnp.concatenate([red(nrm * nrm), red(s * s)], axis=-1)
    return jnp.concatenate([row_s, row_q], axis=0)[None]             # (1, 2, 3i)


# ---------------------------------------------------------------------------
# Stage kernels (each gridded over batch tiles).
# ---------------------------------------------------------------------------
def _stage1_kernel(*refs, i, downsample):
    """conv1 -> nl1 (and, if downsample, dconv1 -> d_nl1); emits the per-tile
    statistics needed by vbn1/sbn1 (and d_vbn1/d_sbn1)."""
    if downsample:
        (v_ref, s_ref, wv1a, wv1b, ws1, wn1, wvda, wvdb, wsd, wnd,
         v1_ref, s1_ref, st1_ref, rv_ref, rs_ref, std_ref) = refs
    else:
        (v_ref, s_ref, wv1a, wv1b, ws1, wn1,
         v1_ref, s1_ref, st1_ref) = refs

    v = v_ref[...].astype(jnp.float32)          # (bt, 2, Cv, N)
    s = s_ref[...].astype(jnp.float32)          # (bt, Cs, N)

    vt = _conv_taps3(v)
    st = _conv_taps3(s)
    # conv(orth(v)) == orth(conv(v)): the shifted taps of v are shared by both
    # halves of the vector conv weight.
    v1 = _conv3(vt, wv1a[...]) + _orth(_conv3(vt, wv1b[...]))
    s1 = _conv3(st, ws1[...])
    v1, s1 = _nonlinearity(v1, s1, wn1[...], i)
    st1_ref[...] = _tile_stats(_norm_and_inv(v1)[0], s1)
    v1_ref[...] = v1.astype(v1_ref.dtype)
    s1_ref[...] = s1.astype(s1_ref.dtype)

    if downsample:
        # Residual branch goes straight to HBM (no long live ranges across the
        # main path).
        rv = _contract_ch(v, wvda[...]) + _orth(_contract_ch(v, wvdb[...]))
        rs = _contract_ch(s, wsd[...])
        rv, rs = _nonlinearity(rv, rs, wnd[...], i)
        std_ref[...] = _tile_stats(_norm_and_inv(rv)[0], rs)
        rv_ref[...] = rv.astype(rv_ref.dtype)
        rs_ref[...] = rs.astype(rs_ref.dtype)


def _stage2_kernel(v1_ref, s1_ref, bn1v_ref, bn1s_ref, wd1_ref,
                   wv2a_ref, wv2b_ref, ws2_ref, wn2_ref,
                   v2_ref, s2_ref, st2_ref, *, i):
    """Apply vbn1/sbn1, vr1/relu, then conv2 -> nl2; emits vbn2/sbn2 stats."""
    v1 = _apply_vn_bn(v1_ref[...].astype(jnp.float32), bn1v_ref[...])
    s1 = _apply_bn(s1_ref[...].astype(jnp.float32), bn1s_ref[...])
    v1 = _vn_leaky_relu(v1, wd1_ref[...])
    s1 = jnp.maximum(s1, 0.0)

    vt = _conv_taps3(v1)
    st = _conv_taps3(s1)
    v2 = _conv3(vt, wv2a_ref[...]) + _orth(_conv3(vt, wv2b_ref[...]))
    s2 = _conv3(st, ws2_ref[...])
    v2, s2 = _nonlinearity(v2, s2, wn2_ref[...], i)
    st2_ref[...] = _tile_stats(_norm_and_inv(v2)[0], s2)
    v2_ref[...] = v2.astype(v2_ref.dtype)
    s2_ref[...] = s2.astype(s2_ref.dtype)


def _stage3_kernel(*refs, downsample):
    """Apply vbn2/sbn2 (and the downsample-branch BNs + residual add), then the
    output VNLeakyReLU / ReLU."""
    if downsample:
        (v2_ref, s2_ref, rv_ref, rs_ref, bn2v_ref, bn2s_ref, bndv_ref, bnds_ref,
         wdo_ref, vout_ref, sout_ref) = refs
    else:
        (v2_ref, s2_ref, bn2v_ref, bn2s_ref, wdo_ref, vout_ref, sout_ref) = refs

    v2 = _apply_vn_bn(v2_ref[...].astype(jnp.float32), bn2v_ref[...])
    s2 = _apply_bn(s2_ref[...].astype(jnp.float32), bn2s_ref[...])
    if downsample:
        v2 = v2 + _apply_vn_bn(rv_ref[...].astype(jnp.float32), bndv_ref[...])
        s2 = s2 + _apply_bn(rs_ref[...].astype(jnp.float32), bnds_ref[...])
    vout_ref[...] = _vn_leaky_relu(v2, wdo_ref[...]).astype(vout_ref.dtype)
    sout_ref[...] = jnp.maximum(s2, 0.0).astype(sout_ref.dtype)


# ---------------------------------------------------------------------------
# Host-side plumbing.
# ---------------------------------------------------------------------------
def _pack_conv3(w):
    """(3, Cout, Cin) conv weight -> MXU pre-packed (Cout, 3*Cin) form when the
    contraction will run on the MXU (column order matches the stacked taps),
    else the (3, Cout, Cin) VPU form."""
    k, cout, cin = w.shape
    if cin >= _MXU_MIN_CIN:
        return jnp.transpose(w, (1, 0, 2)).reshape(cout, k * cin)
    return w


def _split_pack_conv3(w, half):
    """Split a vector-conv weight (3, Cout, 2*half) into its 'v' / 'orth(v)'
    halves and pack each for the kernel."""
    return _pack_conv3(w[:, :, :half]), _pack_conv3(w[:, :, half:])


def _bn_pair(st_tiles, split, count):
    """Per-tile [sum, sumsq] partials -> two (2, C, 1) [mean, inv_std] arrays:
    vector-norm BN (C = split) and scalar BN (C = rest).  Biased variance,
    eps=1e-5 (training-mode BatchNorm1d)."""
    tot = jnp.sum(st_tiles.astype(jnp.float32), axis=0)        # (2, 3i)

    def mk(cols):
        mean = cols[0] / count
        var = jnp.maximum(cols[1] / count - mean * mean, 0.0)
        return jnp.stack([mean, lax.rsqrt(var + _EPS_BN)])[:, :, None]

    return mk(tot[:, :split]), mk(tot[:, split:])


def _act_spec(shape, bt):
    """Activation BlockSpec: tile the leading batch axis, full trailing dims
    (channels on sublanes, N on lanes -> lane-dense, unmasked stores)."""
    nd = len(shape)
    return pl.BlockSpec((bt,) + tuple(shape[1:]), lambda b: (b,) + (0,) * (nd - 1))


def _const_spec(a):
    """Full-array block with a constant index map: the pipeline sees the
    unchanged block index and keeps the array VMEM-resident across grid steps
    instead of re-DMAing it (weights, per-channel BN vectors)."""
    nd = a.ndim
    return pl.BlockSpec(a.shape, lambda b: (0,) * nd)


def _st_spec(i):
    return pl.BlockSpec((1, 2, 3 * i), lambda b: (b, 0, 0))


def _vmem_limit(act_block_bytes):
    """Generation-aware scoped-VMEM limit: room for the double-buffered blocks
    plus temporaries, never below the 32 MiB default, capped below this
    generation's physical VMEM (64 MiB/core on v7x, 128 MiB on v5e/v6e)."""
    try:
        cap = int(pltpu.get_tpu_info().vmem_capacity_bytes)
    except Exception:                 # no TPU visible at trace time / interpret
        cap = 64 * 2 ** 20
    want = 6 * int(act_block_bytes) + (16 << 20)
    return int(max(32 << 20, min(int(0.85 * cap), want)))


def basic_block1d(v, s, params, *, i, stride=1, padding=1, downsample=False,
                  batch_tile=None, intermediate_dtype=None):
    """BasicBlock1D forward.  v: (B, N, 2, indim//2), s: (B, N, indim)."""
    # TODO(synk): stride > 1 / padding != 1 (length-changing) variants and
    # N-tiling with conv halos for very long sequences are not implemented.
    assert stride == 1, "only stride=1 is implemented"
    assert padding == 1, "only padding=1 (length-preserving) is implemented"
    B, N, two, cv = v.shape
    assert two == 2
    indim = s.shape[-1]
    assert 2 * cv == indim, "module requires vector channels == indim // 2"

    # HBM dtype for the inter-stage activations; pass jnp.bfloat16 on v6e/v7x to
    # halve HBM traffic (kernel math and BN statistics stay f32).  Keep f32 on
    # v5e (no bf16 VPU/EUP there).
    io_dt = v.dtype if intermediate_dtype is None else intermediate_dtype

    if batch_tile is None:
        batch_tile = max(d for d in range(1, min(B, 8) + 1) if B % d == 0)
    bt = int(batch_tile)
    assert B % bt == 0, "batch_tile must divide the batch size"
    nbt = B // bt

    # Module-interface -> lane-dense kernel layout (N on lanes, C on sublanes).
    # TODO(synk): a multi-block network should keep this layout between blocks
    # and transpose once at network entry/exit instead of per block.
    v_k = jnp.transpose(v, (0, 2, 3, 1)).astype(io_dt)     # (B, 2, Cv, N)
    s_k = jnp.transpose(s, (0, 2, 1)).astype(io_dt)        # (B, Cs, N)

    # Weight pre-packing (free, outside the kernel).
    wv1a, wv1b = _split_pack_conv3(params["wv1"], cv)
    ws1 = _pack_conv3(params["ws1"])
    wv2a, wv2b = _split_pack_conv3(params["wv2"], i)
    ws2 = _pack_conv3(params["ws2"])
    wvda, wvdb = params["wvd"][0, :, :cv], params["wvd"][0, :, cv:]
    wsd = params["wsd"][0]
    wn1, wn2, wnd = params["wn1"], params["wn2"], params["wnd"]
    wd1, wdo = params["wd1"], params["wdo"]

    # Rough per-step activation block bytes (hint only).
    act_block_bytes = bt * N * (2 * cv + indim + 12 * i) * 4
    cparams = pltpu.CompilerParams(
        dimension_semantics=("parallel",),          # megacore sharding on v7x
        vmem_limit_bytes=_vmem_limit(act_block_bytes))

    v1_shape, s1_shape = (B, 2, i, N), (B, 2 * i, N)
    st_shape = (nbt, 2, 3 * i)

    # ---------------- stage 1: conv1 -> nl1 (+ downsample branch), stats ----
    s1_ins = [v_k, s_k, wv1a, wv1b, ws1, wn1]
    if downsample:
        s1_ins += [wvda, wvdb, wsd, wnd]
    s1_in_specs = ([_act_spec(v_k.shape, bt), _act_spec(s_k.shape, bt)]
                   + [_const_spec(w) for w in s1_ins[2:]])
    s1_out_shape = [jax.ShapeDtypeStruct(v1_shape, io_dt),
                    jax.ShapeDtypeStruct(s1_shape, io_dt),
                    jax.ShapeDtypeStruct(st_shape, jnp.float32)]
    s1_out_specs = [_act_spec(v1_shape, bt), _act_spec(s1_shape, bt), _st_spec(i)]
    if downsample:
        s1_out_shape += [jax.ShapeDtypeStruct(v1_shape, io_dt),
                         jax.ShapeDtypeStruct(s1_shape, io_dt),
                         jax.ShapeDtypeStruct(st_shape, jnp.float32)]
        s1_out_specs += [_act_spec(v1_shape, bt), _act_spec(s1_shape, bt), _st_spec(i)]

    r1 = pl.pallas_call(
        functools.partial(_stage1_kernel, i=i, downsample=downsample),
        grid=(nbt,),
        in_specs=s1_in_specs,
        out_specs=s1_out_specs,
        out_shape=s1_out_shape,
        compiler_params=cparams,
    )(*s1_ins)
    if downsample:
        v1, sc1, st1, rv, rs, std = r1
    else:
        v1, sc1, st1 = r1

    count = float(B * N)
    bn1v, bn1s = _bn_pair(st1, i, count)
    if downsample:
        bndv, bnds = _bn_pair(std, i, count)

    # ---------------- stage 2: apply bn1, vr1/relu, conv2 -> nl2, stats -----
    s2_ins = [v1, sc1, bn1v, bn1s, wd1, wv2a, wv2b, ws2, wn2]
    s2_in_specs = ([_act_spec(v1_shape, bt), _act_spec(s1_shape, bt)]
                   + [_const_spec(a) for a in s2_ins[2:]])
    v2h, s2h, st2 = pl.pallas_call(
        functools.partial(_stage2_kernel, i=i),
        grid=(nbt,),
        in_specs=s2_in_specs,
        out_specs=[_act_spec(v1_shape, bt), _act_spec(s1_shape, bt), _st_spec(i)],
        out_shape=[jax.ShapeDtypeStruct(v1_shape, io_dt),
                   jax.ShapeDtypeStruct(s1_shape, io_dt),
                   jax.ShapeDtypeStruct(st_shape, jnp.float32)],
        compiler_params=cparams,
    )(*s2_ins)
    bn2v, bn2s = _bn_pair(st2, i, count)

    # ---------------- stage 3: apply bn2 (+ residual), output activations ---
    s3_ins = [v2h, s2h] + ([rv, rs] if downsample else []) + [bn2v, bn2s] \
             + ([bndv, bnds] if downsample else []) + [wdo]
    n_act = 4 if downsample else 2
    s3_in_specs = ([_act_spec(v1_shape, bt), _act_spec(s1_shape, bt)]
                   + ([_act_spec(v1_shape, bt), _act_spec(s1_shape, bt)] if downsample else [])
                   + [_const_spec(a) for a in s3_ins[n_act:]])
    v_out_k, s_out_k = pl.pallas_call(
        functools.partial(_stage3_kernel, downsample=downsample),
        grid=(nbt,),
        in_specs=s3_in_specs,
        out_specs=[_act_spec(v1_shape, bt), _act_spec(s1_shape, bt)],
        out_shape=[jax.ShapeDtypeStruct(v1_shape, v.dtype),
                   jax.ShapeDtypeStruct(s1_shape, s.dtype)],
        compiler_params=cparams,
    )(*s3_ins)

    # Back to the module's (B, N, 2, i) / (B, N, 2*i) interface.
    return jnp.transpose(v_out_k, (0, 3, 1, 2)), jnp.transpose(s_out_k, (0, 2, 1))


def init_params(key, indim, i):
    """Deterministic synthetic weights, shapes implied by BasicBlock1D.__init__."""
    ks = jax.random.split(key, 11)

    def w(k, shape, scale=0.2):
        return scale * jax.random.normal(k, shape, dtype=jnp.float32)

    return {
        "wv1": w(ks[0], (3, i, indim)),          # conv1.conv_layer_vec
        "ws1": w(ks[1], (3, 2 * i, indim)),      # conv1.conv_layer_sca
        "wn1": w(ks[2], (3 * i, 3 * i)),         # nl1.linear
        "wd1": w(ks[3], (i, i)),                 # vr1.map_to_dir
        "wv2": w(ks[4], (3, i, 2 * i)),          # conv2.conv_layer_vec
        "ws2": w(ks[5], (3, 2 * i, 2 * i)),      # conv2.conv_layer_sca
        "wn2": w(ks[6], (3 * i, 3 * i)),         # nl2.linear
        "wdo": w(ks[7], (i, i)),                 # vrelu_o.map_to_dir
        "wvd": w(ks[8], (1, i, indim)),          # dconv1.conv_layer_vec
        "wsd": w(ks[9], (1, 2 * i, indim)),      # dconv1.conv_layer_sca
        "wnd": w(ks[10], (3 * i, 3 * i)),        # d_nl1.linear
    }


# ---------------------------------------------------------------------------
# Pure-JAX reference (mirrors the PyTorch module, training-mode BN) used for a
# lightweight self-check in the demo.
# ---------------------------------------------------------------------------
def _ref_orth(v):
    return jnp.concatenate([-v[..., 1:2, :], v[..., 0:1, :]], axis=-2)


def _ref_conv_seq(x, w):
    # x: (B, N, Cin); w: (K, Cout, Cin); replicate padding K//2, stride 1.
    if w.shape[0] == 1:
        return jnp.einsum("bnc,oc->bno", x, w[0])
    n = x.shape[1]
    xp = jnp.concatenate([x[:, :1], x, x[:, -1:]], axis=1)
    return sum(jnp.einsum("bnc,oc->bno", xp[:, j:j + n], w[j]) for j in range(3))


def _ref_convolutional(v, s, wv, ws):
    vin = jnp.concatenate([v, _ref_orth(v)], axis=-1)
    vo = jnp.stack([_ref_conv_seq(vin[:, :, p, :], wv) for p in range(2)], axis=2)
    return vo, _ref_conv_seq(s, ws)


def _ref_nonlinearity(v, s, wn, dim_out):
    nrm = jnp.sqrt(jnp.sum(v * v, axis=-2))
    x = jnp.concatenate([nrm, s], axis=-1) @ wn.T
    mu = jnp.mean(x, axis=-1, keepdims=True)
    var = jnp.mean((x - mu) ** 2, axis=-1, keepdims=True)
    x = (x - mu) / jnp.sqrt(var + _EPS_LN)
    vhat = v / jnp.maximum(nrm, 1e-6)[..., None, :]
    return x[..., :dim_out][..., None, :] * vhat, x[..., dim_out:]


def _ref_vn_bn(v):
    nrm = jnp.maximum(jnp.sqrt(jnp.sum(v * v, axis=-2)), 1e-4)
    mu = jnp.mean(nrm, axis=(0, 1))
    var = jnp.mean((nrm - mu) ** 2, axis=(0, 1))
    bn = (nrm - mu) / jnp.sqrt(var + _EPS_BN)
    return v / nrm[..., None, :] * bn[..., None, :]


def _ref_bn(s):
    mu = jnp.mean(s, axis=(0, 1))
    var = jnp.mean((s - mu) ** 2, axis=(0, 1))
    return (s - mu) / jnp.sqrt(var + _EPS_BN)


def _ref_vn_leaky_relu(v, wd, slope=0.2):
    d = v @ wd.T
    dot = jnp.sum(v * d, axis=-2, keepdims=True)
    dd = jnp.sum(d * d, axis=-2, keepdims=True) + 1e-8
    neg = v - dot / dd * d
    return slope * v + (1.0 - slope) * jnp.where(dot >= 0, v, neg)


def basic_block1d_reference(v, s, params, *, i, downsample):
    v1, s1 = _ref_convolutional(v, s, params["wv1"], params["ws1"])
    v1, s1 = _ref_nonlinearity(v1, s1, params["wn1"], i)
    v1, s1 = _ref_vn_bn(v1), _ref_bn(s1)
    v1, s1 = _ref_vn_leaky_relu(v1, params["wd1"]), jnp.maximum(s1, 0.0)
    v2, s2 = _ref_convolutional(v1, s1, params["wv2"], params["ws2"])
    v2, s2 = _ref_nonlinearity(v2, s2, params["wn2"], i)
    v2, s2 = _ref_vn_bn(v2), _ref_bn(s2)
    if downsample:
        rv, rs = _ref_convolutional(v, s, params["wvd"], params["wsd"])
        rv, rs = _ref_nonlinearity(rv, rs, params["wnd"], i)
        rv, rs = _ref_vn_bn(rv), _ref_bn(rs)
        v2, s2 = v2 + rv, s2 + rs
    return _ref_vn_leaky_relu(v2, params["wdo"]), jnp.maximum(s2, 0.0)


if __name__ == "__main__":
    key = jax.random.PRNGKey(0)
    kv, ks2, kp = jax.random.split(key, 3)

    # Small shapes consistent with the module: vector stream (B, N, 2, indim/2),
    # scalar stream (B, N, indim).  N is a lane multiple; i = 8 keeps channel
    # (sublane) tiles fully packed and exercises both the MXU (Cin >= 16) and
    # VPU contraction paths; batch_tile=1 runs a 2-step pipelined grid.
    B, N, indim, i = 2, 128, 16, 8
    v = jax.random.normal(kv, (B, N, 2, indim // 2), dtype=jnp.float32)
    s = jax.random.normal(ks2, (B, N, indim), dtype=jnp.float32)
    params = init_params(kp, indim, i)

    block = jax.jit(functools.partial(basic_block1d, i=i, stride=1, padding=1,
                                      downsample=True, batch_tile=1))
    v_out, s_out = block(v, s, params)
    jax.block_until_ready((v_out, s_out))
    assert v_out.shape == (B, N, 2, i) and s_out.shape == (B, N, 2 * i)

    # Self-check against the pure-JAX reference of the PyTorch forward.
    v_ref, s_ref = basic_block1d_reference(v, s, params, i=i, downsample=True)
    err_v = float(jnp.max(jnp.abs(v_out - v_ref)))
    err_s = float(jnp.max(jnp.abs(s_out - s_ref)))
    assert err_v < 2e-2 and err_s < 2e-2, (err_v, err_s)

    print("KERNEL_OK")
</pallas_src>

<mosaic_0001>
module attributes {stable_mosaic.version = 11 : i64} {
  func.func @_stage3_kernel(%arg0: i32, %arg1: memref<1x2x8x128xf32, #tpu.memory_space<vmem>>, %arg2: memref<1x16x128xf32, #tpu.memory_space<vmem>>, %arg3: memref<1x2x8x128xf32, #tpu.memory_space<vmem>>, %arg4: memref<1x16x128xf32, #tpu.memory_space<vmem>>, %arg5: memref<2x8x1xf32, #tpu.memory_space<vmem>>, %arg6: memref<2x16x1xf32, #tpu.memory_space<vmem>>, %arg7: memref<2x8x1xf32, #tpu.memory_space<vmem>>, %arg8: memref<2x16x1xf32, #tpu.memory_space<vmem>>, %arg9: memref<8x8xf32, #tpu.memory_space<vmem>>, %arg10: memref<1x2x8x128xf32, #tpu.memory_space<vmem>>, %arg11: memref<1x16x128xf32, #tpu.memory_space<vmem>>) attributes {dimension_semantics = [#tpu.dimension_semantics<parallel>], iteration_bounds = array<i64: 2>, scalar_prefetch = 0 : i64, scratch_operands = 0 : i64, tpu.core_type = #tpu.core_type<tc>, window_params = [{transform_indices = @transform_0, window_bounds = array<i64: 1, 2, 8, 128>}, {transform_indices = @transform_1, window_bounds = array<i64: 1, 16, 128>}, {transform_indices = @transform_2, window_bounds = array<i64: 1, 2, 8, 128>}, {transform_indices = @transform_3, window_bounds = array<i64: 1, 16, 128>}, {pipeline_mode = #tpu.pipeline_mode<synchronous>, transform_indices = @transform_4, window_bounds = array<i64: 2, 8, 1>}, {pipeline_mode = #tpu.pipeline_mode<synchronous>, transform_indices = @transform_5, window_bounds = array<i64: 2, 16, 1>}, {pipeline_mode = #tpu.pipeline_mode<synchronous>, transform_indices = @transform_6, window_bounds = array<i64: 2, 8, 1>}, {pipeline_mode = #tpu.pipeline_mode<synchronous>, transform_indices = @transform_7, window_bounds = array<i64: 2, 16, 1>}, {pipeline_mode = #tpu.pipeline_mode<synchronous>, transform_indices = @transform_8, window_bounds = array<i64: 8, 8>}, {transform_indices = @transform_9, window_bounds = array<i64: 1, 2, 8, 128>}, {transform_indices = @transform_10, window_bounds = array<i64: 1, 16, 128>}]} {
    %c0 = arith.constant 0 : index
    %c0_0 = arith.constant 0 : index
    %c0_1 = arith.constant 0 : index
    %c0_2 = arith.constant 0 : index
    %0 = vector.load %arg1[%c0, %c0_0, %c0_1, %c0_2] : memref<1x2x8x128xf32, #tpu.memory_space<vmem>>, vector<1x2x8x128xf32>
    %c0_3 = arith.constant 0 : index
    %c0_4 = arith.constant 0 : index
    %c0_5 = arith.constant 0 : index
    %1 = vector.load %arg5[%c0_3, %c0_4, %c0_5] : memref<2x8x1xf32, #tpu.memory_space<vmem>>, vector<2x8x1xf32>
    %2 = vector.extract_strided_slice %0 {offsets = [0, 0, 0, 0], sizes = [1, 1, 8, 128], strides = [1, 1, 1, 1]} : vector<1x2x8x128xf32> to vector<1x1x8x128xf32>
    %3 = vector.shape_cast %2 : vector<1x1x8x128xf32> to vector<1x8x128xf32>
    %4 = vector.extract_strided_slice %0 {offsets = [0, 0, 0, 0], sizes = [1, 1, 8, 128], strides = [1, 1, 1, 1]} : vector<1x2x8x128xf32> to vector<1x1x8x128xf32>
    %5 = vector.shape_cast %4 : vector<1x1x8x128xf32> to vector<1x8x128xf32>
    %6 = arith.mulf %3, %5 : vector<1x8x128xf32>
    %7 = vector.extract_strided_slice %0 {offsets = [0, 1, 0, 0], sizes = [1, 1, 8, 128], strides = [1, 1, 1, 1]} : vector<1x2x8x128xf32> to vector<1x1x8x128xf32>
    %8 = vector.shape_cast %7 : vector<1x1x8x128xf32> to vector<1x8x128xf32>
    %9 = vector.extract_strided_slice %0 {offsets = [0, 1, 0, 0], sizes = [1, 1, 8, 128], strides = [1, 1, 1, 1]} : vector<1x2x8x128xf32> to vector<1x1x8x128xf32>
    %10 = vector.shape_cast %9 : vector<1x1x8x128xf32> to vector<1x8x128xf32>
    %11 = arith.mulf %8, %10 : vector<1x8x128xf32>
    %12 = arith.addf %6, %11 : vector<1x8x128xf32>
    %cst = arith.constant 9.99999993E-9 : f32
    %13 = vector.broadcast %cst : f32 to vector<1x8x128xf32>
    %14 = arith.maximumf %12, %13 : vector<1x8x128xf32>
    %15 = math.rsqrt %14 : vector<1x8x128xf32>
    %16 = arith.mulf %12, %15 : vector<1x8x128xf32>
    %cst_6 = arith.constant 9.99999974E-5 : f32
    %17 = vector.broadcast %cst_6 : f32 to vector<1x8x128xf32>
    %18 = arith.maximumf %16, %17 : vector<1x8x128xf32>
    %19 = vector.extract_strided_slice %1 {offsets = [0, 0, 0], sizes = [1, 8, 1], strides = [1, 1, 1]} : vector<2x8x1xf32> to vector<1x8x1xf32>
    %20 = vector.shape_cast %19 : vector<1x8x1xf32> to vector<8x1xf32>
    %21 = vector.shape_cast %20 : vector<8x1xf32> to vector<1x8x1xf32>
    %22 = vector.broadcast %21 : vector<1x8x1xf32> to vector<1x8x128xf32>
    %23 = arith.subf %18, %22 : vector<1x8x128xf32>
    %24 = vector.extract_strided_slice %1 {offsets = [1, 0, 0], sizes = [1, 8, 1], strides = [1, 1, 1]} : vector<2x8x1xf32> to vector<1x8x1xf32>
    %25 = vector.shape_cast %24 : vector<1x8x1xf32> to vector<8x1xf32>
    %26 = vector.shape_cast %25 : vector<8x1xf32> to vector<1x8x1xf32>
    %27 = vector.broadcast %26 : vector<1x8x1xf32> to vector<1x8x128xf32>
    %28 = arith.mulf %23, %27 : vector<1x8x128xf32>
    %29 = arith.mulf %28, %15 : vector<1x8x128xf32>
    %30 = vector.shape_cast %29 : vector<1x8x128xf32> to vector<1x1x8x128xf32>
    %31 = vector.broadcast %30 : vector<1x1x8x128xf32> to vector<1x2x8x128xf32>
    %32 = arith.mulf %0, %31 : vector<1x2x8x128xf32>
    %c0_7 = arith.constant 0 : index
    %c0_8 = arith.constant 0 : index
    %c0_9 = arith.constant 0 : index
    %33 = vector.load %arg2[%c0_7, %c0_8, %c0_9] : memref<1x16x128xf32, #tpu.memory_space<vmem>>, vector<1x16x128xf32>
    %c0_10 = arith.constant 0 : index
    %c0_11 = arith.constant 0 : index
    %c0_12 = arith.constant 0 : index
    %34 = vector.load %arg6[%c0_10, %c0_11, %c0_12] : memref<2x16x1xf32, #tpu.memory_space<vmem>>, vector<2x16x1xf32>
    %35 = vector.extract_strided_slice %34 {offsets = [0, 0, 0], sizes = [1, 16, 1], strides = [1, 1, 1]} : vector<2x16x1xf32> to vector<1x16x1xf32>
    %36 = vector.shape_cast %35 : vector<1x16x1xf32> to vector<16x1xf32>
    %37 = vector.shape_cast %36 : vector<16x1xf32> to vector<1x16x1xf32>
    %38 = vector.broadcast %37 : vector<1x16x1xf32> to vector<1x16x128xf32>
    %39 = arith.subf %33, %38 : vector<1x16x128xf32>
    %40 = vector.extract_strided_slice %34 {offsets = [1, 0, 0], sizes = [1, 16, 1], strides = [1, 1, 1]} : vector<2x16x1xf32> to vector<1x16x1xf32>
    %41 = vector.shape_cast %40 : vector<1x16x1xf32> to vector<16x1xf32>
    %42 = vector.shape_cast %41 : vector<16x1xf32> to vector<1x16x1xf32>
    %43 = vector.broadcast %42 : vector<1x16x1xf32> to vector<1x16x128xf32>
    %44 = arith.mulf %39, %43 : vector<1x16x128xf32>
    %c0_13 = arith.constant 0 : index
    %c0_14 = arith.constant 0 : index
    %c0_15 = arith.constant 0 : index
    %c0_16 = arith.constant 0 : index
    %45 = vector.load %arg3[%c0_13, %c0_14, %c0_15, %c0_16] : memref<1x2x8x128xf32, #tpu.memory_space<vmem>>, vector<1x2x8x128xf32>
    %c0_17 = arith.constant 0 : index
    %c0_18 = arith.constant 0 : index
    %c0_19 = arith.constant 0 : index
    %46 = vector.load %arg7[%c0_17, %c0_18, %c0_19] : memref<2x8x1xf32, #tpu.memory_space<vmem>>, vector<2x8x1xf32>
    %47 = vector.extract_strided_slice %45 {offsets = [0, 0, 0, 0], sizes = [1, 1, 8, 128], strides = [1, 1, 1, 1]} : vector<1x2x8x128xf32> to vector<1x1x8x128xf32>
    %48 = vector.shape_cast %47 : vector<1x1x8x128xf32> to vector<1x8x128xf32>
    %49 = vector.extract_strided_slice %45 {offsets = [0, 0, 0, 0], sizes = [1, 1, 8, 128], strides = [1, 1, 1, 1]} : vector<1x2x8x128xf32> to vector<1x1x8x128xf32>
    %50 = vector.shape_cast %49 : vector<1x1x8x128xf32> to vector<1x8x128xf32>
    %51 = arith.mulf %48, %50 : vector<1x8x128xf32>
    %52 = vector.extract_strided_slice %45 {offsets = [0, 1, 0, 0], sizes = [1, 1, 8, 128], strides = [1, 1, 1, 1]} : vector<1x2x8x128xf32> to vector<1x1x8x128xf32>
    %53 = vector.shape_cast %52 : vector<1x1x8x128xf32> to vector<1x8x128xf32>
    %54 = vector.extract_strided_slice %45 {offsets = [0, 1, 0, 0], sizes = [1, 1, 8, 128], strides = [1, 1, 1, 1]} : vector<1x2x8x128xf32> to vector<1x1x8x128xf32>
    %55 = vector.shape_cast %54 : vector<1x1x8x128xf32> to vector<1x8x128xf32>
    %56 = arith.mulf %53, %55 : vector<1x8x128xf32>
    %57 = arith.addf %51, %56 : vector<1x8x128xf32>
    %cst_20 = arith.constant 9.99999993E-9 : f32
    %58 = vector.broadcast %cst_20 : f32 to vector<1x8x128xf32>
    %59 = arith.maximumf %57, %58 : vector<1x8x128xf32>
    %60 = math.rsqrt %59 : vector<1x8x128xf32>
    %61 = arith.mulf %57, %60 : vector<1x8x128xf32>
    %cst_21 = arith.constant 9.99999974E-5 : f32
    %62 = vector.broadcast %cst_21 : f32 to vector<1x8x128xf32>
    %63 = arith.maximumf %61, %62 : vector<1x8x128xf32>
    %64 = vector.extract_strided_slice %46 {offsets = [0, 0, 0], sizes = [1, 8, 1], strides = [1, 1, 1]} : vector<2x8x1xf32> to vector<1x8x1xf32>
    %65 = vector.shape_cast %64 : vector<1x8x1xf32> to vector<8x1xf32>
    %66 = vector.shape_cast %65 : vector<8x1xf32> to vector<1x8x1xf32>
    %67 = vector.broadcast %66 : vector<1x8x1xf32> to vector<1x8x128xf32>
    %68 = arith.subf %63, %67 : vector<1x8x128xf32>
    %69 = vector.extract_strided_slice %46 {offsets = [1, 0, 0], sizes = [1, 8, 1], strides = [1, 1, 1]} : vector<2x8x1xf32> to vector<1x8x1xf32>
    %70 = vector.shape_cast %69 : vector<1x8x1xf32> to vector<8x1xf32>
    %71 = vector.shape_cast %70 : vector<8x1xf32> to vector<1x8x1xf32>
    %72 = vector.broadcast %71 : vector<1x8x1xf32> to vector<1x8x128xf32>
    %73 = arith.mulf %68, %72 : vector<1x8x128xf32>
    %74 = arith.mulf %73, %60 : vector<1x8x128xf32>
    %75 = vector.shape_cast %74 : vector<1x8x128xf32> to vector<1x1x8x128xf32>
    %76 = vector.broadcast %75 : vector<1x1x8x128xf32> to vector<1x2x8x128xf32>
    %77 = arith.mulf %45, %76 : vector<1x2x8x128xf32>
    %78 = arith.addf %32, %77 : vector<1x2x8x128xf32>
    %c0_22 = arith.constant 0 : index
    %c0_23 = arith.constant 0 : index
    %c0_24 = arith.constant 0 : index
    %79 = vector.load %arg4[%c0_22, %c0_23, %c0_24] : memref<1x16x128xf32, #tpu.memory_space<vmem>>, vector<1x16x128xf32>
    %c0_25 = arith.constant 0 : index
    %c0_26 = arith.constant 0 : index
    %c0_27 = arith.constant 0 : index
    %80 = vector.load %arg8[%c0_25, %c0_26, %c0_27] : memref<2x16x1xf32, #tpu.memory_space<vmem>>, vector<2x16x1xf32>
    %81 = vector.extract_strided_slice %80 {offsets = [0, 0, 0], sizes = [1, 16, 1], strides = [1, 1, 1]} : vector<2x16x1xf32> to vector<1x16x1xf32>
    %82 = vector.shape_cast %81 : vector<1x16x1xf32> to vector<16x1xf32>
    %83 = vector.shape_cast %82 : vector<16x1xf32> to vector<1x16x1xf32>
    %84 = vector.broadcast %83 : vector<1x16x1xf32> to vector<1x16x128xf32>
    %85 = arith.subf %79, %84 : vector<1x16x128xf32>
    %86 = vector.extract_strided_slice %80 {offsets = [1, 0, 0], sizes = [1, 16, 1], strides = [1, 1, 1]} : vector<2x16x1xf32> to vector<1x16x1xf32>
    %87 = vector.shape_cast %86 : vector<1x16x1xf32> to vector<16x1xf32>
    %88 = vector.shape_cast %87 : vector<16x1xf32> to vector<1x16x1xf32>
    %89 = vector.broadcast %88 : vector<1x16x1xf32> to vector<1x16x128xf32>
    %90 = arith.mulf %85, %89 : vector<1x16x128xf32>
    %91 = arith.addf %44, %90 : vector<1x16x128xf32>
    %c0_28 = arith.constant 0 : index
    %c0_29 = arith.constant 0 : index
    %92 = vector.load %arg9[%c0_28, %c0_29] : memref<8x8xf32, #tpu.memory_space<vmem>>, vector<8x8xf32>
    %93 = vector.extract_strided_slice %78 {offsets = [0, 0, 0, 0], sizes = [1, 2, 1, 128], strides = [1, 1, 1, 1]} : vector<1x2x8x128xf32> to vector<1x2x1x128xf32>
    %94 = vector.extract_strided_slice %92 {offsets = [0, 0], sizes = [8, 1], strides = [1, 1]} : vector<8x8xf32> to vector<8x1xf32>
    %95 = vector.shape_cast %94 : vector<8x1xf32> to vector<1x1x8x1xf32>
    %96 = vector.broadcast %93 : vector<1x2x1x128xf32> to vector<1x2x8x128xf32>
    %97 = vector.broadcast %95 : vector<1x1x8x1xf32> to vector<1x2x8x128xf32>
    %98 = arith.mulf %96, %97 : vector<1x2x8x128xf32>
    %99 = vector.extract_strided_slice %78 {offsets = [0, 0, 1, 0], sizes = [1, 2, 1, 128], strides = [1, 1, 1, 1]} : vector<1x2x8x128xf32> to vector<1x2x1x128xf32>
    %100 = vector.extract_strided_slice %92 {offsets = [0, 1], sizes = [8, 1], strides = [1, 1]} : vector<8x8xf32> to vector<8x1xf32>
    %101 = vector.shape_cast %100 : vector<8x1xf32> to vector<1x1x8x1xf32>
    %102 = vector.broadcast %99 : vector<1x2x1x128xf32> to vector<1x2x8x128xf32>
    %103 = vector.broadcast %101 : vector<1x1x8x1xf32> to vector<1x2x8x128xf32>
    %104 = arith.mulf %102, %103 : vector<1x2x8x128xf32>
    %105 = vector.extract_strided_slice %78 {offsets = [0, 0, 2, 0], sizes = [1, 2, 1, 128], strides = [1, 1, 1, 1]} : vector<1x2x8x128xf32> to vector<1x2x1x128xf32>
    %106 = vector.extract_strided_slice %92 {offsets = [0, 2], sizes = [8, 1], strides = [1, 1]} : vector<8x8xf32> to vector<8x1xf32>
    %107 = vector.shape_cast %106 : vector<8x1xf32> to vector<1x1x8x1xf32>
    %108 = vector.broadcast %105 : vector<1x2x1x128xf32> to vector<1x2x8x128xf32>
    %109 = vector.broadcast %107 : vector<1x1x8x1xf32> to vector<1x2x8x128xf32>
    %110 = arith.mulf %108, %109 : vector<1x2x8x128xf32>
    %111 = vector.extract_strided_slice %78 {offsets = [0, 0, 3, 0], sizes = [1, 2, 1, 128], strides = [1, 1, 1, 1]} : vector<1x2x8x128xf32> to vector<1x2x1x128xf32>
    %112 = vector.extract_strided_slice %92 {offsets = [0, 3], sizes = [8, 1], strides = [1, 1]} : vector<8x8xf32> to vector<8x1xf32>
    %113 = vector.shape_cast %112 : vector<8x1xf32> to vector<1x1x8x1xf32>
    %114 = vector.broadcast %111 : vector<1x2x1x128xf32> to vector<1x2x8x128xf32>
    %115 = vector.broadcast %113 : vector<1x1x8x1xf32> to vector<1x2x8x128xf32>
    %116 = arith.mulf %114, %115 : vector<1x2x8x128xf32>
    %117 = vector.extract_strided_slice %78 {offsets = [0, 0, 4, 0], sizes = [1, 2, 1, 128], strides = [1, 1, 1, 1]} : vector<1x2x8x128xf32> to vector<1x2x1x128xf32>
    %118 = vector.extract_strided_slice %92 {offsets = [0, 4], sizes = [8, 1], strides = [1, 1]} : vector<8x8xf32> to vector<8x1xf32>
    %119 = vector.shape_cast %118 : vector<8x1xf32> to vector<1x1x8x1xf32>
    %120 = vector.broadcast %117 : vector<1x2x1x128xf32> to vector<1x2x8x128xf32>
    %121 = vector.broadcast %119 : vector<1x1x8x1xf32> to vector<1x2x8x128xf32>
    %122 = arith.mulf %120, %121 : vector<1x2x8x128xf32>
    %123 = arith.addf %98, %122 : vector<1x2x8x128xf32>
    %124 = vector.extract_strided_slice %78 {offsets = [0, 0, 5, 0], sizes = [1, 2, 1, 128], strides = [1, 1, 1, 1]} : vector<1x2x8x128xf32> to vector<1x2x1x128xf32>
    %125 = vector.extract_strided_slice %92 {offsets = [0, 5], sizes = [8, 1], strides = [1, 1]} : vector<8x8xf32> to vector<8x1xf32>
    %126 = vector.shape_cast %125 : vector<8x1xf32> to vector<1x1x8x1xf32>
    %127 = vector.broadcast %124 : vector<1x2x1x128xf32> to vector<1x2x8x128xf32>
    %128 = vector.broadcast %126 : vector<1x1x8x1xf32> to vector<1x2x8x128xf32>
    %129 = arith.mulf %127, %128 : vector<1x2x8x128xf32>
    %130 = arith.addf %104, %129 : vector<1x2x8x128xf32>
    %131 = vector.extract_strided_slice %78 {offsets = [0, 0, 6, 0], sizes = [1, 2, 1, 128], strides = [1, 1, 1, 1]} : vector<1x2x8x128xf32> to vector<1x2x1x128xf32>
    %132 = vector.extract_strided_slice %92 {offsets = [0, 6], sizes = [8, 1], strides = [1, 1]} : vector<8x8xf32> to vector<8x1xf32>
    %133 = vector.shape_cast %132 : vector<8x1xf32> to vector<1x1x8x1xf32>
    %134 = vector.broadcast %131 : vector<1x2x1x128xf32> to vector<1x2x8x128xf32>
    %135 = vector.broadcast %133 : vector<1x1x8x1xf32> to vector<1x2x8x128xf32>
    %136 = arith.mulf %134, %135 : vector<1x2x8x128xf32>
    %137 = arith.addf %110, %136 : vector<1x2x8x128xf32>
    %138 = vector.extract_strided_slice %78 {offsets = [0, 0, 7, 0], sizes = [1, 2, 1, 128], strides = [1, 1, 1, 1]} : vector<1x2x8x128xf32> to vector<1x2x1x128xf32>
    %139 = vector.extract_strided_slice %92 {offsets = [0, 7], sizes = [8, 1], strides = [1, 1]} : vector<8x8xf32> to vector<8x1xf32>
    %140 = vector.shape_cast %139 : vector<8x1xf32> to vector<1x1x8x1xf32>
    %141 = vector.broadcast %138 : vector<1x2x1x128xf32> to vector<1x2x8x128xf32>
    %142 = vector.broadcast %140 : vector<1x1x8x1xf32> to vector<1x2x8x128xf32>
    %143 = arith.mulf %141, %142 : vector<1x2x8x128xf32>
    %144 = arith.addf %116, %143 : vector<1x2x8x128xf32>
    %145 = arith.addf %123, %130 : vector<1x2x8x128xf32>
    %146 = arith.addf %137, %144 : vector<1x2x8x128xf32>
    %147 = arith.addf %145, %146 : vector<1x2x8x128xf32>
    %148 = arith.mulf %78, %147 : vector<1x2x8x128xf32>
    %cst_30 = arith.constant dense<0.000000e+00> : vector<1x8x128xf32>
    %149 = vector.multi_reduction <add>, %148, %cst_30 [1] : vector<1x2x8x128xf32> to vector<1x8x128xf32>
    %150 = vector.shape_cast %149 : vector<1x8x128xf32> to vector<1x1x8x128xf32>
    %151 = arith.mulf %147, %147 : vector<1x2x8x128xf32>
    %cst_31 = arith.constant dense<0.000000e+00> : vector<1x8x128xf32>
    %152 = vector.multi_reduction <add>, %151, %cst_31 [1] : vector<1x2x8x128xf32> to vector<1x8x128xf32>
    %153 = vector.shape_cast %152 : vector<1x8x128xf32> to vector<1x1x8x128xf32>
    %cst_32 = arith.constant 9.99999993E-9 : f32
    %154 = vector.broadcast %cst_32 : f32 to vector<1x1x8x128xf32>
    %155 = arith.addf %153, %154 : vector<1x1x8x128xf32>
    %156 = arith.divf %150, %155 : vector<1x1x8x128xf32>
    %157 = vector.broadcast %156 : vector<1x1x8x128xf32> to vector<1x2x8x128xf32>
    %158 = arith.mulf %157, %147 : vector<1x2x8x128xf32>
    %159 = arith.subf %78, %158 : vector<1x2x8x128xf32>
    %cst_33 = arith.constant 2.000000e-01 : f32
    %160 = vector.broadcast %cst_33 : f32 to vector<1x2x8x128xf32>
    %161 = arith.mulf %160, %78 : vector<1x2x8x128xf32>
    %cst_34 = arith.constant 0.000000e+00 : f32
    %162 = vector.broadcast %cst_34 : f32 to vector<1x1x8x128xf32>
    %163 = arith.cmpf oge, %150, %162 : vector<1x1x8x128xf32>
    %164 = vector.shape_cast %163 : vector<1x1x8x128xi1> to vector<1x1x8x128xi1>
    %165 = vector.broadcast %164 : vector<1x1x8x128xi1> to vector<1x2x8x128xi1>
    %166 = arith.select %165, %78, %159 : vector<1x2x8x128xi1>, vector<1x2x8x128xf32>
    %cst_35 = arith.constant 8.000000e-01 : f32
    %167 = vector.broadcast %cst_35 : f32 to vector<1x2x8x128xf32>
    %168 = arith.mulf %167, %166 : vector<1x2x8x128xf32>
    %169 = arith.addf %161, %168 : vector<1x2x8x128xf32>
    %c0_36 = arith.constant 0 : index
    %c0_37 = arith.constant 0 : index
    %c0_38 = arith.constant 0 : index
    %c0_39 = arith.constant 0 : index
    %170 = vector.load %arg10[%c0_36, %c0_37, %c0_38, %c0_39] : memref<1x2x8x128xf32, #tpu.memory_space<vmem>>, vector<1x2x8x128xf32>
    tpu.vector_store %arg10[%c0_36, %c0_37, %c0_38, %c0_39], %169 {strides = array<i32>} : memref<1x2x8x128xf32, #tpu.memory_space<vmem>>, vector<1x2x8x128xf32>,
    %cst_40 = arith.constant 0.000000e+00 : f32
    %171 = vector.broadcast %cst_40 : f32 to vector<1x16x128xf32>
    %172 = arith.maximumf %91, %171 : vector<1x16x128xf32>
    %c0_41 = arith.constant 0 : index
    %c0_42 = arith.constant 0 : index
    %c0_43 = arith.constant 0 : index
    %173 = vector.load %arg11[%c0_41, %c0_42, %c0_43] : memref<1x16x128xf32, #tpu.memory_space<vmem>>, vector<1x16x128xf32>
    tpu.vector_store %arg11[%c0_41, %c0_42, %c0_43], %172 {strides = array<i32>} : memref<1x16x128xf32, #tpu.memory_space<vmem>>, vector<1x16x128xf32>,
    return
  }
  func.func @transform_0(%arg0: i32) -> (i32, i32, i32, i32) {
    %c0_i32 = arith.constant 0 : i32
    %c0_i32_0 = arith.constant 0 : i32
    %c0_i32_1 = arith.constant 0 : i32
    %c0_i32_2 = arith.constant 0 : i32
    return %arg0, %c0_i32, %c0_i32_0, %c0_i32_1 : i32, i32, i32, i32
  }
  func.func @transform_1(%arg0: i32) -> (i32, i32, i32) {
    %c0_i32 = arith.constant 0 : i32
    %c0_i32_0 = arith.constant 0 : i32
    %c0_i32_1 = arith.constant 0 : i32
    return %arg0, %c0_i32, %c0_i32_0 : i32, i32, i32
  }
  func.func @transform_2(%arg0: i32) -> (i32, i32, i32, i32) {
    %c0_i32 = arith.constant 0 : i32
    %c0_i32_0 = arith.constant 0 : i32
    %c0_i32_1 = arith.constant 0 : i32
    %c0_i32_2 = arith.constant 0 : i32
    return %arg0, %c0_i32, %c0_i32_0, %c0_i32_1 : i32, i32, i32, i32
  }
  func.func @transform_3(%arg0: i32) -> (i32, i32, i32) {
    %c0_i32 = arith.constant 0 : i32
    %c0_i32_0 = arith.constant 0 : i32
    %c0_i32_1 = arith.constant 0 : i32
    return %arg0, %c0_i32, %c0_i32_0 : i32, i32, i32
  }
  func.func @transform_4(%arg0: i32) -> (i32, i32, i32) {
    %c0_i32 = arith.constant 0 : i32
    %c0_i32_0 = arith.constant 0 : i32
    %c0_i32_1 = arith.constant 0 : i32
    %c0_i32_2 = arith.constant 0 : i32
    return %c0_i32, %c0_i32_0, %c0_i32_1 : i32, i32, i32
  }
  func.func @transform_5(%arg0: i32) -> (i32, i32, i32) {
    %c0_i32 = arith.constant 0 : i32
    %c0_i32_0 = arith.constant 0 : i32
    %c0_i32_1 = arith.constant 0 : i32
    %c0_i32_2 = arith.constant 0 : i32
    return %c0_i32, %c0_i32_0, %c0_i32_1 : i32, i32, i32
  }
  func.func @transform_6(%arg0: i32) -> (i32, i32, i32) {
    %c0_i32 = arith.constant 0 : i32
    %c0_i32_0 = arith.constant 0 : i32
    %c0_i32_1 = arith.constant 0 : i32
    %c0_i32_2 = arith.constant 0 : i32
    return %c0_i32, %c0_i32_0, %c0_i32_1 : i32, i32, i32
  }
  func.func @transform_7(%arg0: i32) -> (i32, i32, i32) {
    %c0_i32 = arith.constant 0 : i32
    %c0_i32_0 = arith.constant 0 : i32
    %c0_i32_1 = arith.constant 0 : i32
    %c0_i32_2 = arith.constant 0 : i32
    return %c0_i32, %c0_i32_0, %c0_i32_1 : i32, i32, i32
  }
  func.func @transform_8(%arg0: i32) -> (i32, i32) {
    %c0_i32 = arith.constant 0 : i32
    %c0_i32_0 = arith.constant 0 : i32
    %c0_i32_1 = arith.constant 0 : i32
    return %c0_i32, %c0_i32_0 : i32, i32
  }
  func.func @transform_9(%arg0: i32) -> (i32, i32, i32, i32) {
    %c0_i32 = arith.constant 0 : i32
    %c0_i32_0 = arith.constant 0 : i32
    %c0_i32_1 = arith.constant 0 : i32
    %c0_i32_2 = arith.constant 0 : i32
    return %arg0, %c0_i32, %c0_i32_0, %c0_i32_1 : i32, i32, i32, i32
  }
  func.func @transform_10(%arg0: i32) -> (i32, i32, i32) {
    %c0_i32 = arith.constant 0 : i32
    %c0_i32_0 = arith.constant 0 : i32
    %c0_i32_1 = arith.constant 0 : i32
    return %arg0, %c0_i32, %c0_i32_0 : i32, i32, i32
  }
}

module attributes {stable_mosaic.version = 11 : i64} {
  func.func @_stage1_kernel(%arg0: i32, %arg1: memref<1x2x8x128xf32, #tpu.memory_space<vmem>>, %arg2: memref<1x16x128xf32, #tpu.memory_space<vmem>>, %arg3: memref<3x8x8xf32, #tpu.memory_space<vmem>>, %arg4: memref<3x8x8xf32, #tpu.memory_space<vmem>>, %arg5: memref<16x48xf32, #tpu.memory_space<vmem>>, %arg6: memref<24x24xf32, #tpu.memory_space<vmem>>, %arg7: memref<8x8xf32, #tpu.memory_space<vmem>>, %arg8: memref<8x8xf32, #tpu.memory_space<vmem>>, %arg9: memref<16x16xf32, #tpu.memory_space<vmem>>, %arg10: memref<24x24xf32, #tpu.memory_space<vmem>>, %arg11: memref<1x2x8x128xf32, #tpu.memory_space<vmem>>, %arg12: memref<1x16x128xf32, #tpu.memory_space<vmem>>, %arg13: memref<1x2x24xf32, #tpu.memory_space<vmem>>, %arg14: memref<1x2x8x128xf32, #tpu.memory_space<vmem>>, %arg15: memref<1x16x128xf32, #tpu.memory_space<vmem>>, %arg16: memref<1x2x24xf32, #tpu.memory_space<vmem>>) attributes {dimension_semantics = [#tpu.dimension_semantics<parallel>], iteration_bounds = array<i64: 2>, scalar_prefetch = 0 : i64, scratch_operands = 0 : i64, tpu.core_type = #tpu.core_type<tc>, window_params = [{transform_indices = @transform_0, window_bounds = array<i64: 1, 2, 8, 128>}, {transform_indices = @transform_1, window_bounds = array<i64: 1, 16, 128>}, {pipeline_mode = #tpu.pipeline_mode<synchronous>, transform_indices = @transform_2, window_bounds = array<i64: 3, 8, 8>}, {pipeline_mode = #tpu.pipeline_mode<synchronous>, transform_indices = @transform_3, window_bounds = array<i64: 3, 8, 8>}, {pipeline_mode = #tpu.pipeline_mode<synchronous>, transform_indices = @transform_4, window_bounds = array<i64: 16, 48>}, {pipeline_mode = #tpu.pipeline_mode<synchronous>, transform_indices = @transform_5, window_bounds = array<i64: 24, 24>}, {pipeline_mode = #tpu.pipeline_mode<synchronous>, transform_indices = @transform_6, window_bounds = array<i64: 8, 8>}, {pipeline_mode = #tpu.pipeline_mode<synchronous>, transform_indices = @transform_7, window_bounds = array<i64: 8, 8>}, {pipeline_mode = #tpu.pipeline_mode<synchronous>, transform_indices = @transform_8, window_bounds = array<i64: 16, 16>}, {pipeline_mode = #tpu.pipeline_mode<synchronous>, transform_indices = @transform_9, window_bounds = array<i64: 24, 24>}, {transform_indices = @transform_10, window_bounds = array<i64: 1, 2, 8, 128>}, {transform_indices = @transform_11, window_bounds = array<i64: 1, 16, 128>}, {transform_indices = @transform_12, window_bounds = array<i64: 1, 2, 24>}, {transform_indices = @transform_13, window_bounds = array<i64: 1, 2, 8, 128>}, {transform_indices = @transform_14, window_bounds = array<i64: 1, 16, 128>}, {transform_indices = @transform_15, window_bounds = array<i64: 1, 2, 24>}]} {
    %c0 = arith.constant 0 : index
    %c0_0 = arith.constant 0 : index
    %c0_1 = arith.constant 0 : index
    %c0_2 = arith.constant 0 : index
    %0 = vector.load %arg1[%c0, %c0_0, %c0_1, %c0_2] : memref<1x2x8x128xf32, #tpu.memory_space<vmem>>, vector<1x2x8x128xf32>
    %c0_3 = arith.constant 0 : index
    %c0_4 = arith.constant 0 : index
    %c0_5 = arith.constant 0 : index
    %1 = vector.load %arg2[%c0_3, %c0_4, %c0_5] : memref<1x16x128xf32, #tpu.memory_space<vmem>>, vector<1x16x128xf32>
    %2 = vector.extract_strided_slice %0 {offsets = [0, 0, 0, 0], sizes = [1, 2, 8, 1], strides = [1, 1, 1, 1]} : vector<1x2x8x128xf32> to vector<1x2x8x1xf32>
    %3 = vector.extract_strided_slice %0 {offsets = [0, 0, 0, 0], sizes = [1, 2, 8, 127], strides = [1, 1, 1, 1]} : vector<1x2x8x128xf32> to vector<1x2x8x127xf32>
    %4 = tpu.concatenate %2, %3 in 3 : vector<1x2x8x1xf32>, vector<1x2x8x127xf32> -> vector<1x2x8x128xf32>
    %5 = vector.extract_strided_slice %0 {offsets = [0, 0, 0, 1], sizes = [1, 2, 8, 127], strides = [1, 1, 1, 1]} : vector<1x2x8x128xf32> to vector<1x2x8x127xf32>
    %6 = vector.extract_strided_slice %0 {offsets = [0, 0, 0, 127], sizes = [1, 2, 8, 1], strides = [1, 1, 1, 1]} : vector<1x2x8x128xf32> to vector<1x2x8x1xf32>
    %7 = tpu.concatenate %5, %6 in 3 : vector<1x2x8x127xf32>, vector<1x2x8x1xf32> -> vector<1x2x8x128xf32>
    %8 = vector.extract_strided_slice %1 {offsets = [0, 0, 0], sizes = [1, 16, 1], strides = [1, 1, 1]} : vector<1x16x128xf32> to vector<1x16x1xf32>
    %9 = vector.extract_strided_slice %1 {offsets = [0, 0, 0], sizes = [1, 16, 127], strides = [1, 1, 1]} : vector<1x16x128xf32> to vector<1x16x127xf32>
    %10 = tpu.concatenate %8, %9 in 2 : vector<1x16x1xf32>, vector<1x16x127xf32> -> vector<1x16x128xf32>
    %11 = vector.extract_strided_slice %1 {offsets = [0, 0, 1], sizes = [1, 16, 127], strides = [1, 1, 1]} : vector<1x16x128xf32> to vector<1x16x127xf32>
    %12 = vector.extract_strided_slice %1 {offsets = [0, 0, 127], sizes = [1, 16, 1], strides = [1, 1, 1]} : vector<1x16x128xf32> to vector<1x16x1xf32>
    %13 = tpu.concatenate %11, %12 in 2 : vector<1x16x127xf32>, vector<1x16x1xf32> -> vector<1x16x128xf32>
    %c0_6 = arith.constant 0 : index
    %c0_7 = arith.constant 0 : index
    %c0_8 = arith.constant 0 : index
    %14 = vector.load %arg3[%c0_6, %c0_7, %c0_8] : memref<3x8x8xf32, #tpu.memory_space<vmem>>, vector<3x8x8xf32>
    %15 = vector.extract_strided_slice %14 {offsets = [0, 0, 0], sizes = [1, 8, 8], strides = [1, 1, 1]} : vector<3x8x8xf32> to vector<1x8x8xf32>
    %16 = vector.shape_cast %15 : vector<1x8x8xf32> to vector<8x8xf32>
    %17 = vector.extract_strided_slice %4 {offsets = [0, 0, 0, 0], sizes = [1, 2, 1, 128], strides = [1, 1, 1, 1]} : vector<1x2x8x128xf32> to vector<1x2x1x128xf32>
    %18 = vector.extract_strided_slice %16 {offsets = [0, 0], sizes = [8, 1], strides = [1, 1]} : vector<8x8xf32> to vector<8x1xf32>
    %19 = vector.shape_cast %18 : vector<8x1xf32> to vector<1x1x8x1xf32>
    %20 = vector.broadcast %17 : vector<1x2x1x128xf32> to vector<1x2x8x128xf32>
    %21 = vector.broadcast %19 : vector<1x1x8x1xf32> to vector<1x2x8x128xf32>
    %22 = arith.mulf %20, %21 : vector<1x2x8x128xf32>
    %23 = vector.extract_strided_slice %4 {offsets = [0, 0, 1, 0], sizes = [1, 2, 1, 128], strides = [1, 1, 1, 1]} : vector<1x2x8x128xf32> to vector<1x2x1x128xf32>
    %24 = vector.extract_strided_slice %16 {offsets = [0, 1], sizes = [8, 1], strides = [1, 1]} : vector<8x8xf32> to vector<8x1xf32>
    %25 = vector.shape_cast %24 : vector<8x1xf32> to vector<1x1x8x1xf32>
    %26 = vector.broadcast %23 : vector<1x2x1x128xf32> to vector<1x2x8x128xf32>
    %27 = vector.broadcast %25 : vector<1x1x8x1xf32> to vector<1x2x8x128xf32>
    %28 = arith.mulf %26, %27 : vector<1x2x8x128xf32>
    %29 = vector.extract_strided_slice %4 {offsets = [0, 0, 2, 0], sizes = [1, 2, 1, 128], strides = [1, 1, 1, 1]} : vector<1x2x8x128xf32> to vector<1x2x1x128xf32>
    %30 = vector.extract_strided_slice %16 {offsets = [0, 2], sizes = [8, 1], strides = [1, 1]} : vector<8x8xf32> to vector<8x1xf32>
    %31 = vector.shape_cast %30 : vector<8x1xf32> to vector<1x1x8x1xf32>
    %32 = vector.broadcast %29 : vector<1x2x1x128xf32> to vector<1x2x8x128xf32>
    %33 = vector.broadcast %31 : vector<1x1x8x1xf32> to vector<1x2x8x128xf32>
    %34 = arith.mulf %32, %33 : vector<1x2x8x128xf32>
    %35 = vector.extract_strided_slice %4 {offsets = [0, 0, 3, 0], sizes = [1, 2, 1, 128], strides = [1, 1, 1, 1]} : vector<1x2x8x128xf32> to vector<1x2x1x128xf32>
    %36 = vector.extract_strided_slice %16 {offsets = [0, 3], sizes = [8, 1], strides = [1, 1]} : vector<8x8xf32> to vector<8x1xf32>
    %37 = vector.shape_cast %36 : vector<8x1xf32> to vector<1x1x8x1xf32>
    %38 = vector.broadcast %35 : vector<1x2x1x128xf32> to vector<1x2x8x128xf32>
    %39 = vector.broadcast %37 : vector<1x1x8x1xf32> to vector<1x2x8x128xf32>
    %40 = arith.mulf %38, %39 : vector<1x2x8x128xf32>
    %41 = vector.extract_strided_slice %4 {offsets = [0, 0, 4, 0], sizes = [1, 2, 1, 128], strides = [1, 1, 1, 1]} : vector<1x2x8x128xf32> to vector<1x2x1x128xf32>
    %42 = vector.extract_strided_slice %16 {offsets = [0, 4], sizes = [8, 1], strides = [1, 1]} : vector<8x8xf32> to vector<8x1xf32>
    %43 = vector.shape_cast %42 : vector<8x1xf32> to vector<1x1x8x1xf32>
    %44 = vector.broadcast %41 : vector<1x2x1x128xf32> to vector<1x2x8x128xf32>
    %45 = vector.broadcast %43 : vector<1x1x8x1xf32> to vector<1x2x8x128xf32>
    %46 = arith.mulf %44, %45 : vector<1x2x8x128xf32>
    %47 = arith.addf %22, %46 : vector<1x2x8x128xf32>
    %48 = vector.extract_strided_slice %4 {offsets = [0, 0, 5, 0], sizes = [1, 2, 1, 128], strides = [1, 1, 1, 1]} : vector<1x2x8x128xf32> to vector<1x2x1x128xf32>
    %49 = vector.extract_strided_slice %16 {offsets = [0, 5], sizes = [8, 1], strides = [1, 1]} : vector<8x8xf32> to vector<8x1xf32>
    %50 = vector.shape_cast %49 : vector<8x1xf32> to vector<1x1x8x1xf32>
    %51 = vector.broadcast %48 : vector<1x2x1x128xf32> to vector<1x2x8x128xf32>
    %52 = vector.broadcast %50 : vector<1x1x8x1xf32> to vector<1x2x8x128xf32>
    %53 = arith.mulf %51, %52 : vector<1x2x8x128xf32>
    %54 = arith.addf %28, %53 : vector<1x2x8x128xf32>
    %55 = vector.extract_strided_slice %4 {offsets = [0, 0, 6, 0], sizes = [1, 2, 1, 128], strides = [1, 1, 1, 1]} : vector<1x2x8x128xf32> to vector<1x2x1x128xf32>
    %56 = vector.extract_strided_slice %16 {offsets = [0, 6], sizes = [8, 1], strides = [1, 1]} : vector<8x8xf32> to vector<8x1xf32>
    %57 = vector.shape_cast %56 : vector<8x1xf32> to vector<1x1x8x1xf32>
    %58 = vector.broadcast %55 : vector<1x2x1x128xf32> to vector<1x2x8x128xf32>
    %59 = vector.broadcast %57 : vector<1x1x8x1xf32> to vector<1x2x8x128xf32>
    %60 = arith.mulf %58, %59 : vector<1x2x8x128xf32>
    %61 = arith.addf %34, %60 : vector<1x2x8x128xf32>
    %62 = vector.extract_strided_slice %4 {offsets = [0, 0, 7, 0], sizes = [1, 2, 1, 128], strides = [1, 1, 1, 1]} : vector<1x2x8x128xf32> to vector<1x2x1x128xf32>
    %63 = vector.extract_strided_slice %16 {offsets = [0, 7], sizes = [8, 1], strides = [1, 1]} : vector<8x8xf32> to vector<8x1xf32>
    %64 = vector.shape_cast %63 : vector<8x1xf32> to vector<1x1x8x1xf32>
    %65 = vector.broadcast %62 : vector<1x2x1x128xf32> to vector<1x2x8x128xf32>
    %66 = vector.broadcast %64 : vector<1x1x8x1xf32> to vector<1x2x8x128xf32>
    %67 = arith.mulf %65, %66 : vector<1x2x8x128xf32>
    %68 = arith.addf %40, %67 : vector<1x2x8x128xf32>
    %69 = arith.addf %47, %54 : vector<1x2x8x128xf32>
    %70 = arith.addf %61, %68 : vector<1x2x8x128xf32>
    %71 = arith.addf %69, %70 : vector<1x2x8x128xf32>
    %72 = vector.extract_strided_slice %14 {offsets = [1, 0, 0], sizes = [1, 8, 8], strides = [1, 1, 1]} : vector<3x8x8xf32> to vector<1x8x8xf32>
    %73 = vector.shape_cast %72 : vector<1x8x8xf32> to vector<8x8xf32>
    %74 = vector.extract_strided_slice %0 {offsets = [0, 0, 0, 0], sizes = [1, 2, 1, 128], strides = [1, 1, 1, 1]} : vector<1x2x8x128xf32> to vector<1x2x1x128xf32>
    %75 = vector.extract_strided_slice %73 {offsets = [0, 0], sizes = [8, 1], strides = [1, 1]} : vector<8x8xf32> to vector<8x1xf32>
    %76 = vector.shape_cast %75 : vector<8x1xf32> to vector<1x1x8x1xf32>
    %77 = vector.broadcast %74 : vector<1x2x1x128xf32> to vector<1x2x8x128xf32>
    %78 = vector.broadcast %76 : vector<1x1x8x1xf32> to vector<1x2x8x128xf32>
    %79 = arith.mulf %77, %78 : vector<1x2x8x128xf32>
    %80 = vector.extract_strided_slice %0 {offsets = [0, 0, 1, 0], sizes = [1, 2, 1, 128], strides = [1, 1, 1, 1]} : vector<1x2x8x128xf32> to vector<1x2x1x128xf32>
    %81 = vector.extract_strided_slice %73 {offsets = [0, 1], sizes = [8, 1], strides = [1, 1]} : vector<8x8xf32> to vector<8x1xf32>
    %82 = vector.shape_cast %81 : vector<8x1xf32> to vector<1x1x8x1xf32>
    %83 = vector.broadcast %80 : vector<1x2x1x128xf32> to vector<1x2x8x128xf32>
    %84 = vector.broadcast %82 : vector<1x1x8x1xf32> to vector<1x2x8x128xf32>
    %85 = arith.mulf %83, %84 : vector<1x2x8x128xf32>
    %86 = vector.extract_strided_slice %0 {offsets = [0, 0, 2, 0], sizes = [1, 2, 1, 128], strides = [1, 1, 1, 1]} : vector<1x2x8x128xf32> to vector<1x2x1x128xf32>
    %87 = vector.extract_strided_slice %73 {offsets = [0, 2], sizes = [8, 1], strides = [1, 1]} : vector<8x8xf32> to vector<8x1xf32>
    %88 = vector.shape_cast %87 : vector<8x1xf32> to vector<1x1x8x1xf32>
    %89 = vector.broadcast %86 : vector<1x2x1x128xf32> to vector<1x2x8x128xf32>
    %90 = vector.broadcast %88 : vector<1x1x8x1xf32> to vector<1x2x8x128xf32>
    %91 = arith.mulf %89, %90 : vector<1x2x8x128xf32>
    %92 = vector.extract_strided_slice %0 {offsets = [0, 0, 3, 0], sizes = [1, 2, 1, 128], strides = [1, 1, 1, 1]} : vector<1x2x8x128xf32> to vector<1x2x1x128xf32>
    %93 = vector.extract_strided_slice %73 {offsets = [0, 3], sizes = [8, 1], strides = [1, 1]} : vector<8x8xf32> to vector<8x1xf32>
    %94 = vector.shape_cast %93 : vector<8x1xf32> to vector<1x1x8x1xf32>
    %95 = vector.broadcast %92 : vector<1x2x1x128xf32> to vector<1x2x8x128xf32>
    %96 = vector.broadcast %94 : vector<1x1x8x1xf32> to vector<1x2x8x128xf32>
    %97 = arith.mulf %95, %96 : vector<1x2x8x128xf32>
    %98 = vector.extract_strided_slice %0 {offsets = [0, 0, 4, 0], sizes = [1, 2, 1, 128], strides = [1, 1, 1, 1]} : vector<1x2x8x128xf32> to vector<1x2x1x128xf32>
    %99 = vector.extract_strided_slice %73 {offsets = [0, 4], sizes = [8, 1], strides = [1, 1]} : vector<8x8xf32> to vector<8x1xf32>
    %100 = vector.shape_cast %99 : vector<8x1xf32> to vector<1x1x8x1xf32>
    %101 = vector.broadcast %98 : vector<1x2x1x128xf32> to vector<1x2x8x128xf32>
    %102 = vector.broadcast %100 : vector<1x1x8x1xf32> to vector<1x2x8x128xf32>
    %103 = arith.mulf %101, %102 : vector<1x2x8x128xf32>
    %104 = arith.addf %79, %103 : vector<1x2x8x128xf32>
    %105 = vector.extract_strided_slice %0 {offsets = [0, 0, 5, 0], sizes = [1, 2, 1, 128], strides = [1, 1, 1, 1]} : vector<1x2x8x128xf32> to vector<1x2x1x128xf32>
    %106 = vector.extract_strided_slice %73 {offsets = [0, 5], sizes = [8, 1], strides = [1, 1]} : vector<8x8xf32> to vector<8x1xf32>
    %107 = vector.shape_cast %106 : vector<8x1xf32> to vector<1x1x8x1xf32>
    %108 = vector.broadcast %105 : vector<1x2x1x128xf32> to vector<1x2x8x128xf32>
    %109 = vector.broadcast %107 : vector<1x1x8x1xf32> to vector<1x2x8x128xf32>
    %110 = arith.mulf %108, %109 : vector<1x2x8x128xf32>
    %111 = arith.addf %85, %110 : vector<1x2x8x128xf32>
    %112 = vector.extract_strided_slice %0 {offsets = [0, 0, 6, 0], sizes = [1, 2, 1, 128], strides = [1, 1, 1, 1]} : vector<1x2x8x128xf32> to vector<1x2x1x128xf32>
    %113 = vector.extract_strided_slice %73 {offsets = [0, 6], sizes = [8, 1], strides = [1, 1]} : vector<8x8xf32> to vector<8x1xf32>
    %114 = vector.shape_cast %113 : vector<8x1xf32> to vector<1x1x8x1xf32>
    %115 = vector.broadcast %112 : vector<1x2x1x128xf32> to vector<1x2x8x128xf32>
    %116 = vector.broadcast %114 : vector<1x1x8x1xf32> to vector<1x2x8x128xf32>
    %117 = arith.mulf %115, %116 : vector<1x2x8x128xf32>
    %118 = arith.addf %91, %117 : vector<1x2x8x128xf32>
    %119 = vector.extract_strided_slice %0 {offsets = [0, 0, 7, 0], sizes = [1, 2, 1, 128], strides = [1, 1, 1, 1]} : vector<1x2x8x128xf32> to vector<1x2x1x128xf32>
    %120 = vector.extract_strided_slice %73 {offsets = [0, 7], sizes = [8, 1], strides = [1, 1]} : vector<8x8xf32> to vector<8x1xf32>
    %121 = vector.shape_cast %120 : vector<8x1xf32> to vector<1x1x8x1xf32>
    %122 = vector.broadcast %119 : vector<1x2x1x128xf32> to vector<1x2x8x128xf32>
    %123 = vector.broadcast %121 : vector<1x1x8x1xf32> to vector<1x2x8x128xf32>
    %124 = arith.mulf %122, %123 : vector<1x2x8x128xf32>
    %125 = arith.addf %97, %124 : vector<1x2x8x128xf32>
    %126 = arith.addf %104, %111 : vector<1x2x8x128xf32>
    %127 = arith.addf %118, %125 : vector<1x2x8x128xf32>
    %128 = arith.addf %126, %127 : vector<1x2x8x128xf32>
    %129 = arith.addf %71, %128 : vector<1x2x8x128xf32>
    %130 = vector.extract_strided_slice %14 {offsets = [2, 0, 0], sizes = [1, 8, 8], strides = [1, 1, 1]} : vector<3x8x8xf32> to vector<1x8x8xf32>
    %131 = vector.shape_cast %130 : vector<1x8x8xf32> to vector<8x8xf32>
    %132 = vector.extract_strided_slice %7 {offsets = [0, 0, 0, 0], sizes = [1, 2, 1, 128], strides = [1, 1, 1, 1]} : vector<1x2x8x128xf32> to vector<1x2x1x128xf32>
    %133 = vector.extract_strided_slice %131 {offsets = [0, 0], sizes = [8, 1], strides = [1, 1]} : vector<8x8xf32> to vector<8x1xf32>
    %134 = vector.shape_cast %133 : vector<8x1xf32> to vector<1x1x8x1xf32>
    %135 = vector.broadcast %132 : vector<1x2x1x128xf32> to vector<1x2x8x128xf32>
    %136 = vector.broadcast %134 : vector<1x1x8x1xf32> to vector<1x2x8x128xf32>
    %137 = arith.mulf %135, %136 : vector<1x2x8x128xf32>
    %138 = vector.extract_strided_slice %7 {offsets = [0, 0, 1, 0], sizes = [1, 2, 1, 128], strides = [1, 1, 1, 1]} : vector<1x2x8x128xf32> to vector<1x2x1x128xf32>
    %139 = vector.extract_strided_slice %131 {offsets = [0, 1], sizes = [8, 1], strides = [1, 1]} : vector<8x8xf32> to vector<8x1xf32>
    %140 = vector.shape_cast %139 : vector<8x1xf32> to vector<1x1x8x1xf32>
    %141 = vector.broadcast %138 : vector<1x2x1x128xf32> to vector<1x2x8x128xf32>
    %142 = vector.broadcast %140 : vector<1x1x8x1xf32> to vector<1x2x8x128xf32>
    %143 = arith.mulf %141, %142 : vector<1x2x8x128xf32>
    %144 = vector.extract_strided_slice %7 {offsets = [0, 0, 2, 0], sizes = [1, 2, 1, 128], strides = [1, 1, 1, 1]} : vector<1x2x8x128xf32> to vector<1x2x1x128xf32>
    %145 = vector.extract_strided_slice %131 {offsets = [0, 2], sizes = [8, 1], strides = [1, 1]} : vector<8x8xf32> to vector<8x1xf32>
    %146 = vector.shape_cast %145 : vector<8x1xf32> to vector<1x1x8x1xf32>
    %147 = vector.broadcast %144 : vector<1x2x1x128xf32> to vector<1x2x8x128xf32>
    %148 = vector.broadcast %146 : vector<1x1x8x1xf32> to vector<1x2x8x128xf32>
    %149 = arith.mulf %147, %148 : vector<1x2x8x128xf32>
    %150 = vector.extract_strided_slice %7 {offsets = [0, 0, 3, 0], sizes = [1, 2, 1, 128], strides = [1, 1, 1, 1]} : vector<1x2x8x128xf32> to vector<1x2x1x128xf32>
    %151 = vector.extract_strided_slice %131 {offsets = [0, 3], sizes = [8, 1], strides = [1, 1]} : vector<8x8xf32> to vector<8x1xf32>
    %152 = vector.shape_cast %151 : vector<8x1xf32> to vector<1x1x8x1xf32>
    %153 = vector.broadcast %150 : vector<1x2x1x128xf32> to vector<1x2x8x128xf32>
    %154 = vector.broadcast %152 : vector<1x1x8x1xf32> to vector<1x2x8x128xf32>
    %155 = arith.mulf %153, %154 : vector<1x2x8x128xf32>
    %156 = vector.extract_strided_slice %7 {offsets = [0, 0, 4, 0], sizes = [1, 2, 1, 128], strides = [1, 1, 1, 1]} : vector<1x2x8x128xf32> to vector<1x2x1x128xf32>
    %157 = vector.extract_strided_slice %131 {offsets = [0, 4], sizes = [8, 1], strides = [1, 1]} : vector<8x8xf32> to vector<8x1xf32>
    %158 = vector.shape_cast %157 : vector<8x1xf32> to vector<1x1x8x1xf32>
    %159 = vector.broadcast %156 : vector<1x2x1x128xf32> to vector<1x2x8x128xf32>
    %160 = vector.broadcast %158 : vector<1x1x8x1xf32> to vector<1x2x8x128xf32>
    %161 = arith.mulf %159, %160 : vector<1x2x8x128xf32>
    %162 = arith.addf %137, %161 : vector<1x2x8x128xf32>
    %163 = vector.extract_strided_slice %7 {offsets = [0, 0, 5, 0], sizes = [1, 2, 1, 128], strides = [1, 1, 1, 1]} : vector<1x2x8x128xf32> to vector<1x2x1x128xf32>
    %164 = vector.extract_strided_slice %131 {offsets = [0, 5], sizes = [8, 1], strides = [1, 1]} : vector<8x8xf32> to vector<8x1xf32>
    %165 = vector.shape_cast %164 : vector<8x1xf32> to vector<1x1x8x1xf32>
    %166 = vector.broadcast %163 : vector<1x2x1x128xf32> to vector<1x2x8x128xf32>
    %167 = vector.broadcast %165 : vector<1x1x8x1xf32> to vector<1x2x8x128xf32>
    %168 = arith.mulf %166, %167 : vector<1x2x8x128xf32>
    %169 = arith.addf %143, %168 : vector<1x2x8x128xf32>
    %170 = vector.extract_strided_slice %7 {offsets = [0, 0, 6, 0], sizes = [1, 2, 1, 128], strides = [1, 1, 1, 1]} : vector<1x2x8x128xf32> to vector<1x2x1x128xf32>
    %171 = vector.extract_strided_slice %131 {offsets = [0, 6], sizes = [8, 1], strides = [1, 1]} : vector<8x8xf32> to vector<8x1xf32>
    %172 = vector.shape_cast %171 : vector<8x1xf32> to vector<1x1x8x1xf32>
    %173 = vector.broadcast %170 : vector<1x2x1x128xf32> to vector<1x2x8x128xf32>
    %174 = vector.broadcast %172 : vector<1x1x8x1xf32> to vector<1x2x8x128xf32>
    %175 = arith.mulf %173, %174 : vector<1x2x8x128xf32>
    %176 = arith.addf %149, %175 : vector<1x2x8x128xf32>
    %177 = vector.extract_strided_slice %7 {offsets = [0, 0, 7, 0], sizes = [1, 2, 1, 128], strides = [1, 1, 1, 1]} : vector<1x2x8x128xf32> to vector<1x2x1x128xf32>
    %178 = vector.extract_strided_slice %131 {offsets = [0, 7], sizes = [8, 1], strides = [1, 1]} : vector<8x8xf32> to vector<8x1xf32>
    %179 = vector.shape_cast %178 : vector<8x1xf32> to vector<1x1x8x1xf32>
    %180 = vector.broadcast %177 : vector<1x2x1x128xf32> to vector<1x2x8x128xf32>
    %181 = vector.broadcast %179 : vector<1x1x8x1xf32> to vector<1x2x8x128xf32>
    %182 = arith.mulf %180, %181 : vector<1x2x8x128xf32>
    %183 = arith.addf %155, %182 : vector<1x2x8x128xf32>
    %184 = arith.addf %162, %169 : vector<1x2x8x128xf32>
    %185 = arith.addf %176, %183 : vector<1x2x8x128xf32>
    %186 = arith.addf %184, %185 : vector<1x2x8x128xf32>
    %187 = arith.addf %129, %186 : vector<1x2x8x128xf32>
    %c0_9 = arith.constant 0 : index
    %c0_10 = arith.constant 0 : index
    %c0_11 = arith.constant 0 : index
    %188 = vector.load %arg4[%c0_9, %c0_10, %c0_11] : memref<3x8x8xf32, #tpu.memory_space<vmem>>, vector<3x8x8xf32>
    %189 = vector.extract_strided_slice %188 {offsets = [0, 0, 0], sizes = [1, 8, 8], strides = [1, 1, 1]} : vector<3x8x8xf32> to vector<1x8x8xf32>
    %190 = vector.shape_cast %189 : vector<1x8x8xf32> to vector<8x8xf32>
    %191 = vector.extract_strided_slice %4 {offsets = [0, 0, 0, 0], sizes = [1, 2, 1, 128], strides = [1, 1, 1, 1]} : vector<1x2x8x128xf32> to vector<1x2x1x128xf32>
    %192 = vector.extract_strided_slice %190 {offsets = [0, 0], sizes = [8, 1], strides = [1, 1]} : vector<8x8xf32> to vector<8x1xf32>
    %193 = vector.shape_cast %192 : vector<8x1xf32> to vector<1x1x8x1xf32>
    %194 = vector.broadcast %191 : vector<1x2x1x128xf32> to vector<1x2x8x128xf32>
    %195 = vector.broadcast %193 : vector<1x1x8x1xf32> to vector<1x2x8x128xf32>
    %196 = arith.mulf %194, %195 : vector<1x2x8x128xf32>
    %197 = vector.extract_strided_slice %4 {offsets = [0, 0, 1, 0], sizes = [1, 2, 1, 128], strides = [1, 1, 1, 1]} : vector<1x2x8x128xf32> to vector<1x2x1x128xf32>
    %198 = vector.extract_strided_slice %190 {offsets = [0, 1], sizes = [8, 1], strides = [1, 1]} : vector<8x8xf32> to vector<8x1xf32>
    %199 = vector.shape_cast %198 : vector<8x1xf32> to vector<1x1x8x1xf32>
    %200 = vector.broadcast %197 : vector<1x2x1x128xf32> to vector<1x2x8x128xf32>
    %201 = vector.broadcast %199 : vector<1x1x8x1xf32> to vector<1x2x8x128xf32>
    %202 = arith.mulf %200, %201 : vector<1x2x8x128xf32>
    %203 = vector.extract_strided_slice %4 {offsets = [0, 0, 2, 0], sizes = [1, 2, 1, 128], strides = [1, 1, 1, 1]} : vector<1x2x8x128xf32> to vector<1x2x1x128xf32>
    %204 = vector.extract_strided_slice %190 {offsets = [0, 2], sizes = [8, 1], strides = [1, 1]} : vector<8x8xf32> to vector<8x1xf32>
    %205 = vector.shape_cast %204 : vector<8x1xf32> to vector<1x1x8x1xf32>
    %206 = vector.broadcast %203 : vector<1x2x1x128xf32> to vector<1x2x8x128xf32>
    %207 = vector.broadcast %205 : vector<1x1x8x1xf32> to vector<1x2x8x128xf32>
    %208 = arith.mulf %206, %207 : vector<1x2x8x128xf32>
    %209 = vector.extract_strided_slice %4 {offsets = [0, 0, 3, 0], sizes = [1, 2, 1, 128], strides = [1, 1, 1, 1]} : vector<1x2x8x128xf32> to vector<1x2x1x128xf32>
    %210 = vector.extract_strided_slice %190 {offsets = [0, 3], sizes = [8, 1], strides = [1, 1]} : vector<8x8xf32> to vector<8x1xf32>
    %211 = vector.shape_cast %210 : vector<8x1xf32> to vector<1x1x8x1xf32>
    %212 = vector.broadcast %209 : vector<1x2x1x128xf32> to vector<1x2x8x128xf32>
    %213 = vector.broadcast %211 : vector<1x1x8x1xf32> to vector<1x2x8x128xf32>
    %214 = arith.mulf %212, %213 : vector<1x2x8x128xf32>
    %215 = vector.extract_strided_slice %4 {offsets = [0, 0, 4, 0], sizes = [1, 2, 1, 128], strides = [1, 1, 1, 1]} : vector<1x2x8x128xf32> to vector<1x2x1x128xf32>
    %216 = vector.extract_strided_slice %190 {offsets = [0, 4], sizes = [8, 1], strides = [1, 1]} : vector<8x8xf32> to vector<8x1xf32>
    %217 = vector.shape_cast %216 : vector<8x1xf32> to vector<1x1x8x1xf32>
    %218 = vector.broadcast %215 : vector<1x2x1x128xf32> to vector<1x2x8x128xf32>
    %219 = vector.broadcast %217 : vector<1x1x8x1xf32> to vector<1x2x8x128xf32>
    %220 = arith.mulf %218, %219 : vector<1x2x8x128xf32>
    %221 = arith.addf %196, %220 : vector<1x2x8x128xf32>
    %222 = vector.extract_strided_slice %4 {offsets = [0, 0, 5, 0], sizes = [1, 2, 1, 128], strides = [1, 1, 1, 1]} : vector<1x2x8x128xf32> to vector<1x2x1x128xf32>
    %223 = vector.extract_strided_slice %190 {offsets = [0, 5], sizes = [8, 1], strides = [1, 1]} : vector<8x8xf32> to vector<8x1xf32>
    %224 = vector.shape_cast %223 : vector<8x1xf32> to vector<1x1x8x1xf32>
    %225 = vector.broadcast %222 : vector<1x2x1x128xf32> to vector<1x2x8x128xf32>
    %226 = vector.broadcast %224 : vector<1x1x8x1xf32> to vector<1x2x8x128xf32>
    %227 = arith.mulf %225, %226 : vector<1x2x8x128xf32>
    %228 = arith.addf %202, %227 : vector<1x2x8x128xf32>
    %229 = vector.extract_strided_slice %4 {offsets = [0, 0, 6, 0], sizes = [1, 2, 1, 128], strides = [1, 1, 1, 1]} : vector<1x2x8x128xf32> to vector<1x2x1x128xf32>
    %230 = vector.extract_strided_slice %190 {offsets = [0, 6], sizes = [8, 1], strides = [1, 1]} : vector<8x8xf32> to vector<8x1xf32>
    %231 = vector.shape_cast %230 : vector<8x1xf32> to vector<1x1x8x1xf32>
    %232 = vector.broadcast %229 : vector<1x2x1x128xf32> to vector<1x2x8x128xf32>
    %233 = vector.broadcast %231 : vector<1x1x8x1xf32> to vector<1x2x8x128xf32>
    %234 = arith.mulf %232, %233 : vector<1x2x8x128xf32>
    %235 = arith.addf %208, %234 : vector<1x2x8x128xf32>
    %236 = vector.extract_strided_slice %4 {offsets = [0, 0, 7, 0], sizes = [1, 2, 1, 128], strides = [1, 1, 1, 1]} : vector<1x2x8x128xf32> to vector<1x2x1x128xf32>
    %237 = vector.extract_strided_slice %190 {offsets = [0, 7], sizes = [8, 1], strides = [1, 1]} : vector<8x8xf32> to vector<8x1xf32>
    %238 = vector.shape_cast %237 : vector<8x1xf32> to vector<1x1x8x1xf32>
    %239 = vector.broadcast %236 : vector<1x2x1x128xf32> to vector<1x2x8x128xf32>
    %240 = vector.broadcast %238 : vector<1x1x8x1xf32> to vector<1x2x8x128xf32>
    %241 = arith.mulf %239, %240 : vector<1x2x8x128xf32>
    %242 = arith.addf %214, %241 : vector<1x2x8x128xf32>
    %243 = arith.addf %221, %228 : vector<1x2x8x128xf32>
    %244 = arith.addf %235, %242 : vector<1x2x8x128xf32>
    %245 = arith.addf %243, %244 : vector<1x2x8x128xf32>
    %246 = vector.extract_strided_slice %188 {offsets = [1, 0, 0], sizes = [1, 8, 8], strides = [1, 1, 1]} : vector<3x8x8xf32> to vector<1x8x8xf32>
    %247 = vector.shape_cast %246 : vector<1x8x8xf32> to vector<8x8xf32>
    %248 = vector.extract_strided_slice %0 {offsets = [0, 0, 0, 0], sizes = [1, 2, 1, 128], strides = [1, 1, 1, 1]} : vector<1x2x8x128xf32> to vector<1x2x1x128xf32>
    %249 = vector.extract_strided_slice %247 {offsets = [0, 0], sizes = [8, 1], strides = [1, 1]} : vector<8x8xf32> to vector<8x1xf32>
    %250 = vector.shape_cast %249 : vector<8x1xf32> to vector<1x1x8x1xf32>
    %251 = vector.broadcast %248 : vector<1x2x1x128xf32> to vector<1x2x8x128xf32>
    %252 = vector.broadcast %250 : vector<1x1x8x1xf32> to vector<1x2x8x128xf32>
    %253 = arith.mulf %251, %252 : vector<1x2x8x128xf32>
    %254 = vector.extract_strided_slice %0 {offsets = [0, 0, 1, 0], sizes = [1, 2, 1, 128], strides = [1, 1, 1, 1]} : vector<1x2x8x128xf32> to vector<1x2x1x128xf32>
    %255 = vector.extract_strided_slice %247 {offsets = [0, 1], sizes = [8, 1], strides = [1, 1]} : vector<8x8xf32> to vector<8x1xf32>
    %256 = vector.shape_cast %255 : vector<8x1xf32> to vector<1x1x8x1xf32>
    %257 = vector.broadcast %254 : vector<1x2x1x128xf32> to vector<1x2x8x128xf32>
    %258 = vector.broadcast %256 : vector<1x1x8x1xf32> to vector<1x2x8x128xf32>
    %259 = arith.mulf %257, %258 : vector<1x2x8x128xf32>
    %260 = vector.extract_strided_slice %0 {offsets = [0, 0, 2, 0], sizes = [1, 2, 1, 128], strides = [1, 1, 1, 1]} : vector<1x2x8x128xf32> to vector<1x2x1x128xf32>
    %261 = vector.extract_strided_slice %247 {offsets = [0, 2], sizes = [8, 1], strides = [1, 1]} : vector<8x8xf32> to vector<8x1xf32>
    %262 = vector.shape_cast %261 : vector<8x1xf32> to vector<1x1x8x1xf32>
    %263 = vector.broadcast %260 : vector<1x2x1x128xf32> to vector<1x2x8x128xf32>
    %264 = vector.broadcast %262 : vector<1x1x8x1xf32> to vector<1x2x8x128xf32>
    %265 = arith.mulf %263, %264 : vector<1x2x8x128xf32>
    %266 = vector.extract_strided_slice %0 {offsets = [0, 0, 3, 0], sizes = [1, 2, 1, 128], strides = [1, 1, 1, 1]} : vector<1x2x8x128xf32> to vector<1x2x1x128xf32>
    %267 = vector.extract_strided_slice %247 {offsets = [0, 3], sizes = [8, 1], strides = [1, 1]} : vector<8x8xf32> to vector<8x1xf32>
    %268 = vector.shape_cast %267 : vector<8x1xf32> to vector<1x1x8x1xf32>
    %269 = vector.broadcast %266 : vector<1x2x1x128xf32> to vector<1x2x8x128xf32>
    %270 = vector.broadcast %268 : vector<1x1x8x1xf32> to vector<1x2x8x128xf32>
    %271 = arith.mulf %269, %270 : vector<1x2x8x128xf32>
    %272 = vector.extract_strided_slice %0 {offsets = [0, 0, 4, 0], sizes = [1, 2, 1, 128], strides = [1, 1, 1, 1]} : vector<1x2x8x128xf32> to vector<1x2x1x128xf32>
    %273 = vector.extract_strided_slice %247 {offsets = [0, 4], sizes = [8, 1], strides = [1, 1]} : vector<8x8xf32> to vector<8x1xf32>
    %274 = vector.shape_cast %273 : vector<8x1xf32> to vector<1x1x8x1xf32>
    %275 = vector.broadcast %272 : vector<1x2x1x128xf32> to vector<1x2x8x128xf32>
    %276 = vector.broadcast %274 : vector<1x1x8x1xf32> to vector<1x2x8x128xf32>
    %277 = arith.mulf %275, %276 : vector<1x2x8x128xf32>
    %278 = arith.addf %253, %277 : vector<1x2x8x128xf32>
    %279 = vector.extract_strided_slice %0 {offsets = [0, 0, 5, 0], sizes = [1, 2, 1, 128], strides = [1, 1, 1, 1]} : vector<1x2x8x128xf32> to vector<1x2x1x128xf32>
    %280 = vector.extract_strided_slice %247 {offsets = [0, 5], sizes = [8, 1], strides = [1, 1]} : vector<8x8xf32> to vector<8x1xf32>
    %281 = vector.shape_cast %280 : vector<8x1xf32> to vector<1x1x8x1xf32>
    %282 = vector.broadcast %279 : vector<1x2x1x128xf32> to vector<1x2x8x128xf32>
    %283 = vector.broadcast %281 : vector<1x1x8x1xf32> to vector<1x2x8x128xf32>
    %284 = arith.mulf %282, %283 : vector<1x2x8x128xf32>
    %285 = arith.addf %259, %284 : vector<1x2x8x128xf32>
    %286 = vector.extract_strided_slice %0 {offsets = [0, 0, 6, 0], sizes = [1, 2, 1, 128], strides = [1, 1, 1, 1]} : vector<1x2x8x128xf32> to vector<1x2x1x128xf32>
    %287 = vector.extract_strided_slice %247 {offsets = [0, 6], sizes = [8, 1], strides = [1, 1]} : vector<8x8xf32> to vector<8x1xf32>
    %288 = vector.shape_cast %287 : vector<8x1xf32> to vector<1x1x8x1xf32>
    %289 = vector.broadcast %286 : vector<1x2x1x128xf32> to vector<1x2x8x128xf32>
    %290 = vector.broadcast %288 : vector<1x1x8x1xf32> to vector<1x2x8x128xf32>
    %291 = arith.mulf %289, %290 : vector<1x2x8x128xf32>
    %292 = arith.addf %265, %291 : vector<1x2x8x128xf32>
    %293 = vector.extract_strided_slice %0 {offsets = [0, 0, 7, 0], sizes = [1, 2, 1, 128], strides = [1, 1, 1, 1]} : vector<1x2x8x128xf32> to vector<1x2x1x128xf32>
    %294 = vector.extract_strided_slice %247 {offsets = [0, 7], sizes = [8, 1], strides = [1, 1]} : vector<8x8xf32> to vector<8x1xf32>
    %295 = vector.shape_cast %294 : vector<8x1xf32> to vector<1x1x8x1xf32>
    %296 = vector.broadcast %293 : vector<1x2x1x128xf32> to vector<1x2x8x128xf32>
    %297 = vector.broadcast %295 : vector<1x1x8x1xf32> to vector<1x2x8x128xf32>
    %298 = arith.mulf %296, %297 : vector<1x2x8x128xf32>
    %299 = arith.addf %271, %298 : vector<1x2x8x128xf32>
    %300 = arith.addf %278, %285 : vector<1x2x8x128xf32>
    %301 = arith.addf %292, %299 : vector<1x2x8x128xf32>
    %302 = arith.addf %300, %301 : vector<1x2x8x128xf32>
    %303 = arith.addf %245, %302 : vector<1x2x8x128xf32>
    %304 = vector.extract_strided_slice %188 {offsets = [2, 0, 0], sizes = [1, 8, 8], strides = [1, 1, 1]} : vector<3x8x8xf32> to vector<1x8x8xf32>
    %305 = vector.shape_cast %304 : vector<1x8x8xf32> to vector<8x8xf32>
    %306 = vector.extract_strided_slice %7 {offsets = [0, 0, 0, 0], sizes = [1, 2, 1, 128], strides = [1, 1, 1, 1]} : vector<1x2x8x128xf32> to vector<1x2x1x128xf32>
    %307 = vector.extract_strided_slice %305 {offsets = [0, 0], sizes = [8, 1], strides = [1, 1]} : vector<8x8xf32> to vector<8x1xf32>
    %308 = vector.shape_cast %307 : vector<8x1xf32> to vector<1x1x8x1xf32>
    %309 = vector.broadcast %306 : vector<1x2x1x128xf32> to vector<1x2x8x128xf32>
    %310 = vector.broadcast %308 : vector<1x1x8x1xf32> to vector<1x2x8x128xf32>
    %311 = arith.mulf %309, %310 : vector<1x2x8x128xf32>
    %312 = vector.extract_strided_slice %7 {offsets = [0, 0, 1, 0], sizes = [1, 2, 1, 128], strides = [1, 1, 1, 1]} : vector<1x2x8x128xf32> to vector<1x2x1x128xf32>
    %313 = vector.extract_strided_slice %305 {offsets = [0, 1], sizes = [8, 1], strides = [1, 1]} : vector<8x8xf32> to vector<8x1xf32>
    %314 = vector.shape_cast %313 : vector<8x1xf32> to vector<1x1x8x1xf32>
    %315 = vector.broadcast %312 : vector<1x2x1x128xf32> to vector<1x2x8x128xf32>
    %316 = vector.broadcast %314 : vector<1x1x8x1xf32> to vector<1x2x8x128xf32>
    %317 = arith.mulf %315, %316 : vector<1x2x8x128xf32>
    %318 = vector.extract_strided_slice %7 {offsets = [0, 0, 2, 0], sizes = [1, 2, 1, 128], strides = [1, 1, 1, 1]} : vector<1x2x8x128xf32> to vector<1x2x1x128xf32>
    %319 = vector.extract_strided_slice %305 {offsets = [0, 2], sizes = [8, 1], strides = [1, 1]} : vector<8x8xf32> to vector<8x1xf32>
    %320 = vector.shape_cast %319 : vector<8x1xf32> to vector<1x1x8x1xf32>
    %321 = vector.broadcast %318 : vector<1x2x1x128xf32> to vector<1x2x8x128xf32>
    %322 = vector.broadcast %320 : vector<1x1x8x1xf32> to vector<1x2x8x128xf32>
    %323 = arith.mulf %321, %322 : vector<1x2x8x128xf32>
    %324 = vector.extract_strided_slice %7 {offsets = [0, 0, 3, 0], sizes = [1, 2, 1, 128], strides = [1, 1, 1, 1]} : vector<1x2x8x128xf32> to vector<1x2x1x128xf32>
    %325 = vector.extract_strided_slice %305 {offsets = [0, 3], sizes = [8, 1], strides = [1, 1]} : vector<8x8xf32> to vector<8x1xf32>
    %326 = vector.shape_cast %325 : vector<8x1xf32> to vector<1x1x8x1xf32>
    %327 = vector.broadcast %324 : vector<1x2x1x128xf32> to vector<1x2x8x128xf32>
    %328 = vector.broadcast %326 : vector<1x1x8x1xf32> to vector<1x2x8x128xf32>
    %329 = arith.mulf %327, %328 : vector<1x2x8x128xf32>
    %330 = vector.extract_strided_slice %7 {offsets = [0, 0, 4, 0], sizes = [1, 2, 1, 128], strides = [1, 1, 1, 1]} : vector<1x2x8x128xf32> to vector<1x2x1x128xf32>
    %331 = vector.extract_strided_slice %305 {offsets = [0, 4], sizes = [8, 1], strides = [1, 1]} : vector<8x8xf32> to vector<8x1xf32>
    %332 = vector.shape_cast %331 : vector<8x1xf32> to vector<1x1x8x1xf32>
    %333 = vector.broadcast %330 : vector<1x2x1x128xf32> to vector<1x2x8x128xf32>
    %334 = vector.broadcast %332 : vector<1x1x8x1xf32> to vector<1x2x8x128xf32>
    %335 = arith.mulf %333, %334 : vector<1x2x8x128xf32>
    %336 = arith.addf %311, %335 : vector<1x2x8x128xf32>
    %337 = vector.extract_strided_slice %7 {offsets = [0, 0, 5, 0], sizes = [1, 2, 1, 128], strides = [1, 1, 1, 1]} : vector<1x2x8x128xf32> to vector<1x2x1x128xf32>
    %338 = vector.extract_strided_slice %305 {offsets = [0, 5], sizes = [8, 1], strides = [1, 1]} : vector<8x8xf32> to vector<8x1xf32>
    %339 = vector.shape_cast %338 : vector<8x1xf32> to vector<1x1x8x1xf32>
    %340 = vector.broadcast %337 : vector<1x2x1x128xf32> to vector<1x2x8x128xf32>
    %341 = vector.broadcast %339 : vector<1x1x8x1xf32> to vector<1x2x8x128xf32>
    %342 = arith.mulf %340, %341 : vector<1x2x8x128xf32>
    %343 = arith.addf %317, %342 : vector<1x2x8x128xf32>
    %344 = vector.extract_strided_slice %7 {offsets = [0, 0, 6, 0], sizes = [1, 2, 1, 128], strides = [1, 1, 1, 1]} : vector<1x2x8x128xf32> to vector<1x2x1x128xf32>
    %345 = vector.extract_strided_slice %305 {offsets = [0, 6], sizes = [8, 1], strides = [1, 1]} : vector<8x8xf32> to vector<8x1xf32>
    %346 = vector.shape_cast %345 : vector<8x1xf32> to vector<1x1x8x1xf32>
    %347 = vector.broadcast %344 : vector<1x2x1x128xf32> to vector<1x2x8x128xf32>
    %348 = vector.broadcast %346 : vector<1x1x8x1xf32> to vector<1x2x8x128xf32>
    %349 = arith.mulf %347, %348 : vector<1x2x8x128xf32>
    %350 = arith.addf %323, %349 : vector<1x2x8x128xf32>
    %351 = vector.extract_strided_slice %7 {offsets = [0, 0, 7, 0], sizes = [1, 2, 1, 128], strides = [1, 1, 1, 1]} : vector<1x2x8x128xf32> to vector<1x2x1x128xf32>
    %352 = vector.extract_strided_slice %305 {offsets = [0, 7], sizes = [8, 1], strides = [1, 1]} : vector<8x8xf32> to vector<8x1xf32>
    %353 = vector.shape_cast %352 : vector<8x1xf32> to vector<1x1x8x1xf32>
    %354 = vector.broadcast %351 : vector<1x2x1x128xf32> to vector<1x2x8x128xf32>
    %355 = vector.broadcast %353 : vector<1x1x8x1xf32> to vector<1x2x8x128xf32>
    %356 = arith.mulf %354, %355 : vector<1x2x8x128xf32>
    %357 = arith.addf %329, %356 : vector<1x2x8x128xf32>
    %358 = arith.addf %336, %343 : vector<1x2x8x128xf32>
    %359 = arith.addf %350, %357 : vector<1x2x8x128xf32>
    %360 = arith.addf %358, %359 : vector<1x2x8x128xf32>
    %361 = arith.addf %303, %360 : vector<1x2x8x128xf32>
    %362 = vector.extract_strided_slice %361 {offsets = [0, 1, 0, 0], sizes = [1, 1, 8, 128], strides = [1, 1, 1, 1]} : vector<1x2x8x128xf32> to vector<1x1x8x128xf32>
    %cst = arith.constant 0.000000e+00 : f32
    %363 = vector.broadcast %cst : f32 to vector<1x1x8x128xf32>
    %364 = arith.subf %363, %362 : vector<1x1x8x128xf32>
    %365 = vector.extract_strided_slice %361 {offsets = [0, 0, 0, 0], sizes = [1, 1, 8, 128], strides = [1, 1, 1, 1]} : vector<1x2x8x128xf32> to vector<1x1x8x128xf32>
    %366 = tpu.concatenate %364, %365 in 1 : vector<1x1x8x128xf32>, vector<1x1x8x128xf32> -> vector<1x2x8x128xf32>
    %367 = arith.addf %187, %366 : vector<1x2x8x128xf32>
    %c0_12 = arith.constant 0 : index
    %c0_13 = arith.constant 0 : index
    %368 = vector.load %arg5[%c0_12, %c0_13] : memref<16x48xf32, #tpu.memory_space<vmem>>, vector<16x48xf32>
    %369 = tpu.concatenate %10, %1, %13 in 1 : vector<1x16x128xf32>, vector<1x16x128xf32>, vector<1x16x128xf32> -> vector<1x48x128xf32>
    %370 = vector.shape_cast %369 : vector<1x48x128xf32> to vector<48x128xf32>
    %cst_14 = arith.constant dense<0.000000e+00> : vector<16x128xf32>
    %371 = tpu.matmul %368, %370, %cst_14 {dimension_numbers = #tpu.dot_dimension_numbers<[1], [0], [0], [1], [0, 0, 1, 1], [], []>} : vector<16x48xf32>, vector<48x128xf32>, vector<16x128xf32> -> vector<16x128xf32>
    %372 = vector.shape_cast %371 : vector<16x128xf32> to vector<1x16x128xf32>
    %c0_15 = arith.constant 0 : index
    %c0_16 = arith.constant 0 : index
    %373 = vector.load %arg6[%c0_15, %c0_16] : memref<24x24xf32, #tpu.memory_space<vmem>>, vector<24x24xf32>
    %374 = vector.extract_strided_slice %367 {offsets = [0, 0, 0, 0], sizes = [1, 1, 8, 128], strides = [1, 1, 1, 1]} : vector<1x2x8x128xf32> to vector<1x1x8x128xf32>
    %375 = vector.shape_cast %374 : vector<1x1x8x128xf32> to vector<1x8x128xf32>
    %376 = vector.extract_strided_slice %367 {offsets = [0, 0, 0, 0], sizes = [1, 1, 8, 128], strides = [1, 1, 1, 1]} : vector<1x2x8x128xf32> to vector<1x1x8x128xf32>
    %377 = vector.shape_cast %376 : vector<1x1x8x128xf32> to vector<1x8x128xf32>
    %378 = arith.mulf %375, %377 : vector<1x8x128xf32>
    %379 = vector.extract_strided_slice %367 {offsets = [0, 1, 0, 0], sizes = [1, 1, 8, 128], strides = [1, 1, 1, 1]} : vector<1x2x8x128xf32> to vector<1x1x8x128xf32>
    %380 = vector.shape_cast %379 : vector<1x1x8x128xf32> to vector<1x8x128xf32>
    %381 = vector.extract_strided_slice %367 {offsets = [0, 1, 0, 0], sizes = [1, 1, 8, 128], strides = [1, 1, 1, 1]} : vector<1x2x8x128xf32> to vector<1x1x8x128xf32>
    %382 = vector.shape_cast %381 : vector<1x1x8x128xf32> to vector<1x8x128xf32>
    %383 = arith.mulf %380, %382 : vector<1x8x128xf32>
    %384 = arith.addf %378, %383 : vector<1x8x128xf32>
    %cst_17 = arith.constant 9.99999996E-13 : f32
    %385 = vector.broadcast %cst_17 : f32 to vector<1x8x128xf32>
    %386 = arith.maximumf %384, %385 : vector<1x8x128xf32>
    %387 = math.rsqrt %386 : vector<1x8x128xf32>
    %388 = arith.mulf %384, %387 : vector<1x8x128xf32>
    %389 = tpu.concatenate %388, %372 in 1 : vector<1x8x128xf32>, vector<1x16x128xf32> -> vector<1x24x128xf32>
    %390 = vector.shape_cast %389 : vector<1x24x128xf32> to vector<24x128xf32>
    %cst_18 = arith.constant dense<0.000000e+00> : vector<24x128xf32>
    %391 = tpu.matmul %373, %390, %cst_18 {dimension_numbers = #tpu.dot_dimension_numbers<[1], [0], [0], [1], [0, 0, 1, 1], [], []>} : vector<24x24xf32>, vector<24x128xf32>, vector<24x128xf32> -> vector<24x128xf32>
    %392 = vector.shape_cast %391 : vector<24x128xf32> to vector<1x24x128xf32>
    %cst_19 = arith.constant dense<0.000000e+00> : vector<1x128xf32>
    %393 = vector.multi_reduction <add>, %392, %cst_19 [1] : vector<1x24x128xf32> to vector<1x128xf32>
    %394 = vector.shape_cast %393 : vector<1x128xf32> to vector<1x1x128xf32>
    %cst_20 = arith.constant 2.400000e+01 : f32
    %395 = vector.broadcast %cst_20 : f32 to vector<1x1x128xf32>
    %396 = arith.divf %394, %395 : vector<1x1x128xf32>
    %397 = vector.broadcast %396 : vector<1x1x128xf32> to vector<1x24x128xf32>
    %398 = arith.subf %392, %397 : vector<1x24x128xf32>
    %399 = vector.broadcast %396 : vector<1x1x128xf32> to vector<1x24x128xf32>
    %400 = arith.subf %392, %399 : vector<1x24x128xf32>
    %401 = arith.mulf %398, %400 : vector<1x24x128xf32>
    %cst_21 = arith.constant dense<0.000000e+00> : vector<1x128xf32>
    %402 = vector.multi_reduction <add>, %401, %cst_21 [1] : vector<1x24x128xf32> to vector<1x128xf32>
    %403 = vector.shape_cast %402 : vector<1x128xf32> to vector<1x1x128xf32>
    %cst_22 = arith.constant 2.400000e+01 : f32
    %404 = vector.broadcast %cst_22 : f32 to vector<1x1x128xf32>
    %405 = arith.divf %403, %404 : vector<1x1x128xf32>
    %406 = vector.broadcast %396 : vector<1x1x128xf32> to vector<1x24x128xf32>
    %407 = arith.subf %392, %406 : vector<1x24x128xf32>
    %cst_23 = arith.constant 9.99999974E-6 : f32
    %408 = vector.broadcast %cst_23 : f32 to vector<1x1x128xf32>
    %409 = arith.addf %405, %408 : vector<1x1x128xf32>
    %410 = math.rsqrt %409 : vector<1x1x128xf32>
    %411 = vector.broadcast %410 : vector<1x1x128xf32> to vector<1x24x128xf32>
    %412 = arith.mulf %407, %411 : vector<1x24x128xf32>
    %413 = vector.extract_strided_slice %412 {offsets = [0, 0, 0], sizes = [1, 8, 128], strides = [1, 1, 1]} : vector<1x24x128xf32> to vector<1x8x128xf32>
    %414 = arith.mulf %413, %387 : vector<1x8x128xf32>
    %415 = vector.shape_cast %414 : vector<1x8x128xf32> to vector<1x1x8x128xf32>
    %416 = vector.broadcast %415 : vector<1x1x8x128xf32> to vector<1x2x8x128xf32>
    %417 = arith.mulf %367, %416 : vector<1x2x8x128xf32>
    %418 = vector.extract_strided_slice %412 {offsets = [0, 8, 0], sizes = [1, 16, 128], strides = [1, 1, 1]} : vector<1x24x128xf32> to vector<1x16x128xf32>
    %419 = vector.extract_strided_slice %417 {offsets = [0, 0, 0, 0], sizes = [1, 1, 8, 128], strides = [1, 1, 1, 1]} : vector<1x2x8x128xf32> to vector<1x1x8x128xf32>
    %420 = vector.shape_cast %419 : vector<1x1x8x128xf32> to vector<1x8x128xf32>
    %421 = vector.extract_strided_slice %417 {offsets = [0, 0, 0, 0], sizes = [1, 1, 8, 128], strides = [1, 1, 1, 1]} : vector<1x2x8x128xf32> to vector<1x1x8x128xf32>
    %422 = vector.shape_cast %421 : vector<1x1x8x128xf32> to vector<1x8x128xf32>
    %423 = arith.mulf %420, %422 : vector<1x8x128xf32>
    %424 = vector.extract_strided_slice %417 {offsets = [0, 1, 0, 0], sizes = [1, 1, 8, 128], strides = [1, 1, 1, 1]} : vector<1x2x8x128xf32> to vector<1x1x8x128xf32>
    %425 = vector.shape_cast %424 : vector<1x1x8x128xf32> to vector<1x8x128xf32>
    %426 = vector.extract_strided_slice %417 {offsets = [0, 1, 0, 0], sizes = [1, 1, 8, 128], strides = [1, 1, 1, 1]} : vector<1x2x8x128xf32> to vector<1x1x8x128xf32>
    %427 = vector.shape_cast %426 : vector<1x1x8x128xf32> to vector<1x8x128xf32>
    %428 = arith.mulf %425, %427 : vector<1x8x128xf32>
    %429 = arith.addf %423, %428 : vector<1x8x128xf32>
    %cst_24 = arith.constant 9.99999993E-9 : f32
    %430 = vector.broadcast %cst_24 : f32 to vector<1x8x128xf32>
    %431 = arith.maximumf %429, %430 : vector<1x8x128xf32>
    %432 = math.rsqrt %431 : vector<1x8x128xf32>
    %433 = arith.mulf %429, %432 : vector<1x8x128xf32>
    %cst_25 = arith.constant 9.99999974E-5 : f32
    %434 = vector.broadcast %cst_25 : f32 to vector<1x8x128xf32>
    %435 = arith.maximumf %433, %434 : vector<1x8x128xf32>
    %cst_26 = arith.constant dense<0.000000e+00> : vector<1x8xf32>
    %436 = vector.multi_reduction <add>, %435, %cst_26 [2] : vector<1x8x128xf32> to vector<1x8xf32>
    %cst_27 = arith.constant dense<0.000000e+00> : vector<8xf32>
    %437 = vector.multi_reduction <add>, %436, %cst_27 [0] : vector<1x8xf32> to vector<8xf32>
    %438 = vector.shape_cast %437 : vector<8xf32> to vector<1x8xf32>
    %cst_28 = arith.constant dense<0.000000e+00> : vector<1x16xf32>
    %439 = vector.multi_reduction <add>, %418, %cst_28 [2] : vector<1x16x128xf32> to vector<1x16xf32>
    %cst_29 = arith.constant dense<0.000000e+00> : vector<16xf32>
    %440 = vector.multi_reduction <add>, %439, %cst_29 [0] : vector<1x16xf32> to vector<16xf32>
    %441 = vector.shape_cast %440 : vector<16xf32> to vector<1x16xf32>
    %442 = tpu.concatenate %438, %441 in 1 : vector<1x8xf32>, vector<1x16xf32> -> vector<1x24xf32>
    %443 = arith.mulf %435, %435 : vector<1x8x128xf32>
    %cst_30 = arith.constant dense<0.000000e+00> : vector<1x8xf32>
    %444 = vector.multi_reduction <add>, %443, %cst_30 [2] : vector<1x8x128xf32> to vector<1x8xf32>
    %cst_31 = arith.constant dense<0.000000e+00> : vector<8xf32>
    %445 = vector.multi_reduction <add>, %444, %cst_31 [0] : vector<1x8xf32> to vector<8xf32>
    %446 = vector.shape_cast %445 : vector<8xf32> to vector<1x8xf32>
    %447 = arith.mulf %418, %418 : vector<1x16x128xf32>
    %cst_32 = arith.constant dense<0.000000e+00> : vector<1x16xf32>
    %448 = vector.multi_reduction <add>, %447, %cst_32 [2] : vector<1x16x128xf32> to vector<1x16xf32>
    %cst_33 = arith.constant dense<0.000000e+00> : vector<16xf32>
    %449 = vector.multi_reduction <add>, %448, %cst_33 [0] : vector<1x16xf32> to vector<16xf32>
    %450 = vector.shape_cast %449 : vector<16xf32> to vector<1x16xf32>
    %451 = tpu.concatenate %446, %450 in 1 : vector<1x8xf32>, vector<1x16xf32> -> vector<1x24xf32>
    %452 = tpu.concatenate %442, %451 in 0 : vector<1x24xf32>, vector<1x24xf32> -> vector<2x24xf32>
    %453 = vector.shape_cast %452 : vector<2x24xf32> to vector<1x2x24xf32>
    %c0_34 = arith.constant 0 : index
    %c0_35 = arith.constant 0 : index
    %c0_36 = arith.constant 0 : index
    %454 = vector.load %arg13[%c0_34, %c0_35, %c0_36] : memref<1x2x24xf32, #tpu.memory_space<vmem>>, vector<1x2x24xf32>
    tpu.vector_store %arg13[%c0_34, %c0_35, %c0_36], %453 {strides = array<i32>} : memref<1x2x24xf32, #tpu.memory_space<vmem>>, vector<1x2x24xf32>,
    %c0_37 = arith.constant 0 : index
    %c0_38 = arith.constant 0 : index
    %c0_39 = arith.constant 0 : index
    %c0_40 = arith.constant 0 : index
    %455 = vector.load %arg11[%c0_37, %c0_38, %c0_39, %c0_40] : memref<1x2x8x128xf32, #tpu.memory_space<vmem>>, vector<1x2x8x128xf32>
    tpu.vector_store %arg11[%c0_37, %c0_38, %c0_39, %c0_40], %417 {strides = array<i32>} : memref<1x2x8x128xf32, #tpu.memory_space<vmem>>, vector<1x2x8x128xf32>,
    %c0_41 = arith.constant 0 : index
    %c0_42 = arith.constant 0 : index
    %c0_43 = arith.constant 0 : index
    %456 = vector.load %arg12[%c0_41, %c0_42, %c0_43] : memref<1x16x128xf32, #tpu.memory_space<vmem>>, vector<1x16x128xf32>
    tpu.vector_store %arg12[%c0_41, %c0_42, %c0_43], %418 {strides = array<i32>} : memref<1x16x128xf32, #tpu.memory_space<vmem>>, vector<1x16x128xf32>,
    %c0_44 = arith.constant 0 : index
    %c0_45 = arith.constant 0 : index
    %457 = vector.load %arg7[%c0_44, %c0_45] : memref<8x8xf32, #tpu.memory_space<vmem>>, vector<8x8xf32>
    %458 = vector.extract_strided_slice %0 {offsets = [0, 0, 0, 0], sizes = [1, 2, 1, 128], strides = [1, 1, 1, 1]} : vector<1x2x8x128xf32> to vector<1x2x1x128xf32>
    %459 = vector.extract_strided_slice %457 {offsets = [0, 0], sizes = [8, 1], strides = [1, 1]} : vector<8x8xf32> to vector<8x1xf32>
    %460 = vector.shape_cast %459 : vector<8x1xf32> to vector<1x1x8x1xf32>
    %461 = vector.broadcast %458 : vector<1x2x1x128xf32> to vector<1x2x8x128xf32>
    %462 = vector.broadcast %460 : vector<1x1x8x1xf32> to vector<1x2x8x128xf32>
    %463 = arith.mulf %461, %462 : vector<1x2x8x128xf32>
    %464 = vector.extract_strided_slice %0 {offsets = [0, 0, 1, 0], sizes = [1, 2, 1, 128], strides = [1, 1, 1, 1]} : vector<1x2x8x128xf32> to vector<1x2x1x128xf32>
    %465 = vector.extract_strided_slice %457 {offsets = [0, 1], sizes = [8, 1], strides = [1, 1]} : vector<8x8xf32> to vector<8x1xf32>
    %466 = vector.shape_cast %465 : vector<8x1xf32> to vector<1x1x8x1xf32>
    %467 = vector.broadcast %464 : vector<1x2x1x128xf32> to vector<1x2x8x128xf32>
    %468 = vector.broadcast %466 : vector<1x1x8x1xf32> to vector<1x2x8x128xf32>
    %469 = arith.mulf %467, %468 : vector<1x2x8x128xf32>
    %470 = vector.extract_strided_slice %0 {offsets = [0, 0, 2, 0], sizes = [1, 2, 1, 128], strides = [1, 1, 1, 1]} : vector<1x2x8x128xf32> to vector<1x2x1x128xf32>
    %471 = vector.extract_strided_slice %457 {offsets = [0, 2], sizes = [8, 1], strides = [1, 1]} : vector<8x8xf32> to vector<8x1xf32>
    %472 = vector.shape_cast %471 : vector<8x1xf32> to vector<1x1x8x1xf32>
    %473 = vector.broadcast %470 : vector<1x2x1x128xf32> to vector<1x2x8x128xf32>
    %474 = vector.broadcast %472 : vector<1x1x8x1xf32> to vector<1x2x8x128xf32>
    %475 = arith.mulf %473, %474 : vector<1x2x8x128xf32>
    %476 = vector.extract_strided_slice %0 {offsets = [0, 0, 3, 0], sizes = [1, 2, 1, 128], strides = [1, 1, 1, 1]} : vector<1x2x8x128xf32> to vector<1x2x1x128xf32>
    %477 = vector.extract_strided_slice %457 {offsets = [0, 3], sizes = [8, 1], strides = [1, 1]} : vector<8x8xf32> to vector<8x1xf32>
    %478 = vector.shape_cast %477 : vector<8x1xf32> to vector<1x1x8x1xf32>
    %479 = vector.broadcast %476 : vector<1x2x1x128xf32> to vector<1x2x8x128xf32>
    %480 = vector.broadcast %478 : vector<1x1x8x1xf32> to vector<1x2x8x128xf32>
    %481 = arith.mulf %479, %480 : vector<1x2x8x128xf32>
    %482 = vector.extract_strided_slice %0 {offsets = [0, 0, 4, 0], sizes = [1, 2, 1, 128], strides = [1, 1, 1, 1]} : vector<1x2x8x128xf32> to vector<1x2x1x128xf32>
    %483 = vector.extract_strided_slice %457 {offsets = [0, 4], sizes = [8, 1], strides = [1, 1]} : vector<8x8xf32> to vector<8x1xf32>
    %484 = vector.shape_cast %483 : vector<8x1xf32> to vector<1x1x8x1xf32>
    %485 = vector.broadcast %482 : vector<1x2x1x128xf32> to vector<1x2x8x128xf32>
    %486 = vector.broadcast %484 : vector<1x1x8x1xf32> to vector<1x2x8x128xf32>
    %487 = arith.mulf %485, %486 : vector<1x2x8x128xf32>
    %488 = arith.addf %463, %487 : vector<1x2x8x128xf32>
    %489 = vector.extract_strided_slice %0 {offsets = [0, 0, 5, 0], sizes = [1, 2, 1, 128], strides = [1, 1, 1, 1]} : vector<1x2x8x128xf32> to vector<1x2x1x128xf32>
    %490 = vector.extract_strided_slice %457 {offsets = [0, 5], sizes = [8, 1], strides = [1, 1]} : vector<8x8xf32> to vector<8x1xf32>
    %491 = vector.shape_cast %490 : vector<8x1xf32> to vector<1x1x8x1xf32>
    %492 = vector.broadcast %489 : vector<1x2x1x128xf32> to vector<1x2x8x128xf32>
    %493 = vector.broadcast %491 : vector<1x1x8x1xf32> to vector<1x2x8x128xf32>
    %494 = arith.mulf %492, %493 : vector<1x2x8x128xf32>
    %495 = arith.addf %469, %494 : vector<1x2x8x128xf32>
    %496 = vector.extract_strided_slice %0 {offsets = [0, 0, 6, 0], sizes = [1, 2, 1, 128], strides = [1, 1, 1, 1]} : vector<1x2x8x128xf32> to vector<1x2x1x128xf32>
    %497 = vector.extract_strided_slice %457 {offsets = [0, 6], sizes = [8, 1], strides = [1, 1]} : vector<8x8xf32> to vector<8x1xf32>
    %498 = vector.shape_cast %497 : vector<8x1xf32> to vector<1x1x8x1xf32>
    %499 = vector.broadcast %496 : vector<1x2x1x128xf32> to vector<1x2x8x128xf32>
    %500 = vector.broadcast %498 : vector<1x1x8x1xf32> to vector<1x2x8x128xf32>
    %501 = arith.mulf %499, %500 : vector<1x2x8x128xf32>
    %502 = arith.addf %475, %501 : vector<1x2x8x128xf32>
    %503 = vector.extract_strided_slice %0 {offsets = [0, 0, 7, 0], sizes = [1, 2, 1, 128], strides = [1, 1, 1, 1]} : vector<1x2x8x128xf32> to vector<1x2x1x128xf32>
    %504 = vector.extract_strided_slice %457 {offsets = [0, 7], sizes = [8, 1], strides = [1, 1]} : vector<8x8xf32> to vector<8x1xf32>
    %505 = vector.shape_cast %504 : vector<8x1xf32> to vector<1x1x8x1xf32>
    %506 = vector.broadcast %503 : vector<1x2x1x128xf32> to vector<1x2x8x128xf32>
    %507 = vector.broadcast %505 : vector<1x1x8x1xf32> to vector<1x2x8x128xf32>
    %508 = arith.mulf %506, %507 : vector<1x2x8x128xf32>
    %509 = arith.addf %481, %508 : vector<1x2x8x128xf32>
    %510 = arith.addf %488, %495 : vector<1x2x8x128xf32>
    %511 = arith.addf %502, %509 : vector<1x2x8x128xf32>
    %512 = arith.addf %510, %511 : vector<1x2x8x128xf32>
    %c0_46 = arith.constant 0 : index
    %c0_47 = arith.constant 0 : index
    %513 = vector.load %arg8[%c0_46, %c0_47] : memref<8x8xf32, #tpu.memory_space<vmem>>, vector<8x8xf32>
    %514 = vector.extract_strided_slice %0 {offsets = [0, 0, 0, 0], sizes = [1, 2, 1, 128], strides = [1, 1, 1, 1]} : vector<1x2x8x128xf32> to vector<1x2x1x128xf32>
    %515 = vector.extract_strided_slice %513 {offsets = [0, 0], sizes = [8, 1], strides = [1, 1]} : vector<8x8xf32> to vector<8x1xf32>
    %516 = vector.shape_cast %515 : vector<8x1xf32> to vector<1x1x8x1xf32>
    %517 = vector.broadcast %514 : vector<1x2x1x128xf32> to vector<1x2x8x128xf32>
    %518 = vector.broadcast %516 : vector<1x1x8x1xf32> to vector<1x2x8x128xf32>
    %519 = arith.mulf %517, %518 : vector<1x2x8x128xf32>
    %520 = vector.extract_strided_slice %0 {offsets = [0, 0, 1, 0], sizes = [1, 2, 1, 128], strides = [1, 1, 1, 1]} : vector<1x2x8x128xf32> to vector<1x2x1x128xf32>
    %521 = vector.extract_strided_slice %513 {offsets = [0, 1], sizes = [8, 1], strides = [1, 1]} : vector<8x8xf32> to vector<8x1xf32>
    %522 = vector.shape_cast %521 : vector<8x1xf32> to vector<1x1x8x1xf32>
    %523 = vector.broadcast %520 : vector<1x2x1x128xf32> to vector<1x2x8x128xf32>
    %524 = vector.broadcast %522 : vector<1x1x8x1xf32> to vector<1x2x8x128xf32>
    %525 = arith.mulf %523, %524 : vector<1x2x8x128xf32>
    %526 = vector.extract_strided_slice %0 {offsets = [0, 0, 2, 0], sizes = [1, 2, 1, 128], strides = [1, 1, 1, 1]} : vector<1x2x8x128xf32> to vector<1x2x1x128xf32>
    %527 = vector.extract_strided_slice %513 {offsets = [0, 2], sizes = [8, 1], strides = [1, 1]} : vector<8x8xf32> to vector<8x1xf32>
    %528 = vector.shape_cast %527 : vector<8x1xf32> to vector<1x1x8x1xf32>
    %529 = vector.broadcast %526 : vector<1x2x1x128xf32> to vector<1x2x8x128xf32>
    %530 = vector.broadcast %528 : vector<1x1x8x1xf32> to vector<1x2x8x128xf32>
    %531 = arith.mulf %529, %530 : vector<1x2x8x128xf32>
    %532 = vector.extract_strided_slice %0 {offsets = [0, 0, 3, 0], sizes = [1, 2, 1, 128], strides = [1, 1, 1, 1]} : vector<1x2x8x128xf32> to vector<1x2x1x128xf32>
    %533 = vector.extract_strided_slice %513 {offsets = [0, 3], sizes = [8, 1], strides = [1, 1]} : vector<8x8xf32> to vector<8x1xf32>
    %534 = vector.shape_cast %533 : vector<8x1xf32> to vector<1x1x8x1xf32>
    %535 = vector.broadcast %532 : vector<1x2x1x128xf32> to vector<1x2x8x128xf32>
    %536 = vector.broadcast %534 : vector<1x1x8x1xf32> to vector<1x2x8x128xf32>
    %537 = arith.mulf %535, %536 : vector<1x2x8x128xf32>
    %538 = vector.extract_strided_slice %0 {offsets = [0, 0, 4, 0], sizes = [1, 2, 1, 128], strides = [1, 1, 1, 1]} : vector<1x2x8x128xf32> to vector<1x2x1x128xf32>
    %539 = vector.extract_strided_slice %513 {offsets = [0, 4], sizes = [8, 1], strides = [1, 1]} : vector<8x8xf32> to vector<8x1xf32>
    %540 = vector.shape_cast %539 : vector<8x1xf32> to vector<1x1x8x1xf32>
    %541 = vector.broadcast %538 : vector<1x2x1x128xf32> to vector<1x2x8x128xf32>
    %542 = vector.broadcast %540 : vector<1x1x8x1xf32> to vector<1x2x8x128xf32>
    %543 = arith.mulf %541, %542 : vector<1x2x8x128xf32>
    %544 = arith.addf %519, %543 : vector<1x2x8x128xf32>
    %545 = vector.extract_strided_slice %0 {offsets = [0, 0, 5, 0], sizes = [1, 2, 1, 128], strides = [1, 1, 1, 1]} : vector<1x2x8x128xf32> to vector<1x2x1x128xf32>
    %546 = vector.extract_strided_slice %513 {offsets = [0, 5], sizes = [8, 1], strides = [1, 1]} : vector<8x8xf32> to vector<8x1xf32>
    %547 = vector.shape_cast %546 : vector<8x1xf32> to vector<1x1x8x1xf32>
    %548 = vector.broadcast %545 : vector<1x2x1x128xf32> to vector<1x2x8x128xf32>
    %549 = vector.broadcast %547 : vector<1x1x8x1xf32> to vector<1x2x8x128xf32>
    %550 = arith.mulf %548, %549 : vector<1x2x8x128xf32>
    %551 = arith.addf %525, %550 : vector<1x2x8x128xf32>
    %552 = vector.extract_strided_slice %0 {offsets = [0, 0, 6, 0], sizes = [1, 2, 1, 128], strides = [1, 1, 1, 1]} : vector<1x2x8x128xf32> to vector<1x2x1x128xf32>
    %553 = vector.extract_strided_slice %513 {offsets = [0, 6], sizes = [8, 1], strides = [1, 1]} : vector<8x8xf32> to vector<8x1xf32>
    %554 = vector.shape_cast %553 : vector<8x1xf32> to vector<1x1x8x1xf32>
    %555 = vector.broadcast %552 : vector<1x2x1x128xf32> to vector<1x2x8x128xf32>
    %556 = vector.broadcast %554 : vector<1x1x8x1xf32> to vector<1x2x8x128xf32>
    %557 = arith.mulf %555, %556 : vector<1x2x8x128xf32>
    %558 = arith.addf %531, %557 : vector<1x2x8x128xf32>
    %559 = vector.extract_strided_slice %0 {offsets = [0, 0, 7, 0], sizes = [1, 2, 1, 128], strides = [1, 1, 1, 1]} : vector<1x2x8x128xf32> to vector<1x2x1x128xf32>
    %560 = vector.extract_strided_slice %513 {offsets = [0, 7], sizes = [8, 1], strides = [1, 1]} : vector<8x8xf32> to vector<8x1xf32>
    %561 = vector.shape_cast %560 : vector<8x1xf32> to vector<1x1x8x1xf32>
    %562 = vector.broadcast %559 : vector<1x2x1x128xf32> to vector<1x2x8x128xf32>
    %563 = vector.broadcast %561 : vector<1x1x8x1xf32> to vector<1x2x8x128xf32>
    %564 = arith.mulf %562, %563 : vector<1x2x8x128xf32>
    %565 = arith.addf %537, %564 : vector<1x2x8x128xf32>
    %566 = arith.addf %544, %551 : vector<1x2x8x128xf32>
    %567 = arith.addf %558, %565 : vector<1x2x8x128xf32>
    %568 = arith.addf %566, %567 : vector<1x2x8x128xf32>
    %569 = vector.extract_strided_slice %568 {offsets = [0, 1, 0, 0], sizes = [1, 1, 8, 128], strides = [1, 1, 1, 1]} : vector<1x2x8x128xf32> to vector<1x1x8x128xf32>
    %cst_48 = arith.constant 0.000000e+00 : f32
    %570 = vector.broadcast %cst_48 : f32 to vector<1x1x8x128xf32>
    %571 = arith.subf %570, %569 : vector<1x1x8x128xf32>
    %572 = vector.extract_strided_slice %568 {offsets = [0, 0, 0, 0], sizes = [1, 1, 8, 128], strides = [1, 1, 1, 1]} : vector<1x2x8x128xf32> to vector<1x1x8x128xf32>
    %573 = tpu.concatenate %571, %572 in 1 : vector<1x1x8x128xf32>, vector<1x1x8x128xf32> -> vector<1x2x8x128xf32>
    %574 = arith.addf %512, %573 : vector<1x2x8x128xf32>
    %c0_49 = arith.constant 0 : index
    %c0_50 = arith.constant 0 : index
    %575 = vector.load %arg9[%c0_49, %c0_50] : memref<16x16xf32, #tpu.memory_space<vmem>>, vector<16x16xf32>
    %576 = vector.shape_cast %1 : vector<1x16x128xf32> to vector<16x128xf32>
    %cst_51 = arith.constant dense<0.000000e+00> : vector<16x128xf32>
    %577 = tpu.matmul %575, %576, %cst_51 {dimension_numbers = #tpu.dot_dimension_numbers<[1], [0], [0], [1], [0, 0, 1, 1], [], []>} : vector<16x16xf32>, vector<16x128xf32>, vector<16x128xf32> -> vector<16x128xf32>
    %578 = vector.shape_cast %577 : vector<16x128xf32> to vector<1x16x128xf32>
    %c0_52 = arith.constant 0 : index
    %c0_53 = arith.constant 0 : index
    %579 = vector.load %arg10[%c0_52, %c0_53] : memref<24x24xf32, #tpu.memory_space<vmem>>, vector<24x24xf32>
    %580 = vector.extract_strided_slice %574 {offsets = [0, 0, 0, 0], sizes = [1, 1, 8, 128], strides = [1, 1, 1, 1]} : vector<1x2x8x128xf32> to vector<1x1x8x128xf32>
    %581 = vector.shape_cast %580 : vector<1x1x8x128xf32> to vector<1x8x128xf32>
    %582 = vector.extract_strided_slice %574 {offsets = [0, 0, 0, 0], sizes = [1, 1, 8, 128], strides = [1, 1, 1, 1]} : vector<1x2x8x128xf32> to vector<1x1x8x128xf32>
    %583 = vector.shape_cast %582 : vector<1x1x8x128xf32> to vector<1x8x128xf32>
    %584 = arith.mulf %581, %583 : vector<1x8x128xf32>
    %585 = vector.extract_strided_slice %574 {offsets = [0, 1, 0, 0], sizes = [1, 1, 8, 128], strides = [1, 1, 1, 1]} : vector<1x2x8x128xf32> to vector<1x1x8x128xf32>
    %586 = vector.shape_cast %585 : vector<1x1x8x128xf32> to vector<1x8x128xf32>
    %587 = vector.extract_strided_slice %574 {offsets = [0, 1, 0, 0], sizes = [1, 1, 8, 128], strides = [1, 1, 1, 1]} : vector<1x2x8x128xf32> to vector<1x1x8x128xf32>
    %588 = vector.shape_cast %587 : vector<1x1x8x128xf32> to vector<1x8x128xf32>
    %589 = arith.mulf %586, %588 : vector<1x8x128xf32>
    %590 = arith.addf %584, %589 : vector<1x8x128xf32>
    %cst_54 = arith.constant 9.99999996E-13 : f32
    %591 = vector.broadcast %cst_54 : f32 to vector<1x8x128xf32>
    %592 = arith.maximumf %590, %591 : vector<1x8x128xf32>
    %593 = math.rsqrt %592 : vector<1x8x128xf32>
    %594 = arith.mulf %590, %593 : vector<1x8x128xf32>
    %595 = tpu.concatenate %594, %578 in 1 : vector<1x8x128xf32>, vector<1x16x128xf32> -> vector<1x24x128xf32>
    %596 = vector.shape_cast %595 : vector<1x24x128xf32> to vector<24x128xf32>
    %cst_55 = arith.constant dense<0.000000e+00> : vector<24x128xf32>
    %597 = tpu.matmul %579, %596, %cst_55 {dimension_numbers = #tpu.dot_dimension_numbers<[1], [0], [0], [1], [0, 0, 1, 1], [], []>} : vector<24x24xf32>, vector<24x128xf32>, vector<24x128xf32> -> vector<24x128xf32>
    %598 = vector.shape_cast %597 : vector<24x128xf32> to vector<1x24x128xf32>
    %cst_56 = arith.constant dense<0.000000e+00> : vector<1x128xf32>
    %599 = vector.multi_reduction <add>, %598, %cst_56 [1] : vector<1x24x128xf32> to vector<1x128xf32>
    %600 = vector.shape_cast %599 : vector<1x128xf32> to vector<1x1x128xf32>
    %cst_57 = arith.constant 2.400000e+01 : f32
    %601 = vector.broadcast %cst_57 : f32 to vector<1x1x128xf32>
    %602 = arith.divf %600, %601 : vector<1x1x128xf32>
    %603 = vector.broadcast %602 : vector<1x1x128xf32> to vector<1x24x128xf32>
    %604 = arith.subf %598, %603 : vector<1x24x128xf32>
    %605 = vector.broadcast %602 : vector<1x1x128xf32> to vector<1x24x128xf32>
    %606 = arith.subf %598, %605 : vector<1x24x128xf32>
    %607 = arith.mulf %604, %606 : vector<1x24x128xf32>
    %cst_58 = arith.constant dense<0.000000e+00> : vector<1x128xf32>
    %608 = vector.multi_reduction <add>, %607, %cst_58 [1] : vector<1x24x128xf32> to vector<1x128xf32>
    %609 = vector.shape_cast %608 : vector<1x128xf32> to vector<1x1x128xf32>
    %cst_59 = arith.constant 2.400000e+01 : f32
    %610 = vector.broadcast %cst_59 : f32 to vector<1x1x128xf32>
    %611 = arith.divf %609, %610 : vector<1x1x128xf32>
    %612 = vector.broadcast %602 : vector<1x1x128xf32> to vector<1x24x128xf32>
    %613 = arith.subf %598, %612 : vector<1x24x128xf32>
    %cst_60 = arith.constant 9.99999974E-6 : f32
    %614 = vector.broadcast %cst_60 : f32 to vector<1x1x128xf32>
    %615 = arith.addf %611, %614 : vector<1x1x128xf32>
    %616 = math.rsqrt %615 : vector<1x1x128xf32>
    %617 = vector.broadcast %616 : vector<1x1x128xf32> to vector<1x24x128xf32>
    %618 = arith.mulf %613, %617 : vector<1x24x128xf32>
    %619 = vector.extract_strided_slice %618 {offsets = [0, 0, 0], sizes = [1, 8, 128], strides = [1, 1, 1]} : vector<1x24x128xf32> to vector<1x8x128xf32>
    %620 = arith.mulf %619, %593 : vector<1x8x128xf32>
    %621 = vector.shape_cast %620 : vector<1x8x128xf32> to vector<1x1x8x128xf32>
    %622 = vector.broadcast %621 : vector<1x1x8x128xf32> to vector<1x2x8x128xf32>
    %623 = arith.mulf %574, %622 : vector<1x2x8x128xf32>
    %624 = vector.extract_strided_slice %618 {offsets = [0, 8, 0], sizes = [1, 16, 128], strides = [1, 1, 1]} : vector<1x24x128xf32> to vector<1x16x128xf32>
    %625 = vector.extract_strided_slice %623 {offsets = [0, 0, 0, 0], sizes = [1, 1, 8, 128], strides = [1, 1, 1, 1]} : vector<1x2x8x128xf32> to vector<1x1x8x128xf32>
    %626 = vector.shape_cast %625 : vector<1x1x8x128xf32> to vector<1x8x128xf32>
    %627 = vector.extract_strided_slice %623 {offsets = [0, 0, 0, 0], sizes = [1, 1, 8, 128], strides = [1, 1, 1, 1]} : vector<1x2x8x128xf32> to vector<1x1x8x128xf32>
    %628 = vector.shape_cast %627 : vector<1x1x8x128xf32> to vector<1x8x128xf32>
    %629 = arith.mulf %626, %628 : vector<1x8x128xf32>
    %630 = vector.extract_strided_slice %623 {offsets = [0, 1, 0, 0], sizes = [1, 1, 8, 128], strides = [1, 1, 1, 1]} : vector<1x2x8x128xf32> to vector<1x1x8x128xf32>
    %631 = vector.shape_cast %630 : vector<1x1x8x128xf32> to vector<1x8x128xf32>
    %632 = vector.extract_strided_slice %623 {offsets = [0, 1, 0, 0], sizes = [1, 1, 8, 128], strides = [1, 1, 1, 1]} : vector<1x2x8x128xf32> to vector<1x1x8x128xf32>
    %633 = vector.shape_cast %632 : vector<1x1x8x128xf32> to vector<1x8x128xf32>
    %634 = arith.mulf %631, %633 : vector<1x8x128xf32>
    %635 = arith.addf %629, %634 : vector<1x8x128xf32>
    %cst_61 = arith.constant 9.99999993E-9 : f32
    %636 = vector.broadcast %cst_61 : f32 to vector<1x8x128xf32>
    %637 = arith.maximumf %635, %636 : vector<1x8x128xf32>
    %638 = math.rsqrt %637 : vector<1x8x128xf32>
    %639 = arith.mulf %635, %638 : vector<1x8x128xf32>
    %cst_62 = arith.constant 9.99999974E-5 : f32
    %640 = vector.broadcast %cst_62 : f32 to vector<1x8x128xf32>
    %641 = arith.maximumf %639, %640 : vector<1x8x128xf32>
    %cst_63 = arith.constant dense<0.000000e+00> : vector<1x8xf32>
    %642 = vector.multi_reduction <add>, %641, %cst_63 [2] : vector<1x8x128xf32> to vector<1x8xf32>
    %cst_64 = arith.constant dense<0.000000e+00> : vector<8xf32>
    %643 = vector.multi_reduction <add>, %642, %cst_64 [0] : vector<1x8xf32> to vector<8xf32>
    %644 = vector.shape_cast %643 : vector<8xf32> to vector<1x8xf32>
    %cst_65 = arith.constant dense<0.000000e+00> : vector<1x16xf32>
    %645 = vector.multi_reduction <add>, %624, %cst_65 [2] : vector<1x16x128xf32> to vector<1x16xf32>
    %cst_66 = arith.constant dense<0.000000e+00> : vector<16xf32>
    %646 = vector.multi_reduction <add>, %645, %cst_66 [0] : vector<1x16xf32> to vector<16xf32>
    %647 = vector.shape_cast %646 : vector<16xf32> to vector<1x16xf32>
    %648 = tpu.concatenate %644, %647 in 1 : vector<1x8xf32>, vector<1x16xf32> -> vector<1x24xf32>
    %649 = arith.mulf %641, %641 : vector<1x8x128xf32>
    %cst_67 = arith.constant dense<0.000000e+00> : vector<1x8xf32>
    %650 = vector.multi_reduction <add>, %649, %cst_67 [2] : vector<1x8x128xf32> to vector<1x8xf32>
    %cst_68 = arith.constant dense<0.000000e+00> : vector<8xf32>
    %651 = vector.multi_reduction <add>, %650, %cst_68 [0] : vector<1x8xf32> to vector<8xf32>
    %652 = vector.shape_cast %651 : vector<8xf32> to vector<1x8xf32>
    %653 = arith.mulf %624, %624 : vector<1x16x128xf32>
    %cst_69 = arith.constant dense<0.000000e+00> : vector<1x16xf32>
    %654 = vector.multi_reduction <add>, %653, %cst_69 [2] : vector<1x16x128xf32> to vector<1x16xf32>
    %cst_70 = arith.constant dense<0.000000e+00> : vector<16xf32>
    %655 = vector.multi_reduction <add>, %654, %cst_70 [0] : vector<1x16xf32> to vector<16xf32>
    %656 = vector.shape_cast %655 : vector<16xf32> to vector<1x16xf32>
    %657 = tpu.concatenate %652, %656 in 1 : vector<1x8xf32>, vector<1x16xf32> -> vector<1x24xf32>
    %658 = tpu.concatenate %648, %657 in 0 : vector<1x24xf32>, vector<1x24xf32> -> vector<2x24xf32>
    %659 = vector.shape_cast %658 : vector<2x24xf32> to vector<1x2x24xf32>
    %c0_71 = arith.constant 0 : index
    %c0_72 = arith.constant 0 : index
    %c0_73 = arith.constant 0 : index
    %660 = vector.load %arg16[%c0_71, %c0_72, %c0_73] : memref<1x2x24xf32, #tpu.memory_space<vmem>>, vector<1x2x24xf32>
    tpu.vector_store %arg16[%c0_71, %c0_72, %c0_73], %659 {strides = array<i32>} : memref<1x2x24xf32, #tpu.memory_space<vmem>>, vector<1x2x24xf32>,
    %c0_74 = arith.constant 0 : index
    %c0_75 = arith.constant 0 : index
    %c0_76 = arith.constant 0 : index
    %c0_77 = arith.constant 0 : index
    %661 = vector.load %arg14[%c0_74, %c0_75, %c0_76, %c0_77] : memref<1x2x8x128xf32, #tpu.memory_space<vmem>>, vector<1x2x8x128xf32>
    tpu.vector_store %arg14[%c0_74, %c0_75, %c0_76, %c0_77], %623 {strides = array<i32>} : memref<1x2x8x128xf32, #tpu.memory_space<vmem>>, vector<1x2x8x128xf32>,
    %c0_78 = arith.constant 0 : index
    %c0_79 = arith.constant 0 : index
    %c0_80 = arith.constant 0 : index
    %662 = vector.load %arg15[%c0_78, %c0_79, %c0_80] : memref<1x16x128xf32, #tpu.memory_space<vmem>>, vector<1x16x128xf32>
    tpu.vector_store %arg15[%c0_78, %c0_79, %c0_80], %624 {strides = array<i32>} : memref<1x16x128xf32, #tpu.memory_space<vmem>>, vector<1x16x128xf32>,
    return
  }
  func.func @transform_0(%arg0: i32) -> (i32, i32, i32, i32) {
    %c0_i32 = arith.constant 0 : i32
    %c0_i32_0 = arith.constant 0 : i32
    %c0_i32_1 = arith.constant 0 : i32
    %c0_i32_2 = arith.constant 0 : i32
    return %arg0, %c0_i32, %c0_i32_0, %c0_i32_1 : i32, i32, i32, i32
  }
  func.func @transform_1(%arg0: i32) -> (i32, i32, i32) {
    %c0_i32 = arith.constant 0 : i32
    %c0_i32_0 = arith.constant 0 : i32
    %c0_i32_1 = arith.constant 0 : i32
    return %arg0, %c0_i32, %c0_i32_0 : i32, i32, i32
  }
  func.func @transform_2(%arg0: i32) -> (i32, i32, i32) {
    %c0_i32 = arith.constant 0 : i32
    %c0_i32_0 = arith.constant 0 : i32
    %c0_i32_1 = arith.constant 0 : i32
    %c0_i32_2 = arith.constant 0 : i32
    return %c0_i32, %c0_i32_0, %c0_i32_1 : i32, i32, i32
  }
  func.func @transform_3(%arg0: i32) -> (i32, i32, i32) {
    %c0_i32 = arith.constant 0 : i32
    %c0_i32_0 = arith.constant 0 : i32
    %c0_i32_1 = arith.constant 0 : i32
    %c0_i32_2 = arith.constant 0 : i32
    return %c0_i32, %c0_i32_0, %c0_i32_1 : i32, i32, i32
  }
  func.func @transform_4(%arg0: i32) -> (i32, i32) {
    %c0_i32 = arith.constant 0 : i32
    %c0_i32_0 = arith.constant 0 : i32
    %c0_i32_1 = arith.constant 0 : i32
    return %c0_i32, %c0_i32_0 : i32, i32
  }
  func.func @transform_5(%arg0: i32) -> (i32, i32) {
    %c0_i32 = arith.constant 0 : i32
    %c0_i32_0 = arith.constant 0 : i32
    %c0_i32_1 = arith.constant 0 : i32
    return %c0_i32, %c0_i32_0 : i32, i32
  }
  func.func @transform_6(%arg0: i32) -> (i32, i32) {
    %c0_i32 = arith.constant 0 : i32
    %c0_i32_0 = arith.constant 0 : i32
    %c0_i32_1 = arith.constant 0 : i32
    return %c0_i32, %c0_i32_0 : i32, i32
  }
  func.func @transform_7(%arg0: i32) -> (i32, i32) {
    %c0_i32 = arith.constant 0 : i32
    %c0_i32_0 = arith.constant 0 : i32
    %c0_i32_1 = arith.constant 0 : i32
    return %c0_i32, %c0_i32_0 : i32, i32
  }
  func.func @transform_8(%arg0: i32) -> (i32, i32) {
    %c0_i32 = arith.constant 0 : i32
    %c0_i32_0 = arith.constant 0 : i32
    %c0_i32_1 = arith.constant 0 : i32
    return %c0_i32, %c0_i32_0 : i32, i32
  }
  func.func @transform_9(%arg0: i32) -> (i32, i32) {
    %c0_i32 = arith.constant 0 : i32
    %c0_i32_0 = arith.constant 0 : i32
    %c0_i32_1 = arith.constant 0 : i32
    return %c0_i32, %c0_i32_0 : i32, i32
  }
  func.func @transform_10(%arg0: i32) -> (i32, i32, i32, i32) {
    %c0_i32 = arith.constant 0 : i32
    %c0_i32_0 = arith.constant 0 : i32
    %c0_i32_1 = arith.constant 0 : i32
    %c0_i32_2 = arith.constant 0 : i32
    return %arg0, %c0_i32, %c0_i32_0, %c0_i32_1 : i32, i32, i32, i32
  }
  func.func @transform_11(%arg0: i32) -> (i32, i32, i32) {
    %c0_i32 = arith.constant 0 : i32
    %c0_i32_0 = arith.constant 0 : i32
    %c0_i32_1 = arith.constant 0 : i32
    return %arg0, %c0_i32, %c0_i32_0 : i32, i32, i32
  }
  func.func @transform_12(%arg0: i32) -> (i32, i32, i32) {
    %c0_i32 = arith.constant 0 : i32
    %c0_i32_0 = arith.constant 0 : i32
    %c0_i32_1 = arith.constant 0 : i32
    return %arg0, %c0_i32, %c0_i32_0 : i32, i32, i32
  }
  func.func @transform_13(%arg0: i32) -> (i32, i32, i32, i32) {
    %c0_i32 = arith.constant 0 : i32
    %c0_i32_0 = arith.constant 0 : i32
    %c0_i32_1 = arith.constant 0 : i32
    %c0_i32_2 = arith.constant 0 : i32
    return %arg0, %c0_i32, %c0_i32_0, %c0_i32_1 : i32, i32, i32, i32
  }
  func.func @transform_14(%arg0: i32) -> (i32, i32, i32) {
    %c0_i32 = arith.constant 0 : i32
    %c0_i32_0 = arith.constant 0 : i32
    %c0_i32_1 = arith.constant 0 : i32
    return %arg0, %c0_i32, %c0_i32_0 : i32, i32, i32
  }
  func.func @transform_15(%arg0: i32) -> (i32, i32, i32) {
    %c0_i32 = arith.constant 0 : i32
    %c0_i32_0 = arith.constant 0 : i32
    %c0_i32_1 = arith.constant 0 : i32
    return %arg0, %c0_i32, %c0_i32_0 : i32, i32, i32
  }
}

module attributes {stable_mosaic.version = 11 : i64} {
  func.func @_stage2_kernel(%arg0: i32, %arg1: memref<1x2x8x128xf32, #tpu.memory_space<vmem>>, %arg2: memref<1x16x128xf32, #tpu.memory_space<vmem>>, %arg3: memref<2x8x1xf32, #tpu.memory_space<vmem>>, %arg4: memref<2x16x1xf32, #tpu.memory_space<vmem>>, %arg5: memref<8x8xf32, #tpu.memory_space<vmem>>, %arg6: memref<3x8x8xf32, #tpu.memory_space<vmem>>, %arg7: memref<3x8x8xf32, #tpu.memory_space<vmem>>, %arg8: memref<16x48xf32, #tpu.memory_space<vmem>>, %arg9: memref<24x24xf32, #tpu.memory_space<vmem>>, %arg10: memref<1x2x8x128xf32, #tpu.memory_space<vmem>>, %arg11: memref<1x16x128xf32, #tpu.memory_space<vmem>>, %arg12: memref<1x2x24xf32, #tpu.memory_space<vmem>>) attributes {dimension_semantics = [#tpu.dimension_semantics<parallel>], iteration_bounds = array<i64: 2>, scalar_prefetch = 0 : i64, scratch_operands = 0 : i64, tpu.core_type = #tpu.core_type<tc>, window_params = [{transform_indices = @transform_0, window_bounds = array<i64: 1, 2, 8, 128>}, {transform_indices = @transform_1, window_bounds = array<i64: 1, 16, 128>}, {pipeline_mode = #tpu.pipeline_mode<synchronous>, transform_indices = @transform_2, window_bounds = array<i64: 2, 8, 1>}, {pipeline_mode = #tpu.pipeline_mode<synchronous>, transform_indices = @transform_3, window_bounds = array<i64: 2, 16, 1>}, {pipeline_mode = #tpu.pipeline_mode<synchronous>, transform_indices = @transform_4, window_bounds = array<i64: 8, 8>}, {pipeline_mode = #tpu.pipeline_mode<synchronous>, transform_indices = @transform_5, window_bounds = array<i64: 3, 8, 8>}, {pipeline_mode = #tpu.pipeline_mode<synchronous>, transform_indices = @transform_6, window_bounds = array<i64: 3, 8, 8>}, {pipeline_mode = #tpu.pipeline_mode<synchronous>, transform_indices = @transform_7, window_bounds = array<i64: 16, 48>}, {pipeline_mode = #tpu.pipeline_mode<synchronous>, transform_indices = @transform_8, window_bounds = array<i64: 24, 24>}, {transform_indices = @transform_9, window_bounds = array<i64: 1, 2, 8, 128>}, {transform_indices = @transform_10, window_bounds = array<i64: 1, 16, 128>}, {transform_indices = @transform_11, window_bounds = array<i64: 1, 2, 24>}]} {
    %c0 = arith.constant 0 : index
    %c0_0 = arith.constant 0 : index
    %c0_1 = arith.constant 0 : index
    %c0_2 = arith.constant 0 : index
    %0 = vector.load %arg1[%c0, %c0_0, %c0_1, %c0_2] : memref<1x2x8x128xf32, #tpu.memory_space<vmem>>, vector<1x2x8x128xf32>
    %c0_3 = arith.constant 0 : index
    %c0_4 = arith.constant 0 : index
    %c0_5 = arith.constant 0 : index
    %1 = vector.load %arg3[%c0_3, %c0_4, %c0_5] : memref<2x8x1xf32, #tpu.memory_space<vmem>>, vector<2x8x1xf32>
    %2 = vector.extract_strided_slice %0 {offsets = [0, 0, 0, 0], sizes = [1, 1, 8, 128], strides = [1, 1, 1, 1]} : vector<1x2x8x128xf32> to vector<1x1x8x128xf32>
    %3 = vector.shape_cast %2 : vector<1x1x8x128xf32> to vector<1x8x128xf32>
    %4 = vector.extract_strided_slice %0 {offsets = [0, 0, 0, 0], sizes = [1, 1, 8, 128], strides = [1, 1, 1, 1]} : vector<1x2x8x128xf32> to vector<1x1x8x128xf32>
    %5 = vector.shape_cast %4 : vector<1x1x8x128xf32> to vector<1x8x128xf32>
    %6 = arith.mulf %3, %5 : vector<1x8x128xf32>
    %7 = vector.extract_strided_slice %0 {offsets = [0, 1, 0, 0], sizes = [1, 1, 8, 128], strides = [1, 1, 1, 1]} : vector<1x2x8x128xf32> to vector<1x1x8x128xf32>
    %8 = vector.shape_cast %7 : vector<1x1x8x128xf32> to vector<1x8x128xf32>
    %9 = vector.extract_strided_slice %0 {offsets = [0, 1, 0, 0], sizes = [1, 1, 8, 128], strides = [1, 1, 1, 1]} : vector<1x2x8x128xf32> to vector<1x1x8x128xf32>
    %10 = vector.shape_cast %9 : vector<1x1x8x128xf32> to vector<1x8x128xf32>
    %11 = arith.mulf %8, %10 : vector<1x8x128xf32>
    %12 = arith.addf %6, %11 : vector<1x8x128xf32>
    %cst = arith.constant 9.99999993E-9 : f32
    %13 = vector.broadcast %cst : f32 to vector<1x8x128xf32>
    %14 = arith.maximumf %12, %13 : vector<1x8x128xf32>
    %15 = math.rsqrt %14 : vector<1x8x128xf32>
    %16 = arith.mulf %12, %15 : vector<1x8x128xf32>
    %cst_6 = arith.constant 9.99999974E-5 : f32
    %17 = vector.broadcast %cst_6 : f32 to vector<1x8x128xf32>
    %18 = arith.maximumf %16, %17 : vector<1x8x128xf32>
    %19 = vector.extract_strided_slice %1 {offsets = [0, 0, 0], sizes = [1, 8, 1], strides = [1, 1, 1]} : vector<2x8x1xf32> to vector<1x8x1xf32>
    %20 = vector.shape_cast %19 : vector<1x8x1xf32> to vector<8x1xf32>
    %21 = vector.shape_cast %20 : vector<8x1xf32> to vector<1x8x1xf32>
    %22 = vector.broadcast %21 : vector<1x8x1xf32> to vector<1x8x128xf32>
    %23 = arith.subf %18, %22 : vector<1x8x128xf32>
    %24 = vector.extract_strided_slice %1 {offsets = [1, 0, 0], sizes = [1, 8, 1], strides = [1, 1, 1]} : vector<2x8x1xf32> to vector<1x8x1xf32>
    %25 = vector.shape_cast %24 : vector<1x8x1xf32> to vector<8x1xf32>
    %26 = vector.shape_cast %25 : vector<8x1xf32> to vector<1x8x1xf32>
    %27 = vector.broadcast %26 : vector<1x8x1xf32> to vector<1x8x128xf32>
    %28 = arith.mulf %23, %27 : vector<1x8x128xf32>
    %29 = arith.mulf %28, %15 : vector<1x8x128xf32>
    %30 = vector.shape_cast %29 : vector<1x8x128xf32> to vector<1x1x8x128xf32>
    %31 = vector.broadcast %30 : vector<1x1x8x128xf32> to vector<1x2x8x128xf32>
    %32 = arith.mulf %0, %31 : vector<1x2x8x128xf32>
    %c0_7 = arith.constant 0 : index
    %c0_8 = arith.constant 0 : index
    %c0_9 = arith.constant 0 : index
    %33 = vector.load %arg2[%c0_7, %c0_8, %c0_9] : memref<1x16x128xf32, #tpu.memory_space<vmem>>, vector<1x16x128xf32>
    %c0_10 = arith.constant 0 : index
    %c0_11 = arith.constant 0 : index
    %c0_12 = arith.constant 0 : index
    %34 = vector.load %arg4[%c0_10, %c0_11, %c0_12] : memref<2x16x1xf32, #tpu.memory_space<vmem>>, vector<2x16x1xf32>
    %35 = vector.extract_strided_slice %34 {offsets = [0, 0, 0], sizes = [1, 16, 1], strides = [1, 1, 1]} : vector<2x16x1xf32> to vector<1x16x1xf32>
    %36 = vector.shape_cast %35 : vector<1x16x1xf32> to vector<16x1xf32>
    %37 = vector.shape_cast %36 : vector<16x1xf32> to vector<1x16x1xf32>
    %38 = vector.broadcast %37 : vector<1x16x1xf32> to vector<1x16x128xf32>
    %39 = arith.subf %33, %38 : vector<1x16x128xf32>
    %40 = vector.extract_strided_slice %34 {offsets = [1, 0, 0], sizes = [1, 16, 1], strides = [1, 1, 1]} : vector<2x16x1xf32> to vector<1x16x1xf32>
    %41 = vector.shape_cast %40 : vector<1x16x1xf32> to vector<16x1xf32>
    %42 = vector.shape_cast %41 : vector<16x1xf32> to vector<1x16x1xf32>
    %43 = vector.broadcast %42 : vector<1x16x1xf32> to vector<1x16x128xf32>
    %44 = arith.mulf %39, %43 : vector<1x16x128xf32>
    %c0_13 = arith.constant 0 : index
    %c0_14 = arith.constant 0 : index
    %45 = vector.load %arg5[%c0_13, %c0_14] : memref<8x8xf32, #tpu.memory_space<vmem>>, vector<8x8xf32>
    %46 = vector.extract_strided_slice %32 {offsets = [0, 0, 0, 0], sizes = [1, 2, 1, 128], strides = [1, 1, 1, 1]} : vector<1x2x8x128xf32> to vector<1x2x1x128xf32>
    %47 = vector.extract_strided_slice %45 {offsets = [0, 0], sizes = [8, 1], strides = [1, 1]} : vector<8x8xf32> to vector<8x1xf32>
    %48 = vector.shape_cast %47 : vector<8x1xf32> to vector<1x1x8x1xf32>
    %49 = vector.broadcast %46 : vector<1x2x1x128xf32> to vector<1x2x8x128xf32>
    %50 = vector.broadcast %48 : vector<1x1x8x1xf32> to vector<1x2x8x128xf32>
    %51 = arith.mulf %49, %50 : vector<1x2x8x128xf32>
    %52 = vector.extract_strided_slice %32 {offsets = [0, 0, 1, 0], sizes = [1, 2, 1, 128], strides = [1, 1, 1, 1]} : vector<1x2x8x128xf32> to vector<1x2x1x128xf32>
    %53 = vector.extract_strided_slice %45 {offsets = [0, 1], sizes = [8, 1], strides = [1, 1]} : vector<8x8xf32> to vector<8x1xf32>
    %54 = vector.shape_cast %53 : vector<8x1xf32> to vector<1x1x8x1xf32>
    %55 = vector.broadcast %52 : vector<1x2x1x128xf32> to vector<1x2x8x128xf32>
    %56 = vector.broadcast %54 : vector<1x1x8x1xf32> to vector<1x2x8x128xf32>
    %57 = arith.mulf %55, %56 : vector<1x2x8x128xf32>
    %58 = vector.extract_strided_slice %32 {offsets = [0, 0, 2, 0], sizes = [1, 2, 1, 128], strides = [1, 1, 1, 1]} : vector<1x2x8x128xf32> to vector<1x2x1x128xf32>
    %59 = vector.extract_strided_slice %45 {offsets = [0, 2], sizes = [8, 1], strides = [1, 1]} : vector<8x8xf32> to vector<8x1xf32>
    %60 = vector.shape_cast %59 : vector<8x1xf32> to vector<1x1x8x1xf32>
    %61 = vector.broadcast %58 : vector<1x2x1x128xf32> to vector<1x2x8x128xf32>
    %62 = vector.broadcast %60 : vector<1x1x8x1xf32> to vector<1x2x8x128xf32>
    %63 = arith.mulf %61, %62 : vector<1x2x8x128xf32>
    %64 = vector.extract_strided_slice %32 {offsets = [0, 0, 3, 0], sizes = [1, 2, 1, 128], strides = [1, 1, 1, 1]} : vector<1x2x8x128xf32> to vector<1x2x1x128xf32>
    %65 = vector.extract_strided_slice %45 {offsets = [0, 3], sizes = [8, 1], strides = [1, 1]} : vector<8x8xf32> to vector<8x1xf32>
    %66 = vector.shape_cast %65 : vector<8x1xf32> to vector<1x1x8x1xf32>
    %67 = vector.broadcast %64 : vector<1x2x1x128xf32> to vector<1x2x8x128xf32>
    %68 = vector.broadcast %66 : vector<1x1x8x1xf32> to vector<1x2x8x128xf32>
    %69 = arith.mulf %67, %68 : vector<1x2x8x128xf32>
    %70 = vector.extract_strided_slice %32 {offsets = [0, 0, 4, 0], sizes = [1, 2, 1, 128], strides = [1, 1, 1, 1]} : vector<1x2x8x128xf32> to vector<1x2x1x128xf32>
    %71 = vector.extract_strided_slice %45 {offsets = [0, 4], sizes = [8, 1], strides = [1, 1]} : vector<8x8xf32> to vector<8x1xf32>
    %72 = vector.shape_cast %71 : vector<8x1xf32> to vector<1x1x8x1xf32>
    %73 = vector.broadcast %70 : vector<1x2x1x128xf32> to vector<1x2x8x128xf32>
    %74 = vector.broadcast %72 : vector<1x1x8x1xf32> to vector<1x2x8x128xf32>
    %75 = arith.mulf %73, %74 : vector<1x2x8x128xf32>
    %76 = arith.addf %51, %75 : vector<1x2x8x128xf32>
    %77 = vector.extract_strided_slice %32 {offsets = [0, 0, 5, 0], sizes = [1, 2, 1, 128], strides = [1, 1, 1, 1]} : vector<1x2x8x128xf32> to vector<1x2x1x128xf32>
    %78 = vector.extract_strided_slice %45 {offsets = [0, 5], sizes = [8, 1], strides = [1, 1]} : vector<8x8xf32> to vector<8x1xf32>
    %79 = vector.shape_cast %78 : vector<8x1xf32> to vector<1x1x8x1xf32>
    %80 = vector.broadcast %77 : vector<1x2x1x128xf32> to vector<1x2x8x128xf32>
    %81 = vector.broadcast %79 : vector<1x1x8x1xf32> to vector<1x2x8x128xf32>
    %82 = arith.mulf %80, %81 : vector<1x2x8x128xf32>
    %83 = arith.addf %57, %82 : vector<1x2x8x128xf32>
    %84 = vector.extract_strided_slice %32 {offsets = [0, 0, 6, 0], sizes = [1, 2, 1, 128], strides = [1, 1, 1, 1]} : vector<1x2x8x128xf32> to vector<1x2x1x128xf32>
    %85 = vector.extract_strided_slice %45 {offsets = [0, 6], sizes = [8, 1], strides = [1, 1]} : vector<8x8xf32> to vector<8x1xf32>
    %86 = vector.shape_cast %85 : vector<8x1xf32> to vector<1x1x8x1xf32>
    %87 = vector.broadcast %84 : vector<1x2x1x128xf32> to vector<1x2x8x128xf32>
    %88 = vector.broadcast %86 : vector<1x1x8x1xf32> to vector<1x2x8x128xf32>
    %89 = arith.mulf %87, %88 : vector<1x2x8x128xf32>
    %90 = arith.addf %63, %89 : vector<1x2x8x128xf32>
    %91 = vector.extract_strided_slice %32 {offsets = [0, 0, 7, 0], sizes = [1, 2, 1, 128], strides = [1, 1, 1, 1]} : vector<1x2x8x128xf32> to vector<1x2x1x128xf32>
    %92 = vector.extract_strided_slice %45 {offsets = [0, 7], sizes = [8, 1], strides = [1, 1]} : vector<8x8xf32> to vector<8x1xf32>
    %93 = vector.shape_cast %92 : vector<8x1xf32> to vector<1x1x8x1xf32>
    %94 = vector.broadcast %91 : vector<1x2x1x128xf32> to vector<1x2x8x128xf32>
    %95 = vector.broadcast %93 : vector<1x1x8x1xf32> to vector<1x2x8x128xf32>
    %96 = arith.mulf %94, %95 : vector<1x2x8x128xf32>
    %97 = arith.addf %69, %96 : vector<1x2x8x128xf32>
    %98 = arith.addf %76, %83 : vector<1x2x8x128xf32>
    %99 = arith.addf %90, %97 : vector<1x2x8x128xf32>
    %100 = arith.addf %98, %99 : vector<1x2x8x128xf32>
    %101 = arith.mulf %32, %100 : vector<1x2x8x128xf32>
    %cst_15 = arith.constant dense<0.000000e+00> : vector<1x8x128xf32>
    %102 = vector.multi_reduction <add>, %101, %cst_15 [1] : vector<1x2x8x128xf32> to vector<1x8x128xf32>
    %103 = vector.shape_cast %102 : vector<1x8x128xf32> to vector<1x1x8x128xf32>
    %104 = arith.mulf %100, %100 : vector<1x2x8x128xf32>
    %cst_16 = arith.constant dense<0.000000e+00> : vector<1x8x128xf32>
    %105 = vector.multi_reduction <add>, %104, %cst_16 [1] : vector<1x2x8x128xf32> to vector<1x8x128xf32>
    %106 = vector.shape_cast %105 : vector<1x8x128xf32> to vector<1x1x8x128xf32>
    %cst_17 = arith.constant 9.99999993E-9 : f32
    %107 = vector.broadcast %cst_17 : f32 to vector<1x1x8x128xf32>
    %108 = arith.addf %106, %107 : vector<1x1x8x128xf32>
    %109 = arith.divf %103, %108 : vector<1x1x8x128xf32>
    %110 = vector.broadcast %109 : vector<1x1x8x128xf32> to vector<1x2x8x128xf32>
    %111 = arith.mulf %110, %100 : vector<1x2x8x128xf32>
    %112 = arith.subf %32, %111 : vector<1x2x8x128xf32>
    %cst_18 = arith.constant 2.000000e-01 : f32
    %113 = vector.broadcast %cst_18 : f32 to vector<1x2x8x128xf32>
    %114 = arith.mulf %113, %32 : vector<1x2x8x128xf32>
    %cst_19 = arith.constant 0.000000e+00 : f32
    %115 = vector.broadcast %cst_19 : f32 to vector<1x1x8x128xf32>
    %116 = arith.cmpf oge, %103, %115 : vector<1x1x8x128xf32>
    %117 = vector.shape_cast %116 : vector<1x1x8x128xi1> to vector<1x1x8x128xi1>
    %118 = vector.broadcast %117 : vector<1x1x8x128xi1> to vector<1x2x8x128xi1>
    %119 = arith.select %118, %32, %112 : vector<1x2x8x128xi1>, vector<1x2x8x128xf32>
    %cst_20 = arith.constant 8.000000e-01 : f32
    %120 = vector.broadcast %cst_20 : f32 to vector<1x2x8x128xf32>
    %121 = arith.mulf %120, %119 : vector<1x2x8x128xf32>
    %122 = arith.addf %114, %121 : vector<1x2x8x128xf32>
    %cst_21 = arith.constant 0.000000e+00 : f32
    %123 = vector.broadcast %cst_21 : f32 to vector<1x16x128xf32>
    %124 = arith.maximumf %44, %123 : vector<1x16x128xf32>
    %125 = vector.extract_strided_slice %122 {offsets = [0, 0, 0, 0], sizes = [1, 2, 8, 1], strides = [1, 1, 1, 1]} : vector<1x2x8x128xf32> to vector<1x2x8x1xf32>
    %126 = vector.extract_strided_slice %122 {offsets = [0, 0, 0, 0], sizes = [1, 2, 8, 127], strides = [1, 1, 1, 1]} : vector<1x2x8x128xf32> to vector<1x2x8x127xf32>
    %127 = tpu.concatenate %125, %126 in 3 : vector<1x2x8x1xf32>, vector<1x2x8x127xf32> -> vector<1x2x8x128xf32>
    %128 = vector.extract_strided_slice %122 {offsets = [0, 0, 0, 1], sizes = [1, 2, 8, 127], strides = [1, 1, 1, 1]} : vector<1x2x8x128xf32> to vector<1x2x8x127xf32>
    %129 = vector.extract_strided_slice %122 {offsets = [0, 0, 0, 127], sizes = [1, 2, 8, 1], strides = [1, 1, 1, 1]} : vector<1x2x8x128xf32> to vector<1x2x8x1xf32>
    %130 = tpu.concatenate %128, %129 in 3 : vector<1x2x8x127xf32>, vector<1x2x8x1xf32> -> vector<1x2x8x128xf32>
    %131 = vector.extract_strided_slice %124 {offsets = [0, 0, 0], sizes = [1, 16, 1], strides = [1, 1, 1]} : vector<1x16x128xf32> to vector<1x16x1xf32>
    %132 = vector.extract_strided_slice %124 {offsets = [0, 0, 0], sizes = [1, 16, 127], strides = [1, 1, 1]} : vector<1x16x128xf32> to vector<1x16x127xf32>
    %133 = tpu.concatenate %131, %132 in 2 : vector<1x16x1xf32>, vector<1x16x127xf32> -> vector<1x16x128xf32>
    %134 = vector.extract_strided_slice %124 {offsets = [0, 0, 1], sizes = [1, 16, 127], strides = [1, 1, 1]} : vector<1x16x128xf32> to vector<1x16x127xf32>
    %135 = vector.extract_strided_slice %124 {offsets = [0, 0, 127], sizes = [1, 16, 1], strides = [1, 1, 1]} : vector<1x16x128xf32> to vector<1x16x1xf32>
    %136 = tpu.concatenate %134, %135 in 2 : vector<1x16x127xf32>, vector<1x16x1xf32> -> vector<1x16x128xf32>
    %c0_22 = arith.constant 0 : index
    %c0_23 = arith.constant 0 : index
    %c0_24 = arith.constant 0 : index
    %137 = vector.load %arg6[%c0_22, %c0_23, %c0_24] : memref<3x8x8xf32, #tpu.memory_space<vmem>>, vector<3x8x8xf32>
    %138 = vector.extract_strided_slice %137 {offsets = [0, 0, 0], sizes = [1, 8, 8], strides = [1, 1, 1]} : vector<3x8x8xf32> to vector<1x8x8xf32>
    %139 = vector.shape_cast %138 : vector<1x8x8xf32> to vector<8x8xf32>
    %140 = vector.extract_strided_slice %127 {offsets = [0, 0, 0, 0], sizes = [1, 2, 1, 128], strides = [1, 1, 1, 1]} : vector<1x2x8x128xf32> to vector<1x2x1x128xf32>
    %141 = vector.extract_strided_slice %139 {offsets = [0, 0], sizes = [8, 1], strides = [1, 1]} : vector<8x8xf32> to vector<8x1xf32>
    %142 = vector.shape_cast %141 : vector<8x1xf32> to vector<1x1x8x1xf32>
    %143 = vector.broadcast %140 : vector<1x2x1x128xf32> to vector<1x2x8x128xf32>
    %144 = vector.broadcast %142 : vector<1x1x8x1xf32> to vector<1x2x8x128xf32>
    %145 = arith.mulf %143, %144 : vector<1x2x8x128xf32>
    %146 = vector.extract_strided_slice %127 {offsets = [0, 0, 1, 0], sizes = [1, 2, 1, 128], strides = [1, 1, 1, 1]} : vector<1x2x8x128xf32> to vector<1x2x1x128xf32>
    %147 = vector.extract_strided_slice %139 {offsets = [0, 1], sizes = [8, 1], strides = [1, 1]} : vector<8x8xf32> to vector<8x1xf32>
    %148 = vector.shape_cast %147 : vector<8x1xf32> to vector<1x1x8x1xf32>
    %149 = vector.broadcast %146 : vector<1x2x1x128xf32> to vector<1x2x8x128xf32>
    %150 = vector.broadcast %148 : vector<1x1x8x1xf32> to vector<1x2x8x128xf32>
    %151 = arith.mulf %149, %150 : vector<1x2x8x128xf32>
    %152 = vector.extract_strided_slice %127 {offsets = [0, 0, 2, 0], sizes = [1, 2, 1, 128], strides = [1, 1, 1, 1]} : vector<1x2x8x128xf32> to vector<1x2x1x128xf32>
    %153 = vector.extract_strided_slice %139 {offsets = [0, 2], sizes = [8, 1], strides = [1, 1]} : vector<8x8xf32> to vector<8x1xf32>
    %154 = vector.shape_cast %153 : vector<8x1xf32> to vector<1x1x8x1xf32>
    %155 = vector.broadcast %152 : vector<1x2x1x128xf32> to vector<1x2x8x128xf32>
    %156 = vector.broadcast %154 : vector<1x1x8x1xf32> to vector<1x2x8x128xf32>
    %157 = arith.mulf %155, %156 : vector<1x2x8x128xf32>
    %158 = vector.extract_strided_slice %127 {offsets = [0, 0, 3, 0], sizes = [1, 2, 1, 128], strides = [1, 1, 1, 1]} : vector<1x2x8x128xf32> to vector<1x2x1x128xf32>
    %159 = vector.extract_strided_slice %139 {offsets = [0, 3], sizes = [8, 1], strides = [1, 1]} : vector<8x8xf32> to vector<8x1xf32>
    %160 = vector.shape_cast %159 : vector<8x1xf32> to vector<1x1x8x1xf32>
    %161 = vector.broadcast %158 : vector<1x2x1x128xf32> to vector<1x2x8x128xf32>
    %162 = vector.broadcast %160 : vector<1x1x8x1xf32> to vector<1x2x8x128xf32>
    %163 = arith.mulf %161, %162 : vector<1x2x8x128xf32>
    %164 = vector.extract_strided_slice %127 {offsets = [0, 0, 4, 0], sizes = [1, 2, 1, 128], strides = [1, 1, 1, 1]} : vector<1x2x8x128xf32> to vector<1x2x1x128xf32>
    %165 = vector.extract_strided_slice %139 {offsets = [0, 4], sizes = [8, 1], strides = [1, 1]} : vector<8x8xf32> to vector<8x1xf32>
    %166 = vector.shape_cast %165 : vector<8x1xf32> to vector<1x1x8x1xf32>
    %167 = vector.broadcast %164 : vector<1x2x1x128xf32> to vector<1x2x8x128xf32>
    %168 = vector.broadcast %166 : vector<1x1x8x1xf32> to vector<1x2x8x128xf32>
    %169 = arith.mulf %167, %168 : vector<1x2x8x128xf32>
    %170 = arith.addf %145, %169 : vector<1x2x8x128xf32>
    %171 = vector.extract_strided_slice %127 {offsets = [0, 0, 5, 0], sizes = [1, 2, 1, 128], strides = [1, 1, 1, 1]} : vector<1x2x8x128xf32> to vector<1x2x1x128xf32>
    %172 = vector.extract_strided_slice %139 {offsets = [0, 5], sizes = [8, 1], strides = [1, 1]} : vector<8x8xf32> to vector<8x1xf32>
    %173 = vector.shape_cast %172 : vector<8x1xf32> to vector<1x1x8x1xf32>
    %174 = vector.broadcast %171 : vector<1x2x1x128xf32> to vector<1x2x8x128xf32>
    %175 = vector.broadcast %173 : vector<1x1x8x1xf32> to vector<1x2x8x128xf32>
    %176 = arith.mulf %174, %175 : vector<1x2x8x128xf32>
    %177 = arith.addf %151, %176 : vector<1x2x8x128xf32>
    %178 = vector.extract_strided_slice %127 {offsets = [0, 0, 6, 0], sizes = [1, 2, 1, 128], strides = [1, 1, 1, 1]} : vector<1x2x8x128xf32> to vector<1x2x1x128xf32>
    %179 = vector.extract_strided_slice %139 {offsets = [0, 6], sizes = [8, 1], strides = [1, 1]} : vector<8x8xf32> to vector<8x1xf32>
    %180 = vector.shape_cast %179 : vector<8x1xf32> to vector<1x1x8x1xf32>
    %181 = vector.broadcast %178 : vector<1x2x1x128xf32> to vector<1x2x8x128xf32>
    %182 = vector.broadcast %180 : vector<1x1x8x1xf32> to vector<1x2x8x128xf32>
    %183 = arith.mulf %181, %182 : vector<1x2x8x128xf32>
    %184 = arith.addf %157, %183 : vector<1x2x8x128xf32>
    %185 = vector.extract_strided_slice %127 {offsets = [0, 0, 7, 0], sizes = [1, 2, 1, 128], strides = [1, 1, 1, 1]} : vector<1x2x8x128xf32> to vector<1x2x1x128xf32>
    %186 = vector.extract_strided_slice %139 {offsets = [0, 7], sizes = [8, 1], strides = [1, 1]} : vector<8x8xf32> to vector<8x1xf32>
    %187 = vector.shape_cast %186 : vector<8x1xf32> to vector<1x1x8x1xf32>
    %188 = vector.broadcast %185 : vector<1x2x1x128xf32> to vector<1x2x8x128xf32>
    %189 = vector.broadcast %187 : vector<1x1x8x1xf32> to vector<1x2x8x128xf32>
    %190 = arith.mulf %188, %189 : vector<1x2x8x128xf32>
    %191 = arith.addf %163, %190 : vector<1x2x8x128xf32>
    %192 = arith.addf %170, %177 : vector<1x2x8x128xf32>
    %193 = arith.addf %184, %191 : vector<1x2x8x128xf32>
    %194 = arith.addf %192, %193 : vector<1x2x8x128xf32>
    %195 = vector.extract_strided_slice %137 {offsets = [1, 0, 0], sizes = [1, 8, 8], strides = [1, 1, 1]} : vector<3x8x8xf32> to vector<1x8x8xf32>
    %196 = vector.shape_cast %195 : vector<1x8x8xf32> to vector<8x8xf32>
    %197 = vector.extract_strided_slice %122 {offsets = [0, 0, 0, 0], sizes = [1, 2, 1, 128], strides = [1, 1, 1, 1]} : vector<1x2x8x128xf32> to vector<1x2x1x128xf32>
    %198 = vector.extract_strided_slice %196 {offsets = [0, 0], sizes = [8, 1], strides = [1, 1]} : vector<8x8xf32> to vector<8x1xf32>
    %199 = vector.shape_cast %198 : vector<8x1xf32> to vector<1x1x8x1xf32>
    %200 = vector.broadcast %197 : vector<1x2x1x128xf32> to vector<1x2x8x128xf32>
    %201 = vector.broadcast %199 : vector<1x1x8x1xf32> to vector<1x2x8x128xf32>
    %202 = arith.mulf %200, %201 : vector<1x2x8x128xf32>
    %203 = vector.extract_strided_slice %122 {offsets = [0, 0, 1, 0], sizes = [1, 2, 1, 128], strides = [1, 1, 1, 1]} : vector<1x2x8x128xf32> to vector<1x2x1x128xf32>
    %204 = vector.extract_strided_slice %196 {offsets = [0, 1], sizes = [8, 1], strides = [1, 1]} : vector<8x8xf32> to vector<8x1xf32>
    %205 = vector.shape_cast %204 : vector<8x1xf32> to vector<1x1x8x1xf32>
    %206 = vector.broadcast %203 : vector<1x2x1x128xf32> to vector<1x2x8x128xf32>
    %207 = vector.broadcast %205 : vector<1x1x8x1xf32> to vector<1x2x8x128xf32>
    %208 = arith.mulf %206, %207 : vector<1x2x8x128xf32>
    %209 = vector.extract_strided_slice %122 {offsets = [0, 0, 2, 0], sizes = [1, 2, 1, 128], strides = [1, 1, 1, 1]} : vector<1x2x8x128xf32> to vector<1x2x1x128xf32>
    %210 = vector.extract_strided_slice %196 {offsets = [0, 2], sizes = [8, 1], strides = [1, 1]} : vector<8x8xf32> to vector<8x1xf32>
    %211 = vector.shape_cast %210 : vector<8x1xf32> to vector<1x1x8x1xf32>
    %212 = vector.broadcast %209 : vector<1x2x1x128xf32> to vector<1x2x8x128xf32>
    %213 = vector.broadcast %211 : vector<1x1x8x1xf32> to vector<1x2x8x128xf32>
    %214 = arith.mulf %212, %213 : vector<1x2x8x128xf32>
    %215 = vector.extract_strided_slice %122 {offsets = [0, 0, 3, 0], sizes = [1, 2, 1, 128], strides = [1, 1, 1, 1]} : vector<1x2x8x128xf32> to vector<1x2x1x128xf32>
    %216 = vector.extract_strided_slice %196 {offsets = [0, 3], sizes = [8, 1], strides = [1, 1]} : vector<8x8xf32> to vector<8x1xf32>
    %217 = vector.shape_cast %216 : vector<8x1xf32> to vector<1x1x8x1xf32>
    %218 = vector.broadcast %215 : vector<1x2x1x128xf32> to vector<1x2x8x128xf32>
    %219 = vector.broadcast %217 : vector<1x1x8x1xf32> to vector<1x2x8x128xf32>
    %220 = arith.mulf %218, %219 : vector<1x2x8x128xf32>
    %221 = vector.extract_strided_slice %122 {offsets = [0, 0, 4, 0], sizes = [1, 2, 1, 128], strides = [1, 1, 1, 1]} : vector<1x2x8x128xf32> to vector<1x2x1x128xf32>
    %222 = vector.extract_strided_slice %196 {offsets = [0, 4], sizes = [8, 1], strides = [1, 1]} : vector<8x8xf32> to vector<8x1xf32>
    %223 = vector.shape_cast %222 : vector<8x1xf32> to vector<1x1x8x1xf32>
    %224 = vector.broadcast %221 : vector<1x2x1x128xf32> to vector<1x2x8x128xf32>
    %225 = vector.broadcast %223 : vector<1x1x8x1xf32> to vector<1x2x8x128xf32>
    %226 = arith.mulf %224, %225 : vector<1x2x8x128xf32>
    %227 = arith.addf %202, %226 : vector<1x2x8x128xf32>
    %228 = vector.extract_strided_slice %122 {offsets = [0, 0, 5, 0], sizes = [1, 2, 1, 128], strides = [1, 1, 1, 1]} : vector<1x2x8x128xf32> to vector<1x2x1x128xf32>
    %229 = vector.extract_strided_slice %196 {offsets = [0, 5], sizes = [8, 1], strides = [1, 1]} : vector<8x8xf32> to vector<8x1xf32>
    %230 = vector.shape_cast %229 : vector<8x1xf32> to vector<1x1x8x1xf32>
    %231 = vector.broadcast %228 : vector<1x2x1x128xf32> to vector<1x2x8x128xf32>
    %232 = vector.broadcast %230 : vector<1x1x8x1xf32> to vector<1x2x8x128xf32>
    %233 = arith.mulf %231, %232 : vector<1x2x8x128xf32>
    %234 = arith.addf %208, %233 : vector<1x2x8x128xf32>
    %235 = vector.extract_strided_slice %122 {offsets = [0, 0, 6, 0], sizes = [1, 2, 1, 128], strides = [1, 1, 1, 1]} : vector<1x2x8x128xf32> to vector<1x2x1x128xf32>
    %236 = vector.extract_strided_slice %196 {offsets = [0, 6], sizes = [8, 1], strides = [1, 1]} : vector<8x8xf32> to vector<8x1xf32>
    %237 = vector.shape_cast %236 : vector<8x1xf32> to vector<1x1x8x1xf32>
    %238 = vector.broadcast %235 : vector<1x2x1x128xf32> to vector<1x2x8x128xf32>
    %239 = vector.broadcast %237 : vector<1x1x8x1xf32> to vector<1x2x8x128xf32>
    %240 = arith.mulf %238, %239 : vector<1x2x8x128xf32>
    %241 = arith.addf %214, %240 : vector<1x2x8x128xf32>
    %242 = vector.extract_strided_slice %122 {offsets = [0, 0, 7, 0], sizes = [1, 2, 1, 128], strides = [1, 1, 1, 1]} : vector<1x2x8x128xf32> to vector<1x2x1x128xf32>
    %243 = vector.extract_strided_slice %196 {offsets = [0, 7], sizes = [8, 1], strides = [1, 1]} : vector<8x8xf32> to vector<8x1xf32>
    %244 = vector.shape_cast %243 : vector<8x1xf32> to vector<1x1x8x1xf32>
    %245 = vector.broadcast %242 : vector<1x2x1x128xf32> to vector<1x2x8x128xf32>
    %246 = vector.broadcast %244 : vector<1x1x8x1xf32> to vector<1x2x8x128xf32>
    %247 = arith.mulf %245, %246 : vector<1x2x8x128xf32>
    %248 = arith.addf %220, %247 : vector<1x2x8x128xf32>
    %249 = arith.addf %227, %234 : vector<1x2x8x128xf32>
    %250 = arith.addf %241, %248 : vector<1x2x8x128xf32>
    %251 = arith.addf %249, %250 : vector<1x2x8x128xf32>
    %252 = arith.addf %194, %251 : vector<1x2x8x128xf32>
    %253 = vector.extract_strided_slice %137 {offsets = [2, 0, 0], sizes = [1, 8, 8], strides = [1, 1, 1]} : vector<3x8x8xf32> to vector<1x8x8xf32>
    %254 = vector.shape_cast %253 : vector<1x8x8xf32> to vector<8x8xf32>
    %255 = vector.extract_strided_slice %130 {offsets = [0, 0, 0, 0], sizes = [1, 2, 1, 128], strides = [1, 1, 1, 1]} : vector<1x2x8x128xf32> to vector<1x2x1x128xf32>
    %256 = vector.extract_strided_slice %254 {offsets = [0, 0], sizes = [8, 1], strides = [1, 1]} : vector<8x8xf32> to vector<8x1xf32>
    %257 = vector.shape_cast %256 : vector<8x1xf32> to vector<1x1x8x1xf32>
    %258 = vector.broadcast %255 : vector<1x2x1x128xf32> to vector<1x2x8x128xf32>
    %259 = vector.broadcast %257 : vector<1x1x8x1xf32> to vector<1x2x8x128xf32>
    %260 = arith.mulf %258, %259 : vector<1x2x8x128xf32>
    %261 = vector.extract_strided_slice %130 {offsets = [0, 0, 1, 0], sizes = [1, 2, 1, 128], strides = [1, 1, 1, 1]} : vector<1x2x8x128xf32> to vector<1x2x1x128xf32>
    %262 = vector.extract_strided_slice %254 {offsets = [0, 1], sizes = [8, 1], strides = [1, 1]} : vector<8x8xf32> to vector<8x1xf32>
    %263 = vector.shape_cast %262 : vector<8x1xf32> to vector<1x1x8x1xf32>
    %264 = vector.broadcast %261 : vector<1x2x1x128xf32> to vector<1x2x8x128xf32>
    %265 = vector.broadcast %263 : vector<1x1x8x1xf32> to vector<1x2x8x128xf32>
    %266 = arith.mulf %264, %265 : vector<1x2x8x128xf32>
    %267 = vector.extract_strided_slice %130 {offsets = [0, 0, 2, 0], sizes = [1, 2, 1, 128], strides = [1, 1, 1, 1]} : vector<1x2x8x128xf32> to vector<1x2x1x128xf32>
    %268 = vector.extract_strided_slice %254 {offsets = [0, 2], sizes = [8, 1], strides = [1, 1]} : vector<8x8xf32> to vector<8x1xf32>
    %269 = vector.shape_cast %268 : vector<8x1xf32> to vector<1x1x8x1xf32>
    %270 = vector.broadcast %267 : vector<1x2x1x128xf32> to vector<1x2x8x128xf32>
    %271 = vector.broadcast %269 : vector<1x1x8x1xf32> to vector<1x2x8x128xf32>
    %272 = arith.mulf %270, %271 : vector<1x2x8x128xf32>
    %273 = vector.extract_strided_slice %130 {offsets = [0, 0, 3, 0], sizes = [1, 2, 1, 128], strides = [1, 1, 1, 1]} : vector<1x2x8x128xf32> to vector<1x2x1x128xf32>
    %274 = vector.extract_strided_slice %254 {offsets = [0, 3], sizes = [8, 1], strides = [1, 1]} : vector<8x8xf32> to vector<8x1xf32>
    %275 = vector.shape_cast %274 : vector<8x1xf32> to vector<1x1x8x1xf32>
    %276 = vector.broadcast %273 : vector<1x2x1x128xf32> to vector<1x2x8x128xf32>
    %277 = vector.broadcast %275 : vector<1x1x8x1xf32> to vector<1x2x8x128xf32>
    %278 = arith.mulf %276, %277 : vector<1x2x8x128xf32>
    %279 = vector.extract_strided_slice %130 {offsets = [0, 0, 4, 0], sizes = [1, 2, 1, 128], strides = [1, 1, 1, 1]} : vector<1x2x8x128xf32> to vector<1x2x1x128xf32>
    %280 = vector.extract_strided_slice %254 {offsets = [0, 4], sizes = [8, 1], strides = [1, 1]} : vector<8x8xf32> to vector<8x1xf32>
    %281 = vector.shape_cast %280 : vector<8x1xf32> to vector<1x1x8x1xf32>
    %282 = vector.broadcast %279 : vector<1x2x1x128xf32> to vector<1x2x8x128xf32>
    %283 = vector.broadcast %281 : vector<1x1x8x1xf32> to vector<1x2x8x128xf32>
    %284 = arith.mulf %282, %283 : vector<1x2x8x128xf32>
    %285 = arith.addf %260, %284 : vector<1x2x8x128xf32>
    %286 = vector.extract_strided_slice %130 {offsets = [0, 0, 5, 0], sizes = [1, 2, 1, 128], strides = [1, 1, 1, 1]} : vector<1x2x8x128xf32> to vector<1x2x1x128xf32>
    %287 = vector.extract_strided_slice %254 {offsets = [0, 5], sizes = [8, 1], strides = [1, 1]} : vector<8x8xf32> to vector<8x1xf32>
    %288 = vector.shape_cast %287 : vector<8x1xf32> to vector<1x1x8x1xf32>
    %289 = vector.broadcast %286 : vector<1x2x1x128xf32> to vector<1x2x8x128xf32>
    %290 = vector.broadcast %288 : vector<1x1x8x1xf32> to vector<1x2x8x128xf32>
    %291 = arith.mulf %289, %290 : vector<1x2x8x128xf32>
    %292 = arith.addf %266, %291 : vector<1x2x8x128xf32>
    %293 = vector.extract_strided_slice %130 {offsets = [0, 0, 6, 0], sizes = [1, 2, 1, 128], strides = [1, 1, 1, 1]} : vector<1x2x8x128xf32> to vector<1x2x1x128xf32>
    %294 = vector.extract_strided_slice %254 {offsets = [0, 6], sizes = [8, 1], strides = [1, 1]} : vector<8x8xf32> to vector<8x1xf32>
    %295 = vector.shape_cast %294 : vector<8x1xf32> to vector<1x1x8x1xf32>
    %296 = vector.broadcast %293 : vector<1x2x1x128xf32> to vector<1x2x8x128xf32>
    %297 = vector.broadcast %295 : vector<1x1x8x1xf32> to vector<1x2x8x128xf32>
    %298 = arith.mulf %296, %297 : vector<1x2x8x128xf32>
    %299 = arith.addf %272, %298 : vector<1x2x8x128xf32>
    %300 = vector.extract_strided_slice %130 {offsets = [0, 0, 7, 0], sizes = [1, 2, 1, 128], strides = [1, 1, 1, 1]} : vector<1x2x8x128xf32> to vector<1x2x1x128xf32>
    %301 = vector.extract_strided_slice %254 {offsets = [0, 7], sizes = [8, 1], strides = [1, 1]} : vector<8x8xf32> to vector<8x1xf32>
    %302 = vector.shape_cast %301 : vector<8x1xf32> to vector<1x1x8x1xf32>
    %303 = vector.broadcast %300 : vector<1x2x1x128xf32> to vector<1x2x8x128xf32>
    %304 = vector.broadcast %302 : vector<1x1x8x1xf32> to vector<1x2x8x128xf32>
    %305 = arith.mulf %303, %304 : vector<1x2x8x128xf32>
    %306 = arith.addf %278, %305 : vector<1x2x8x128xf32>
    %307 = arith.addf %285, %292 : vector<1x2x8x128xf32>
    %308 = arith.addf %299, %306 : vector<1x2x8x128xf32>
    %309 = arith.addf %307, %308 : vector<1x2x8x128xf32>
    %310 = arith.addf %252, %309 : vector<1x2x8x128xf32>
    %c0_25 = arith.constant 0 : index
    %c0_26 = arith.constant 0 : index
    %c0_27 = arith.constant 0 : index
    %311 = vector.load %arg7[%c0_25, %c0_26, %c0_27] : memref<3x8x8xf32, #tpu.memory_space<vmem>>, vector<3x8x8xf32>
    %312 = vector.extract_strided_slice %311 {offsets = [0, 0, 0], sizes = [1, 8, 8], strides = [1, 1, 1]} : vector<3x8x8xf32> to vector<1x8x8xf32>
    %313 = vector.shape_cast %312 : vector<1x8x8xf32> to vector<8x8xf32>
    %314 = vector.extract_strided_slice %127 {offsets = [0, 0, 0, 0], sizes = [1, 2, 1, 128], strides = [1, 1, 1, 1]} : vector<1x2x8x128xf32> to vector<1x2x1x128xf32>
    %315 = vector.extract_strided_slice %313 {offsets = [0, 0], sizes = [8, 1], strides = [1, 1]} : vector<8x8xf32> to vector<8x1xf32>
    %316 = vector.shape_cast %315 : vector<8x1xf32> to vector<1x1x8x1xf32>
    %317 = vector.broadcast %314 : vector<1x2x1x128xf32> to vector<1x2x8x128xf32>
    %318 = vector.broadcast %316 : vector<1x1x8x1xf32> to vector<1x2x8x128xf32>
    %319 = arith.mulf %317, %318 : vector<1x2x8x128xf32>
    %320 = vector.extract_strided_slice %127 {offsets = [0, 0, 1, 0], sizes = [1, 2, 1, 128], strides = [1, 1, 1, 1]} : vector<1x2x8x128xf32> to vector<1x2x1x128xf32>
    %321 = vector.extract_strided_slice %313 {offsets = [0, 1], sizes = [8, 1], strides = [1, 1]} : vector<8x8xf32> to vector<8x1xf32>
    %322 = vector.shape_cast %321 : vector<8x1xf32> to vector<1x1x8x1xf32>
    %323 = vector.broadcast %320 : vector<1x2x1x128xf32> to vector<1x2x8x128xf32>
    %324 = vector.broadcast %322 : vector<1x1x8x1xf32> to vector<1x2x8x128xf32>
    %325 = arith.mulf %323, %324 : vector<1x2x8x128xf32>
    %326 = vector.extract_strided_slice %127 {offsets = [0, 0, 2, 0], sizes = [1, 2, 1, 128], strides = [1, 1, 1, 1]} : vector<1x2x8x128xf32> to vector<1x2x1x128xf32>
    %327 = vector.extract_strided_slice %313 {offsets = [0, 2], sizes = [8, 1], strides = [1, 1]} : vector<8x8xf32> to vector<8x1xf32>
    %328 = vector.shape_cast %327 : vector<8x1xf32> to vector<1x1x8x1xf32>
    %329 = vector.broadcast %326 : vector<1x2x1x128xf32> to vector<1x2x8x128xf32>
    %330 = vector.broadcast %328 : vector<1x1x8x1xf32> to vector<1x2x8x128xf32>
    %331 = arith.mulf %329, %330 : vector<1x2x8x128xf32>
    %332 = vector.extract_strided_slice %127 {offsets = [0, 0, 3, 0], sizes = [1, 2, 1, 128], strides = [1, 1, 1, 1]} : vector<1x2x8x128xf32> to vector<1x2x1x128xf32>
    %333 = vector.extract_strided_slice %313 {offsets = [0, 3], sizes = [8, 1], strides = [1, 1]} : vector<8x8xf32> to vector<8x1xf32>
    %334 = vector.shape_cast %333 : vector<8x1xf32> to vector<1x1x8x1xf32>
    %335 = vector.broadcast %332 : vector<1x2x1x128xf32> to vector<1x2x8x128xf32>
    %336 = vector.broadcast %334 : vector<1x1x8x1xf32> to vector<1x2x8x128xf32>
    %337 = arith.mulf %335, %336 : vector<1x2x8x128xf32>
    %338 = vector.extract_strided_slice %127 {offsets = [0, 0, 4, 0], sizes = [1, 2, 1, 128], strides = [1, 1, 1, 1]} : vector<1x2x8x128xf32> to vector<1x2x1x128xf32>
    %339 = vector.extract_strided_slice %313 {offsets = [0, 4], sizes = [8, 1], strides = [1, 1]} : vector<8x8xf32> to vector<8x1xf32>
    %340 = vector.shape_cast %339 : vector<8x1xf32> to vector<1x1x8x1xf32>
    %341 = vector.broadcast %338 : vector<1x2x1x128xf32> to vector<1x2x8x128xf32>
    %342 = vector.broadcast %340 : vector<1x1x8x1xf32> to vector<1x2x8x128xf32>
    %343 = arith.mulf %341, %342 : vector<1x2x8x128xf32>
    %344 = arith.addf %319, %343 : vector<1x2x8x128xf32>
    %345 = vector.extract_strided_slice %127 {offsets = [0, 0, 5, 0], sizes = [1, 2, 1, 128], strides = [1, 1, 1, 1]} : vector<1x2x8x128xf32> to vector<1x2x1x128xf32>
    %346 = vector.extract_strided_slice %313 {offsets = [0, 5], sizes = [8, 1], strides = [1, 1]} : vector<8x8xf32> to vector<8x1xf32>
    %347 = vector.shape_cast %346 : vector<8x1xf32> to vector<1x1x8x1xf32>
    %348 = vector.broadcast %345 : vector<1x2x1x128xf32> to vector<1x2x8x128xf32>
    %349 = vector.broadcast %347 : vector<1x1x8x1xf32> to vector<1x2x8x128xf32>
    %350 = arith.mulf %348, %349 : vector<1x2x8x128xf32>
    %351 = arith.addf %325, %350 : vector<1x2x8x128xf32>
    %352 = vector.extract_strided_slice %127 {offsets = [0, 0, 6, 0], sizes = [1, 2, 1, 128], strides = [1, 1, 1, 1]} : vector<1x2x8x128xf32> to vector<1x2x1x128xf32>
    %353 = vector.extract_strided_slice %313 {offsets = [0, 6], sizes = [8, 1], strides = [1, 1]} : vector<8x8xf32> to vector<8x1xf32>
    %354 = vector.shape_cast %353 : vector<8x1xf32> to vector<1x1x8x1xf32>
    %355 = vector.broadcast %352 : vector<1x2x1x128xf32> to vector<1x2x8x128xf32>
    %356 = vector.broadcast %354 : vector<1x1x8x1xf32> to vector<1x2x8x128xf32>
    %357 = arith.mulf %355, %356 : vector<1x2x8x128xf32>
    %358 = arith.addf %331, %357 : vector<1x2x8x128xf32>
    %359 = vector.extract_strided_slice %127 {offsets = [0, 0, 7, 0], sizes = [1, 2, 1, 128], strides = [1, 1, 1, 1]} : vector<1x2x8x128xf32> to vector<1x2x1x128xf32>
    %360 = vector.extract_strided_slice %313 {offsets = [0, 7], sizes = [8, 1], strides = [1, 1]} : vector<8x8xf32> to vector<8x1xf32>
    %361 = vector.shape_cast %360 : vector<8x1xf32> to vector<1x1x8x1xf32>
    %362 = vector.broadcast %359 : vector<1x2x1x128xf32> to vector<1x2x8x128xf32>
    %363 = vector.broadcast %361 : vector<1x1x8x1xf32> to vector<1x2x8x128xf32>
    %364 = arith.mulf %362, %363 : vector<1x2x8x128xf32>
    %365 = arith.addf %337, %364 : vector<1x2x8x128xf32>
    %366 = arith.addf %344, %351 : vector<1x2x8x128xf32>
    %367 = arith.addf %358, %365 : vector<1x2x8x128xf32>
    %368 = arith.addf %366, %367 : vector<1x2x8x128xf32>
    %369 = vector.extract_strided_slice %311 {offsets = [1, 0, 0], sizes = [1, 8, 8], strides = [1, 1, 1]} : vector<3x8x8xf32> to vector<1x8x8xf32>
    %370 = vector.shape_cast %369 : vector<1x8x8xf32> to vector<8x8xf32>
    %371 = vector.extract_strided_slice %122 {offsets = [0, 0, 0, 0], sizes = [1, 2, 1, 128], strides = [1, 1, 1, 1]} : vector<1x2x8x128xf32> to vector<1x2x1x128xf32>
    %372 = vector.extract_strided_slice %370 {offsets = [0, 0], sizes = [8, 1], strides = [1, 1]} : vector<8x8xf32> to vector<8x1xf32>
    %373 = vector.shape_cast %372 : vector<8x1xf32> to vector<1x1x8x1xf32>
    %374 = vector.broadcast %371 : vector<1x2x1x128xf32> to vector<1x2x8x128xf32>
    %375 = vector.broadcast %373 : vector<1x1x8x1xf32> to vector<1x2x8x128xf32>
    %376 = arith.mulf %374, %375 : vector<1x2x8x128xf32>
    %377 = vector.extract_strided_slice %122 {offsets = [0, 0, 1, 0], sizes = [1, 2, 1, 128], strides = [1, 1, 1, 1]} : vector<1x2x8x128xf32> to vector<1x2x1x128xf32>
    %378 = vector.extract_strided_slice %370 {offsets = [0, 1], sizes = [8, 1], strides = [1, 1]} : vector<8x8xf32> to vector<8x1xf32>
    %379 = vector.shape_cast %378 : vector<8x1xf32> to vector<1x1x8x1xf32>
    %380 = vector.broadcast %377 : vector<1x2x1x128xf32> to vector<1x2x8x128xf32>
    %381 = vector.broadcast %379 : vector<1x1x8x1xf32> to vector<1x2x8x128xf32>
    %382 = arith.mulf %380, %381 : vector<1x2x8x128xf32>
    %383 = vector.extract_strided_slice %122 {offsets = [0, 0, 2, 0], sizes = [1, 2, 1, 128], strides = [1, 1, 1, 1]} : vector<1x2x8x128xf32> to vector<1x2x1x128xf32>
    %384 = vector.extract_strided_slice %370 {offsets = [0, 2], sizes = [8, 1], strides = [1, 1]} : vector<8x8xf32> to vector<8x1xf32>
    %385 = vector.shape_cast %384 : vector<8x1xf32> to vector<1x1x8x1xf32>
    %386 = vector.broadcast %383 : vector<1x2x1x128xf32> to vector<1x2x8x128xf32>
    %387 = vector.broadcast %385 : vector<1x1x8x1xf32> to vector<1x2x8x128xf32>
    %388 = arith.mulf %386, %387 : vector<1x2x8x128xf32>
    %389 = vector.extract_strided_slice %122 {offsets = [0, 0, 3, 0], sizes = [1, 2, 1, 128], strides = [1, 1, 1, 1]} : vector<1x2x8x128xf32> to vector<1x2x1x128xf32>
    %390 = vector.extract_strided_slice %370 {offsets = [0, 3], sizes = [8, 1], strides = [1, 1]} : vector<8x8xf32> to vector<8x1xf32>
    %391 = vector.shape_cast %390 : vector<8x1xf32> to vector<1x1x8x1xf32>
    %392 = vector.broadcast %389 : vector<1x2x1x128xf32> to vector<1x2x8x128xf32>
    %393 = vector.broadcast %391 : vector<1x1x8x1xf32> to vector<1x2x8x128xf32>
    %394 = arith.mulf %392, %393 : vector<1x2x8x128xf32>
    %395 = vector.extract_strided_slice %122 {offsets = [0, 0, 4, 0], sizes = [1, 2, 1, 128], strides = [1, 1, 1, 1]} : vector<1x2x8x128xf32> to vector<1x2x1x128xf32>
    %396 = vector.extract_strided_slice %370 {offsets = [0, 4], sizes = [8, 1], strides = [1, 1]} : vector<8x8xf32> to vector<8x1xf32>
    %397 = vector.shape_cast %396 : vector<8x1xf32> to vector<1x1x8x1xf32>
    %398 = vector.broadcast %395 : vector<1x2x1x128xf32> to vector<1x2x8x128xf32>
    %399 = vector.broadcast %397 : vector<1x1x8x1xf32> to vector<1x2x8x128xf32>
    %400 = arith.mulf %398, %399 : vector<1x2x8x128xf32>
    %401 = arith.addf %376, %400 : vector<1x2x8x128xf32>
    %402 = vector.extract_strided_slice %122 {offsets = [0, 0, 5, 0], sizes = [1, 2, 1, 128], strides = [1, 1, 1, 1]} : vector<1x2x8x128xf32> to vector<1x2x1x128xf32>
    %403 = vector.extract_strided_slice %370 {offsets = [0, 5], sizes = [8, 1], strides = [1, 1]} : vector<8x8xf32> to vector<8x1xf32>
    %404 = vector.shape_cast %403 : vector<8x1xf32> to vector<1x1x8x1xf32>
    %405 = vector.broadcast %402 : vector<1x2x1x128xf32> to vector<1x2x8x128xf32>
    %406 = vector.broadcast %404 : vector<1x1x8x1xf32> to vector<1x2x8x128xf32>
    %407 = arith.mulf %405, %406 : vector<1x2x8x128xf32>
    %408 = arith.addf %382, %407 : vector<1x2x8x128xf32>
    %409 = vector.extract_strided_slice %122 {offsets = [0, 0, 6, 0], sizes = [1, 2, 1, 128], strides = [1, 1, 1, 1]} : vector<1x2x8x128xf32> to vector<1x2x1x128xf32>
    %410 = vector.extract_strided_slice %370 {offsets = [0, 6], sizes = [8, 1], strides = [1, 1]} : vector<8x8xf32> to vector<8x1xf32>
    %411 = vector.shape_cast %410 : vector<8x1xf32> to vector<1x1x8x1xf32>
    %412 = vector.broadcast %409 : vector<1x2x1x128xf32> to vector<1x2x8x128xf32>
    %413 = vector.broadcast %411 : vector<1x1x8x1xf32> to vector<1x2x8x128xf32>
    %414 = arith.mulf %412, %413 : vector<1x2x8x128xf32>
    %415 = arith.addf %388, %414 : vector<1x2x8x128xf32>
    %416 = vector.extract_strided_slice %122 {offsets = [0, 0, 7, 0], sizes = [1, 2, 1, 128], strides = [1, 1, 1, 1]} : vector<1x2x8x128xf32> to vector<1x2x1x128xf32>
    %417 = vector.extract_strided_slice %370 {offsets = [0, 7], sizes = [8, 1], strides = [1, 1]} : vector<8x8xf32> to vector<8x1xf32>
    %418 = vector.shape_cast %417 : vector<8x1xf32> to vector<1x1x8x1xf32>
    %419 = vector.broadcast %416 : vector<1x2x1x128xf32> to vector<1x2x8x128xf32>
    %420 = vector.broadcast %418 : vector<1x1x8x1xf32> to vector<1x2x8x128xf32>
    %421 = arith.mulf %419, %420 : vector<1x2x8x128xf32>
    %422 = arith.addf %394, %421 : vector<1x2x8x128xf32>
    %423 = arith.addf %401, %408 : vector<1x2x8x128xf32>
    %424 = arith.addf %415, %422 : vector<1x2x8x128xf32>
    %425 = arith.addf %423, %424 : vector<1x2x8x128xf32>
    %426 = arith.addf %368, %425 : vector<1x2x8x128xf32>
    %427 = vector.extract_strided_slice %311 {offsets = [2, 0, 0], sizes = [1, 8, 8], strides = [1, 1, 1]} : vector<3x8x8xf32> to vector<1x8x8xf32>
    %428 = vector.shape_cast %427 : vector<1x8x8xf32> to vector<8x8xf32>
    %429 = vector.extract_strided_slice %130 {offsets = [0, 0, 0, 0], sizes = [1, 2, 1, 128], strides = [1, 1, 1, 1]} : vector<1x2x8x128xf32> to vector<1x2x1x128xf32>
    %430 = vector.extract_strided_slice %428 {offsets = [0, 0], sizes = [8, 1], strides = [1, 1]} : vector<8x8xf32> to vector<8x1xf32>
    %431 = vector.shape_cast %430 : vector<8x1xf32> to vector<1x1x8x1xf32>
    %432 = vector.broadcast %429 : vector<1x2x1x128xf32> to vector<1x2x8x128xf32>
    %433 = vector.broadcast %431 : vector<1x1x8x1xf32> to vector<1x2x8x128xf32>
    %434 = arith.mulf %432, %433 : vector<1x2x8x128xf32>
    %435 = vector.extract_strided_slice %130 {offsets = [0, 0, 1, 0], sizes = [1, 2, 1, 128], strides = [1, 1, 1, 1]} : vector<1x2x8x128xf32> to vector<1x2x1x128xf32>
    %436 = vector.extract_strided_slice %428 {offsets = [0, 1], sizes = [8, 1], strides = [1, 1]} : vector<8x8xf32> to vector<8x1xf32>
    %437 = vector.shape_cast %436 : vector<8x1xf32> to vector<1x1x8x1xf32>
    %438 = vector.broadcast %435 : vector<1x2x1x128xf32> to vector<1x2x8x128xf32>
    %439 = vector.broadcast %437 : vector<1x1x8x1xf32> to vector<1x2x8x128xf32>
    %440 = arith.mulf %438, %439 : vector<1x2x8x128xf32>
    %441 = vector.extract_strided_slice %130 {offsets = [0, 0, 2, 0], sizes = [1, 2, 1, 128], strides = [1, 1, 1, 1]} : vector<1x2x8x128xf32> to vector<1x2x1x128xf32>
    %442 = vector.extract_strided_slice %428 {offsets = [0, 2], sizes = [8, 1], strides = [1, 1]} : vector<8x8xf32> to vector<8x1xf32>
    %443 = vector.shape_cast %442 : vector<8x1xf32> to vector<1x1x8x1xf32>
    %444 = vector.broadcast %441 : vector<1x2x1x128xf32> to vector<1x2x8x128xf32>
    %445 = vector.broadcast %443 : vector<1x1x8x1xf32> to vector<1x2x8x128xf32>
    %446 = arith.mulf %444, %445 : vector<1x2x8x128xf32>
    %447 = vector.extract_strided_slice %130 {offsets = [0, 0, 3, 0], sizes = [1, 2, 1, 128], strides = [1, 1, 1, 1]} : vector<1x2x8x128xf32> to vector<1x2x1x128xf32>
    %448 = vector.extract_strided_slice %428 {offsets = [0, 3], sizes = [8, 1], strides = [1, 1]} : vector<8x8xf32> to vector<8x1xf32>
    %449 = vector.shape_cast %448 : vector<8x1xf32> to vector<1x1x8x1xf32>
    %450 = vector.broadcast %447 : vector<1x2x1x128xf32> to vector<1x2x8x128xf32>
    %451 = vector.broadcast %449 : vector<1x1x8x1xf32> to vector<1x2x8x128xf32>
    %452 = arith.mulf %450, %451 : vector<1x2x8x128xf32>
    %453 = vector.extract_strided_slice %130 {offsets = [0, 0, 4, 0], sizes = [1, 2, 1, 128], strides = [1, 1, 1, 1]} : vector<1x2x8x128xf32> to vector<1x2x1x128xf32>
    %454 = vector.extract_strided_slice %428 {offsets = [0, 4], sizes = [8, 1], strides = [1, 1]} : vector<8x8xf32> to vector<8x1xf32>
    %455 = vector.shape_cast %454 : vector<8x1xf32> to vector<1x1x8x1xf32>
    %456 = vector.broadcast %453 : vector<1x2x1x128xf32> to vector<1x2x8x128xf32>
    %457 = vector.broadcast %455 : vector<1x1x8x1xf32> to vector<1x2x8x128xf32>
    %458 = arith.mulf %456, %457 : vector<1x2x8x128xf32>
    %459 = arith.addf %434, %458 : vector<1x2x8x128xf32>
    %460 = vector.extract_strided_slice %130 {offsets = [0, 0, 5, 0], sizes = [1, 2, 1, 128], strides = [1, 1, 1, 1]} : vector<1x2x8x128xf32> to vector<1x2x1x128xf32>
    %461 = vector.extract_strided_slice %428 {offsets = [0, 5], sizes = [8, 1], strides = [1, 1]} : vector<8x8xf32> to vector<8x1xf32>
    %462 = vector.shape_cast %461 : vector<8x1xf32> to vector<1x1x8x1xf32>
    %463 = vector.broadcast %460 : vector<1x2x1x128xf32> to vector<1x2x8x128xf32>
    %464 = vector.broadcast %462 : vector<1x1x8x1xf32> to vector<1x2x8x128xf32>
    %465 = arith.mulf %463, %464 : vector<1x2x8x128xf32>
    %466 = arith.addf %440, %465 : vector<1x2x8x128xf32>
    %467 = vector.extract_strided_slice %130 {offsets = [0, 0, 6, 0], sizes = [1, 2, 1, 128], strides = [1, 1, 1, 1]} : vector<1x2x8x128xf32> to vector<1x2x1x128xf32>
    %468 = vector.extract_strided_slice %428 {offsets = [0, 6], sizes = [8, 1], strides = [1, 1]} : vector<8x8xf32> to vector<8x1xf32>
    %469 = vector.shape_cast %468 : vector<8x1xf32> to vector<1x1x8x1xf32>
    %470 = vector.broadcast %467 : vector<1x2x1x128xf32> to vector<1x2x8x128xf32>
    %471 = vector.broadcast %469 : vector<1x1x8x1xf32> to vector<1x2x8x128xf32>
    %472 = arith.mulf %470, %471 : vector<1x2x8x128xf32>
    %473 = arith.addf %446, %472 : vector<1x2x8x128xf32>
    %474 = vector.extract_strided_slice %130 {offsets = [0, 0, 7, 0], sizes = [1, 2, 1, 128], strides = [1, 1, 1, 1]} : vector<1x2x8x128xf32> to vector<1x2x1x128xf32>
    %475 = vector.extract_strided_slice %428 {offsets = [0, 7], sizes = [8, 1], strides = [1, 1]} : vector<8x8xf32> to vector<8x1xf32>
    %476 = vector.shape_cast %475 : vector<8x1xf32> to vector<1x1x8x1xf32>
    %477 = vector.broadcast %474 : vector<1x2x1x128xf32> to vector<1x2x8x128xf32>
    %478 = vector.broadcast %476 : vector<1x1x8x1xf32> to vector<1x2x8x128xf32>
    %479 = arith.mulf %477, %478 : vector<1x2x8x128xf32>
    %480 = arith.addf %452, %479 : vector<1x2x8x128xf32>
    %481 = arith.addf %459, %466 : vector<1x2x8x128xf32>
    %482 = arith.addf %473, %480 : vector<1x2x8x128xf32>
    %483 = arith.addf %481, %482 : vector<1x2x8x128xf32>
    %484 = arith.addf %426, %483 : vector<1x2x8x128xf32>
    %485 = vector.extract_strided_slice %484 {offsets = [0, 1, 0, 0], sizes = [1, 1, 8, 128], strides = [1, 1, 1, 1]} : vector<1x2x8x128xf32> to vector<1x1x8x128xf32>
    %cst_28 = arith.constant 0.000000e+00 : f32
    %486 = vector.broadcast %cst_28 : f32 to vector<1x1x8x128xf32>
    %487 = arith.subf %486, %485 : vector<1x1x8x128xf32>
    %488 = vector.extract_strided_slice %484 {offsets = [0, 0, 0, 0], sizes = [1, 1, 8, 128], strides = [1, 1, 1, 1]} : vector<1x2x8x128xf32> to vector<1x1x8x128xf32>
    %489 = tpu.concatenate %487, %488 in 1 : vector<1x1x8x128xf32>, vector<1x1x8x128xf32> -> vector<1x2x8x128xf32>
    %490 = arith.addf %310, %489 : vector<1x2x8x128xf32>
    %c0_29 = arith.constant 0 : index
    %c0_30 = arith.constant 0 : index
    %491 = vector.load %arg8[%c0_29, %c0_30] : memref<16x48xf32, #tpu.memory_space<vmem>>, vector<16x48xf32>
    %492 = tpu.concatenate %133, %124, %136 in 1 : vector<1x16x128xf32>, vector<1x16x128xf32>, vector<1x16x128xf32> -> vector<1x48x128xf32>
    %493 = vector.shape_cast %492 : vector<1x48x128xf32> to vector<48x128xf32>
    %cst_31 = arith.constant dense<0.000000e+00> : vector<16x128xf32>
    %494 = tpu.matmul %491, %493, %cst_31 {dimension_numbers = #tpu.dot_dimension_numbers<[1], [0], [0], [1], [0, 0, 1, 1], [], []>} : vector<16x48xf32>, vector<48x128xf32>, vector<16x128xf32> -> vector<16x128xf32>
    %495 = vector.shape_cast %494 : vector<16x128xf32> to vector<1x16x128xf32>
    %c0_32 = arith.constant 0 : index
    %c0_33 = arith.constant 0 : index
    %496 = vector.load %arg9[%c0_32, %c0_33] : memref<24x24xf32, #tpu.memory_space<vmem>>, vector<24x24xf32>
    %497 = vector.extract_strided_slice %490 {offsets = [0, 0, 0, 0], sizes = [1, 1, 8, 128], strides = [1, 1, 1, 1]} : vector<1x2x8x128xf32> to vector<1x1x8x128xf32>
    %498 = vector.shape_cast %497 : vector<1x1x8x128xf32> to vector<1x8x128xf32>
    %499 = vector.extract_strided_slice %490 {offsets = [0, 0, 0, 0], sizes = [1, 1, 8, 128], strides = [1, 1, 1, 1]} : vector<1x2x8x128xf32> to vector<1x1x8x128xf32>
    %500 = vector.shape_cast %499 : vector<1x1x8x128xf32> to vector<1x8x128xf32>
    %501 = arith.mulf %498, %500 : vector<1x8x128xf32>
    %502 = vector.extract_strided_slice %490 {offsets = [0, 1, 0, 0], sizes = [1, 1, 8, 128], strides = [1, 1, 1, 1]} : vector<1x2x8x128xf32> to vector<1x1x8x128xf32>
    %503 = vector.shape_cast %502 : vector<1x1x8x128xf32> to vector<1x8x128xf32>
    %504 = vector.extract_strided_slice %490 {offsets = [0, 1, 0, 0], sizes = [1, 1, 8, 128], strides = [1, 1, 1, 1]} : vector<1x2x8x128xf32> to vector<1x1x8x128xf32>
    %505 = vector.shape_cast %504 : vector<1x1x8x128xf32> to vector<1x8x128xf32>
    %506 = arith.mulf %503, %505 : vector<1x8x128xf32>
    %507 = arith.addf %501, %506 : vector<1x8x128xf32>
    %cst_34 = arith.constant 9.99999996E-13 : f32
    %508 = vector.broadcast %cst_34 : f32 to vector<1x8x128xf32>
    %509 = arith.maximumf %507, %508 : vector<1x8x128xf32>
    %510 = math.rsqrt %509 : vector<1x8x128xf32>
    %511 = arith.mulf %507, %510 : vector<1x8x128xf32>
    %512 = tpu.concatenate %511, %495 in 1 : vector<1x8x128xf32>, vector<1x16x128xf32> -> vector<1x24x128xf32>
    %513 = vector.shape_cast %512 : vector<1x24x128xf32> to vector<24x128xf32>
    %cst_35 = arith.constant dense<0.000000e+00> : vector<24x128xf32>
    %514 = tpu.matmul %496, %513, %cst_35 {dimension_numbers = #tpu.dot_dimension_numbers<[1], [0], [0], [1], [0, 0, 1, 1], [], []>} : vector<24x24xf32>, vector<24x128xf32>, vector<24x128xf32> -> vector<24x128xf32>
    %515 = vector.shape_cast %514 : vector<24x128xf32> to vector<1x24x128xf32>
    %cst_36 = arith.constant dense<0.000000e+00> : vector<1x128xf32>
    %516 = vector.multi_reduction <add>, %515, %cst_36 [1] : vector<1x24x128xf32> to vector<1x128xf32>
    %517 = vector.shape_cast %516 : vector<1x128xf32> to vector<1x1x128xf32>
    %cst_37 = arith.constant 2.400000e+01 : f32
    %518 = vector.broadcast %cst_37 : f32 to vector<1x1x128xf32>
    %519 = arith.divf %517, %518 : vector<1x1x128xf32>
    %520 = vector.broadcast %519 : vector<1x1x128xf32> to vector<1x24x128xf32>
    %521 = arith.subf %515, %520 : vector<1x24x128xf32>
    %522 = vector.broadcast %519 : vector<1x1x128xf32> to vector<1x24x128xf32>
    %523 = arith.subf %515, %522 : vector<1x24x128xf32>
    %524 = arith.mulf %521, %523 : vector<1x24x128xf32>
    %cst_38 = arith.constant dense<0.000000e+00> : vector<1x128xf32>
    %525 = vector.multi_reduction <add>, %524, %cst_38 [1] : vector<1x24x128xf32> to vector<1x128xf32>
    %526 = vector.shape_cast %525 : vector<1x128xf32> to vector<1x1x128xf32>
    %cst_39 = arith.constant 2.400000e+01 : f32
    %527 = vector.broadcast %cst_39 : f32 to vector<1x1x128xf32>
    %528 = arith.divf %526, %527 : vector<1x1x128xf32>
    %529 = vector.broadcast %519 : vector<1x1x128xf32> to vector<1x24x128xf32>
    %530 = arith.subf %515, %529 : vector<1x24x128xf32>
    %cst_40 = arith.constant 9.99999974E-6 : f32
    %531 = vector.broadcast %cst_40 : f32 to vector<1x1x128xf32>
    %532 = arith.addf %528, %531 : vector<1x1x128xf32>
    %533 = math.rsqrt %532 : vector<1x1x128xf32>
    %534 = vector.broadcast %533 : vector<1x1x128xf32> to vector<1x24x128xf32>
    %535 = arith.mulf %530, %534 : vector<1x24x128xf32>
    %536 = vector.extract_strided_slice %535 {offsets = [0, 0, 0], sizes = [1, 8, 128], strides = [1, 1, 1]} : vector<1x24x128xf32> to vector<1x8x128xf32>
    %537 = arith.mulf %536, %510 : vector<1x8x128xf32>
    %538 = vector.shape_cast %537 : vector<1x8x128xf32> to vector<1x1x8x128xf32>
    %539 = vector.broadcast %538 : vector<1x1x8x128xf32> to vector<1x2x8x128xf32>
    %540 = arith.mulf %490, %539 : vector<1x2x8x128xf32>
    %541 = vector.extract_strided_slice %535 {offsets = [0, 8, 0], sizes = [1, 16, 128], strides = [1, 1, 1]} : vector<1x24x128xf32> to vector<1x16x128xf32>
    %542 = vector.extract_strided_slice %540 {offsets = [0, 0, 0, 0], sizes = [1, 1, 8, 128], strides = [1, 1, 1, 1]} : vector<1x2x8x128xf32> to vector<1x1x8x128xf32>
    %543 = vector.shape_cast %542 : vector<1x1x8x128xf32> to vector<1x8x128xf32>
    %544 = vector.extract_strided_slice %540 {offsets = [0, 0, 0, 0], sizes = [1, 1, 8, 128], strides = [1, 1, 1, 1]} : vector<1x2x8x128xf32> to vector<1x1x8x128xf32>
    %545 = vector.shape_cast %544 : vector<1x1x8x128xf32> to vector<1x8x128xf32>
    %546 = arith.mulf %543, %545 : vector<1x8x128xf32>
    %547 = vector.extract_strided_slice %540 {offsets = [0, 1, 0, 0], sizes = [1, 1, 8, 128], strides = [1, 1, 1, 1]} : vector<1x2x8x128xf32> to vector<1x1x8x128xf32>
    %548 = vector.shape_cast %547 : vector<1x1x8x128xf32> to vector<1x8x128xf32>
    %549 = vector.extract_strided_slice %540 {offsets = [0, 1, 0, 0], sizes = [1, 1, 8, 128], strides = [1, 1, 1, 1]} : vector<1x2x8x128xf32> to vector<1x1x8x128xf32>
    %550 = vector.shape_cast %549 : vector<1x1x8x128xf32> to vector<1x8x128xf32>
    %551 = arith.mulf %548, %550 : vector<1x8x128xf32>
    %552 = arith.addf %546, %551 : vector<1x8x128xf32>
    %cst_41 = arith.constant 9.99999993E-9 : f32
    %553 = vector.broadcast %cst_41 : f32 to vector<1x8x128xf32>
    %554 = arith.maximumf %552, %553 : vector<1x8x128xf32>
    %555 = math.rsqrt %554 : vector<1x8x128xf32>
    %556 = arith.mulf %552, %555 : vector<1x8x128xf32>
    %cst_42 = arith.constant 9.99999974E-5 : f32
    %557 = vector.broadcast %cst_42 : f32 to vector<1x8x128xf32>
    %558 = arith.maximumf %556, %557 : vector<1x8x128xf32>
    %cst_43 = arith.constant dense<0.000000e+00> : vector<1x8xf32>
    %559 = vector.multi_reduction <add>, %558, %cst_43 [2] : vector<1x8x128xf32> to vector<1x8xf32>
    %cst_44 = arith.constant dense<0.000000e+00> : vector<8xf32>
    %560 = vector.multi_reduction <add>, %559, %cst_44 [0] : vector<1x8xf32> to vector<8xf32>
    %561 = vector.shape_cast %560 : vector<8xf32> to vector<1x8xf32>
    %cst_45 = arith.constant dense<0.000000e+00> : vector<1x16xf32>
    %562 = vector.multi_reduction <add>, %541, %cst_45 [2] : vector<1x16x128xf32> to vector<1x16xf32>
    %cst_46 = arith.constant dense<0.000000e+00> : vector<16xf32>
    %563 = vector.multi_reduction <add>, %562, %cst_46 [0] : vector<1x16xf32> to vector<16xf32>
    %564 = vector.shape_cast %563 : vector<16xf32> to vector<1x16xf32>
    %565 = tpu.concatenate %561, %564 in 1 : vector<1x8xf32>, vector<1x16xf32> -> vector<1x24xf32>
    %566 = arith.mulf %558, %558 : vector<1x8x128xf32>
    %cst_47 = arith.constant dense<0.000000e+00> : vector<1x8xf32>
    %567 = vector.multi_reduction <add>, %566, %cst_47 [2] : vector<1x8x128xf32> to vector<1x8xf32>
    %cst_48 = arith.constant dense<0.000000e+00> : vector<8xf32>
    %568 = vector.multi_reduction <add>, %567, %cst_48 [0] : vector<1x8xf32> to vector<8xf32>
    %569 = vector.shape_cast %568 : vector<8xf32> to vector<1x8xf32>
    %570 = arith.mulf %541, %541 : vector<1x16x128xf32>
    %cst_49 = arith.constant dense<0.000000e+00> : vector<1x16xf32>
    %571 = vector.multi_reduction <add>, %570, %cst_49 [2] : vector<1x16x128xf32> to vector<1x16xf32>
    %cst_50 = arith.constant dense<0.000000e+00> : vector<16xf32>
    %572 = vector.multi_reduction <add>, %571, %cst_50 [0] : vector<1x16xf32> to vector<16xf32>
    %573 = vector.shape_cast %572 : vector<16xf32> to vector<1x16xf32>
    %574 = tpu.concatenate %569, %573 in 1 : vector<1x8xf32>, vector<1x16xf32> -> vector<1x24xf32>
    %575 = tpu.concatenate %565, %574 in 0 : vector<1x24xf32>, vector<1x24xf32> -> vector<2x24xf32>
    %576 = vector.shape_cast %575 : vector<2x24xf32> to vector<1x2x24xf32>
    %c0_51 = arith.constant 0 : index
    %c0_52 = arith.constant 0 : index
    %c0_53 = arith.constant 0 : index
    %577 = vector.load %arg12[%c0_51, %c0_52, %c0_53] : memref<1x2x24xf32, #tpu.memory_space<vmem>>, vector<1x2x24xf32>
    tpu.vector_store %arg12[%c0_51, %c0_52, %c0_53], %576 {strides = array<i32>} : memref<1x2x24xf32, #tpu.memory_space<vmem>>, vector<1x2x24xf32>,
    %c0_54 = arith.constant 0 : index
    %c0_55 = arith.constant 0 : index
    %c0_56 = arith.constant 0 : index
    %c0_57 = arith.constant 0 : index
    %578 = vector.load %arg10[%c0_54, %c0_55, %c0_56, %c0_57] : memref<1x2x8x128xf32, #tpu.memory_space<vmem>>, vector<1x2x8x128xf32>
    tpu.vector_store %arg10[%c0_54, %c0_55, %c0_56, %c0_57], %540 {strides = array<i32>} : memref<1x2x8x128xf32, #tpu.memory_space<vmem>>, vector<1x2x8x128xf32>,
    %c0_58 = arith.constant 0 : index
    %c0_59 = arith.constant 0 : index
    %c0_60 = arith.constant 0 : index
    %579 = vector.load %arg11[%c0_58, %c0_59, %c0_60] : memref<1x16x128xf32, #tpu.memory_space<vmem>>, vector<1x16x128xf32>
    tpu.vector_store %arg11[%c0_58, %c0_59, %c0_60], %541 {strides = array<i32>} : memref<1x16x128xf32, #tpu.memory_space<vmem>>, vector<1x16x128xf32>,
    return
  }
  func.func @transform_0(%arg0: i32) -> (i32, i32, i32, i32) {
    %c0_i32 = arith.constant 0 : i32
    %c0_i32_0 = arith.constant 0 : i32
    %c0_i32_1 = arith.constant 0 : i32
    %c0_i32_2 = arith.constant 0 : i32
    return %arg0, %c0_i32, %c0_i32_0, %c0_i32_1 : i32, i32, i32, i32
  }
  func.func @transform_1(%arg0: i32) -> (i32, i32, i32) {
    %c0_i32 = arith.constant 0 : i32
    %c0_i32_0 = arith.constant 0 : i32
    %c0_i32_1 = arith.constant 0 : i32
    return %arg0, %c0_i32, %c0_i32_0 : i32, i32, i32
  }
  func.func @transform_2(%arg0: i32) -> (i32, i32, i32) {
    %c0_i32 = arith.constant 0 : i32
    %c0_i32_0 = arith.constant 0 : i32
    %c0_i32_1 = arith.constant 0 : i32
    %c0_i32_2 = arith.constant 0 : i32
    return %c0_i32, %c0_i32_0, %c0_i32_1 : i32, i32, i32
  }
  func.func @transform_3(%arg0: i32) -> (i32, i32, i32) {
    %c0_i32 = arith.constant 0 : i32
    %c0_i32_0 = arith.constant 0 : i32
    %c0_i32_1 = arith.constant 0 : i32
    %c0_i32_2 = arith.constant 0 : i32
    return %c0_i32, %c0_i32_0, %c0_i32_1 : i32, i32, i32
  }
  func.func @transform_4(%arg0: i32) -> (i32, i32) {
    %c0_i32 = arith.constant 0 : i32
    %c0_i32_0 = arith.constant 0 : i32
    %c0_i32_1 = arith.constant 0 : i32
    return %c0_i32, %c0_i32_0 : i32, i32
  }
  func.func @transform_5(%arg0: i32) -> (i32, i32, i32) {
    %c0_i32 = arith.constant 0 : i32
    %c0_i32_0 = arith.constant 0 : i32
    %c0_i32_1 = arith.constant 0 : i32
    %c0_i32_2 = arith.constant 0 : i32
    return %c0_i32, %c0_i32_0, %c0_i32_1 : i32, i32, i32
  }
  func.func @transform_6(%arg0: i32) -> (i32, i32, i32) {
    %c0_i32 = arith.constant 0 : i32
    %c0_i32_0 = arith.constant 0 : i32
    %c0_i32_1 = arith.constant 0 : i32
    %c0_i32_2 = arith.constant 0 : i32
    return %c0_i32, %c0_i32_0, %c0_i32_1 : i32, i32, i32
  }
  func.func @transform_7(%arg0: i32) -> (i32, i32) {
    %c0_i32 = arith.constant 0 : i32
    %c0_i32_0 = arith.constant 0 : i32
    %c0_i32_1 = arith.constant 0 : i32
    return %c0_i32, %c0_i32_0 : i32, i32
  }
  func.func @transform_8(%arg0: i32) -> (i32, i32) {
    %c0_i32 = arith.constant 0 : i32
    %c0_i32_0 = arith.constant 0 : i32
    %c0_i32_1 = arith.constant 0 : i32
    return %c0_i32, %c0_i32_0 : i32, i32
  }
  func.func @transform_9(%arg0: i32) -> (i32, i32, i32, i32) {
    %c0_i32 = arith.constant 0 : i32
    %c0_i32_0 = arith.constant 0 : i32
    %c0_i32_1 = arith.constant 0 : i32
    %c0_i32_2 = arith.constant 0 : i32
    return %arg0, %c0_i32, %c0_i32_0, %c0_i32_1 : i32, i32, i32, i32
  }
  func.func @transform_10(%arg0: i32) -> (i32, i32, i32) {
    %c0_i32 = arith.constant 0 : i32
    %c0_i32_0 = arith.constant 0 : i32
    %c0_i32_1 = arith.constant 0 : i32
    return %arg0, %c0_i32, %c0_i32_0 : i32, i32, i32
  }
  func.func @transform_11(%arg0: i32) -> (i32, i32, i32) {
    %c0_i32 = arith.constant 0 : i32
    %c0_i32_0 = arith.constant 0 : i32
    %c0_i32_1 = arith.constant 0 : i32
    return %arg0, %c0_i32, %c0_i32_0 : i32, i32, i32
  }
}

</mosaic_0001>

<llo_original>
// kernel: basic_block1d.5
$region0: #{basic_block1d.5}
  #allocation0 [shape = 'u32[]', space=smem, size = 0x4, offset = 0x4, fixed_abs, tag = 'smem constant byte address 0x4 - core index']
  #allocation1 [shape = 'u32[144,128]{1,0:T(1,128)}', space=vmem, size = 0x12000, scoped, tag = 'internal scratch']
  %s0 = inlined_call_operand.vmem [shape: f32[2,2,8,128], index: 0, kind: input, shape index: {}]
  %s1 = inlined_call_operand.vmem [shape: f32[2,16,128], index: 1, kind: input, shape index: {}]
  %s2 = inlined_call_operand.vmem [shape: f32[2,2,8,128], index: 2, kind: input, shape index: {}]
  %s3 = inlined_call_operand.vmem [shape: f32[2,16,128], index: 3, kind: input, shape index: {}]
  %s4 = inlined_call_operand.vmem [shape: f32[2,8,1], index: 4, kind: input, shape index: {}]
  %s5 = inlined_call_operand.vmem [shape: f32[2,16,1], index: 5, kind: input, shape index: {}]
  %s6 = inlined_call_operand.vmem [shape: f32[2,8,1], index: 6, kind: input, shape index: {}]
  %s7 = inlined_call_operand.vmem [shape: f32[2,16,1], index: 7, kind: input, shape index: {}]
  %s8 = inlined_call_operand.vmem [shape: f32[8,8], index: 8, kind: input, shape index: {}]
  %s9 = inlined_call_operand.hbm [shape: f32[2,2,8,128], index: 9, kind: output, shape index: {0}]
  %s10 = inlined_call_operand.hbm [shape: f32[2,16,128], index: 10, kind: output, shape index: {1}]
  %11 = xla_tuple %s9, %s10
  %s12 = sld [smem:[#allocation0]]
  $region77: #{basic_block1d.5} parent=0
    _
  %s14 = ssub.s32 1, %s12
  %s15 = scalar_select 0, %s14, %s12
  $region1: #{basic_block1d.5} parent=0
    #allocation2 [shape = 'u8[16384]{0}', space=vmem, size = 0x4000, scoped, tag = 'output window, operand 0']
    #allocation3 [shape = 's32[2]{0}', space=sflag, size = 0x8, scoped, tag = 'scoped memory for basic_block1d.5']
    #allocation4 [shape = 'u8[16384]{0}', space=vmem, size = 0x4000, scoped, tag = 'output window, operand 1']
    #allocation5 [shape = 's32[2]{0}', space=sflag, size = 0x8, scoped, tag = 'scoped memory for basic_block1d.5']
    %16 = vsyncpa [#allocation3], 0
    %s17 = scalar_lea.sflag [#allocation3], 1
    %18 = vsyncpa %s17, 0
    %19 = vsyncpa [#allocation5], 0
    %s20 = scalar_lea.sflag [#allocation5], 1
    %21 = vsyncpa %s20, 0
    loop: start=0, step=1, limit=4
    $region2: #{basic_block1d.5} parent=1 // loop_pre_header
      _
    $region3: #{basic_block1d.5} parent=1 // loop_header
      %s23 = sphi 0, %s27
      %p24 = scmp.ge.s32.totalorder %s23, 4
      %s33 = sphi 0, %s35
      %s36 = sphi 0, %s33
      %s37 = sphi 0, %s36
      %s53 = sphi 0, %s37
      %s59 = sphi 0, %s61
      %s62 = sphi 0, %s59
      %s63 = sphi 0, %s62
      %s79 = sphi 0, %s63
      %s85 = sphi 0, %s87
      %s88 = sphi 0, %s85
      %s89 = sphi 0, %s88
      %s105 = sphi 0, %s89
      %s111 = sphi 0, %s113
      %s114 = sphi 0, %s111
      %s115 = sphi 0, %s114
      %s131 = sphi 0, %s115
      %s135 = sphi 0, %s135
      %s137 = sphi 0, %s135
      %s138 = sphi 0, %s137
      %s152 = sphi 0, %s138
      %s156 = sphi 0, %s156
      %s158 = sphi 0, %s156
      %s159 = sphi 0, %s158
      %s173 = sphi 0, %s159
      %s177 = sphi 0, %s177
      %s179 = sphi 0, %s177
      %s180 = sphi 0, %s179
      %s194 = sphi 0, %s180
      %s198 = sphi 0, %s198
      %s200 = sphi 0, %s198
      %s201 = sphi 0, %s200
      %s215 = sphi 0, %s201
      %s219 = sphi 0, %s219
      %s221 = sphi 0, %s219
      %s222 = sphi 0, %s221
      %s236 = sphi 0, %s222
      %s242 = sphi 0, %s244
      %s245 = sphi 0, %s242
      %s246 = sphi 0, %s245
      %s262 = sphi 0, %s246
      %s268 = sphi 0, %s270
      %s271 = sphi 0, %s268
      %s272 = sphi 0, %s271
      %s288 = sphi 0, %s272
    $region4: #{basic_block1d.5} parent=1 // loop_header_branch
      %26 = sbr.rel (%p24) target = $region8
    $region5: #{basic_block1d.5} parent=1 // loop_body
      %s28 = ssub.s32 %s23, 1
      %s29 = ssub.s32 %s23, 2
      %s30 = sadd.s32 %s23, 1
      %s31 = ssub.s32 %s23, %s30
      %p32 = scmp.eq.s32.totalorder %s31, 0
      %s34 = sadd.s32 %s33, 1
      %s35 = scalar_select %p32, %s33, %s34
      %p38 = pneg %p32
      %p39 = scmp.eq.s32.totalorder %s23, 1
      %p40 = por %p38, %p39
      %p41 = scmp.ne.s32.totalorder %s33, %s36
      %p42 = scmp.eq.s32.totalorder %s23, 0
      %p43 = por %p41, %p42
      %p44 = scmp.ne.s32.totalorder %s33, %s36
      %p45 = scmp.eq.s32.totalorder %s28, 1
      %p46 = por %p44, %p45
      %p47 = scmp.ne.s32.totalorder %s36, %s37
      %p48 = scmp.eq.s32.totalorder %s28, 0
      %p49 = por %p47, %p48
      %p50 = scmp.ne.s32.totalorder %s36, %s37
      %p51 = scmp.eq.s32.totalorder %s29, 1
      %p52 = por %p50, %p51
      %p54 = scmp.ne.s32.totalorder %s37, %s53
      %p55 = scmp.eq.s32.totalorder %s29, 0
      %p56 = por %p54, %p55
      %s57 = ssub.s32 %s23, %s30
      %p58 = scmp.eq.s32.totalorder %s57, 0
      %s60 = sadd.s32 %s59, 1
      %s61 = scalar_select %p58, %s59, %s60
      %p64 = pneg %p58
      %p65 = scmp.eq.s32.totalorder %s23, 1
      %p66 = por %p64, %p65
      %p67 = scmp.ne.s32.totalorder %s59, %s62
      %p68 = scmp.eq.s32.totalorder %s23, 0
      %p69 = por %p67, %p68
      %p70 = scmp.ne.s32.totalorder %s59, %s62
      %p71 = scmp.eq.s32.totalorder %s28, 1
      %p72 = por %p70, %p71
      %p73 = scmp.ne.s32.totalorder %s62, %s63
      %p74 = scmp.eq.s32.totalorder %s28, 0
      %p75 = por %p73, %p74
      %p76 = scmp.ne.s32.totalorder %s62, %s63
      %p77 = scmp.eq.s32.totalorder %s29, 1
      %p78 = por %p76, %p77
      %p80 = scmp.ne.s32.totalorder %s63, %s79
      %p81 = scmp.eq.s32.totalorder %s29, 0
      %p82 = por %p80, %p81
      %s83 = ssub.s32 %s23, %s30
      %p84 = scmp.eq.s32.totalorder %s83, 0
      %s86 = sadd.s32 %s85, 1
      %s87 = scalar_select %p84, %s85, %s86
      %p90 = pneg %p84
      %p91 = scmp.eq.s32.totalorder %s23, 1
      %p92 = por %p90, %p91
      %p93 = scmp.ne.s32.totalorder %s85, %s88
      %p94 = scmp.eq.s32.totalorder %s23, 0
      %p95 = por %p93, %p94
      %p96 = scmp.ne.s32.totalorder %s85, %s88
      %p97 = scmp.eq.s32.totalorder %s28, 1
      %p98 = por %p96, %p97
      %p99 = scmp.ne.s32.totalorder %s88, %s89
      %p100 = scmp.eq.s32.totalorder %s28, 0
      %p101 = por %p99, %p100
      %p102 = scmp.ne.s32.totalorder %s88, %s89
      %p103 = scmp.eq.s32.totalorder %s29, 1
      %p104 = por %p102, %p103
      %p106 = scmp.ne.s32.totalorder %s89, %s105
      %p107 = scmp.eq.s32.totalorder %s29, 0
      %p108 = por %p106, %p107
      %s109 = ssub.s32 %s23, %s30
      %p110 = scmp.eq.s32.totalorder %s109, 0
      %s112 = sadd.s32 %s111, 1
      %s113 = scalar_select %p110, %s111, %s112
      %p116 = pneg %p110
      %p117 = scmp.eq.s32.totalorder %s23, 1
      %p118 = por %p116, %p117
      %p119 = scmp.ne.s32.totalorder %s111, %s114
      %p120 = scmp.eq.s32.totalorder %s23, 0
      %p121 = por %p119, %p120
      %p122 = scmp.ne.s32.totalorder %s111, %s114
      %p123 = scmp.eq.s32.totalorder %s28, 1
      %p124 = por %p122, %p123
      %p125 = scmp.ne.s32.totalorder %s114, %s115
      %p126 = scmp.eq.s32.totalorder %s28, 0
      %p127 = por %p125, %p126
      %p128 = scmp.ne.s32.totalorder %s114, %s115
      %p129 = scmp.eq.s32.totalorder %s29, 1
      %p130 = por %p128, %p129
      %p132 = scmp.ne.s32.totalorder %s115, %s131
      %p133 = scmp.eq.s32.totalorder %s29, 0
      %p134 = por %p132, %p133
      %s136 = sadd.s32 %s135, 1
      %p139 = scmp.eq.s32.totalorder %s23, 1
      %p140 = scmp.ne.s32.totalorder %s135, %s137
      %p141 = scmp.eq.s32.totalorder %s23, 0
      %p142 = por %p140, %p141
      %p143 = scmp.ne.s32.totalorder %s135, %s137
      %p144 = scmp.eq.s32.totalorder %s28, 1
      %p145 = por %p143, %p144
      %p146 = scmp.ne.s32.totalorder %s137, %s138
      %p147 = scmp.eq.s32.totalorder %s28, 0
      %p148 = por %p146, %p147
      %p149 = scmp.ne.s32.totalorder %s137, %s138
      %p150 = scmp.eq.s32.totalorder %s29, 1
      %p151 = por %p149, %p150
      %p153 = scmp.ne.s32.totalorder %s138, %s152
      %p154 = scmp.eq.s32.totalorder %s29, 0
      %p155 = por %p153, %p154
      %s157 = sadd.s32 %s156, 1
      %p160 = scmp.eq.s32.totalorder %s23, 1
      %p161 = scmp.ne.s32.totalorder %s156, %s158
      %p162 = scmp.eq.s32.totalorder %s23, 0
      %p163 = por %p161, %p162
      %p164 = scmp.ne.s32.totalorder %s156, %s158
      %p165 = scmp.eq.s32.totalorder %s28, 1
      %p166 = por %p164, %p165
      %p167 = scmp.ne.s32.totalorder %s158, %s159
      %p168 = scmp.eq.s32.totalorder %s28, 0
      %p169 = por %p167, %p168
      %p170 = scmp.ne.s32.totalorder %s158, %s159
      %p171 = scmp.eq.s32.totalorder %s29, 1
      %p172 = por %p170, %p171
      %p174 = scmp.ne.s32.totalorder %s159, %s173
      %p175 = scmp.eq.s32.totalorder %s29, 0
      %p176 = por %p174, %p175
      %s178 = sadd.s32 %s177, 1
      %p181 = scmp.eq.s32.totalorder %s23, 1
      %p182 = scmp.ne.s32.totalorder %s177, %s179
      %p183 = scmp.eq.s32.totalorder %s23, 0
      %p184 = por %p182, %p183
      %p185 = scmp.ne.s32.totalorder %s177, %s179
      %p186 = scmp.eq.s32.totalorder %s28, 1
      %p187 = por %p185, %p186
      %p188 = scmp.ne.s32.totalorder %s179, %s180
      %p189 = scmp.eq.s32.totalorder %s28, 0
      %p190 = por %p188, %p189
      %p191 = scmp.ne.s32.totalorder %s179, %s180
      %p192 = scmp.eq.s32.totalorder %s29, 1
      %p193 = por %p191, %p192
      %p195 = scmp.ne.s32.totalorder %s180, %s194
      %p196 = scmp.eq.s32.totalorder %s29, 0
      %p197 = por %p195, %p196
      %s199 = sadd.s32 %s198, 1
      %p202 = scmp.eq.s32.totalorder %s23, 1
      %p203 = scmp.ne.s32.totalorder %s198, %s200
      %p204 = scmp.eq.s32.totalorder %s23, 0
      %p205 = por %p203, %p204
      %p206 = scmp.ne.s32.totalorder %s198, %s200
      %p207 = scmp.eq.s32.totalorder %s28, 1
      %p208 = por %p206, %p207
      %p209 = scmp.ne.s32.totalorder %s200, %s201
      %p210 = scmp.eq.s32.totalorder %s28, 0
      %p211 = por %p209, %p210
      %p212 = scmp.ne.s32.totalorder %s200, %s201
      %p213 = scmp.eq.s32.totalorder %s29, 1
      %p214 = por %p212, %p213
      %p216 = scmp.ne.s32.totalorder %s201, %s215
      %p217 = scmp.eq.s32.totalorder %s29, 0
      %p218 = por %p216, %p217
      %s220 = sadd.s32 %s219, 1
      %p223 = scmp.eq.s32.totalorder %s23, 1
      %p224 = scmp.ne.s32.totalorder %s219, %s221
      %p225 = scmp.eq.s32.totalorder %s23, 0
      %p226 = por %p224, %p225
      %p227 = scmp.ne.s32.totalorder %s219, %s221
      %p228 = scmp.eq.s32.totalorder %s28, 1
      %p229 = por %p227, %p228
      %p230 = scmp.ne.s32.totalorder %s221, %s222
      %p231 = scmp.eq.s32.totalorder %s28, 0
      %p232 = por %p230, %p231
      %p233 = scmp.ne.s32.totalorder %s221, %s222
      %p234 = scmp.eq.s32.totalorder %s29, 1
      %p235 = por %p233, %p234
      %p237 = scmp.ne.s32.totalorder %s222, %s236
      %p238 = scmp.eq.s32.totalorder %s29, 0
      %p239 = por %p237, %p238
      %s240 = ssub.s32 %s23, %s30
      %p241 = scmp.eq.s32.totalorder %s240, 0
      %s243 = sadd.s32 %s242, 1
      %s244 = scalar_select %p241, %s242, %s243
      %p247 = pneg %p241
      %p248 = scmp.eq.s32.totalorder %s23, 1
      %p249 = por %p247, %p248
      %p250 = scmp.ne.s32.totalorder %s242, %s245
      %p251 = scmp.eq.s32.totalorder %s23, 0
      %p252 = por %p250, %p251
      %p253 = scmp.ne.s32.totalorder %s242, %s245
      %p254 = scmp.eq.s32.totalorder %s28, 1
      %p255 = por %p253, %p254
      %p256 = scmp.ne.s32.totalorder %s245, %s246
      %p257 = scmp.eq.s32.totalorder %s28, 0
      %p258 = por %p256, %p257
      %p259 = scmp.ne.s32.totalorder %s245, %s246
      %p260 = scmp.eq.s32.totalorder %s29, 1
      %p261 = por %p259, %p260
      %p263 = scmp.ne.s32.totalorder %s246, %s262
      %p264 = scmp.eq.s32.totalorder %s29, 0
      %p265 = por %p263, %p264
      %s266 = ssub.s32 %s23, %s30
      %p267 = scmp.eq.s32.totalorder %s266, 0
      %s269 = sadd.s32 %s268, 1
      %s270 = scalar_select %p267, %s268, %s269
      %p273 = pneg %p267
      %p274 = scmp.eq.s32.totalorder %s23, 1
      %p275 = por %p273, %p274
      %p276 = scmp.ne.s32.totalorder %s268, %s271
      %p277 = scmp.eq.s32.totalorder %s23, 0
      %p278 = por %p276, %p277
      %p279 = scmp.ne.s32.totalorder %s268, %s271
      %p280 = scmp.eq.s32.totalorder %s28, 1
      %p281 = por %p279, %p280
      %p282 = scmp.ne.s32.totalorder %s271, %s272
      %p283 = scmp.eq.s32.totalorder %s28, 0
      %p284 = por %p282, %p283
      %p285 = scmp.ne.s32.totalorder %s271, %s272
      %p286 = scmp.eq.s32.totalorder %s29, 1
      %p287 = por %p285, %p286
      %p289 = scmp.ne.s32.totalorder %s272, %s288
      %p290 = scmp.eq.s32.totalorder %s29, 0
      %p291 = por %p289, %p290
      %p292 = scmp.le.s32.totalorder 1, %s23
      %p293 = scmp.lt.s32.totalorder %s23, 3
      %p294 = pnand %p292, %p293
      %p295 = pneg %p294
      // Predicated region
      $region9: #{basic_block1d.5} parent=5 // pred_check
        _
      $region10: #{basic_block1d.5} parent=5 // pred_check_branch
        %297 = sbr.rel (%p294) target = $region12
      $region11: #{basic_block1d.5} parent=5 // pred_region
        %s298 = ssub.s32 %s23, 1
        // Predicated region
        $region13: #{basic_block1d.5} parent=11 // pred_check
          %p299 = pneg %p148
        $region14: #{basic_block1d.5} parent=11 // pred_check_branch
          %301 = sbr.rel (%p299) target = $region16
        $region15: #{basic_block1d.5} parent=11 // pred_region
          _
        $region16: #{basic_block1d.5} parent=11 // pred_fallthru
          _
        // Predicated region
        $region17: #{basic_block1d.5} parent=11 // pred_check
          %p302 = pneg %p169
        $region18: #{basic_block1d.5} parent=11 // pred_check_branch
          %304 = sbr.rel (%p302) target = $region20
        $region19: #{basic_block1d.5} parent=11 // pred_region
          _
        $region20: #{basic_block1d.5} parent=11 // pred_fallthru
          _
        // Predicated region
        $region21: #{basic_block1d.5} parent=11 // pred_check
          %p305 = pneg %p190
        $region22: #{basic_block1d.5} parent=11 // pred_check_branch
          %307 = sbr.rel (%p305) target = $region24
        $region23: #{basic_block1d.5} parent=11 // pred_region
          _
        $region24: #{basic_block1d.5} parent=11 // pred_fallthru
          _
        // Predicated region
        $region25: #{basic_block1d.5} parent=11 // pred_check
          %p308 = pneg %p211
        $region26: #{basic_block1d.5} parent=11 // pred_check_branch
          %310 = sbr.rel (%p308) target = $region28
        $region27: #{basic_block1d.5} parent=11 // pred_region
          _
        $region28: #{basic_block1d.5} parent=11 // pred_fallthru
          _
        // Predicated region
        $region29: #{basic_block1d.5} parent=11 // pred_check
          %p311 = pneg %p232
        $region30: #{basic_block1d.5} parent=11 // pred_check_branch
          %313 = sbr.rel (%p311) target = $region32
        $region31: #{basic_block1d.5} parent=11 // pred_region
          _
        $region32: #{basic_block1d.5} parent=11 // pred_fallthru
          _
      $region12: #{basic_block1d.5} parent=5 // pred_fallthru
        _
      %p314 = scmp.lt.s32.totalorder %s23, 2
      // Predicated region
      $region33: #{basic_block1d.5} parent=5 // pred_check
        %p315 = pneg %p314
      $region34: #{basic_block1d.5} parent=5 // pred_check_branch
        %317 = sbr.rel (%p315) target = $region36
      $region35: #{basic_block1d.5} parent=5 // pred_region
        // Predicated region
        $region37: #{basic_block1d.5} parent=35 // pred_check
          %p318 = pneg %p43
        $region38: #{basic_block1d.5} parent=35 // pred_check_branch
          %320 = sbr.rel (%p318) target = $region40
        $region39: #{basic_block1d.5} parent=35 // pred_region
          %p321 = scmp.lt.s32.totalorder %s23, 1
          %s322 = scalar_select %p321, %s23, 1
          %s323 = smul.addr %s322, 2
          %s324 = smul.addr %s323, 8
          %s325 = scalar_lea.vmem %s0, %s324
        $region40: #{basic_block1d.5} parent=35 // pred_fallthru
          _
        // Predicated region
        $region41: #{basic_block1d.5} parent=35 // pred_check
          %p326 = pneg %p69
        $region42: #{basic_block1d.5} parent=35 // pred_check_branch
          %328 = sbr.rel (%p326) target = $region44
        $region43: #{basic_block1d.5} parent=35 // pred_region
          %p329 = scmp.lt.s32.totalorder %s23, 1
          %s330 = scalar_select %p329, %s23, 1
          %s331 = smul.addr %s330, 2
          %s332 = smul.addr %s331, 8
          %s333 = scalar_lea.vmem %s1, %s332
        $region44: #{basic_block1d.5} parent=35 // pred_fallthru
          _
        // Predicated region
        $region45: #{basic_block1d.5} parent=35 // pred_check
          %p334 = pneg %p95
        $region46: #{basic_block1d.5} parent=35 // pred_check_branch
          %336 = sbr.rel (%p334) target = $region48
        $region47: #{basic_block1d.5} parent=35 // pred_region
          %p337 = scmp.lt.s32.totalorder %s23, 1
          %s338 = scalar_select %p337, %s23, 1
          %s339 = smul.addr %s338, 2
          %s340 = smul.addr %s339, 8
          %s341 = scalar_lea.vmem %s2, %s340
        $region48: #{basic_block1d.5} parent=35 // pred_fallthru
          _
        // Predicated region
        $region49: #{basic_block1d.5} parent=35 // pred_check
          %p342 = pneg %p121
        $region50: #{basic_block1d.5} parent=35 // pred_check_branch
          %344 = sbr.rel (%p342) target = $region52
        $region51: #{basic_block1d.5} parent=35 // pred_region
          %p345 = scmp.lt.s32.totalorder %s23, 1
          %s346 = scalar_select %p345, %s23, 1
          %s347 = smul.addr %s346, 2
          %s348 = smul.addr %s347, 8
          %s349 = scalar_lea.vmem %s3, %s348
        $region52: #{basic_block1d.5} parent=35 // pred_fallthru
          _
      $region36: #{basic_block1d.5} parent=5 // pred_fallthru
        _
      %p350 = scmp.le.s32.totalorder 1, %s23
      %p351 = scmp.lt.s32.totalorder %s23, 3
      %p352 = pnand %p350, %p351
      %p353 = pneg %p352
      // Predicated region
      $region53: #{basic_block1d.5} parent=5 // pred_check
        _
      $region54: #{basic_block1d.5} parent=5 // pred_check_branch
        %355 = sbr.rel (%p352) target = $region56
      $region55: #{basic_block1d.5} parent=5 // pred_region
        %s356 = ssub.s32 %s23, 1
        %p357 = scmp.lt.s32.totalorder %s28, 1
        %s358 = scalar_select %p357, %s28, 1
        %s359 = smul.addr %s358, 2
        %s360 = smul.addr %s359, 8
        %s361 = scalar_lea.vmem %s0, %s360
        %p362 = pneg %p49
        %p363 = pneg %p46
        %p364 = scmp.lt.s32.totalorder %s28, 1
        %s365 = scalar_select %p364, %s28, 1
        %s366 = smul.addr %s365, 2
        %s367 = smul.addr %s366, 8
        %s368 = scalar_lea.vmem %s1, %s367
        %p369 = pneg %p75
        %p370 = pneg %p72
        %p371 = scmp.lt.s32.totalorder %s28, 1
        %s372 = scalar_select %p371, %s28, 1
        %s373 = smul.addr %s372, 2
        %s374 = smul.addr %s373, 8
        %s375 = scalar_lea.vmem %s2, %s374
        %p376 = pneg %p101
        %p377 = pneg %p98
        %p378 = scmp.lt.s32.totalorder %s28, 1
        %s379 = scalar_select %p378, %s28, 1
        %s380 = smul.addr %s379, 2
        %s381 = smul.addr %s380, 8
        %s382 = scalar_lea.vmem %s3, %s381
        %p383 = pneg %p127
        %p384 = pneg %p124
        %p385 = pneg %p148
        %p386 = pneg %p145
        %p387 = pneg %p169
        %p388 = pneg %p166
        %p389 = pneg %p190
        %p390 = pneg %p187
        %p391 = pneg %p211
        %p392 = pneg %p208
        %p393 = pneg %p232
        %p394 = pneg %p229
        %p395 = pneg %p258
        %p396 = pneg %p255
        %s397 = sand.u32 %s245, 1
        %s398 = scalar_lea.sflag [#allocation3], %s397
        %s399 = sand.u32 %s245, 1
        %s400 = smul.addr %s399, 16
        %s401 = scalar_lea.vmem [#allocation2], %s400
        %p402 = pneg %p284
        %p403 = pneg %p281
        %s404 = sand.u32 %s271, 1
        %s405 = scalar_lea.sflag [#allocation5], %s404
        %s406 = sand.u32 %s271, 1
        %s407 = smul.addr %s406, 16
        %s408 = scalar_lea.vmem [#allocation4], %s407
        %p409 = scmp.lt.s32.totalorder %s28, 1
        %s410 = scalar_select %p409, %s28, 1
        %s411 = smul.addr %s410, 2
        %s412 = smul.addr %s411, 8
        %s413 = scalar_lea.vmem %s0, %s412
        %p414 = scmp.lt.s32.totalorder %s28, 1
        %s415 = scalar_select %p414, %s28, 1
        %s416 = smul.addr %s415, 2
        %s417 = smul.addr %s416, 8
        %s418 = scalar_lea.vmem %s1, %s417
        %p419 = scmp.lt.s32.totalorder %s28, 1
        %s420 = scalar_select %p419, %s28, 1
        %s421 = smul.addr %s420, 2
        %s422 = smul.addr %s421, 8
        %s423 = scalar_lea.vmem %s2, %s422
        %p424 = scmp.lt.s32.totalorder %s28, 1
        %s425 = scalar_select %p424, %s28, 1
        %s426 = smul.addr %s425, 2
        %s427 = smul.addr %s426, 8
        %s428 = scalar_lea.vmem %s3, %s427
        %v429 = vld [vmem:[%s413] sm:$0xff]
        %v430 = vld [vmem:[%s413 + $0x8] sm:$0xff]
        %v431 = vld [vmem:[%s4] sm:$0xff]
        %v432 = vld [vmem:[%s4 + $0x8] sm:$0xff]
        %v433 = vmul.f32 %v429, %v429
        %v434 = vmul.f32 %v430, %v430
        %v435 = vadd.f32 %v433, %v434
        %v436 = vmax.f32 %v435, 1e-08
        %v437 = vrsqrt.pop %v436
        %v438 = vmul.f32 %v435, %v437
        %v439 = vmax.f32 %v438, 0.0001
        %441 = vset.pattern.permute.xlu0 0
        %442 = vperm.xlu0 %441, %v431
        %v443 = vpop.permute.xlu0 %442
        %v445 = vsub.f32 %v439, %v443
        %447 = vset.pattern.permute.xlu0 0
        %448 = vperm.xlu0 %447, %v432
        %v449 = vpop.permute.xlu0 %448
        %v451 = vmul.f32 %v445, %v449
        %v452 = vmul.f32 %v451, %v437
        %v453 = vmul.f32 %v429, %v452
        %v454 = vmul.f32 %v430, %v452
        %v455 = vld [vmem:[%s418] sm:$0xff]
        %v456 = vld [vmem:[%s418 + $0x8] sm:$0xff]
        %v457 = vld [vmem:[%s5] sm:$0xff]
        %v458 = vld [vmem:[%s5 + $0x8] sm:$0xff]
        %v459 = vld [vmem:[%s5 + $0x10] sm:$0xff]
        %v460 = vld [vmem:[%s5 + $0x18] sm:$0xff]
        %462 = vset.pattern.permute.xlu0 0
        %463 = vperm.xlu0 %462, %v457
        %v464 = vpop.permute.xlu0 %463
        %467 = vset.pattern.permute.xlu0 0
        %468 = vperm.xlu0 %467, %v458
        %v469 = vpop.permute.xlu0 %468
        %v471 = vsub.f32 %v455, %v464
        %v472 = vsub.f32 %v456, %v469
        %474 = vset.pattern.permute.xlu0 0
        %475 = vperm.xlu0 %474, %v459
        %v476 = vpop.permute.xlu0 %475
        %479 = vset.pattern.permute.xlu0 0
        %480 = vperm.xlu0 %479, %v460
        %v481 = vpop.permute.xlu0 %480
        %v483 = vmul.f32 %v471, %v476
        %v484 = vmul.f32 %v472, %v481
        %v485 = vld [vmem:[%s423] sm:$0xff]
        %v486 = vld [vmem:[%s423 + $0x8] sm:$0xff]
        %v487 = vld [vmem:[%s6] sm:$0xff]
        %v488 = vld [vmem:[%s6 + $0x8] sm:$0xff]
        %v489 = vmul.f32 %v485, %v485
        %v490 = vmul.f32 %v486, %v486
        %v491 = vadd.f32 %v489, %v490
        %v492 = vmax.f32 %v491, 1e-08
        %v493 = vrsqrt.pop %v492
        %v494 = vmul.f32 %v491, %v493
        %v495 = vmax.f32 %v494, 0.0001
        %497 = vset.pattern.permute.xlu0 0
        %498 = vperm.xlu0 %497, %v487
        %v499 = vpop.permute.xlu0 %498
        %v501 = vsub.f32 %v495, %v499
        %503 = vset.pattern.permute.xlu0 0
        %504 = vperm.xlu0 %503, %v488
        %v505 = vpop.permute.xlu0 %504
        %v507 = vmul.f32 %v501, %v505
        %v508 = vmul.f32 %v507, %v493
        %v509 = vmul.f32 %v485, %v508
        %v510 = vmul.f32 %v486, %v508
        %v511 = vadd.f32 %v453, %v509
        %v512 = vadd.f32 %v454, %v510
        %v513 = vld [vmem:[%s428] sm:$0xff]
        %v514 = vld [vmem:[%s428 + $0x8] sm:$0xff]
        %v515 = vld [vmem:[%s7] sm:$0xff]
        %v516 = vld [vmem:[%s7 + $0x8] sm:$0xff]
        %v517 = vld [vmem:[%s7 + $0x10] sm:$0xff]
        %v518 = vld [vmem:[%s7 + $0x18] sm:$0xff]
        %520 = vset.pattern.permute.xlu0 0
        %521 = vperm.xlu0 %520, %v515
        %v522 = vpop.permute.xlu0 %521
        %525 = vset.pattern.permute.xlu0 0
        %526 = vperm.xlu0 %525, %v516
        %v527 = vpop.permute.xlu0 %526
        %v529 = vsub.f32 %v513, %v522
        %v530 = vsub.f32 %v514, %v527
        %532 = vset.pattern.permute.xlu0 0
        %533 = vperm.xlu0 %532, %v517
        %v534 = vpop.permute.xlu0 %533
        %537 = vset.pattern.permute.xlu0 0
        %538 = vperm.xlu0 %537, %v518
        %v539 = vpop.permute.xlu0 %538
        %v541 = vmul.f32 %v529, %v534
        %v542 = vmul.f32 %v530, %v539
        %v543 = vadd.f32 %v483, %v541
        %v544 = vadd.f32 %v484, %v542
        %v545 = vld [vmem:[%s8] sm:$0xff]
        %v546 = vlaneseq
        %v547 = vshrl.u32 %v546, 7
        %v548 = vsub.s32 0, %v547
        %v549 = vrot.slane %v511, %v548
        %v550 = vlaneseq
        %v551 = vshrl.u32 %v550, 7
        %v552 = vsub.s32 0, %v551
        %v553 = vrot.slane %v512, %v552
        %555 = vset.pattern.permute.xlu0 0
        %556 = vperm.xlu0 %555, %v545
        %v557 = vpop.permute.xlu0 %556
        %v559 = vmul.f32 %v549, %v557
        %v560 = vmul.f32 %v553, %v557
        %v561 = vlaneseq
        %v562 = vshrl.u32 %v561, 7
        %v563 = vsub.s32 1, %v562
        %v564 = vrot.slane %v511, %v563
        %v565 = vlaneseq
        %v566 = vshrl.u32 %v565, 7
        %v567 = vsub.s32 1, %v566
        %v568 = vrot.slane %v512, %v567
        %569 = vset.pattern.permute.xlu0 1
        %570 = vperm.xlu0 %569, %v545
        %v571 = vpop.permute.xlu0 %570
        %v573 = vmul.f32 %v564, %v571
        %v574 = vmul.f32 %v568, %v571
        %v575 = vlaneseq
        %v576 = vshrl.u32 %v575, 7
        %v577 = vsub.s32 2, %v576
        %v578 = vrot.slane %v511, %v577
        %v579 = vlaneseq
        %v580 = vshrl.u32 %v579, 7
        %v581 = vsub.s32 2, %v580
        %v582 = vrot.slane %v512, %v581
        %583 = vset.pattern.permute.xlu0 2
        %584 = vperm.xlu0 %583, %v545
        %v585 = vpop.permute.xlu0 %584
        %v587 = vmul.f32 %v578, %v585
        %v588 = vmul.f32 %v582, %v585
        %v589 = vlaneseq
        %v590 = vshrl.u32 %v589, 7
        %v591 = vsub.s32 3, %v590
        %v592 = vrot.slane %v511, %v591
        %v593 = vlaneseq
        %v594 = vshrl.u32 %v593, 7
        %v595 = vsub.s32 3, %v594
        %v596 = vrot.slane %v512, %v595
        %597 = vset.pattern.permute.xlu0 3
        %598 = vperm.xlu0 %597, %v545
        %v599 = vpop.permute.xlu0 %598
        %v601 = vmul.f32 %v592, %v599
        %v602 = vmul.f32 %v596, %v599
        %v603 = vlaneseq
        %v604 = vshrl.u32 %v603, 7
        %v605 = vsub.s32 4, %v604
        %v606 = vrot.slane %v511, %v605
        %v607 = vlaneseq
        %v608 = vshrl.u32 %v607, 7
        %v609 = vsub.s32 4, %v608
        %v610 = vrot.slane %v512, %v609
        %611 = vset.pattern.permute.xlu0 4
        %612 = vperm.xlu0 %611, %v545
        %v613 = vpop.permute.xlu0 %612
        %v615 = vmul.f32 %v606, %v613
        %v616 = vmul.f32 %v610, %v613
        %v617 = vadd.f32 %v559, %v615
        %v618 = vadd.f32 %v560, %v616
        %v619 = vlaneseq
        %v620 = vshrl.u32 %v619, 7
        %v621 = vsub.s32 5, %v620
        %v622 = vrot.slane %v511, %v621
        %v623 = vlaneseq
        %v624 = vshrl.u32 %v623, 7
        %v625 = vsub.s32 5, %v624
        %v626 = vrot.slane %v512, %v625
        %627 = vset.pattern.permute.xlu0 5
        %628 = vperm.xlu0 %627, %v545
        %v629 = vpop.permute.xlu0 %628
        %v631 = vmul.f32 %v622, %v629
        %v632 = vmul.f32 %v626, %v629
        %v633 = vadd.f32 %v573, %v631
        %v634 = vadd.f32 %v574, %v632
        %v635 = vlaneseq
        %v636 = vshrl.u32 %v635, 7
        %v637 = vsub.s32 6, %v636
        %v638 = vrot.slane %v511, %v637
        %v639 = vlaneseq
        %v640 = vshrl.u32 %v639, 7
        %v641 = vsub.s32 6, %v640
        %v642 = vrot.slane %v512, %v641
        %643 = vset.pattern.permute.xlu0 6
        %644 = vperm.xlu0 %643, %v545
        %v645 = vpop.permute.xlu0 %644
        %v647 = vmul.f32 %v638, %v645
        %v648 = vmul.f32 %v642, %v645
        %v649 = vadd.f32 %v587, %v647
        %v650 = vadd.f32 %v588, %v648
        %v651 = vlaneseq
        %v652 = vshrl.u32 %v651, 7
        %v653 = vsub.s32 7, %v652
        %v654 = vrot.slane %v511, %v653
        %v655 = vlaneseq
        %v656 = vshrl.u32 %v655, 7
        %v657 = vsub.s32 7, %v656
        %v658 = vrot.slane %v512, %v657
        %659 = vset.pattern.permute.xlu0 7
        %660 = vperm.xlu0 %659, %v545
        %v661 = vpop.permute.xlu0 %660
        %v663 = vmul.f32 %v654, %v661
        %v664 = vmul.f32 %v658, %v661
        %v665 = vadd.f32 %v601, %v663
        %v666 = vadd.f32 %v602, %v664
        %v667 = vadd.f32 %v617, %v633
        %v668 = vadd.f32 %v618, %v634
        %v669 = vadd.f32 %v649, %v665
        %v670 = vadd.f32 %v650, %v666
        %v671 = vadd.f32 %v667, %v669
        %v672 = vadd.f32 %v668, %v670
        %v673 = vmul.f32 %v511, %v671
        %v674 = vmul.f32 %v512, %v672
        %v675 = vadd.f32 %v673, %v674
        %v676 = vmul.f32 %v671, %v671
        %v677 = vmul.f32 %v672, %v672
        %v678 = vadd.f32 %v676, %v677
        %v679 = vadd.f32 %v678, 1e-08
        %v680 = vrcp.pop %v679
        %v681 = vmul.f32 %v675, %v680
        %v682 = vmul.f32 %v681, %v671
        %v683 = vmul.f32 %v681, %v672
        %v684 = vsub.f32 %v511, %v682
        %v685 = vsub.f32 %v512, %v683
        %v686 = vmul.f32 %v511, 0.2
        %v687 = vmul.f32 %v512, 0.2
        %vm688 = vcmp.ge.f32.partialorder %v675, 0.0
        %v689 = vsel %vm688, 1, 0
        %vm690 = vcmp.eq.s32.totalorder %v689, 1
        %v691 = vsel %vm690, %v511, %v684
        %v692 = vsel %vm690, %v512, %v685
        %v693 = vmul.f32 %v691, 0.8
        %v694 = vmul.f32 %v692, 0.8
        %v695 = vadd.f32 %v686, %v693
        %v696 = vadd.f32 %v687, %v694
        %697 = vst [vmem:[%s401] sm:$0xff] %v695
        %698 = vst [vmem:[%s401 + $0x8] sm:$0xff] %v696
        %v699 = vmax.f32 %v543, 0.0
        %v700 = vmax.f32 %v544, 0.0
        %701 = vst [vmem:[%s408] sm:$0xff] %v699
        %702 = vst [vmem:[%s408 + $0x8] sm:$0xff] %v700
        %s703 = sand.u32 %s245, 1
        %s704 = scalar_lea.sflag [#allocation3], %s703
        %s705 = sand.u32 %s245, 1
        %s706 = smul.addr %s705, 16
        %s707 = scalar_lea.vmem [#allocation2], %s706
        %s708 = sand.u32 %s271, 1
        %s709 = scalar_lea.sflag [#allocation5], %s708
        %s710 = sand.u32 %s271, 1
        %s711 = smul.addr %s710, 16
        %s712 = scalar_lea.vmem [#allocation4], %s711
        // Predicated region
        $region57: #{basic_block1d.5} parent=55 // pred_check
          %p713 = pneg %p255
        $region58: #{basic_block1d.5} parent=55 // pred_check_branch
          %715 = sbr.rel (%p713) target = $region60
        $region59: #{basic_block1d.5} parent=55 // pred_region
          %s717 = ssub.s32 256, 256
          %718 = vsyncadd %s704, %s717
          %s719 = smul.addr %s28, 2
          %s720 = smul.addr %s719, 128
          %s721 = scalar_lea.hbm %s9, %s720
          %s722 = sshll.u32 %s707, 4
          %s723 = int_to_ptr.vmem [resolvable:$true] %s722
          %728 = dma.vmem_to_hbm [thread:$0]  %s723, 256, %s721, %s704, 128, 128, 8
        $region60: #{basic_block1d.5} parent=55 // pred_fallthru
          _
        // Predicated region
        $region61: #{basic_block1d.5} parent=55 // pred_check
          %p729 = pneg %p281
        $region62: #{basic_block1d.5} parent=55 // pred_check_branch
          %731 = sbr.rel (%p729) target = $region64
        $region63: #{basic_block1d.5} parent=55 // pred_region
          %s733 = ssub.s32 256, 256
          %734 = vsyncadd %s709, %s733
          %s735 = smul.addr %s28, 2
          %s736 = smul.addr %s735, 128
          %s737 = scalar_lea.hbm %s10, %s736
          %s738 = sshll.u32 %s712, 4
          %s739 = int_to_ptr.vmem [resolvable:$true] %s738
          %744 = dma.vmem_to_hbm [thread:$0]  %s739, 256, %s737, %s709, 128, 128, 8
        $region64: #{basic_block1d.5} parent=55 // pred_fallthru
          _
      $region56: #{basic_block1d.5} parent=5 // pred_fallthru
        _
      %p745 = scmp.le.s32.totalorder 2, %s23
      // Predicated region
      $region65: #{basic_block1d.5} parent=5 // pred_check
        %p746 = pneg %p745
      $region66: #{basic_block1d.5} parent=5 // pred_check_branch
        %748 = sbr.rel (%p746) target = $region68
      $region67: #{basic_block1d.5} parent=5 // pred_region
        %s749 = ssub.s32 %s23, 2
        // Predicated region
        $region69: #{basic_block1d.5} parent=67 // pred_check
          %p750 = pneg %p261
        $region70: #{basic_block1d.5} parent=67 // pred_check_branch
          %752 = sbr.rel (%p750) target = $region72
        $region71: #{basic_block1d.5} parent=67 // pred_region
          %s753 = sand.u32 %s246, 1
          %s754 = scalar_lea.sflag [#allocation3], %s753
          %s755 = sand.u32 %s246, 1
          %s756 = smul.addr %s755, 16
          %s757 = scalar_lea.vmem [#allocation2], %s756
          %758 = dma.done %s754, 256
        $region72: #{basic_block1d.5} parent=67 // pred_fallthru
          _
        // Predicated region
        $region73: #{basic_block1d.5} parent=67 // pred_check
          %p759 = pneg %p287
        $region74: #{basic_block1d.5} parent=67 // pred_check_branch
          %761 = sbr.rel (%p759) target = $region76
        $region75: #{basic_block1d.5} parent=67 // pred_region
          %s762 = sand.u32 %s272, 1
          %s763 = scalar_lea.sflag [#allocation5], %s762
          %s764 = sand.u32 %s272, 1
          %s765 = smul.addr %s764, 16
          %s766 = scalar_lea.vmem [#allocation4], %s765
          %767 = dma.done %s763, 256
        $region76: #{basic_block1d.5} parent=67 // pred_fallthru
          _
      $region68: #{basic_block1d.5} parent=5 // pred_fallthru
        _
    $region6: #{basic_block1d.5} parent=1 // loop_footer
      %s27 = sadd.s32 1, %s23
    $region7: #{basic_block1d.5} parent=1 // loop_footer_branch
      %22 = sbr.rel target = $region3
    $region8: #{basic_block1d.5} parent=1 // loop_exit
      _
    %768 = vsyncpa [#allocation3], 1
    %s769 = scalar_lea.sflag [#allocation3], 1
    %770 = vsyncpa %s769, 1
    %771 = vsyncpa [#allocation5], 1
    %s772 = scalar_lea.sflag [#allocation5], 1
    %773 = vsyncpa %s772, 1

// kernel: basic_block1d.4
$region0: #{basic_block1d.4}
  #allocation0 [shape = 'u32[]', space=smem, size = 0x4, offset = 0x4, fixed_abs, tag = 'smem constant byte address 0x4 - core index']
  #allocation1 [shape = 'u32[144,128]{1,0:T(1,128)}', space=vmem, size = 0x12000, scoped, tag = 'internal scratch']
  %s0 = inlined_call_operand.vmem [shape: f32[2,2,8,128], index: 0, kind: input, shape index: {}]
  %s1 = inlined_call_operand.vmem [shape: f32[2,16,128], index: 1, kind: input, shape index: {}]
  %s2 = inlined_call_operand.vmem [shape: f32[2,8,1], index: 2, kind: input, shape index: {}]
  %s3 = inlined_call_operand.vmem [shape: f32[2,16,1], index: 3, kind: input, shape index: {}]
  %s4 = inlined_call_operand.vmem [shape: f32[8,8], index: 4, kind: input, shape index: {}]
  %s5 = inlined_call_operand.vmem [shape: f32[3,8,8], index: 5, kind: input, shape index: {}]
  %s6 = inlined_call_operand.vmem [shape: f32[3,8,8], index: 6, kind: input, shape index: {}]
  %s7 = inlined_call_operand.vmem [shape: f32[16,48], index: 7, kind: input, shape index: {}]
  %s8 = inlined_call_operand.vmem [shape: f32[24,24], index: 8, kind: input, shape index: {}]
  %s9 = inlined_call_operand.vmem [shape: f32[2,2,8,128], index: 9, kind: output, shape index: {0}]
  %s10 = inlined_call_operand.vmem [shape: f32[2,16,128], index: 10, kind: output, shape index: {1}]
  %s11 = inlined_call_operand.vmem [shape: f32[2,2,24], index: 11, kind: output, shape index: {2}]
  %12 = xla_tuple %s9, %s10, %s11
  %s13 = sld [smem:[#allocation0]]
  $region85: #{basic_block1d.4} parent=0
    _
  %s15 = ssub.s32 1, %s13
  %s16 = scalar_select 0, %s15, %s13
  loop: start=0, step=1, limit=4
  $region2: #{basic_block1d.4} parent=0 // loop_pre_header
    _
  $region3: #{basic_block1d.4} parent=0 // loop_header
    %s18 = sphi 0, %s22
    %p19 = scmp.ge.s32.totalorder %s18, 4
    %s28 = sphi 0, %s30
    %s31 = sphi 0, %s28
    %s32 = sphi 0, %s31
    %s48 = sphi 0, %s32
    %s54 = sphi 0, %s56
    %s57 = sphi 0, %s54
    %s58 = sphi 0, %s57
    %s74 = sphi 0, %s58
    %s78 = sphi 0, %s78
    %s80 = sphi 0, %s78
    %s81 = sphi 0, %s80
    %s95 = sphi 0, %s81
    %s99 = sphi 0, %s99
    %s101 = sphi 0, %s99
    %s102 = sphi 0, %s101
    %s116 = sphi 0, %s102
    %s120 = sphi 0, %s120
    %s122 = sphi 0, %s120
    %s123 = sphi 0, %s122
    %s137 = sphi 0, %s123
    %s141 = sphi 0, %s141
    %s143 = sphi 0, %s141
    %s144 = sphi 0, %s143
    %s158 = sphi 0, %s144
    %s162 = sphi 0, %s162
    %s164 = sphi 0, %s162
    %s165 = sphi 0, %s164
    %s179 = sphi 0, %s165
    %s183 = sphi 0, %s183
    %s185 = sphi 0, %s183
    %s186 = sphi 0, %s185
    %s200 = sphi 0, %s186
    %s204 = sphi 0, %s204
    %s206 = sphi 0, %s204
    %s207 = sphi 0, %s206
    %s221 = sphi 0, %s207
    %s227 = sphi 0, %s229
    %s230 = sphi 0, %s227
    %s231 = sphi 0, %s230
    %s247 = sphi 0, %s231
    %s253 = sphi 0, %s255
    %s256 = sphi 0, %s253
    %s257 = sphi 0, %s256
    %s273 = sphi 0, %s257
    %s279 = sphi 0, %s281
    %s282 = sphi 0, %s279
    %s283 = sphi 0, %s282
    %s299 = sphi 0, %s283
  $region4: #{basic_block1d.4} parent=0 // loop_header_branch
    %21 = sbr.rel (%p19) target = $region8
  $region5: #{basic_block1d.4} parent=0 // loop_body
    %s23 = ssub.s32 %s18, 1
    %s24 = ssub.s32 %s18, 2
    %s25 = sadd.s32 %s18, 1
    %s26 = ssub.s32 %s18, %s25
    %p27 = scmp.eq.s32.totalorder %s26, 0
    %s29 = sadd.s32 %s28, 1
    %s30 = scalar_select %p27, %s28, %s29
    %p33 = pneg %p27
    %p34 = scmp.eq.s32.totalorder %s18, 1
    %p35 = por %p33, %p34
    %p36 = scmp.ne.s32.totalorder %s28, %s31
    %p37 = scmp.eq.s32.totalorder %s18, 0
    %p38 = por %p36, %p37
    %p39 = scmp.ne.s32.totalorder %s28, %s31
    %p40 = scmp.eq.s32.totalorder %s23, 1
    %p41 = por %p39, %p40
    %p42 = scmp.ne.s32.totalorder %s31, %s32
    %p43 = scmp.eq.s32.totalorder %s23, 0
    %p44 = por %p42, %p43
    %p45 = scmp.ne.s32.totalorder %s31, %s32
    %p46 = scmp.eq.s32.totalorder %s24, 1
    %p47 = por %p45, %p46
    %p49 = scmp.ne.s32.totalorder %s32, %s48
    %p50 = scmp.eq.s32.totalorder %s24, 0
    %p51 = por %p49, %p50
    %s52 = ssub.s32 %s18, %s25
    %p53 = scmp.eq.s32.totalorder %s52, 0
    %s55 = sadd.s32 %s54, 1
    %s56 = scalar_select %p53, %s54, %s55
    %p59 = pneg %p53
    %p60 = scmp.eq.s32.totalorder %s18, 1
    %p61 = por %p59, %p60
    %p62 = scmp.ne.s32.totalorder %s54, %s57
    %p63 = scmp.eq.s32.totalorder %s18, 0
    %p64 = por %p62, %p63
    %p65 = scmp.ne.s32.totalorder %s54, %s57
    %p66 = scmp.eq.s32.totalorder %s23, 1
    %p67 = por %p65, %p66
    %p68 = scmp.ne.s32.totalorder %s57, %s58
    %p69 = scmp.eq.s32.totalorder %s23, 0
    %p70 = por %p68, %p69
    %p71 = scmp.ne.s32.totalorder %s57, %s58
    %p72 = scmp.eq.s32.totalorder %s24, 1
    %p73 = por %p71, %p72
    %p75 = scmp.ne.s32.totalorder %s58, %s74
    %p76 = scmp.eq.s32.totalorder %s24, 0
    %p77 = por %p75, %p76
    %s79 = sadd.s32 %s78, 1
    %p82 = scmp.eq.s32.totalorder %s18, 1
    %p83 = scmp.ne.s32.totalorder %s78, %s80
    %p84 = scmp.eq.s32.totalorder %s18, 0
    %p85 = por %p83, %p84
    %p86 = scmp.ne.s32.totalorder %s78, %s80
    %p87 = scmp.eq.s32.totalorder %s23, 1
    %p88 = por %p86, %p87
    %p89 = scmp.ne.s32.totalorder %s80, %s81
    %p90 = scmp.eq.s32.totalorder %s23, 0
    %p91 = por %p89, %p90
    %p92 = scmp.ne.s32.totalorder %s80, %s81
    %p93 = scmp.eq.s32.totalorder %s24, 1
    %p94 = por %p92, %p93
    %p96 = scmp.ne.s32.totalorder %s81, %s95
    %p97 = scmp.eq.s32.totalorder %s24, 0
    %p98 = por %p96, %p97
    %s100 = sadd.s32 %s99, 1
    %p103 = scmp.eq.s32.totalorder %s18, 1
    %p104 = scmp.ne.s32.totalorder %s99, %s101
    %p105 = scmp.eq.s32.totalorder %s18, 0
    %p106 = por %p104, %p105
    %p107 = scmp.ne.s32.totalorder %s99, %s101
    %p108 = scmp.eq.s32.totalorder %s23, 1
    %p109 = por %p107, %p108
    %p110 = scmp.ne.s32.totalorder %s101, %s102
    %p111 = scmp.eq.s32.totalorder %s23, 0
    %p112 = por %p110, %p111
    %p113 = scmp.ne.s32.totalorder %s101, %s102
    %p114 = scmp.eq.s32.totalorder %s24, 1
    %p115 = por %p113, %p114
    %p117 = scmp.ne.s32.totalorder %s102, %s116
    %p118 = scmp.eq.s32.totalorder %s24, 0
    %p119 = por %p117, %p118
    %s121 = sadd.s32 %s120, 1
    %p124 = scmp.eq.s32.totalorder %s18, 1
    %p125 = scmp.ne.s32.totalorder %s120, %s122
    %p126 = scmp.eq.s32.totalorder %s18, 0
    %p127 = por %p125, %p126
    %p128 = scmp.ne.s32.totalorder %s120, %s122
    %p129 = scmp.eq.s32.totalorder %s23, 1
    %p130 = por %p128, %p129
    %p131 = scmp.ne.s32.totalorder %s122, %s123
    %p132 = scmp.eq.s32.totalorder %s23, 0
    %p133 = por %p131, %p132
    %p134 = scmp.ne.s32.totalorder %s122, %s123
    %p135 = scmp.eq.s32.totalorder %s24, 1
    %p136 = por %p134, %p135
    %p138 = scmp.ne.s32.totalorder %s123, %s137
    %p139 = scmp.eq.s32.totalorder %s24, 0
    %p140 = por %p138, %p139
    %s142 = sadd.s32 %s141, 1
    %p145 = scmp.eq.s32.totalorder %s18, 1
    %p146 = scmp.ne.s32.totalorder %s141, %s143
    %p147 = scmp.eq.s32.totalorder %s18, 0
    %p148 = por %p146, %p147
    %p149 = scmp.ne.s32.totalorder %s141, %s143
    %p150 = scmp.eq.s32.totalorder %s23, 1
    %p151 = por %p149, %p150
    %p152 = scmp.ne.s32.totalorder %s143, %s144
    %p153 = scmp.eq.s32.totalorder %s23, 0
    %p154 = por %p152, %p153
    %p155 = scmp.ne.s32.totalorder %s143, %s144
    %p156 = scmp.eq.s32.totalorder %s24, 1
    %p157 = por %p155, %p156
    %p159 = scmp.ne.s32.totalorder %s144, %s158
    %p160 = scmp.eq.s32.totalorder %s24, 0
    %p161 = por %p159, %p160
    %s163 = sadd.s32 %s162, 1
    %p166 = scmp.eq.s32.totalorder %s18, 1
    %p167 = scmp.ne.s32.totalorder %s162, %s164
    %p168 = scmp.eq.s32.totalorder %s18, 0
    %p169 = por %p167, %p168
    %p170 = scmp.ne.s32.totalorder %s162, %s164
    %p171 = scmp.eq.s32.totalorder %s23, 1
    %p172 = por %p170, %p171
    %p173 = scmp.ne.s32.totalorder %s164, %s165
    %p174 = scmp.eq.s32.totalorder %s23, 0
    %p175 = por %p173, %p174
    %p176 = scmp.ne.s32.totalorder %s164, %s165
    %p177 = scmp.eq.s32.totalorder %s24, 1
    %p178 = por %p176, %p177
    %p180 = scmp.ne.s32.totalorder %s165, %s179
    %p181 = scmp.eq.s32.totalorder %s24, 0
    %p182 = por %p180, %p181
    %s184 = sadd.s32 %s183, 1
    %p187 = scmp.eq.s32.totalorder %s18, 1
    %p188 = scmp.ne.s32.totalorder %s183, %s185
    %p189 = scmp.eq.s32.totalorder %s18, 0
    %p190 = por %p188, %p189
    %p191 = scmp.ne.s32.totalorder %s183, %s185
    %p192 = scmp.eq.s32.totalorder %s23, 1
    %p193 = por %p191, %p192
    %p194 = scmp.ne.s32.totalorder %s185, %s186
    %p195 = scmp.eq.s32.totalorder %s23, 0
    %p196 = por %p194, %p195
    %p197 = scmp.ne.s32.totalorder %s185, %s186
    %p198 = scmp.eq.s32.totalorder %s24, 1
    %p199 = por %p197, %p198
    %p201 = scmp.ne.s32.totalorder %s186, %s200
    %p202 = scmp.eq.s32.totalorder %s24, 0
    %p203 = por %p201, %p202
    %s205 = sadd.s32 %s204, 1
    %p208 = scmp.eq.s32.totalorder %s18, 1
    %p209 = scmp.ne.s32.totalorder %s204, %s206
    %p210 = scmp.eq.s32.totalorder %s18, 0
    %p211 = por %p209, %p210
    %p212 = scmp.ne.s32.totalorder %s204, %s206
    %p213 = scmp.eq.s32.totalorder %s23, 1
    %p214 = por %p212, %p213
    %p215 = scmp.ne.s32.totalorder %s206, %s207
    %p216 = scmp.eq.s32.totalorder %s23, 0
    %p217 = por %p215, %p216
    %p218 = scmp.ne.s32.totalorder %s206, %s207
    %p219 = scmp.eq.s32.totalorder %s24, 1
    %p220 = por %p218, %p219
    %p222 = scmp.ne.s32.totalorder %s207, %s221
    %p223 = scmp.eq.s32.totalorder %s24, 0
    %p224 = por %p222, %p223
    %s225 = ssub.s32 %s18, %s25
    %p226 = scmp.eq.s32.totalorder %s225, 0
    %s228 = sadd.s32 %s227, 1
    %s229 = scalar_select %p226, %s227, %s228
    %p232 = pneg %p226
    %p233 = scmp.eq.s32.totalorder %s18, 1
    %p234 = por %p232, %p233
    %p235 = scmp.ne.s32.totalorder %s227, %s230
    %p236 = scmp.eq.s32.totalorder %s18, 0
    %p237 = por %p235, %p236
    %p238 = scmp.ne.s32.totalorder %s227, %s230
    %p239 = scmp.eq.s32.totalorder %s23, 1
    %p240 = por %p238, %p239
    %p241 = scmp.ne.s32.totalorder %s230, %s231
    %p242 = scmp.eq.s32.totalorder %s23, 0
    %p243 = por %p241, %p242
    %p244 = scmp.ne.s32.totalorder %s230, %s231
    %p245 = scmp.eq.s32.totalorder %s24, 1
    %p246 = por %p244, %p245
    %p248 = scmp.ne.s32.totalorder %s231, %s247
    %p249 = scmp.eq.s32.totalorder %s24, 0
    %p250 = por %p248, %p249
    %s251 = ssub.s32 %s18, %s25
    %p252 = scmp.eq.s32.totalorder %s251, 0
    %s254 = sadd.s32 %s253, 1
    %s255 = scalar_select %p252, %s253, %s254
    %p258 = pneg %p252
    %p259 = scmp.eq.s32.totalorder %s18, 1
    %p260 = por %p258, %p259
    %p261 = scmp.ne.s32.totalorder %s253, %s256
    %p262 = scmp.eq.s32.totalorder %s18, 0
    %p263 = por %p261, %p262
    %p264 = scmp.ne.s32.totalorder %s253, %s256
    %p265 = scmp.eq.s32.totalorder %s23, 1
    %p266 = por %p264, %p265
    %p267 = scmp.ne.s32.totalorder %s256, %s257
    %p268 = scmp.eq.s32.totalorder %s23, 0
    %p269 = por %p267, %p268
    %p270 = scmp.ne.s32.totalorder %s256, %s257
    %p271 = scmp.eq.s32.totalorder %s24, 1
    %p272 = por %p270, %p271
    %p274 = scmp.ne.s32.totalorder %s257, %s273
    %p275 = scmp.eq.s32.totalorder %s24, 0
    %p276 = por %p274, %p275
    %s277 = ssub.s32 %s18, %s25
    %p278 = scmp.eq.s32.totalorder %s277, 0
    %s280 = sadd.s32 %s279, 1
    %s281 = scalar_select %p278, %s279, %s280
    %p284 = pneg %p278
    %p285 = scmp.eq.s32.totalorder %s18, 1
    %p286 = por %p284, %p285
    %p287 = scmp.ne.s32.totalorder %s279, %s282
    %p288 = scmp.eq.s32.totalorder %s18, 0
    %p289 = por %p287, %p288
    %p290 = scmp.ne.s32.totalorder %s279, %s282
    %p291 = scmp.eq.s32.totalorder %s23, 1
    %p292 = por %p290, %p291
    %p293 = scmp.ne.s32.totalorder %s282, %s283
    %p294 = scmp.eq.s32.totalorder %s23, 0
    %p295 = por %p293, %p294
    %p296 = scmp.ne.s32.totalorder %s282, %s283
    %p297 = scmp.eq.s32.totalorder %s24, 1
    %p298 = por %p296, %p297
    %p300 = scmp.ne.s32.totalorder %s283, %s299
    %p301 = scmp.eq.s32.totalorder %s24, 0
    %p302 = por %p300, %p301
    %p303 = scmp.le.s32.totalorder 1, %s18
    %p304 = scmp.lt.s32.totalorder %s18, 3
    %p305 = pnand %p303, %p304
    %p306 = pneg %p305
    // Predicated region
    $region9: #{basic_block1d.4} parent=5 // pred_check
      _
    $region10: #{basic_block1d.4} parent=5 // pred_check_branch
      %308 = sbr.rel (%p305) target = $region12
    $region11: #{basic_block1d.4} parent=5 // pred_region
      %s309 = ssub.s32 %s18, 1
      // Predicated region
      $region13: #{basic_block1d.4} parent=11 // pred_check
        %p310 = pneg %p91
      $region14: #{basic_block1d.4} parent=11 // pred_check_branch
        %312 = sbr.rel (%p310) target = $region16
      $region15: #{basic_block1d.4} parent=11 // pred_region
        _
      $region16: #{basic_block1d.4} parent=11 // pred_fallthru
        _
      // Predicated region
      $region17: #{basic_block1d.4} parent=11 // pred_check
        %p313 = pneg %p112
      $region18: #{basic_block1d.4} parent=11 // pred_check_branch
        %315 = sbr.rel (%p313) target = $region20
      $region19: #{basic_block1d.4} parent=11 // pred_region
        _
      $region20: #{basic_block1d.4} parent=11 // pred_fallthru
        _
      // Predicated region
      $region21: #{basic_block1d.4} parent=11 // pred_check
        %p316 = pneg %p133
      $region22: #{basic_block1d.4} parent=11 // pred_check_branch
        %318 = sbr.rel (%p316) target = $region24
      $region23: #{basic_block1d.4} parent=11 // pred_region
        _
      $region24: #{basic_block1d.4} parent=11 // pred_fallthru
        _
      // Predicated region
      $region25: #{basic_block1d.4} parent=11 // pred_check
        %p319 = pneg %p154
      $region26: #{basic_block1d.4} parent=11 // pred_check_branch
        %321 = sbr.rel (%p319) target = $region28
      $region27: #{basic_block1d.4} parent=11 // pred_region
        _
      $region28: #{basic_block1d.4} parent=11 // pred_fallthru
        _
      // Predicated region
      $region29: #{basic_block1d.4} parent=11 // pred_check
        %p322 = pneg %p175
      $region30: #{basic_block1d.4} parent=11 // pred_check_branch
        %324 = sbr.rel (%p322) target = $region32
      $region31: #{basic_block1d.4} parent=11 // pred_region
        _
      $region32: #{basic_block1d.4} parent=11 // pred_fallthru
        _
      // Predicated region
      $region33: #{basic_block1d.4} parent=11 // pred_check
        %p325 = pneg %p196
      $region34: #{basic_block1d.4} parent=11 // pred_check_branch
        %327 = sbr.rel (%p325) target = $region36
      $region35: #{basic_block1d.4} parent=11 // pred_region
        _
      $region36: #{basic_block1d.4} parent=11 // pred_fallthru
        _
      // Predicated region
      $region37: #{basic_block1d.4} parent=11 // pred_check
        %p328 = pneg %p217
      $region38: #{basic_block1d.4} parent=11 // pred_check_branch
        %330 = sbr.rel (%p328) target = $region40
      $region39: #{basic_block1d.4} parent=11 // pred_region
        _
      $region40: #{basic_block1d.4} parent=11 // pred_fallthru
        _
    $region12: #{basic_block1d.4} parent=5 // pred_fallthru
      _
    %p331 = scmp.lt.s32.totalorder %s18, 2
    // Predicated region
    $region41: #{basic_block1d.4} parent=5 // pred_check
      %p332 = pneg %p331
    $region42: #{basic_block1d.4} parent=5 // pred_check_branch
      %334 = sbr.rel (%p332) target = $region44
    $region43: #{basic_block1d.4} parent=5 // pred_region
      // Predicated region
      $region45: #{basic_block1d.4} parent=43 // pred_check
        %p335 = pneg %p38
      $region46: #{basic_block1d.4} parent=43 // pred_check_branch
        %337 = sbr.rel (%p335) target = $region48
      $region47: #{basic_block1d.4} parent=43 // pred_region
        %p338 = scmp.lt.s32.totalorder %s18, 1
        %s339 = scalar_select %p338, %s18, 1
        %s340 = smul.addr %s339, 2
        %s341 = smul.addr %s340, 8
        %s342 = scalar_lea.vmem %s0, %s341
      $region48: #{basic_block1d.4} parent=43 // pred_fallthru
        _
      // Predicated region
      $region49: #{basic_block1d.4} parent=43 // pred_check
        %p343 = pneg %p64
      $region50: #{basic_block1d.4} parent=43 // pred_check_branch
        %345 = sbr.rel (%p343) target = $region52
      $region51: #{basic_block1d.4} parent=43 // pred_region
        %p346 = scmp.lt.s32.totalorder %s18, 1
        %s347 = scalar_select %p346, %s18, 1
        %s348 = smul.addr %s347, 2
        %s349 = smul.addr %s348, 8
        %s350 = scalar_lea.vmem %s1, %s349
      $region52: #{basic_block1d.4} parent=43 // pred_fallthru
        _
    $region44: #{basic_block1d.4} parent=5 // pred_fallthru
      _
    %p351 = scmp.le.s32.totalorder 1, %s18
    %p352 = scmp.lt.s32.totalorder %s18, 3
    %p353 = pnand %p351, %p352
    %p354 = pneg %p353
    // Predicated region
    $region53: #{basic_block1d.4} parent=5 // pred_check
      _
    $region54: #{basic_block1d.4} parent=5 // pred_check_branch
      %356 = sbr.rel (%p353) target = $region56
    $region55: #{basic_block1d.4} parent=5 // pred_region
      %s357 = ssub.s32 %s18, 1
      %p358 = scmp.lt.s32.totalorder %s23, 1
      %s359 = scalar_select %p358, %s23, 1
      %s360 = smul.addr %s359, 2
      %s361 = smul.addr %s360, 8
      %s362 = scalar_lea.vmem %s0, %s361
      %p363 = pneg %p44
      %p364 = pneg %p41
      %p365 = scmp.lt.s32.totalorder %s23, 1
      %s366 = scalar_select %p365, %s23, 1
      %s367 = smul.addr %s366, 2
      %s368 = smul.addr %s367, 8
      %s369 = scalar_lea.vmem %s1, %s368
      %p370 = pneg %p70
      %p371 = pneg %p67
      %p372 = pneg %p91
      %p373 = pneg %p88
      %p374 = pneg %p112
      %p375 = pneg %p109
      %p376 = pneg %p133
      %p377 = pneg %p130
      %p378 = pneg %p154
      %p379 = pneg %p151
      %p380 = pneg %p175
      %p381 = pneg %p172
      %p382 = pneg %p196
      %p383 = pneg %p193
      %p384 = pneg %p217
      %p385 = pneg %p214
      %p386 = pneg %p243
      %p387 = pneg %p240
      %p388 = scmp.lt.s32.totalorder %s23, 1
      %s389 = scalar_select %p388, %s23, 1
      %s390 = smul.addr %s389, 2
      %s391 = smul.addr %s390, 8
      %s392 = scalar_lea.vmem %s9, %s391
      %p393 = pneg %p269
      %p394 = pneg %p266
      %p395 = scmp.lt.s32.totalorder %s23, 1
      %s396 = scalar_select %p395, %s23, 1
      %s397 = smul.addr %s396, 2
      %s398 = smul.addr %s397, 8
      %s399 = scalar_lea.vmem %s10, %s398
      %p400 = pneg %p295
      %p401 = pneg %p292
      %p402 = scmp.lt.s32.totalorder %s23, 1
      %s403 = scalar_select %p402, %s23, 1
      %s404 = smul.addr %s403, 2
      %s405 = scalar_lea.vmem %s11, %s404
      %p406 = scmp.lt.s32.totalorder %s23, 1
      %s407 = scalar_select %p406, %s23, 1
      %s408 = smul.addr %s407, 2
      %s409 = smul.addr %s408, 8
      %s410 = scalar_lea.vmem %s0, %s409
      %p411 = scmp.lt.s32.totalorder %s23, 1
      %s412 = scalar_select %p411, %s23, 1
      %s413 = smul.addr %s412, 2
      %s414 = smul.addr %s413, 8
      %s415 = scalar_lea.vmem %s1, %s414
      %p416 = scmp.lt.s32.totalorder %s23, 1
      %s417 = scalar_select %p416, %s23, 1
      %s418 = smul.addr %s417, 2
      %s419 = smul.addr %s418, 8
      %s420 = scalar_lea.vmem %s9, %s419
      %p421 = scmp.lt.s32.totalorder %s23, 1
      %s422 = scalar_select %p421, %s23, 1
      %s423 = smul.addr %s422, 2
      %s424 = smul.addr %s423, 8
      %s425 = scalar_lea.vmem %s10, %s424
      %p426 = scmp.lt.s32.totalorder %s23, 1
      %s427 = scalar_select %p426, %s23, 1
      %s428 = smul.addr %s427, 2
      %s429 = scalar_lea.vmem %s11, %s428
      %v430 = vld [vmem:[%s410] sm:$0xff]
      %v431 = vld [vmem:[%s410 + $0x8] sm:$0xff]
      %v432 = vld [vmem:[%s2] sm:$0xff]
      %v433 = vld [vmem:[%s2 + $0x8] sm:$0xff]
      %v434 = vmul.f32 %v430, %v430
      %v435 = vmul.f32 %v431, %v431
      %v436 = vadd.f32 %v434, %v435
      %v437 = vmax.f32 %v436, 1e-08
      %v438 = vrsqrt.pop %v437
      %v439 = vmul.f32 %v436, %v438
      %v440 = vmax.f32 %v439, 0.0001
      %442 = vset.pattern.permute.xlu0 0
      %443 = vperm.xlu0 %442, %v432
      %v444 = vpop.permute.xlu0 %443
      %v446 = vsub.f32 %v440, %v444
      %448 = vset.pattern.permute.xlu0 0
      %449 = vperm.xlu0 %448, %v433
      %v450 = vpop.permute.xlu0 %449
      %v452 = vmul.f32 %v446, %v450
      %v453 = vmul.f32 %v452, %v438
      %v454 = vmul.f32 %v430, %v453
      %v455 = vmul.f32 %v431, %v453
      %v456 = vld [vmem:[%s415] sm:$0xff]
      %v457 = vld [vmem:[%s415 + $0x8] sm:$0xff]
      %v458 = vld [vmem:[%s3] sm:$0xff]
      %v459 = vld [vmem:[%s3 + $0x8] sm:$0xff]
      %v460 = vld [vmem:[%s3 + $0x10] sm:$0xff]
      %v461 = vld [vmem:[%s3 + $0x18] sm:$0xff]
      %463 = vset.pattern.permute.xlu0 0
      %464 = vperm.xlu0 %463, %v458
      %v465 = vpop.permute.xlu0 %464
      %468 = vset.pattern.permute.xlu0 0
      %469 = vperm.xlu0 %468, %v459
      %v470 = vpop.permute.xlu0 %469
      %v472 = vsub.f32 %v456, %v465
      %v473 = vsub.f32 %v457, %v470
      %475 = vset.pattern.permute.xlu0 0
      %476 = vperm.xlu0 %475, %v460
      %v477 = vpop.permute.xlu0 %476
      %480 = vset.pattern.permute.xlu0 0
      %481 = vperm.xlu0 %480, %v461
      %v482 = vpop.permute.xlu0 %481
      %v484 = vmul.f32 %v472, %v477
      %v485 = vmul.f32 %v473, %v482
      %v486 = vld [vmem:[%s4] sm:$0xff]
      %v487 = vlaneseq
      %v488 = vshrl.u32 %v487, 7
      %v489 = vsub.s32 0, %v488
      %v490 = vrot.slane %v454, %v489
      %v491 = vlaneseq
      %v492 = vshrl.u32 %v491, 7
      %v493 = vsub.s32 0, %v492
      %v494 = vrot.slane %v455, %v493
      %496 = vset.pattern.permute.xlu0 0
      %497 = vperm.xlu0 %496, %v486
      %v498 = vpop.permute.xlu0 %497
      %v500 = vmul.f32 %v490, %v498
      %v501 = vmul.f32 %v494, %v498
      %v502 = vlaneseq
      %v503 = vshrl.u32 %v502, 7
      %v504 = vsub.s32 1, %v503
      %v505 = vrot.slane %v454, %v504
      %v506 = vlaneseq
      %v507 = vshrl.u32 %v506, 7
      %v508 = vsub.s32 1, %v507
      %v509 = vrot.slane %v455, %v508
      %510 = vset.pattern.permute.xlu0 1
      %511 = vperm.xlu0 %510, %v486
      %v512 = vpop.permute.xlu0 %511
      %v514 = vmul.f32 %v505, %v512
      %v515 = vmul.f32 %v509, %v512
      %v516 = vlaneseq
      %v517 = vshrl.u32 %v516, 7
      %v518 = vsub.s32 2, %v517
      %v519 = vrot.slane %v454, %v518
      %v520 = vlaneseq
      %v521 = vshrl.u32 %v520, 7
      %v522 = vsub.s32 2, %v521
      %v523 = vrot.slane %v455, %v522
      %524 = vset.pattern.permute.xlu0 2
      %525 = vperm.xlu0 %524, %v486
      %v526 = vpop.permute.xlu0 %525
      %v528 = vmul.f32 %v519, %v526
      %v529 = vmul.f32 %v523, %v526
      %v530 = vlaneseq
      %v531 = vshrl.u32 %v530, 7
      %v532 = vsub.s32 3, %v531
      %v533 = vrot.slane %v454, %v532
      %v534 = vlaneseq
      %v535 = vshrl.u32 %v534, 7
      %v536 = vsub.s32 3, %v535
      %v537 = vrot.slane %v455, %v536
      %538 = vset.pattern.permute.xlu0 3
      %539 = vperm.xlu0 %538, %v486
      %v540 = vpop.permute.xlu0 %539
      %v542 = vmul.f32 %v533, %v540
      %v543 = vmul.f32 %v537, %v540
      %v544 = vlaneseq
      %v545 = vshrl.u32 %v544, 7
      %v546 = vsub.s32 4, %v545
      %v547 = vrot.slane %v454, %v546
      %v548 = vlaneseq
      %v549 = vshrl.u32 %v548, 7
      %v550 = vsub.s32 4, %v549
      %v551 = vrot.slane %v455, %v550
      %552 = vset.pattern.permute.xlu0 4
      %553 = vperm.xlu0 %552, %v486
      %v554 = vpop.permute.xlu0 %553
      %v556 = vmul.f32 %v547, %v554
      %v557 = vmul.f32 %v551, %v554
      %v558 = vadd.f32 %v500, %v556
      %v559 = vadd.f32 %v501, %v557
      %v560 = vlaneseq
      %v561 = vshrl.u32 %v560, 7
      %v562 = vsub.s32 5, %v561
      %v563 = vrot.slane %v454, %v562
      %v564 = vlaneseq
      %v565 = vshrl.u32 %v564, 7
      %v566 = vsub.s32 5, %v565
      %v567 = vrot.slane %v455, %v566
      %568 = vset.pattern.permute.xlu0 5
      %569 = vperm.xlu0 %568, %v486
      %v570 = vpop.permute.xlu0 %569
      %v572 = vmul.f32 %v563, %v570
      %v573 = vmul.f32 %v567, %v570
      %v574 = vadd.f32 %v514, %v572
      %v575 = vadd.f32 %v515, %v573
      %v576 = vlaneseq
      %v577 = vshrl.u32 %v576, 7
      %v578 = vsub.s32 6, %v577
      %v579 = vrot.slane %v454, %v578
      %v580 = vlaneseq
      %v581 = vshrl.u32 %v580, 7
      %v582 = vsub.s32 6, %v581
      %v583 = vrot.slane %v455, %v582
      %584 = vset.pattern.permute.xlu0 6
      %585 = vperm.xlu0 %584, %v486
      %v586 = vpop.permute.xlu0 %585
      %v588 = vmul.f32 %v579, %v586
      %v589 = vmul.f32 %v583, %v586
      %v590 = vadd.f32 %v528, %v588
      %v591 = vadd.f32 %v529, %v589
      %v592 = vlaneseq
      %v593 = vshrl.u32 %v592, 7
      %v594 = vsub.s32 7, %v593
      %v595 = vrot.slane %v454, %v594
      %v596 = vlaneseq
      %v597 = vshrl.u32 %v596, 7
      %v598 = vsub.s32 7, %v597
      %v599 = vrot.slane %v455, %v598
      %600 = vset.pattern.permute.xlu0 7
      %601 = vperm.xlu0 %600, %v486
      %v602 = vpop.permute.xlu0 %601
      %v604 = vmul.f32 %v595, %v602
      %v605 = vmul.f32 %v599, %v602
      %v606 = vadd.f32 %v542, %v604
      %v607 = vadd.f32 %v543, %v605
      %v608 = vadd.f32 %v558, %v574
      %v609 = vadd.f32 %v559, %v575
      %v610 = vadd.f32 %v590, %v606
      %v611 = vadd.f32 %v591, %v607
      %v612 = vadd.f32 %v608, %v610
      %v613 = vadd.f32 %v609, %v611
      %v614 = vmul.f32 %v454, %v612
      %v615 = vmul.f32 %v455, %v613
      %v616 = vadd.f32 %v614, %v615
      %v617 = vmul.f32 %v612, %v612
      %v618 = vmul.f32 %v613, %v613
      %v619 = vadd.f32 %v617, %v618
      %v620 = vadd.f32 %v619, 1e-08
      %v621 = vrcp.pop %v620
      %v622 = vmul.f32 %v616, %v621
      %v623 = vmul.f32 %v622, %v612
      %v624 = vmul.f32 %v622, %v613
      %v625 = vsub.f32 %v454, %v623
      %v626 = vsub.f32 %v455, %v624
      %v627 = vmul.f32 %v454, 0.2
      %v628 = vmul.f32 %v455, 0.2
      %vm629 = vcmp.ge.f32.partialorder %v616, 0.0
      %v630 = vsel %vm629, 1, 0
      %vm631 = vcmp.eq.s32.totalorder %v630, 1
      %v632 = vsel %vm631, %v454, %v625
      %v633 = vsel %vm631, %v455, %v626
      %v634 = vmul.f32 %v632, 0.8
      %v635 = vmul.f32 %v633, 0.8
      %v636 = vadd.f32 %v627, %v634
      %v637 = vadd.f32 %v628, %v635
      %v638 = vmax.f32 %v484, 0.0
      %v639 = vmax.f32 %v485, 0.0
      %642 = vrot.lane.b32.xlu0 %v636, 1
      %v643 = vpop.permute.xlu0 %642
      %644 = vrot.lane.b32.xlu0 %v637, 1
      %v645 = vpop.permute.xlu0 %644
      %vm648 = vcmask 7168
      %v649 = vsel %vm648, %v636, %v643
      %v650 = vsel %vm648, %v637, %v645
      %651 = vrot.lane.b32.xlu0 %v636, 127
      %v652 = vpop.permute.xlu0 %651
      %653 = vrot.lane.b32.xlu0 %v637, 127
      %v654 = vpop.permute.xlu0 %653
      %vm657 = vcmask 1039360
      %v658 = vsel %vm657, %v652, %v636
      %v659 = vsel %vm657, %v654, %v637
      %662 = vrot.lane.b32.xlu0 %v638, 1
      %v663 = vpop.permute.xlu0 %662
      %664 = vrot.lane.b32.xlu0 %v639, 1
      %v665 = vpop.permute.xlu0 %664
      %v668 = vsel %vm648, %v638, %v663
      %v669 = vsel %vm648, %v639, %v665
      %670 = vrot.lane.b32.xlu0 %v638, 127
      %v671 = vpop.permute.xlu0 %670
      %672 = vrot.lane.b32.xlu0 %v639, 127
      %v673 = vpop.permute.xlu0 %672
      %v676 = vsel %vm657, %v671, %v638
      %v677 = vsel %vm657, %v673, %v639
      %v678 = vld [vmem:[%s5] sm:$0xff]
      %v679 = vld [vmem:[%s5 + $0x8] sm:$0xff]
      %v680 = vld [vmem:[%s5 + $0x10] sm:$0xff]
      %v681 = vlaneseq
      %v682 = vshrl.u32 %v681, 7
      %v683 = vsub.s32 0, %v682
      %v684 = vrot.slane %v649, %v683
      %v685 = vlaneseq
      %v686 = vshrl.u32 %v685, 7
      %v687 = vsub.s32 0, %v686
      %v688 = vrot.slane %v650, %v687
      %690 = vset.pattern.permute.xlu0 0
      %691 = vperm.xlu0 %690, %v678
      %v692 = vpop.permute.xlu0 %691
      %v694 = vmul.f32 %v684, %v692
      %v695 = vmul.f32 %v688, %v692
      %v696 = vlaneseq
      %v697 = vshrl.u32 %v696, 7
      %v698 = vsub.s32 1, %v697
      %v699 = vrot.slane %v649, %v698
      %v700 = vlaneseq
      %v701 = vshrl.u32 %v700, 7
      %v702 = vsub.s32 1, %v701
      %v703 = vrot.slane %v650, %v702
      %704 = vset.pattern.permute.xlu0 1
      %705 = vperm.xlu0 %704, %v678
      %v706 = vpop.permute.xlu0 %705
      %v708 = vmul.f32 %v699, %v706
      %v709 = vmul.f32 %v703, %v706
      %v710 = vlaneseq
      %v711 = vshrl.u32 %v710, 7
      %v712 = vsub.s32 2, %v711
      %v713 = vrot.slane %v649, %v712
      %v714 = vlaneseq
      %v715 = vshrl.u32 %v714, 7
      %v716 = vsub.s32 2, %v715
      %v717 = vrot.slane %v650, %v716
      %718 = vset.pattern.permute.xlu0 2
      %719 = vperm.xlu0 %718, %v678
      %v720 = vpop.permute.xlu0 %719
      %v722 = vmul.f32 %v713, %v720
      %v723 = vmul.f32 %v717, %v720
      %v724 = vlaneseq
      %v725 = vshrl.u32 %v724, 7
      %v726 = vsub.s32 3, %v725
      %v727 = vrot.slane %v649, %v726
      %v728 = vlaneseq
      %v729 = vshrl.u32 %v728, 7
      %v730 = vsub.s32 3, %v729
      %v731 = vrot.slane %v650, %v730
      %732 = vset.pattern.permute.xlu0 3
      %733 = vperm.xlu0 %732, %v678
      %v734 = vpop.permute.xlu0 %733
      %v736 = vmul.f32 %v727, %v734
      %v737 = vmul.f32 %v731, %v734
      %v738 = vlaneseq
      %v739 = vshrl.u32 %v738, 7
      %v740 = vsub.s32 4, %v739
      %v741 = vrot.slane %v649, %v740
      %v742 = vlaneseq
      %v743 = vshrl.u32 %v742, 7
      %v744 = vsub.s32 4, %v743
      %v745 = vrot.slane %v650, %v744
      %746 = vset.pattern.permute.xlu0 4
      %747 = vperm.xlu0 %746, %v678
      %v748 = vpop.permute.xlu0 %747
      %v750 = vmul.f32 %v741, %v748
      %v751 = vmul.f32 %v745, %v748
      %v752 = vadd.f32 %v694, %v750
      %v753 = vadd.f32 %v695, %v751
      %v754 = vlaneseq
      %v755 = vshrl.u32 %v754, 7
      %v756 = vsub.s32 5, %v755
      %v757 = vrot.slane %v649, %v756
      %v758 = vlaneseq
      %v759 = vshrl.u32 %v758, 7
      %v760 = vsub.s32 5, %v759
      %v761 = vrot.slane %v650, %v760
      %762 = vset.pattern.permute.xlu0 5
      %763 = vperm.xlu0 %762, %v678
      %v764 = vpop.permute.xlu0 %763
      %v766 = vmul.f32 %v757, %v764
      %v767 = vmul.f32 %v761, %v764
      %v768 = vadd.f32 %v708, %v766
      %v769 = vadd.f32 %v709, %v767
      %v770 = vlaneseq
      %v771 = vshrl.u32 %v770, 7
      %v772 = vsub.s32 6, %v771
      %v773 = vrot.slane %v649, %v772
      %v774 = vlaneseq
      %v775 = vshrl.u32 %v774, 7
      %v776 = vsub.s32 6, %v775
      %v777 = vrot.slane %v650, %v776
      %778 = vset.pattern.permute.xlu0 6
      %779 = vperm.xlu0 %778, %v678
      %v780 = vpop.permute.xlu0 %779
      %v782 = vmul.f32 %v773, %v780
      %v783 = vmul.f32 %v777, %v780
      %v784 = vadd.f32 %v722, %v782
      %v785 = vadd.f32 %v723, %v783
      %v786 = vlaneseq
      %v787 = vshrl.u32 %v786, 7
      %v788 = vsub.s32 7, %v787
      %v789 = vrot.slane %v649, %v788
      %v790 = vlaneseq
      %v791 = vshrl.u32 %v790, 7
      %v792 = vsub.s32 7, %v791
      %v793 = vrot.slane %v650, %v792
      %794 = vset.pattern.permute.xlu0 7
      %795 = vperm.xlu0 %794, %v678
      %v796 = vpop.permute.xlu0 %795
      %v798 = vmul.f32 %v789, %v796
      %v799 = vmul.f32 %v793, %v796
      %v800 = vadd.f32 %v736, %v798
      %v801 = vadd.f32 %v737, %v799
      %v802 = vadd.f32 %v752, %v768
      %v803 = vadd.f32 %v753, %v769
      %v804 = vadd.f32 %v784, %v800
      %v805 = vadd.f32 %v785, %v801
      %v806 = vadd.f32 %v802, %v804
      %v807 = vadd.f32 %v803, %v805
      %v808 = vlaneseq
      %v809 = vshrl.u32 %v808, 7
      %v810 = vsub.s32 0, %v809
      %v811 = vrot.slane %v636, %v810
      %v812 = vlaneseq
      %v813 = vshrl.u32 %v812, 7
      %v814 = vsub.s32 0, %v813
      %v815 = vrot.slane %v637, %v814
      %817 = vset.pattern.permute.xlu0 0
      %818 = vperm.xlu0 %817, %v679
      %v819 = vpop.permute.xlu0 %818
      %v821 = vmul.f32 %v811, %v819
      %v822 = vmul.f32 %v815, %v819
      %v823 = vlaneseq
      %v824 = vshrl.u32 %v823, 7
      %v825 = vsub.s32 1, %v824
      %v826 = vrot.slane %v636, %v825
      %v827 = vlaneseq
      %v828 = vshrl.u32 %v827, 7
      %v829 = vsub.s32 1, %v828
      %v830 = vrot.slane %v637, %v829
      %831 = vset.pattern.permute.xlu0 1
      %832 = vperm.xlu0 %831, %v679
      %v833 = vpop.permute.xlu0 %832
      %v835 = vmul.f32 %v826, %v833
      %v836 = vmul.f32 %v830, %v833
      %v837 = vlaneseq
      %v838 = vshrl.u32 %v837, 7
      %v839 = vsub.s32 2, %v838
      %v840 = vrot.slane %v636, %v839
      %v841 = vlaneseq
      %v842 = vshrl.u32 %v841, 7
      %v843 = vsub.s32 2, %v842
      %v844 = vrot.slane %v637, %v843
      %845 = vset.pattern.permute.xlu0 2
      %846 = vperm.xlu0 %845, %v679
      %v847 = vpop.permute.xlu0 %846
      %v849 = vmul.f32 %v840, %v847
      %v850 = vmul.f32 %v844, %v847
      %v851 = vlaneseq
      %v852 = vshrl.u32 %v851, 7
      %v853 = vsub.s32 3, %v852
      %v854 = vrot.slane %v636, %v853
      %v855 = vlaneseq
      %v856 = vshrl.u32 %v855, 7
      %v857 = vsub.s32 3, %v856
      %v858 = vrot.slane %v637, %v857
      %859 = vset.pattern.permute.xlu0 3
      %860 = vperm.xlu0 %859, %v679
      %v861 = vpop.permute.xlu0 %860
      %v863 = vmul.f32 %v854, %v861
      %v864 = vmul.f32 %v858, %v861
      %v865 = vlaneseq
      %v866 = vshrl.u32 %v865, 7
      %v867 = vsub.s32 4, %v866
      %v868 = vrot.slane %v636, %v867
      %v869 = vlaneseq
      %v870 = vshrl.u32 %v869, 7
      %v871 = vsub.s32 4, %v870
      %v872 = vrot.slane %v637, %v871
      %873 = vset.pattern.permute.xlu0 4
      %874 = vperm.xlu0 %873, %v679
      %v875 = vpop.permute.xlu0 %874
      %v877 = vmul.f32 %v868, %v875
      %v878 = vmul.f32 %v872, %v875
      %v879 = vadd.f32 %v821, %v877
      %v880 = vadd.f32 %v822, %v878
      %v881 = vlaneseq
      %v882 = vshrl.u32 %v881, 7
      %v883 = vsub.s32 5, %v882
      %v884 = vrot.slane %v636, %v883
      %v885 = vlaneseq
      %v886 = vshrl.u32 %v885, 7
      %v887 = vsub.s32 5, %v886
      %v888 = vrot.slane %v637, %v887
      %889 = vset.pattern.permute.xlu0 5
      %890 = vperm.xlu0 %889, %v679
      %v891 = vpop.permute.xlu0 %890
      %v893 = vmul.f32 %v884, %v891
      %v894 = vmul.f32 %v888, %v891
      %v895 = vadd.f32 %v835, %v893
      %v896 = vadd.f32 %v836, %v894
      %v897 = vlaneseq
      %v898 = vshrl.u32 %v897, 7
      %v899 = vsub.s32 6, %v898
      %v900 = vrot.slane %v636, %v899
      %v901 = vlaneseq
      %v902 = vshrl.u32 %v901, 7
      %v903 = vsub.s32 6, %v902
      %v904 = vrot.slane %v637, %v903
      %905 = vset.pattern.permute.xlu0 6
      %906 = vperm.xlu0 %905, %v679
      %v907 = vpop.permute.xlu0 %906
      %v909 = vmul.f32 %v900, %v907
      %v910 = vmul.f32 %v904, %v907
      %v911 = vadd.f32 %v849, %v909
      %v912 = vadd.f32 %v850, %v910
      %v913 = vlaneseq
      %v914 = vshrl.u32 %v913, 7
      %v915 = vsub.s32 7, %v914
      %v916 = vrot.slane %v636, %v915
      %v917 = vlaneseq
      %v918 = vshrl.u32 %v917, 7
      %v919 = vsub.s32 7, %v918
      %v920 = vrot.slane %v637, %v919
      %921 = vset.pattern.permute.xlu0 7
      %922 = vperm.xlu0 %921, %v679
      %v923 = vpop.permute.xlu0 %922
      %v925 = vmul.f32 %v916, %v923
      %v926 = vmul.f32 %v920, %v923
      %v927 = vadd.f32 %v863, %v925
      %v928 = vadd.f32 %v864, %v926
      %v929 = vadd.f32 %v879, %v895
      %v930 = vadd.f32 %v880, %v896
      %v931 = vadd.f32 %v911, %v927
      %v932 = vadd.f32 %v912, %v928
      %v933 = vadd.f32 %v929, %v931
      %v934 = vadd.f32 %v930, %v932
      %v935 = vadd.f32 %v806, %v933
      %v936 = vadd.f32 %v807, %v934
      %v937 = vlaneseq
      %v938 = vshrl.u32 %v937, 7
      %v939 = vsub.s32 0, %v938
      %v940 = vrot.slane %v658, %v939
      %v941 = vlaneseq
      %v942 = vshrl.u32 %v941, 7
      %v943 = vsub.s32 0, %v942
      %v944 = vrot.slane %v659, %v943
      %946 = vset.pattern.permute.xlu0 0
      %947 = vperm.xlu0 %946, %v680
      %v948 = vpop.permute.xlu0 %947
      %v950 = vmul.f32 %v940, %v948
      %v951 = vmul.f32 %v944, %v948
      %v952 = vlaneseq
      %v953 = vshrl.u32 %v952, 7
      %v954 = vsub.s32 1, %v953
      %v955 = vrot.slane %v658, %v954
      %v956 = vlaneseq
      %v957 = vshrl.u32 %v956, 7
      %v958 = vsub.s32 1, %v957
      %v959 = vrot.slane %v659, %v958
      %960 = vset.pattern.permute.xlu0 1
      %961 = vperm.xlu0 %960, %v680
      %v962 = vpop.permute.xlu0 %961
      %v964 = vmul.f32 %v955, %v962
      %v965 = vmul.f32 %v959, %v962
      %v966 = vlaneseq
      %v967 = vshrl.u32 %v966, 7
      %v968 = vsub.s32 2, %v967
      %v969 = vrot.slane %v658, %v968
      %v970 = vlaneseq
      %v971 = vshrl.u32 %v970, 7
      %v972 = vsub.s32 2, %v971
      %v973 = vrot.slane %v659, %v972
      %974 = vset.pattern.permute.xlu0 2
      %975 = vperm.xlu0 %974, %v680
      %v976 = vpop.permute.xlu0 %975
      %v978 = vmul.f32 %v969, %v976
      %v979 = vmul.f32 %v973, %v976
      %v980 = vlaneseq
      %v981 = vshrl.u32 %v980, 7
      %v982 = vsub.s32 3, %v981
      %v983 = vrot.slane %v658, %v982
      %v984 = vlaneseq
      %v985 = vshrl.u32 %v984, 7
      %v986 = vsub.s32 3, %v985
      %v987 = vrot.slane %v659, %v986
      %988 = vset.pattern.permute.xlu0 3
      %989 = vperm.xlu0 %988, %v680
      %v990 = vpop.permute.xlu0 %989
      %v992 = vmul.f32 %v983, %v990
      %v993 = vmul.f32 %v987, %v990
      %v994 = vlaneseq
      %v995 = vshrl.u32 %v994, 7
      %v996 = vsub.s32 4, %v995
      %v997 = vrot.slane %v658, %v996
      %v998 = vlaneseq
      %v999 = vshrl.u32 %v998, 7
      %v1000 = vsub.s32 4, %v999
      %v1001 = vrot.slane %v659, %v1000
      %1002 = vset.pattern.permute.xlu0 4
      %1003 = vperm.xlu0 %1002, %v680
      %v1004 = vpop.permute.xlu0 %1003
      %v1006 = vmul.f32 %v997, %v1004
      %v1007 = vmul.f32 %v1001, %v1004
      %v1008 = vadd.f32 %v950, %v1006
      %v1009 = vadd.f32 %v951, %v1007
      %v1010 = vlaneseq
      %v1011 = vshrl.u32 %v1010, 7
      %v1012 = vsub.s32 5, %v1011
      %v1013 = vrot.slane %v658, %v1012
      %v1014 = vlaneseq
      %v1015 = vshrl.u32 %v1014, 7
      %v1016 = vsub.s32 5, %v1015
      %v1017 = vrot.slane %v659, %v1016
      %1018 = vset.pattern.permute.xlu0 5
      %1019 = vperm.xlu0 %1018, %v680
      %v1020 = vpop.permute.xlu0 %1019
      %v1022 = vmul.f32 %v1013, %v1020
      %v1023 = vmul.f32 %v1017, %v1020
      %v1024 = vadd.f32 %v964, %v1022
      %v1025 = vadd.f32 %v965, %v1023
      %v1026 = vlaneseq
      %v1027 = vshrl.u32 %v1026, 7
      %v1028 = vsub.s32 6, %v1027
      %v1029 = vrot.slane %v658, %v1028
      %v1030 = vlaneseq
      %v1031 = vshrl.u32 %v1030, 7
      %v1032 = vsub.s32 6, %v1031
      %v1033 = vrot.slane %v659, %v1032
      %1034 = vset.pattern.permute.xlu0 6
      %1035 = vperm.xlu0 %1034, %v680
      %v1036 = vpop.permute.xlu0 %1035
      %v1038 = vmul.f32 %v1029, %v1036
      %v1039 = vmul.f32 %v1033, %v1036
      %v1040 = vadd.f32 %v978, %v1038
      %v1041 = vadd.f32 %v979, %v1039
      %v1042 = vlaneseq
      %v1043 = vshrl.u32 %v1042, 7
      %v1044 = vsub.s32 7, %v1043
      %v1045 = vrot.slane %v658, %v1044
      %v1046 = vlaneseq
      %v1047 = vshrl.u32 %v1046, 7
      %v1048 = vsub.s32 7, %v1047
      %v1049 = vrot.slane %v659, %v1048
      %1050 = vset.pattern.permute.xlu0 7
      %1051 = vperm.xlu0 %1050, %v680
      %v1052 = vpop.permute.xlu0 %1051
      %v1054 = vmul.f32 %v1045, %v1052
      %v1055 = vmul.f32 %v1049, %v1052
      %v1056 = vadd.f32 %v992, %v1054
      %v1057 = vadd.f32 %v993, %v1055
      %v1058 = vadd.f32 %v1008, %v1024
      %v1059 = vadd.f32 %v1009, %v1025
      %v1060 = vadd.f32 %v1040, %v1056
      %v1061 = vadd.f32 %v1041, %v1057
      %v1062 = vadd.f32 %v1058, %v1060
      %v1063 = vadd.f32 %v1059, %v1061
      %v1064 = vadd.f32 %v935, %v1062
      %v1065 = vadd.f32 %v936, %v1063
      %v1066 = vld [vmem:[%s6] sm:$0xff]
      %v1067 = vld [vmem:[%s6 + $0x8] sm:$0xff]
      %v1068 = vld [vmem:[%s6 + $0x10] sm:$0xff]
      %1070 = vset.pattern.permute.xlu0 0
      %1071 = vperm.xlu0 %1070, %v1066
      %v1072 = vpop.permute.xlu0 %1071
      %v1074 = vmul.f32 %v684, %v1072
      %v1075 = vmul.f32 %v688, %v1072
      %1076 = vset.pattern.permute.xlu0 1
      %1077 = vperm.xlu0 %1076, %v1066
      %v1078 = vpop.permute.xlu0 %1077
      %v1080 = vmul.f32 %v699, %v1078
      %v1081 = vmul.f32 %v703, %v1078
      %1082 = vset.pattern.permute.xlu0 2
      %1083 = vperm.xlu0 %1082, %v1066
      %v1084 = vpop.permute.xlu0 %1083
      %v1086 = vmul.f32 %v713, %v1084
      %v1087 = vmul.f32 %v717, %v1084
      %1088 = vset.pattern.permute.xlu0 3
      %1089 = vperm.xlu0 %1088, %v1066
      %v1090 = vpop.permute.xlu0 %1089
      %v1092 = vmul.f32 %v727, %v1090
      %v1093 = vmul.f32 %v731, %v1090
      %1094 = vset.pattern.permute.xlu0 4
      %1095 = vperm.xlu0 %1094, %v1066
      %v1096 = vpop.permute.xlu0 %1095
      %v1098 = vmul.f32 %v741, %v1096
      %v1099 = vmul.f32 %v745, %v1096
      %v1100 = vadd.f32 %v1074, %v1098
      %v1101 = vadd.f32 %v1075, %v1099
      %1102 = vset.pattern.permute.xlu0 5
      %1103 = vperm.xlu0 %1102, %v1066
      %v1104 = vpop.permute.xlu0 %1103
      %v1106 = vmul.f32 %v757, %v1104
      %v1107 = vmul.f32 %v761, %v1104
      %v1108 = vadd.f32 %v1080, %v1106
      %v1109 = vadd.f32 %v1081, %v1107
      %1110 = vset.pattern.permute.xlu0 6
      %1111 = vperm.xlu0 %1110, %v1066
      %v1112 = vpop.permute.xlu0 %1111
      %v1114 = vmul.f32 %v773, %v1112
      %v1115 = vmul.f32 %v777, %v1112
      %v1116 = vadd.f32 %v1086, %v1114
      %v1117 = vadd.f32 %v1087, %v1115
      %1118 = vset.pattern.permute.xlu0 7
      %1119 = vperm.xlu0 %1118, %v1066
      %v1120 = vpop.permute.xlu0 %1119
      %v1122 = vmul.f32 %v789, %v1120
      %v1123 = vmul.f32 %v793, %v1120
      %v1124 = vadd.f32 %v1092, %v1122
      %v1125 = vadd.f32 %v1093, %v1123
      %v1126 = vadd.f32 %v1100, %v1108
      %v1127 = vadd.f32 %v1101, %v1109
      %v1128 = vadd.f32 %v1116, %v1124
      %v1129 = vadd.f32 %v1117, %v1125
      %v1130 = vadd.f32 %v1126, %v1128
      %v1131 = vadd.f32 %v1127, %v1129
      %1133 = vset.pattern.permute.xlu0 0
      %1134 = vperm.xlu0 %1133, %v1067
      %v1135 = vpop.permute.xlu0 %1134
      %v1137 = vmul.f32 %v811, %v1135
      %v1138 = vmul.f32 %v815, %v1135
      %1139 = vset.pattern.permute.xlu0 1
      %1140 = vperm.xlu0 %1139, %v1067
      %v1141 = vpop.permute.xlu0 %1140
      %v1143 = vmul.f32 %v826, %v1141
      %v1144 = vmul.f32 %v830, %v1141
      %1145 = vset.pattern.permute.xlu0 2
      %1146 = vperm.xlu0 %1145, %v1067
      %v1147 = vpop.permute.xlu0 %1146
      %v1149 = vmul.f32 %v840, %v1147
      %v1150 = vmul.f32 %v844, %v1147
      %1151 = vset.pattern.permute.xlu0 3
      %1152 = vperm.xlu0 %1151, %v1067
      %v1153 = vpop.permute.xlu0 %1152
      %v1155 = vmul.f32 %v854, %v1153
      %v1156 = vmul.f32 %v858, %v1153
      %1157 = vset.pattern.permute.xlu0 4
      %1158 = vperm.xlu0 %1157, %v1067
      %v1159 = vpop.permute.xlu0 %1158
      %v1161 = vmul.f32 %v868, %v1159
      %v1162 = vmul.f32 %v872, %v1159
      %v1163 = vadd.f32 %v1137, %v1161
      %v1164 = vadd.f32 %v1138, %v1162
      %1165 = vset.pattern.permute.xlu0 5
      %1166 = vperm.xlu0 %1165, %v1067
      %v1167 = vpop.permute.xlu0 %1166
      %v1169 = vmul.f32 %v884, %v1167
      %v1170 = vmul.f32 %v888, %v1167
      %v1171 = vadd.f32 %v1143, %v1169
      %v1172 = vadd.f32 %v1144, %v1170
      %1173 = vset.pattern.permute.xlu0 6
      %1174 = vperm.xlu0 %1173, %v1067
      %v1175 = vpop.permute.xlu0 %1174
      %v1177 = vmul.f32 %v900, %v1175
      %v1178 = vmul.f32 %v904, %v1175
      %v1179 = vadd.f32 %v1149, %v1177
      %v1180 = vadd.f32 %v1150, %v1178
      %1181 = vset.pattern.permute.xlu0 7
      %1182 = vperm.xlu0 %1181, %v1067
      %v1183 = vpop.permute.xlu0 %1182
      %v1185 = vmul.f32 %v916, %v1183
      %v1186 = vmul.f32 %v920, %v1183
      %v1187 = vadd.f32 %v1155, %v1185
      %v1188 = vadd.f32 %v1156, %v1186
      %v1189 = vadd.f32 %v1163, %v1171
      %v1190 = vadd.f32 %v1164, %v1172
      %v1191 = vadd.f32 %v1179, %v1187
      %v1192 = vadd.f32 %v1180, %v1188
      %v1193 = vadd.f32 %v1189, %v1191
      %v1194 = vadd.f32 %v1190, %v1192
      %v1195 = vadd.f32 %v1130, %v1193
      %v1196 = vadd.f32 %v1131, %v1194
      %1198 = vset.pattern.permute.xlu0 0
      %1199 = vperm.xlu0 %1198, %v1068
      %v1200 = vpop.permute.xlu0 %1199
      %v1202 = vmul.f32 %v940, %v1200
      %v1203 = vmul.f32 %v944, %v1200
      %1204 = vset.pattern.permute.xlu0 1
      %1205 = vperm.xlu0 %1204, %v1068
      %v1206 = vpop.permute.xlu0 %1205
      %v1208 = vmul.f32 %v955, %v1206
      %v1209 = vmul.f32 %v959, %v1206
      %1210 = vset.pattern.permute.xlu0 2
      %1211 = vperm.xlu0 %1210, %v1068
      %v1212 = vpop.permute.xlu0 %1211
      %v1214 = vmul.f32 %v969, %v1212
      %v1215 = vmul.f32 %v973, %v1212
      %1216 = vset.pattern.permute.xlu0 3
      %1217 = vperm.xlu0 %1216, %v1068
      %v1218 = vpop.permute.xlu0 %1217
      %v1220 = vmul.f32 %v983, %v1218
      %v1221 = vmul.f32 %v987, %v1218
      %1222 = vset.pattern.permute.xlu0 4
      %1223 = vperm.xlu0 %1222, %v1068
      %v1224 = vpop.permute.xlu0 %1223
      %v1226 = vmul.f32 %v997, %v1224
      %v1227 = vmul.f32 %v1001, %v1224
      %v1228 = vadd.f32 %v1202, %v1226
      %v1229 = vadd.f32 %v1203, %v1227
      %1230 = vset.pattern.permute.xlu0 5
      %1231 = vperm.xlu0 %1230, %v1068
      %v1232 = vpop.permute.xlu0 %1231
      %v1234 = vmul.f32 %v1013, %v1232
      %v1235 = vmul.f32 %v1017, %v1232
      %v1236 = vadd.f32 %v1208, %v1234
      %v1237 = vadd.f32 %v1209, %v1235
      %1238 = vset.pattern.permute.xlu0 6
      %1239 = vperm.xlu0 %1238, %v1068
      %v1240 = vpop.permute.xlu0 %1239
      %v1242 = vmul.f32 %v1029, %v1240
      %v1243 = vmul.f32 %v1033, %v1240
      %v1244 = vadd.f32 %v1214, %v1242
      %v1245 = vadd.f32 %v1215, %v1243
      %1246 = vset.pattern.permute.xlu0 7
      %1247 = vperm.xlu0 %1246, %v1068
      %v1248 = vpop.permute.xlu0 %1247
      %v1250 = vmul.f32 %v1045, %v1248
      %v1251 = vmul.f32 %v1049, %v1248
      %v1252 = vadd.f32 %v1220, %v1250
      %v1253 = vadd.f32 %v1221, %v1251
      %v1254 = vadd.f32 %v1228, %v1236
      %v1255 = vadd.f32 %v1229, %v1237
      %v1256 = vadd.f32 %v1244, %v1252
      %v1257 = vadd.f32 %v1245, %v1253
      %v1258 = vadd.f32 %v1254, %v1256
      %v1259 = vadd.f32 %v1255, %v1257
      %v1260 = vadd.f32 %v1195, %v1258
      %v1261 = vadd.f32 %v1196, %v1259
      %v1262 = vsub.f32 0.0, %v1261
      %v1263 = vadd.f32 %v1064, %v1262
      %v1264 = vadd.f32 %v1065, %v1260
      %v1265 = vld [vmem:[%s7] sm:$0xff]
      %v1266 = vld [vmem:[%s7 + $0x8] sm:$0xff]
      %vm1267 = vcmask 392192
      %v1269 = vsel %vm1267, %v1265, 0
      %v1272 = vsel %vm1267, %v1266, 0
      %1274 = vmatprep.subr.mxu0 0.0
      %1275 = vmatpush1.msra.mxu0 %v668
      %1276 = vmatprep.subr.mxu0 0.0
      %1277 = vmatpush1.msra.mxu0 %v669
      %1278 = vmatprep.subr.mxu0 0.0
      %1279 = vmatpush1.msra.mxu0 %v638
      %1280 = vmatprep.subr.mxu0 0.0
      %1281 = vmatpush1.msra.mxu0 %v639
      %1282 = vmatprep.subr.mxu0 0.0
      %1283 = vmatpush1.msra.mxu0 %v676
      %1284 = vmatprep.subr.mxu0 0.0
      %1285 = vmatpush1.msra.mxu0 %v677
      %1286 = vmatprep.subr.mxu0 0.0
      %1287 = vmatpush1.msra.mxu0 0.0
      %1288 = vmatprep.subr.mxu0 0.0
      %1289 = vmatpush1.msra.mxu0 0.0
      %1290 = vmatprep.subr.mxu0 0.0
      %1291 = vmatpush1.msra.mxu0 0.0
      %1292 = vmatprep.subr.mxu0 0.0
      %1293 = vmatpush1.msra.mxu0 0.0
      %1294 = vmatprep.subr.mxu0 0.0
      %1295 = vmatpush1.msra.mxu0 0.0
      %1296 = vmatprep.subr.mxu0 0.0
      %1297 = vmatpush1.msra.mxu0 0.0
      %1298 = vmatprep.subr.mxu0 0.0
      %1299 = vmatpush1.msra.mxu0 0.0
      %1300 = vmatprep.subr.mxu0 0.0
      %1301 = vmatpush1.msra.mxu0 0.0
      %1302 = vmatprep.subr.mxu0 0.0
      %1303 = vmatpush1.msra.mxu0 0.0
      %1304 = vmatprep.subr.mxu0 0.0
      %1305 = vmatpush1.msra.mxu0 0.0
      %1306 = vmatprep.subr.mxu0 0.0
      %1307 = vmatpush1.msra.mxu0 0.0
      %1308 = vmatprep.subr.mxu0 0.0
      %1309 = vmatpush1.msra.mxu0 0.0
      %1310 = vmatprep.subr.mxu0 0.0
      %1311 = vmatpush1.msra.mxu0 0.0
      %1312 = vmatprep.subr.mxu0 0.0
      %1313 = vmatpush1.msra.mxu0 0.0
      %1314 = vmatprep.subr.mxu0 0.0
      %1315 = vmatpush1.msra.mxu0 0.0
      %1316 = vmatprep.subr.mxu0 0.0
      %1317 = vmatpush1.msra.mxu0 0.0
      %1318 = vmatprep.subr.mxu0 0.0
      %1319 = vmatpush1.msra.mxu0 0.0
      %1320 = vmatprep.subr.mxu0 0.0
      %1321 = vmatpush1.msra.mxu0 0.0
      %1322 = vmatprep.subr.mxu0 0.0
      %1323 = vmatpush1.msra.mxu0 0.0
      %1324 = vmatprep.subr.mxu0 0.0
      %1325 = vmatpush1.msra.mxu0 0.0
      %1326 = vmatprep.subr.mxu0 0.0
      %1327 = vmatpush1.msra.mxu0 0.0
      %1328 = vmatprep.subr.mxu0 0.0
      %1329 = vmatpush1.msra.mxu0 0.0
      %1330 = vmatprep.subr.mxu0 0.0
      %1331 = vmatpush1.msra.mxu0 0.0
      %1332 = vmatprep.subr.mxu0 0.0
      %1333 = vmatpush1.msra.mxu0 0.0
      %1334 = vmatprep.subr.mxu0 0.0
      %1335 = vmatpush1.msra.mxu0 0.0
      %1336 = vmatprep.subr.mxu0 0.0
      %1337 = vmatpush1.msra.mxu0 0.0
      %1338 = vmatprep.mubr.f32.mxu0 0.0
      %1339 = vmatmul.mubr.f32.gmra.mrb[0].mxu0 %v1269
      %v1340 = vpop.f32.mrb[0].mxu0
      %v1341 = vadd.f32 0.0, %v1340
      %v1342 = vpop.f32.mrb[0].mxu0
      %1343 = vmatprep.mubr.f32.mxu0 0.0
      %1344 = vmatmul.mubr.f32.gmra.mrb[0].mxu0 %v1272
      %v1345 = vpop.f32.mrb[0].mxu0
      %v1346 = vadd.f32 0.0, %v1345
      %v1347 = vpop.f32.mrb[0].mxu0
      %1348 = vdwg.mxu0
      %v1349 = vld [vmem:[%s8] sm:$0xff]
      %v1350 = vld [vmem:[%s8 + $0x8] sm:$0xff]
      %v1351 = vld [vmem:[%s8 + $0x10] sm:$0xff]
      %v1352 = vmul.f32 %v1263, %v1263
      %v1353 = vmul.f32 %v1264, %v1264
      %v1354 = vadd.f32 %v1352, %v1353
      %v1355 = vmax.f32 %v1354, 1e-12
      %v1356 = vrsqrt.pop %v1355
      %v1357 = vmul.f32 %v1354, %v1356
      %vm1358 = vcmask 195584
      %v1360 = vsel %vm1358, %v1349, 0
      %v1363 = vsel %vm1358, %v1350, 0
      %v1366 = vsel %vm1358, %v1351, 0
      %1368 = vmatprep.subr.mxu0 0.0
      %1369 = vmatpush1.msra.mxu0 %v1357
      %1370 = vmatprep.subr.mxu0 0.0
      %1371 = vmatpush1.msra.mxu0 %v1341
      %1372 = vmatprep.subr.mxu0 0.0
      %1373 = vmatpush1.msra.mxu0 %v1346
      %1374 = vmatprep.subr.mxu0 0.0
      %1375 = vmatpush1.msra.mxu0 0.0
      %1376 = vmatprep.subr.mxu0 0.0
      %1377 = vmatpush1.msra.mxu0 0.0
      %1378 = vmatprep.subr.mxu0 0.0
      %1379 = vmatpush1.msra.mxu0 0.0
      %1380 = vmatprep.subr.mxu0 0.0
      %1381 = vmatpush1.msra.mxu0 0.0
      %1382 = vmatprep.subr.mxu0 0.0
      %1383 = vmatpush1.msra.mxu0 0.0
      %1384 = vmatprep.subr.mxu0 0.0
      %1385 = vmatpush1.msra.mxu0 0.0
      %1386 = vmatprep.subr.mxu0 0.0
      %1387 = vmatpush1.msra.mxu0 0.0
      %1388 = vmatprep.subr.mxu0 0.0
      %1389 = vmatpush1.msra.mxu0 0.0
      %1390 = vmatprep.subr.mxu0 0.0
      %1391 = vmatpush1.msra.mxu0 0.0
      %1392 = vmatprep.subr.mxu0 0.0
      %1393 = vmatpush1.msra.mxu0 0.0
      %1394 = vmatprep.subr.mxu0 0.0
      %1395 = vmatpush1.msra.mxu0 0.0
      %1396 = vmatprep.subr.mxu0 0.0
      %1397 = vmatpush1.msra.mxu0 0.0
      %1398 = vmatprep.subr.mxu0 0.0
      %1399 = vmatpush1.msra.mxu0 0.0
      %1400 = vmatprep.subr.mxu0 0.0
      %1401 = vmatpush1.msra.mxu0 0.0
      %1402 = vmatprep.subr.mxu0 0.0
      %1403 = vmatpush1.msra.mxu0 0.0
      %1404 = vmatprep.subr.mxu0 0.0
      %1405 = vmatpush1.msra.mxu0 0.0
      %1406 = vmatprep.subr.mxu0 0.0
      %1407 = vmatpush1.msra.mxu0 0.0
      %1408 = vmatprep.subr.mxu0 0.0
      %1409 = vmatpush1.msra.mxu0 0.0
      %1410 = vmatprep.subr.mxu0 0.0
      %1411 = vmatpush1.msra.mxu0 0.0
      %1412 = vmatprep.subr.mxu0 0.0
      %1413 = vmatpush1.msra.mxu0 0.0
      %1414 = vmatprep.subr.mxu0 0.0
      %1415 = vmatpush1.msra.mxu0 0.0
      %1416 = vmatprep.subr.mxu0 0.0
      %1417 = vmatpush1.msra.mxu0 0.0
      %1418 = vmatprep.subr.mxu0 0.0
      %1419 = vmatpush1.msra.mxu0 0.0
      %1420 = vmatprep.subr.mxu0 0.0
      %1421 = vmatpush1.msra.mxu0 0.0
      %1422 = vmatprep.subr.mxu0 0.0
      %1423 = vmatpush1.msra.mxu0 0.0
      %1424 = vmatprep.subr.mxu0 0.0
      %1425 = vmatpush1.msra.mxu0 0.0
      %1426 = vmatprep.subr.mxu0 0.0
      %1427 = vmatpush1.msra.mxu0 0.0
      %1428 = vmatprep.subr.mxu0 0.0
      %1429 = vmatpush1.msra.mxu0 0.0
      %1430 = vmatprep.subr.mxu0 0.0
      %1431 = vmatpush1.msra.mxu0 0.0
      %1432 = vmatprep.mubr.f32.mxu0 0.0
      %1433 = vmatmul.mubr.f32.gmra.mrb[0].mxu0 %v1360
      %v1434 = vpop.f32.mrb[0].mxu0
      %v1435 = vadd.f32 0.0, %v1434
      %v1436 = vpop.f32.mrb[0].mxu0
      %1437 = vmatprep.mubr.f32.mxu0 0.0
      %1438 = vmatmul.mubr.f32.gmra.mrb[0].mxu0 %v1363
      %v1439 = vpop.f32.mrb[0].mxu0
      %v1440 = vadd.f32 0.0, %v1439
      %v1441 = vpop.f32.mrb[0].mxu0
      %1442 = vmatprep.mubr.f32.mxu0 0.0
      %1443 = vmatmul.mubr.f32.gmra.mrb[0].mxu0 %v1366
      %v1444 = vpop.f32.mrb[0].mxu0
      %v1445 = vadd.f32 0.0, %v1444
      %v1446 = vpop.f32.mrb[0].mxu0
      %1447 = vdwg.mxu0
      %v1448 = vadd.f32 %v1435, %v1440
      %v1449 = vadd.f32 %v1448, %v1445
      %v1450 = vrot.slane %v1449, 4
      %v1451 = vadd.f32 %v1449, %v1450
      %v1452 = vrot.slane %v1451, 2
      %v1453 = vadd.f32 %v1451, %v1452
      %v1454 = vrot.slane %v1453, 1
      %v1455 = vadd.f32 %v1453, %v1454
      %v1456 = vrcp.pop 24.0
      %v1457 = vmul.f32 %v1455, %v1456
      %v1458 = vsub.f32 %v1435, %v1457
      %v1459 = vsub.f32 %v1440, %v1457
      %v1460 = vsub.f32 %v1445, %v1457
      %v1461 = vmul.f32 %v1458, %v1458
      %v1462 = vmul.f32 %v1459, %v1459
      %v1463 = vmul.f32 %v1460, %v1460
      %v1464 = vadd.f32 %v1461, %v1462
      %v1465 = vadd.f32 %v1464, %v1463
      %v1466 = vrot.slane %v1465, 4
      %v1467 = vadd.f32 %v1465, %v1466
      %v1468 = vrot.slane %v1467, 2
      %v1469 = vadd.f32 %v1467, %v1468
      %v1470 = vrot.slane %v1469, 1
      %v1471 = vadd.f32 %v1469, %v1470
      %v1472 = vmul.f32 %v1471, %v1456
      %v1473 = vadd.f32 %v1472, 1e-05
      %v1474 = vrsqrt.pop %v1473
      %v1475 = vmul.f32 %v1458, %v1474
      %v1476 = vmul.f32 %v1459, %v1474
      %v1477 = vmul.f32 %v1460, %v1474
      %v1478 = vmul.f32 %v1475, %v1356
      %v1479 = vmul.f32 %v1263, %v1478
      %v1480 = vmul.f32 %v1264, %v1478
      %v1481 = vmul.f32 %v1479, %v1479
      %v1482 = vmul.f32 %v1480, %v1480
      %v1483 = vadd.f32 %v1481, %v1482
      %v1484 = vmax.f32 %v1483, 1e-08
      %v1485 = vrsqrt.pop %v1484
      %v1486 = vmul.f32 %v1483, %v1485
      %v1487 = vmax.f32 %v1486, 0.0001
      %1488 = vadd.xlane.f32.xlu0 %v1487
      %v1489 = vpop.xlane.xlu0 %1488
      %v1490 = vadd.f32 %v1489, 0.0
      %1491 = vadd.xlane.f32.xlu0 %v1476
      %v1492 = vpop.xlane.xlu0 %1491
      %1493 = vadd.xlane.f32.xlu0 %v1477
      %v1494 = vpop.xlane.xlu0 %1493
      %v1495 = vadd.f32 %v1492, 0.0
      %v1496 = vadd.f32 %v1494, 0.0
      %v1498 = vlaneseq
      %v1499 = vand.u32 %v1498, 127
      %v1500 = vlaneseq
      %v1501 = vshrl.u32 %v1500, 7
      %v1502 = vsub.s32 %v1499, %v1501
      %v1503 = vrot.slane %v1490, %v1502
      %v1507 = vadd.s32 %v1499, 4294967288
      %v1508 = vlaneseq
      %v1509 = vshrl.u32 %v1508, 7
      %v1510 = vsub.s32 %v1507, %v1509
      %v1511 = vrot.slane %v1495, %v1510
      %v1512 = vadd.s32 %v1499, 4294967280
      %v1513 = vlaneseq
      %v1514 = vshrl.u32 %v1513, 7
      %v1515 = vsub.s32 %v1512, %v1514
      %v1516 = vrot.slane %v1496, %v1515
      %vm1517 = vcmask 195712
      %v1518 = vsel %vm1517, %v1516, %v1511
      %vm1520 = vcmask 64512
      %v1521 = vsel %vm1520, %v1503, %v1518
      %v1522 = vmul.f32 %v1487, %v1487
      %1523 = vadd.xlane.f32.xlu0 %v1522
      %v1524 = vpop.xlane.xlu0 %1523
      %v1525 = vadd.f32 %v1524, 0.0
      %v1526 = vmul.f32 %v1476, %v1476
      %v1527 = vmul.f32 %v1477, %v1477
      %1528 = vadd.xlane.f32.xlu0 %v1526
      %v1529 = vpop.xlane.xlu0 %1528
      %1530 = vadd.xlane.f32.xlu0 %v1527
      %v1531 = vpop.xlane.xlu0 %1530
      %v1532 = vadd.f32 %v1529, 0.0
      %v1533 = vadd.f32 %v1531, 0.0
      %v1535 = vlaneseq
      %v1536 = vshrl.u32 %v1535, 7
      %v1537 = vsub.s32 %v1499, %v1536
      %v1538 = vrot.slane %v1525, %v1537
      %v1542 = vlaneseq
      %v1543 = vshrl.u32 %v1542, 7
      %v1544 = vsub.s32 %v1507, %v1543
      %v1545 = vrot.slane %v1532, %v1544
      %v1546 = vlaneseq
      %v1547 = vshrl.u32 %v1546, 7
      %v1548 = vsub.s32 %v1512, %v1547
      %v1549 = vrot.slane %v1533, %v1548
      %v1550 = vsel %vm1517, %v1549, %v1545
      %v1552 = vsel %vm1520, %v1538, %v1550
      %v1554 = vrot.slane %v1552, 7
      %vm1556 = vcmask 1040384
      %v1557 = vsel %vm1556, %v1521, %v1554
      %vm1558 = vcmask 189440
      %1559 = vst.msk [vmem:[%s429] sm:$0x3] %vm1558, %v1557
      %1560 = vst [vmem:[%s420] sm:$0xff] %v1479
      %1561 = vst [vmem:[%s420 + $0x8] sm:$0xff] %v1480
      %1562 = vst [vmem:[%s425] sm:$0xff] %v1476
      %1563 = vst [vmem:[%s425 + $0x8] sm:$0xff] %v1477
      %p1564 = scmp.lt.s32.totalorder %s23, 1
      %s1565 = scalar_select %p1564, %s23, 1
      %s1566 = smul.addr %s1565, 2
      %s1567 = smul.addr %s1566, 8
      %s1568 = scalar_lea.vmem %s9, %s1567
      %p1569 = scmp.lt.s32.totalorder %s23, 1
      %s1570 = scalar_select %p1569, %s23, 1
      %s1571 = smul.addr %s1570, 2
      %s1572 = smul.addr %s1571, 8
      %s1573 = scalar_lea.vmem %s10, %s1572
      %p1574 = scmp.lt.s32.totalorder %s23, 1
      %s1575 = scalar_select %p1574, %s23, 1
      %s1576 = smul.addr %s1575, 2
      %s1577 = scalar_lea.vmem %s11, %s1576
      // Predicated region
      $region57: #{basic_block1d.4} parent=55 // pred_check
        %p1578 = pneg %p240
      $region58: #{basic_block1d.4} parent=55 // pred_check_branch
        %1580 = sbr.rel (%p1578) target = $region60
      $region59: #{basic_block1d.4} parent=55 // pred_region
        _
      $region60: #{basic_block1d.4} parent=55 // pred_fallthru
        _
      // Predicated region
      $region61: #{basic_block1d.4} parent=55 // pred_check
        %p1581 = pneg %p266
      $region62: #{basic_block1d.4} parent=55 // pred_check_branch
        %1583 = sbr.rel (%p1581) target = $region64
      $region63: #{basic_block1d.4} parent=55 // pred_region
        _
      $region64: #{basic_block1d.4} parent=55 // pred_fallthru
        _
      // Predicated region
      $region65: #{basic_block1d.4} parent=55 // pred_check
        %p1584 = pneg %p292
      $region66: #{basic_block1d.4} parent=55 // pred_check_branch
        %1586 = sbr.rel (%p1584) target = $region68
      $region67: #{basic_block1d.4} parent=55 // pred_region
        _
      $region68: #{basic_block1d.4} parent=55 // pred_fallthru
        _
    $region56: #{basic_block1d.4} parent=5 // pred_fallthru
      _
    %p1587 = scmp.le.s32.totalorder 2, %s18
    // Predicated region
    $region69: #{basic_block1d.4} parent=5 // pred_check
      %p1588 = pneg %p1587
    $region70: #{basic_block1d.4} parent=5 // pred_check_branch
      %1590 = sbr.rel (%p1588) target = $region72
    $region71: #{basic_block1d.4} parent=5 // pred_region
      %s1591 = ssub.s32 %s18, 2
      // Predicated region
      $region73: #{basic_block1d.4} parent=71 // pred_check
        %p1592 = pneg %p246
      $region74: #{basic_block1d.4} parent=71 // pred_check_branch
        %1594 = sbr.rel (%p1592) target = $region76
      $region75: #{basic_block1d.4} parent=71 // pred_region
        %p1595 = scmp.lt.s32.totalorder %s24, 1
        %s1596 = scalar_select %p1595, %s24, 1
        %s1597 = smul.addr %s1596, 2
        %s1598 = smul.addr %s1597, 8
        %s1599 = scalar_lea.vmem %s9, %s1598
      $region76: #{basic_block1d.4} parent=71 // pred_fallthru
        _
      // Predicated region
      $region77: #{basic_block1d.4} parent=71 // pred_check
        %p1600 = pneg %p272
      $region78: #{basic_block1d.4} parent=71 // pred_check_branch
        %1602 = sbr.rel (%p1600) target = $region80
      $region79: #{basic_block1d.4} parent=71 // pred_region
        %p1603 = scmp.lt.s32.totalorder %s24, 1
        %s1604 = scalar_select %p1603, %s24, 1
        %s1605 = smul.addr %s1604, 2
        %s1606 = smul.addr %s1605, 8
        %s1607 = scalar_lea.vmem %s10, %s1606
      $region80: #{basic_block1d.4} parent=71 // pred_fallthru
        _
      // Predicated region
      $region81: #{basic_block1d.4} parent=71 // pred_check
        %p1608 = pneg %p298
      $region82: #{basic_block1d.4} parent=71 // pred_check_branch
        %1610 = sbr.rel (%p1608) target = $region84
      $region83: #{basic_block1d.4} parent=71 // pred_region
        %p1611 = scmp.lt.s32.totalorder %s24, 1
        %s1612 = scalar_select %p1611, %s24, 1
        %s1613 = smul.addr %s1612, 2
        %s1614 = scalar_lea.vmem %s11, %s1613
      $region84: #{basic_block1d.4} parent=71 // pred_fallthru
        _
    $region72: #{basic_block1d.4} parent=5 // pred_fallthru
      _
  $region6: #{basic_block1d.4} parent=0 // loop_footer
    %s22 = sadd.s32 1, %s18
  $region7: #{basic_block1d.4} parent=0 // loop_footer_branch
    %17 = sbr.rel target = $region3
  $region8: #{basic_block1d.4} parent=0 // loop_exit
    _

// kernel: basic_block1d.3
$region0: #{basic_block1d.3}
  #allocation0 [shape = 'u32[]', space=smem, size = 0x4, offset = 0x4, fixed_abs, tag = 'smem constant byte address 0x4 - core index']
  #allocation1 [shape = 'u32[144,128]{1,0:T(1,128)}', space=vmem, size = 0x12000, scoped, tag = 'internal scratch']
  %s0 = inlined_call_operand.vmem [shape: f32[2,2,8,128], index: 0, kind: input, shape index: {}]
  %s1 = inlined_call_operand.vmem [shape: f32[2,16,128], index: 1, kind: input, shape index: {}]
  %s2 = inlined_call_operand.vmem [shape: f32[3,8,8], index: 2, kind: input, shape index: {}]
  %s3 = inlined_call_operand.vmem [shape: f32[3,8,8], index: 3, kind: input, shape index: {}]
  %s4 = inlined_call_operand.vmem [shape: f32[16,48], index: 4, kind: input, shape index: {}]
  %s5 = inlined_call_operand.vmem [shape: f32[24,24], index: 5, kind: input, shape index: {}]
  %s6 = inlined_call_operand.vmem [shape: f32[8,8], index: 6, kind: input, shape index: {}]
  %s7 = inlined_call_operand.vmem [shape: f32[8,8], index: 7, kind: input, shape index: {}]
  %s8 = inlined_call_operand.vmem [shape: f32[16,16], index: 8, kind: input, shape index: {}]
  %s9 = inlined_call_operand.vmem [shape: f32[24,24], index: 9, kind: input, shape index: {}]
  %s10 = inlined_call_operand.vmem [shape: f32[2,2,8,128], index: 10, kind: output, shape index: {0}]
  %s11 = inlined_call_operand.vmem [shape: f32[2,16,128], index: 11, kind: output, shape index: {1}]
  %s12 = inlined_call_operand.vmem [shape: f32[2,2,24], index: 12, kind: output, shape index: {2}]
  %s13 = inlined_call_operand.vmem [shape: f32[2,2,8,128], index: 13, kind: output, shape index: {3}]
  %s14 = inlined_call_operand.vmem [shape: f32[2,16,128], index: 14, kind: output, shape index: {4}]
  %s15 = inlined_call_operand.vmem [shape: f32[2,2,24], index: 15, kind: output, shape index: {5}]
  %16 = xla_tuple %s10, %s11, %s12, %s13, %s14, %s15
  %s17 = sld [smem:[#allocation0]]
  $region113: #{basic_block1d.3} parent=0
    _
  %s19 = ssub.s32 1, %s17
  %s20 = scalar_select 0, %s19, %s17
  loop: start=0, step=1, limit=4
  $region2: #{basic_block1d.3} parent=0 // loop_pre_header
    _
  $region3: #{basic_block1d.3} parent=0 // loop_header
    %s22 = sphi 0, %s26
    %p23 = scmp.ge.s32.totalorder %s22, 4
    %s32 = sphi 0, %s34
    %s35 = sphi 0, %s32
    %s36 = sphi 0, %s35
    %s52 = sphi 0, %s36
    %s58 = sphi 0, %s60
    %s61 = sphi 0, %s58
    %s62 = sphi 0, %s61
    %s78 = sphi 0, %s62
    %s82 = sphi 0, %s82
    %s84 = sphi 0, %s82
    %s85 = sphi 0, %s84
    %s99 = sphi 0, %s85
    %s103 = sphi 0, %s103
    %s105 = sphi 0, %s103
    %s106 = sphi 0, %s105
    %s120 = sphi 0, %s106
    %s124 = sphi 0, %s124
    %s126 = sphi 0, %s124
    %s127 = sphi 0, %s126
    %s141 = sphi 0, %s127
    %s145 = sphi 0, %s145
    %s147 = sphi 0, %s145
    %s148 = sphi 0, %s147
    %s162 = sphi 0, %s148
    %s166 = sphi 0, %s166
    %s168 = sphi 0, %s166
    %s169 = sphi 0, %s168
    %s183 = sphi 0, %s169
    %s187 = sphi 0, %s187
    %s189 = sphi 0, %s187
    %s190 = sphi 0, %s189
    %s204 = sphi 0, %s190
    %s208 = sphi 0, %s208
    %s210 = sphi 0, %s208
    %s211 = sphi 0, %s210
    %s225 = sphi 0, %s211
    %s229 = sphi 0, %s229
    %s231 = sphi 0, %s229
    %s232 = sphi 0, %s231
    %s246 = sphi 0, %s232
    %s252 = sphi 0, %s254
    %s255 = sphi 0, %s252
    %s256 = sphi 0, %s255
    %s272 = sphi 0, %s256
    %s278 = sphi 0, %s280
    %s281 = sphi 0, %s278
    %s282 = sphi 0, %s281
    %s298 = sphi 0, %s282
    %s304 = sphi 0, %s306
    %s307 = sphi 0, %s304
    %s308 = sphi 0, %s307
    %s324 = sphi 0, %s308
    %s330 = sphi 0, %s332
    %s333 = sphi 0, %s330
    %s334 = sphi 0, %s333
    %s350 = sphi 0, %s334
    %s356 = sphi 0, %s358
    %s359 = sphi 0, %s356
    %s360 = sphi 0, %s359
    %s376 = sphi 0, %s360
    %s382 = sphi 0, %s384
    %s385 = sphi 0, %s382
    %s386 = sphi 0, %s385
    %s402 = sphi 0, %s386
  $region4: #{basic_block1d.3} parent=0 // loop_header_branch
    %25 = sbr.rel (%p23) target = $region8
  $region5: #{basic_block1d.3} parent=0 // loop_body
    %s27 = ssub.s32 %s22, 1
    %s28 = ssub.s32 %s22, 2
    %s29 = sadd.s32 %s22, 1
    %s30 = ssub.s32 %s22, %s29
    %p31 = scmp.eq.s32.totalorder %s30, 0
    %s33 = sadd.s32 %s32, 1
    %s34 = scalar_select %p31, %s32, %s33
    %p37 = pneg %p31
    %p38 = scmp.eq.s32.totalorder %s22, 1
    %p39 = por %p37, %p38
    %p40 = scmp.ne.s32.totalorder %s32, %s35
    %p41 = scmp.eq.s32.totalorder %s22, 0
    %p42 = por %p40, %p41
    %p43 = scmp.ne.s32.totalorder %s32, %s35
    %p44 = scmp.eq.s32.totalorder %s27, 1
    %p45 = por %p43, %p44
    %p46 = scmp.ne.s32.totalorder %s35, %s36
    %p47 = scmp.eq.s32.totalorder %s27, 0
    %p48 = por %p46, %p47
    %p49 = scmp.ne.s32.totalorder %s35, %s36
    %p50 = scmp.eq.s32.totalorder %s28, 1
    %p51 = por %p49, %p50
    %p53 = scmp.ne.s32.totalorder %s36, %s52
    %p54 = scmp.eq.s32.totalorder %s28, 0
    %p55 = por %p53, %p54
    %s56 = ssub.s32 %s22, %s29
    %p57 = scmp.eq.s32.totalorder %s56, 0
    %s59 = sadd.s32 %s58, 1
    %s60 = scalar_select %p57, %s58, %s59
    %p63 = pneg %p57
    %p64 = scmp.eq.s32.totalorder %s22, 1
    %p65 = por %p63, %p64
    %p66 = scmp.ne.s32.totalorder %s58, %s61
    %p67 = scmp.eq.s32.totalorder %s22, 0
    %p68 = por %p66, %p67
    %p69 = scmp.ne.s32.totalorder %s58, %s61
    %p70 = scmp.eq.s32.totalorder %s27, 1
    %p71 = por %p69, %p70
    %p72 = scmp.ne.s32.totalorder %s61, %s62
    %p73 = scmp.eq.s32.totalorder %s27, 0
    %p74 = por %p72, %p73
    %p75 = scmp.ne.s32.totalorder %s61, %s62
    %p76 = scmp.eq.s32.totalorder %s28, 1
    %p77 = por %p75, %p76
    %p79 = scmp.ne.s32.totalorder %s62, %s78
    %p80 = scmp.eq.s32.totalorder %s28, 0
    %p81 = por %p79, %p80
    %s83 = sadd.s32 %s82, 1
    %p86 = scmp.eq.s32.totalorder %s22, 1
    %p87 = scmp.ne.s32.totalorder %s82, %s84
    %p88 = scmp.eq.s32.totalorder %s22, 0
    %p89 = por %p87, %p88
    %p90 = scmp.ne.s32.totalorder %s82, %s84
    %p91 = scmp.eq.s32.totalorder %s27, 1
    %p92 = por %p90, %p91
    %p93 = scmp.ne.s32.totalorder %s84, %s85
    %p94 = scmp.eq.s32.totalorder %s27, 0
    %p95 = por %p93, %p94
    %p96 = scmp.ne.s32.totalorder %s84, %s85
    %p97 = scmp.eq.s32.totalorder %s28, 1
    %p98 = por %p96, %p97
    %p100 = scmp.ne.s32.totalorder %s85, %s99
    %p101 = scmp.eq.s32.totalorder %s28, 0
    %p102 = por %p100, %p101
    %s104 = sadd.s32 %s103, 1
    %p107 = scmp.eq.s32.totalorder %s22, 1
    %p108 = scmp.ne.s32.totalorder %s103, %s105
    %p109 = scmp.eq.s32.totalorder %s22, 0
    %p110 = por %p108, %p109
    %p111 = scmp.ne.s32.totalorder %s103, %s105
    %p112 = scmp.eq.s32.totalorder %s27, 1
    %p113 = por %p111, %p112
    %p114 = scmp.ne.s32.totalorder %s105, %s106
    %p115 = scmp.eq.s32.totalorder %s27, 0
    %p116 = por %p114, %p115
    %p117 = scmp.ne.s32.totalorder %s105, %s106
    %p118 = scmp.eq.s32.totalorder %s28, 1
    %p119 = por %p117, %p118
    %p121 = scmp.ne.s32.totalorder %s106, %s120
    %p122 = scmp.eq.s32.totalorder %s28, 0
    %p123 = por %p121, %p122
    %s125 = sadd.s32 %s124, 1
    %p128 = scmp.eq.s32.totalorder %s22, 1
    %p129 = scmp.ne.s32.totalorder %s124, %s126
    %p130 = scmp.eq.s32.totalorder %s22, 0
    %p131 = por %p129, %p130
    %p132 = scmp.ne.s32.totalorder %s124, %s126
    %p133 = scmp.eq.s32.totalorder %s27, 1
    %p134 = por %p132, %p133
    %p135 = scmp.ne.s32.totalorder %s126, %s127
    %p136 = scmp.eq.s32.totalorder %s27, 0
    %p137 = por %p135, %p136
    %p138 = scmp.ne.s32.totalorder %s126, %s127
    %p139 = scmp.eq.s32.totalorder %s28, 1
    %p140 = por %p138, %p139
    %p142 = scmp.ne.s32.totalorder %s127, %s141
    %p143 = scmp.eq.s32.totalorder %s28, 0
    %p144 = por %p142, %p143
    %s146 = sadd.s32 %s145, 1
    %p149 = scmp.eq.s32.totalorder %s22, 1
    %p150 = scmp.ne.s32.totalorder %s145, %s147
    %p151 = scmp.eq.s32.totalorder %s22, 0
    %p152 = por %p150, %p151
    %p153 = scmp.ne.s32.totalorder %s145, %s147
    %p154 = scmp.eq.s32.totalorder %s27, 1
    %p155 = por %p153, %p154
    %p156 = scmp.ne.s32.totalorder %s147, %s148
    %p157 = scmp.eq.s32.totalorder %s27, 0
    %p158 = por %p156, %p157
    %p159 = scmp.ne.s32.totalorder %s147, %s148
    %p160 = scmp.eq.s32.totalorder %s28, 1
    %p161 = por %p159, %p160
    %p163 = scmp.ne.s32.totalorder %s148, %s162
    %p164 = scmp.eq.s32.totalorder %s28, 0
    %p165 = por %p163, %p164
    %s167 = sadd.s32 %s166, 1
    %p170 = scmp.eq.s32.totalorder %s22, 1
    %p171 = scmp.ne.s32.totalorder %s166, %s168
    %p172 = scmp.eq.s32.totalorder %s22, 0
    %p173 = por %p171, %p172
    %p174 = scmp.ne.s32.totalorder %s166, %s168
    %p175 = scmp.eq.s32.totalorder %s27, 1
    %p176 = por %p174, %p175
    %p177 = scmp.ne.s32.totalorder %s168, %s169
    %p178 = scmp.eq.s32.totalorder %s27, 0
    %p179 = por %p177, %p178
    %p180 = scmp.ne.s32.totalorder %s168, %s169
    %p181 = scmp.eq.s32.totalorder %s28, 1
    %p182 = por %p180, %p181
    %p184 = scmp.ne.s32.totalorder %s169, %s183
    %p185 = scmp.eq.s32.totalorder %s28, 0
    %p186 = por %p184, %p185
    %s188 = sadd.s32 %s187, 1
    %p191 = scmp.eq.s32.totalorder %s22, 1
    %p192 = scmp.ne.s32.totalorder %s187, %s189
    %p193 = scmp.eq.s32.totalorder %s22, 0
    %p194 = por %p192, %p193
    %p195 = scmp.ne.s32.totalorder %s187, %s189
    %p196 = scmp.eq.s32.totalorder %s27, 1
    %p197 = por %p195, %p196
    %p198 = scmp.ne.s32.totalorder %s189, %s190
    %p199 = scmp.eq.s32.totalorder %s27, 0
    %p200 = por %p198, %p199
    %p201 = scmp.ne.s32.totalorder %s189, %s190
    %p202 = scmp.eq.s32.totalorder %s28, 1
    %p203 = por %p201, %p202
    %p205 = scmp.ne.s32.totalorder %s190, %s204
    %p206 = scmp.eq.s32.totalorder %s28, 0
    %p207 = por %p205, %p206
    %s209 = sadd.s32 %s208, 1
    %p212 = scmp.eq.s32.totalorder %s22, 1
    %p213 = scmp.ne.s32.totalorder %s208, %s210
    %p214 = scmp.eq.s32.totalorder %s22, 0
    %p215 = por %p213, %p214
    %p216 = scmp.ne.s32.totalorder %s208, %s210
    %p217 = scmp.eq.s32.totalorder %s27, 1
    %p218 = por %p216, %p217
    %p219 = scmp.ne.s32.totalorder %s210, %s211
    %p220 = scmp.eq.s32.totalorder %s27, 0
    %p221 = por %p219, %p220
    %p222 = scmp.ne.s32.totalorder %s210, %s211
    %p223 = scmp.eq.s32.totalorder %s28, 1
    %p224 = por %p222, %p223
    %p226 = scmp.ne.s32.totalorder %s211, %s225
    %p227 = scmp.eq.s32.totalorder %s28, 0
    %p228 = por %p226, %p227
    %s230 = sadd.s32 %s229, 1
    %p233 = scmp.eq.s32.totalorder %s22, 1
    %p234 = scmp.ne.s32.totalorder %s229, %s231
    %p235 = scmp.eq.s32.totalorder %s22, 0
    %p236 = por %p234, %p235
    %p237 = scmp.ne.s32.totalorder %s229, %s231
    %p238 = scmp.eq.s32.totalorder %s27, 1
    %p239 = por %p237, %p238
    %p240 = scmp.ne.s32.totalorder %s231, %s232
    %p241 = scmp.eq.s32.totalorder %s27, 0
    %p242 = por %p240, %p241
    %p243 = scmp.ne.s32.totalorder %s231, %s232
    %p244 = scmp.eq.s32.totalorder %s28, 1
    %p245 = por %p243, %p244
    %p247 = scmp.ne.s32.totalorder %s232, %s246
    %p248 = scmp.eq.s32.totalorder %s28, 0
    %p249 = por %p247, %p248
    %s250 = ssub.s32 %s22, %s29
    %p251 = scmp.eq.s32.totalorder %s250, 0
    %s253 = sadd.s32 %s252, 1
    %s254 = scalar_select %p251, %s252, %s253
    %p257 = pneg %p251
    %p258 = scmp.eq.s32.totalorder %s22, 1
    %p259 = por %p257, %p258
    %p260 = scmp.ne.s32.totalorder %s252, %s255
    %p261 = scmp.eq.s32.totalorder %s22, 0
    %p262 = por %p260, %p261
    %p263 = scmp.ne.s32.totalorder %s252, %s255
    %p264 = scmp.eq.s32.totalorder %s27, 1
    %p265 = por %p263, %p264
    %p266 = scmp.ne.s32.totalorder %s255, %s256
    %p267 = scmp.eq.s32.totalorder %s27, 0
    %p268 = por %p266, %p267
    %p269 = scmp.ne.s32.totalorder %s255, %s256
    %p270 = scmp.eq.s32.totalorder %s28, 1
    %p271 = por %p269, %p270
    %p273 = scmp.ne.s32.totalorder %s256, %s272
    %p274 = scmp.eq.s32.totalorder %s28, 0
    %p275 = por %p273, %p274
    %s276 = ssub.s32 %s22, %s29
    %p277 = scmp.eq.s32.totalorder %s276, 0
    %s279 = sadd.s32 %s278, 1
    %s280 = scalar_select %p277, %s278, %s279
    %p283 = pneg %p277
    %p284 = scmp.eq.s32.totalorder %s22, 1
    %p285 = por %p283, %p284
    %p286 = scmp.ne.s32.totalorder %s278, %s281
    %p287 = scmp.eq.s32.totalorder %s22, 0
    %p288 = por %p286, %p287
    %p289 = scmp.ne.s32.totalorder %s278, %s281
    %p290 = scmp.eq.s32.totalorder %s27, 1
    %p291 = por %p289, %p290
    %p292 = scmp.ne.s32.totalorder %s281, %s282
    %p293 = scmp.eq.s32.totalorder %s27, 0
    %p294 = por %p292, %p293
    %p295 = scmp.ne.s32.totalorder %s281, %s282
    %p296 = scmp.eq.s32.totalorder %s28, 1
    %p297 = por %p295, %p296
    %p299 = scmp.ne.s32.totalorder %s282, %s298
    %p300 = scmp.eq.s32.totalorder %s28, 0
    %p301 = por %p299, %p300
    %s302 = ssub.s32 %s22, %s29
    %p303 = scmp.eq.s32.totalorder %s302, 0
    %s305 = sadd.s32 %s304, 1
    %s306 = scalar_select %p303, %s304, %s305
    %p309 = pneg %p303
    %p310 = scmp.eq.s32.totalorder %s22, 1
    %p311 = por %p309, %p310
    %p312 = scmp.ne.s32.totalorder %s304, %s307
    %p313 = scmp.eq.s32.totalorder %s22, 0
    %p314 = por %p312, %p313
    %p315 = scmp.ne.s32.totalorder %s304, %s307
    %p316 = scmp.eq.s32.totalorder %s27, 1
    %p317 = por %p315, %p316
    %p318 = scmp.ne.s32.totalorder %s307, %s308
    %p319 = scmp.eq.s32.totalorder %s27, 0
    %p320 = por %p318, %p319
    %p321 = scmp.ne.s32.totalorder %s307, %s308
    %p322 = scmp.eq.s32.totalorder %s28, 1
    %p323 = por %p321, %p322
    %p325 = scmp.ne.s32.totalorder %s308, %s324
    %p326 = scmp.eq.s32.totalorder %s28, 0
    %p327 = por %p325, %p326
    %s328 = ssub.s32 %s22, %s29
    %p329 = scmp.eq.s32.totalorder %s328, 0
    %s331 = sadd.s32 %s330, 1
    %s332 = scalar_select %p329, %s330, %s331
    %p335 = pneg %p329
    %p336 = scmp.eq.s32.totalorder %s22, 1
    %p337 = por %p335, %p336
    %p338 = scmp.ne.s32.totalorder %s330, %s333
    %p339 = scmp.eq.s32.totalorder %s22, 0
    %p340 = por %p338, %p339
    %p341 = scmp.ne.s32.totalorder %s330, %s333
    %p342 = scmp.eq.s32.totalorder %s27, 1
    %p343 = por %p341, %p342
    %p344 = scmp.ne.s32.totalorder %s333, %s334
    %p345 = scmp.eq.s32.totalorder %s27, 0
    %p346 = por %p344, %p345
    %p347 = scmp.ne.s32.totalorder %s333, %s334
    %p348 = scmp.eq.s32.totalorder %s28, 1
    %p349 = por %p347, %p348
    %p351 = scmp.ne.s32.totalorder %s334, %s350
    %p352 = scmp.eq.s32.totalorder %s28, 0
    %p353 = por %p351, %p352
    %s354 = ssub.s32 %s22, %s29
    %p355 = scmp.eq.s32.totalorder %s354, 0
    %s357 = sadd.s32 %s356, 1
    %s358 = scalar_select %p355, %s356, %s357
    %p361 = pneg %p355
    %p362 = scmp.eq.s32.totalorder %s22, 1
    %p363 = por %p361, %p362
    %p364 = scmp.ne.s32.totalorder %s356, %s359
    %p365 = scmp.eq.s32.totalorder %s22, 0
    %p366 = por %p364, %p365
    %p367 = scmp.ne.s32.totalorder %s356, %s359
    %p368 = scmp.eq.s32.totalorder %s27, 1
    %p369 = por %p367, %p368
    %p370 = scmp.ne.s32.totalorder %s359, %s360
    %p371 = scmp.eq.s32.totalorder %s27, 0
    %p372 = por %p370, %p371
    %p373 = scmp.ne.s32.totalorder %s359, %s360
    %p374 = scmp.eq.s32.totalorder %s28, 1
    %p375 = por %p373, %p374
    %p377 = scmp.ne.s32.totalorder %s360, %s376
    %p378 = scmp.eq.s32.totalorder %s28, 0
    %p379 = por %p377, %p378
    %s380 = ssub.s32 %s22, %s29
    %p381 = scmp.eq.s32.totalorder %s380, 0
    %s383 = sadd.s32 %s382, 1
    %s384 = scalar_select %p381, %s382, %s383
    %p387 = pneg %p381
    %p388 = scmp.eq.s32.totalorder %s22, 1
    %p389 = por %p387, %p388
    %p390 = scmp.ne.s32.totalorder %s382, %s385
    %p391 = scmp.eq.s32.totalorder %s22, 0
    %p392 = por %p390, %p391
    %p393 = scmp.ne.s32.totalorder %s382, %s385
    %p394 = scmp.eq.s32.totalorder %s27, 1
    %p395 = por %p393, %p394
    %p396 = scmp.ne.s32.totalorder %s385, %s386
    %p397 = scmp.eq.s32.totalorder %s27, 0
    %p398 = por %p396, %p397
    %p399 = scmp.ne.s32.totalorder %s385, %s386
    %p400 = scmp.eq.s32.totalorder %s28, 1
    %p401 = por %p399, %p400
    %p403 = scmp.ne.s32.totalorder %s386, %s402
    %p404 = scmp.eq.s32.totalorder %s28, 0
    %p405 = por %p403, %p404
    %p406 = scmp.le.s32.totalorder 1, %s22
    %p407 = scmp.lt.s32.totalorder %s22, 3
    %p408 = pnand %p406, %p407
    %p409 = pneg %p408
    // Predicated region
    $region9: #{basic_block1d.3} parent=5 // pred_check
      _
    $region10: #{basic_block1d.3} parent=5 // pred_check_branch
      %411 = sbr.rel (%p408) target = $region12
    $region11: #{basic_block1d.3} parent=5 // pred_region
      %s412 = ssub.s32 %s22, 1
      // Predicated region
      $region13: #{basic_block1d.3} parent=11 // pred_check
        %p413 = pneg %p95
      $region14: #{basic_block1d.3} parent=11 // pred_check_branch
        %415 = sbr.rel (%p413) target = $region16
      $region15: #{basic_block1d.3} parent=11 // pred_region
        _
      $region16: #{basic_block1d.3} parent=11 // pred_fallthru
        _
      // Predicated region
      $region17: #{basic_block1d.3} parent=11 // pred_check
        %p416 = pneg %p116
      $region18: #{basic_block1d.3} parent=11 // pred_check_branch
        %418 = sbr.rel (%p416) target = $region20
      $region19: #{basic_block1d.3} parent=11 // pred_region
        _
      $region20: #{basic_block1d.3} parent=11 // pred_fallthru
        _
      // Predicated region
      $region21: #{basic_block1d.3} parent=11 // pred_check
        %p419 = pneg %p137
      $region22: #{basic_block1d.3} parent=11 // pred_check_branch
        %421 = sbr.rel (%p419) target = $region24
      $region23: #{basic_block1d.3} parent=11 // pred_region
        _
      $region24: #{basic_block1d.3} parent=11 // pred_fallthru
        _
      // Predicated region
      $region25: #{basic_block1d.3} parent=11 // pred_check
        %p422 = pneg %p158
      $region26: #{basic_block1d.3} parent=11 // pred_check_branch
        %424 = sbr.rel (%p422) target = $region28
      $region27: #{basic_block1d.3} parent=11 // pred_region
        _
      $region28: #{basic_block1d.3} parent=11 // pred_fallthru
        _
      // Predicated region
      $region29: #{basic_block1d.3} parent=11 // pred_check
        %p425 = pneg %p179
      $region30: #{basic_block1d.3} parent=11 // pred_check_branch
        %427 = sbr.rel (%p425) target = $region32
      $region31: #{basic_block1d.3} parent=11 // pred_region
        _
      $region32: #{basic_block1d.3} parent=11 // pred_fallthru
        _
      // Predicated region
      $region33: #{basic_block1d.3} parent=11 // pred_check
        %p428 = pneg %p200
      $region34: #{basic_block1d.3} parent=11 // pred_check_branch
        %430 = sbr.rel (%p428) target = $region36
      $region35: #{basic_block1d.3} parent=11 // pred_region
        _
      $region36: #{basic_block1d.3} parent=11 // pred_fallthru
        _
      // Predicated region
      $region37: #{basic_block1d.3} parent=11 // pred_check
        %p431 = pneg %p221
      $region38: #{basic_block1d.3} parent=11 // pred_check_branch
        %433 = sbr.rel (%p431) target = $region40
      $region39: #{basic_block1d.3} parent=11 // pred_region
        _
      $region40: #{basic_block1d.3} parent=11 // pred_fallthru
        _
      // Predicated region
      $region41: #{basic_block1d.3} parent=11 // pred_check
        %p434 = pneg %p242
      $region42: #{basic_block1d.3} parent=11 // pred_check_branch
        %436 = sbr.rel (%p434) target = $region44
      $region43: #{basic_block1d.3} parent=11 // pred_region
        _
      $region44: #{basic_block1d.3} parent=11 // pred_fallthru
        _
    $region12: #{basic_block1d.3} parent=5 // pred_fallthru
      _
    %p437 = scmp.lt.s32.totalorder %s22, 2
    // Predicated region
    $region45: #{basic_block1d.3} parent=5 // pred_check
      %p438 = pneg %p437
    $region46: #{basic_block1d.3} parent=5 // pred_check_branch
      %440 = sbr.rel (%p438) target = $region48
    $region47: #{basic_block1d.3} parent=5 // pred_region
      // Predicated region
      $region49: #{basic_block1d.3} parent=47 // pred_check
        %p441 = pneg %p42
      $region50: #{basic_block1d.3} parent=47 // pred_check_branch
        %443 = sbr.rel (%p441) target = $region52
      $region51: #{basic_block1d.3} parent=47 // pred_region
        %p444 = scmp.lt.s32.totalorder %s22, 1
        %s445 = scalar_select %p444, %s22, 1
        %s446 = smul.addr %s445, 2
        %s447 = smul.addr %s446, 8
        %s448 = scalar_lea.vmem %s0, %s447
      $region52: #{basic_block1d.3} parent=47 // pred_fallthru
        _
      // Predicated region
      $region53: #{basic_block1d.3} parent=47 // pred_check
        %p449 = pneg %p68
      $region54: #{basic_block1d.3} parent=47 // pred_check_branch
        %451 = sbr.rel (%p449) target = $region56
      $region55: #{basic_block1d.3} parent=47 // pred_region
        %p452 = scmp.lt.s32.totalorder %s22, 1
        %s453 = scalar_select %p452, %s22, 1
        %s454 = smul.addr %s453, 2
        %s455 = smul.addr %s454, 8
        %s456 = scalar_lea.vmem %s1, %s455
      $region56: #{basic_block1d.3} parent=47 // pred_fallthru
        _
    $region48: #{basic_block1d.3} parent=5 // pred_fallthru
      _
    %p457 = scmp.le.s32.totalorder 1, %s22
    %p458 = scmp.lt.s32.totalorder %s22, 3
    %p459 = pnand %p457, %p458
    %p460 = pneg %p459
    // Predicated region
    $region57: #{basic_block1d.3} parent=5 // pred_check
      _
    $region58: #{basic_block1d.3} parent=5 // pred_check_branch
      %462 = sbr.rel (%p459) target = $region60
    $region59: #{basic_block1d.3} parent=5 // pred_region
      %s463 = ssub.s32 %s22, 1
      %p464 = scmp.lt.s32.totalorder %s27, 1
      %s465 = scalar_select %p464, %s27, 1
      %s466 = smul.addr %s465, 2
      %s467 = smul.addr %s466, 8
      %s468 = scalar_lea.vmem %s0, %s467
      %p469 = pneg %p48
      %p470 = pneg %p45
      %p471 = scmp.lt.s32.totalorder %s27, 1
      %s472 = scalar_select %p471, %s27, 1
      %s473 = smul.addr %s472, 2
      %s474 = smul.addr %s473, 8
      %s475 = scalar_lea.vmem %s1, %s474
      %p476 = pneg %p74
      %p477 = pneg %p71
      %p478 = pneg %p95
      %p479 = pneg %p92
      %p480 = pneg %p116
      %p481 = pneg %p113
      %p482 = pneg %p137
      %p483 = pneg %p134
      %p484 = pneg %p158
      %p485 = pneg %p155
      %p486 = pneg %p179
      %p487 = pneg %p176
      %p488 = pneg %p200
      %p489 = pneg %p197
      %p490 = pneg %p221
      %p491 = pneg %p218
      %p492 = pneg %p242
      %p493 = pneg %p239
      %p494 = pneg %p268
      %p495 = pneg %p265
      %p496 = scmp.lt.s32.totalorder %s27, 1
      %s497 = scalar_select %p496, %s27, 1
      %s498 = smul.addr %s497, 2
      %s499 = smul.addr %s498, 8
      %s500 = scalar_lea.vmem %s10, %s499
      %p501 = pneg %p294
      %p502 = pneg %p291
      %p503 = scmp.lt.s32.totalorder %s27, 1
      %s504 = scalar_select %p503, %s27, 1
      %s505 = smul.addr %s504, 2
      %s506 = smul.addr %s505, 8
      %s507 = scalar_lea.vmem %s11, %s506
      %p508 = pneg %p320
      %p509 = pneg %p317
      %p510 = scmp.lt.s32.totalorder %s27, 1
      %s511 = scalar_select %p510, %s27, 1
      %s512 = smul.addr %s511, 2
      %s513 = scalar_lea.vmem %s12, %s512
      %p514 = pneg %p346
      %p515 = pneg %p343
      %p516 = scmp.lt.s32.totalorder %s27, 1
      %s517 = scalar_select %p516, %s27, 1
      %s518 = smul.addr %s517, 2
      %s519 = smul.addr %s518, 8
      %s520 = scalar_lea.vmem %s13, %s519
      %p521 = pneg %p372
      %p522 = pneg %p369
      %p523 = scmp.lt.s32.totalorder %s27, 1
      %s524 = scalar_select %p523, %s27, 1
      %s525 = smul.addr %s524, 2
      %s526 = smul.addr %s525, 8
      %s527 = scalar_lea.vmem %s14, %s526
      %p528 = pneg %p398
      %p529 = pneg %p395
      %p530 = scmp.lt.s32.totalorder %s27, 1
      %s531 = scalar_select %p530, %s27, 1
      %s532 = smul.addr %s531, 2
      %s533 = scalar_lea.vmem %s15, %s532
      %p534 = scmp.lt.s32.totalorder %s27, 1
      %s535 = scalar_select %p534, %s27, 1
      %s536 = smul.addr %s535, 2
      %s537 = smul.addr %s536, 8
      %s538 = scalar_lea.vmem %s0, %s537
      %p539 = scmp.lt.s32.totalorder %s27, 1
      %s540 = scalar_select %p539, %s27, 1
      %s541 = smul.addr %s540, 2
      %s542 = smul.addr %s541, 8
      %s543 = scalar_lea.vmem %s1, %s542
      %p544 = scmp.lt.s32.totalorder %s27, 1
      %s545 = scalar_select %p544, %s27, 1
      %s546 = smul.addr %s545, 2
      %s547 = smul.addr %s546, 8
      %s548 = scalar_lea.vmem %s10, %s547
      %p549 = scmp.lt.s32.totalorder %s27, 1
      %s550 = scalar_select %p549, %s27, 1
      %s551 = smul.addr %s550, 2
      %s552 = smul.addr %s551, 8
      %s553 = scalar_lea.vmem %s11, %s552
      %p554 = scmp.lt.s32.totalorder %s27, 1
      %s555 = scalar_select %p554, %s27, 1
      %s556 = smul.addr %s555, 2
      %s557 = scalar_lea.vmem %s12, %s556
      %p558 = scmp.lt.s32.totalorder %s27, 1
      %s559 = scalar_select %p558, %s27, 1
      %s560 = smul.addr %s559, 2
      %s561 = smul.addr %s560, 8
      %s562 = scalar_lea.vmem %s13, %s561
      %p563 = scmp.lt.s32.totalorder %s27, 1
      %s564 = scalar_select %p563, %s27, 1
      %s565 = smul.addr %s564, 2
      %s566 = smul.addr %s565, 8
      %s567 = scalar_lea.vmem %s14, %s566
      %p568 = scmp.lt.s32.totalorder %s27, 1
      %s569 = scalar_select %p568, %s27, 1
      %s570 = smul.addr %s569, 2
      %s571 = scalar_lea.vmem %s15, %s570
      %v572 = vld [vmem:[%s538] sm:$0xff]
      %v573 = vld [vmem:[%s538 + $0x8] sm:$0xff]
      %v574 = vld [vmem:[%s543] sm:$0xff]
      %v575 = vld [vmem:[%s543 + $0x8] sm:$0xff]
      %578 = vrot.lane.b32.xlu0 %v572, 1
      %v579 = vpop.permute.xlu0 %578
      %580 = vrot.lane.b32.xlu0 %v573, 1
      %v581 = vpop.permute.xlu0 %580
      %vm584 = vcmask 7168
      %v585 = vsel %vm584, %v572, %v579
      %v586 = vsel %vm584, %v573, %v581
      %587 = vrot.lane.b32.xlu0 %v572, 127
      %v588 = vpop.permute.xlu0 %587
      %589 = vrot.lane.b32.xlu0 %v573, 127
      %v590 = vpop.permute.xlu0 %589
      %vm593 = vcmask 1039360
      %v594 = vsel %vm593, %v588, %v572
      %v595 = vsel %vm593, %v590, %v573
      %598 = vrot.lane.b32.xlu0 %v574, 1
      %v599 = vpop.permute.xlu0 %598
      %600 = vrot.lane.b32.xlu0 %v575, 1
      %v601 = vpop.permute.xlu0 %600
      %v604 = vsel %vm584, %v574, %v599
      %v605 = vsel %vm584, %v575, %v601
      %606 = vrot.lane.b32.xlu0 %v574, 127
      %v607 = vpop.permute.xlu0 %606
      %608 = vrot.lane.b32.xlu0 %v575, 127
      %v609 = vpop.permute.xlu0 %608
      %v612 = vsel %vm593, %v607, %v574
      %v613 = vsel %vm593, %v609, %v575
      %v614 = vld [vmem:[%s2] sm:$0xff]
      %v615 = vld [vmem:[%s2 + $0x8] sm:$0xff]
      %v616 = vld [vmem:[%s2 + $0x10] sm:$0xff]
      %v617 = vlaneseq
      %v618 = vshrl.u32 %v617, 7
      %v619 = vsub.s32 0, %v618
      %v620 = vrot.slane %v585, %v619
      %v621 = vlaneseq
      %v622 = vshrl.u32 %v621, 7
      %v623 = vsub.s32 0, %v622
      %v624 = vrot.slane %v586, %v623
      %626 = vset.pattern.permute.xlu0 0
      %627 = vperm.xlu0 %626, %v614
      %v628 = vpop.permute.xlu0 %627
      %v630 = vmul.f32 %v620, %v628
      %v631 = vmul.f32 %v624, %v628
      %v632 = vlaneseq
      %v633 = vshrl.u32 %v632, 7
      %v634 = vsub.s32 1, %v633
      %v635 = vrot.slane %v585, %v634
      %v636 = vlaneseq
      %v637 = vshrl.u32 %v636, 7
      %v638 = vsub.s32 1, %v637
      %v639 = vrot.slane %v586, %v638
      %640 = vset.pattern.permute.xlu0 1
      %641 = vperm.xlu0 %640, %v614
      %v642 = vpop.permute.xlu0 %641
      %v644 = vmul.f32 %v635, %v642
      %v645 = vmul.f32 %v639, %v642
      %v646 = vlaneseq
      %v647 = vshrl.u32 %v646, 7
      %v648 = vsub.s32 2, %v647
      %v649 = vrot.slane %v585, %v648
      %v650 = vlaneseq
      %v651 = vshrl.u32 %v650, 7
      %v652 = vsub.s32 2, %v651
      %v653 = vrot.slane %v586, %v652
      %654 = vset.pattern.permute.xlu0 2
      %655 = vperm.xlu0 %654, %v614
      %v656 = vpop.permute.xlu0 %655
      %v658 = vmul.f32 %v649, %v656
      %v659 = vmul.f32 %v653, %v656
      %v660 = vlaneseq
      %v661 = vshrl.u32 %v660, 7
      %v662 = vsub.s32 3, %v661
      %v663 = vrot.slane %v585, %v662
      %v664 = vlaneseq
      %v665 = vshrl.u32 %v664, 7
      %v666 = vsub.s32 3, %v665
      %v667 = vrot.slane %v586, %v666
      %668 = vset.pattern.permute.xlu0 3
      %669 = vperm.xlu0 %668, %v614
      %v670 = vpop.permute.xlu0 %669
      %v672 = vmul.f32 %v663, %v670
      %v673 = vmul.f32 %v667, %v670
      %v674 = vlaneseq
      %v675 = vshrl.u32 %v674, 7
      %v676 = vsub.s32 4, %v675
      %v677 = vrot.slane %v585, %v676
      %v678 = vlaneseq
      %v679 = vshrl.u32 %v678, 7
      %v680 = vsub.s32 4, %v679
      %v681 = vrot.slane %v586, %v680
      %682 = vset.pattern.permute.xlu0 4
      %683 = vperm.xlu0 %682, %v614
      %v684 = vpop.permute.xlu0 %683
      %v686 = vmul.f32 %v677, %v684
      %v687 = vmul.f32 %v681, %v684
      %v688 = vadd.f32 %v630, %v686
      %v689 = vadd.f32 %v631, %v687
      %v690 = vlaneseq
      %v691 = vshrl.u32 %v690, 7
      %v692 = vsub.s32 5, %v691
      %v693 = vrot.slane %v585, %v692
      %v694 = vlaneseq
      %v695 = vshrl.u32 %v694, 7
      %v696 = vsub.s32 5, %v695
      %v697 = vrot.slane %v586, %v696
      %698 = vset.pattern.permute.xlu0 5
      %699 = vperm.xlu0 %698, %v614
      %v700 = vpop.permute.xlu0 %699
      %v702 = vmul.f32 %v693, %v700
      %v703 = vmul.f32 %v697, %v700
      %v704 = vadd.f32 %v644, %v702
      %v705 = vadd.f32 %v645, %v703
      %v706 = vlaneseq
      %v707 = vshrl.u32 %v706, 7
      %v708 = vsub.s32 6, %v707
      %v709 = vrot.slane %v585, %v708
      %v710 = vlaneseq
      %v711 = vshrl.u32 %v710, 7
      %v712 = vsub.s32 6, %v711
      %v713 = vrot.slane %v586, %v712
      %714 = vset.pattern.permute.xlu0 6
      %715 = vperm.xlu0 %714, %v614
      %v716 = vpop.permute.xlu0 %715
      %v718 = vmul.f32 %v709, %v716
      %v719 = vmul.f32 %v713, %v716
      %v720 = vadd.f32 %v658, %v718
      %v721 = vadd.f32 %v659, %v719
      %v722 = vlaneseq
      %v723 = vshrl.u32 %v722, 7
      %v724 = vsub.s32 7, %v723
      %v725 = vrot.slane %v585, %v724
      %v726 = vlaneseq
      %v727 = vshrl.u32 %v726, 7
      %v728 = vsub.s32 7, %v727
      %v729 = vrot.slane %v586, %v728
      %730 = vset.pattern.permute.xlu0 7
      %731 = vperm.xlu0 %730, %v614
      %v732 = vpop.permute.xlu0 %731
      %v734 = vmul.f32 %v725, %v732
      %v735 = vmul.f32 %v729, %v732
      %v736 = vadd.f32 %v672, %v734
      %v737 = vadd.f32 %v673, %v735
      %v738 = vadd.f32 %v688, %v704
      %v739 = vadd.f32 %v689, %v705
      %v740 = vadd.f32 %v720, %v736
      %v741 = vadd.f32 %v721, %v737
      %v742 = vadd.f32 %v738, %v740
      %v743 = vadd.f32 %v739, %v741
      %v744 = vlaneseq
      %v745 = vshrl.u32 %v744, 7
      %v746 = vsub.s32 0, %v745
      %v747 = vrot.slane %v572, %v746
      %v748 = vlaneseq
      %v749 = vshrl.u32 %v748, 7
      %v750 = vsub.s32 0, %v749
      %v751 = vrot.slane %v573, %v750
      %753 = vset.pattern.permute.xlu0 0
      %754 = vperm.xlu0 %753, %v615
      %v755 = vpop.permute.xlu0 %754
      %v757 = vmul.f32 %v747, %v755
      %v758 = vmul.f32 %v751, %v755
      %v759 = vlaneseq
      %v760 = vshrl.u32 %v759, 7
      %v761 = vsub.s32 1, %v760
      %v762 = vrot.slane %v572, %v761
      %v763 = vlaneseq
      %v764 = vshrl.u32 %v763, 7
      %v765 = vsub.s32 1, %v764
      %v766 = vrot.slane %v573, %v765
      %767 = vset.pattern.permute.xlu0 1
      %768 = vperm.xlu0 %767, %v615
      %v769 = vpop.permute.xlu0 %768
      %v771 = vmul.f32 %v762, %v769
      %v772 = vmul.f32 %v766, %v769
      %v773 = vlaneseq
      %v774 = vshrl.u32 %v773, 7
      %v775 = vsub.s32 2, %v774
      %v776 = vrot.slane %v572, %v775
      %v777 = vlaneseq
      %v778 = vshrl.u32 %v777, 7
      %v779 = vsub.s32 2, %v778
      %v780 = vrot.slane %v573, %v779
      %781 = vset.pattern.permute.xlu0 2
      %782 = vperm.xlu0 %781, %v615
      %v783 = vpop.permute.xlu0 %782
      %v785 = vmul.f32 %v776, %v783
      %v786 = vmul.f32 %v780, %v783
      %v787 = vlaneseq
      %v788 = vshrl.u32 %v787, 7
      %v789 = vsub.s32 3, %v788
      %v790 = vrot.slane %v572, %v789
      %v791 = vlaneseq
      %v792 = vshrl.u32 %v791, 7
      %v793 = vsub.s32 3, %v792
      %v794 = vrot.slane %v573, %v793
      %795 = vset.pattern.permute.xlu0 3
      %796 = vperm.xlu0 %795, %v615
      %v797 = vpop.permute.xlu0 %796
      %v799 = vmul.f32 %v790, %v797
      %v800 = vmul.f32 %v794, %v797
      %v801 = vlaneseq
      %v802 = vshrl.u32 %v801, 7
      %v803 = vsub.s32 4, %v802
      %v804 = vrot.slane %v572, %v803
      %v805 = vlaneseq
      %v806 = vshrl.u32 %v805, 7
      %v807 = vsub.s32 4, %v806
      %v808 = vrot.slane %v573, %v807
      %809 = vset.pattern.permute.xlu0 4
      %810 = vperm.xlu0 %809, %v615
      %v811 = vpop.permute.xlu0 %810
      %v813 = vmul.f32 %v804, %v811
      %v814 = vmul.f32 %v808, %v811
      %v815 = vadd.f32 %v757, %v813
      %v816 = vadd.f32 %v758, %v814
      %v817 = vlaneseq
      %v818 = vshrl.u32 %v817, 7
      %v819 = vsub.s32 5, %v818
      %v820 = vrot.slane %v572, %v819
      %v821 = vlaneseq
      %v822 = vshrl.u32 %v821, 7
      %v823 = vsub.s32 5, %v822
      %v824 = vrot.slane %v573, %v823
      %825 = vset.pattern.permute.xlu0 5
      %826 = vperm.xlu0 %825, %v615
      %v827 = vpop.permute.xlu0 %826
      %v829 = vmul.f32 %v820, %v827
      %v830 = vmul.f32 %v824, %v827
      %v831 = vadd.f32 %v771, %v829
      %v832 = vadd.f32 %v772, %v830
      %v833 = vlaneseq
      %v834 = vshrl.u32 %v833, 7
      %v835 = vsub.s32 6, %v834
      %v836 = vrot.slane %v572, %v835
      %v837 = vlaneseq
      %v838 = vshrl.u32 %v837, 7
      %v839 = vsub.s32 6, %v838
      %v840 = vrot.slane %v573, %v839
      %841 = vset.pattern.permute.xlu0 6
      %842 = vperm.xlu0 %841, %v615
      %v843 = vpop.permute.xlu0 %842
      %v845 = vmul.f32 %v836, %v843
      %v846 = vmul.f32 %v840, %v843
      %v847 = vadd.f32 %v785, %v845
      %v848 = vadd.f32 %v786, %v846
      %v849 = vlaneseq
      %v850 = vshrl.u32 %v849, 7
      %v851 = vsub.s32 7, %v850
      %v852 = vrot.slane %v572, %v851
      %v853 = vlaneseq
      %v854 = vshrl.u32 %v853, 7
      %v855 = vsub.s32 7, %v854
      %v856 = vrot.slane %v573, %v855
      %857 = vset.pattern.permute.xlu0 7
      %858 = vperm.xlu0 %857, %v615
      %v859 = vpop.permute.xlu0 %858
      %v861 = vmul.f32 %v852, %v859
      %v862 = vmul.f32 %v856, %v859
      %v863 = vadd.f32 %v799, %v861
      %v864 = vadd.f32 %v800, %v862
      %v865 = vadd.f32 %v815, %v831
      %v866 = vadd.f32 %v816, %v832
      %v867 = vadd.f32 %v847, %v863
      %v868 = vadd.f32 %v848, %v864
      %v869 = vadd.f32 %v865, %v867
      %v870 = vadd.f32 %v866, %v868
      %v871 = vadd.f32 %v742, %v869
      %v872 = vadd.f32 %v743, %v870
      %v873 = vlaneseq
      %v874 = vshrl.u32 %v873, 7
      %v875 = vsub.s32 0, %v874
      %v876 = vrot.slane %v594, %v875
      %v877 = vlaneseq
      %v878 = vshrl.u32 %v877, 7
      %v879 = vsub.s32 0, %v878
      %v880 = vrot.slane %v595, %v879
      %882 = vset.pattern.permute.xlu0 0
      %883 = vperm.xlu0 %882, %v616
      %v884 = vpop.permute.xlu0 %883
      %v886 = vmul.f32 %v876, %v884
      %v887 = vmul.f32 %v880, %v884
      %v888 = vlaneseq
      %v889 = vshrl.u32 %v888, 7
      %v890 = vsub.s32 1, %v889
      %v891 = vrot.slane %v594, %v890
      %v892 = vlaneseq
      %v893 = vshrl.u32 %v892, 7
      %v894 = vsub.s32 1, %v893
      %v895 = vrot.slane %v595, %v894
      %896 = vset.pattern.permute.xlu0 1
      %897 = vperm.xlu0 %896, %v616
      %v898 = vpop.permute.xlu0 %897
      %v900 = vmul.f32 %v891, %v898
      %v901 = vmul.f32 %v895, %v898
      %v902 = vlaneseq
      %v903 = vshrl.u32 %v902, 7
      %v904 = vsub.s32 2, %v903
      %v905 = vrot.slane %v594, %v904
      %v906 = vlaneseq
      %v907 = vshrl.u32 %v906, 7
      %v908 = vsub.s32 2, %v907
      %v909 = vrot.slane %v595, %v908
      %910 = vset.pattern.permute.xlu0 2
      %911 = vperm.xlu0 %910, %v616
      %v912 = vpop.permute.xlu0 %911
      %v914 = vmul.f32 %v905, %v912
      %v915 = vmul.f32 %v909, %v912
      %v916 = vlaneseq
      %v917 = vshrl.u32 %v916, 7
      %v918 = vsub.s32 3, %v917
      %v919 = vrot.slane %v594, %v918
      %v920 = vlaneseq
      %v921 = vshrl.u32 %v920, 7
      %v922 = vsub.s32 3, %v921
      %v923 = vrot.slane %v595, %v922
      %924 = vset.pattern.permute.xlu0 3
      %925 = vperm.xlu0 %924, %v616
      %v926 = vpop.permute.xlu0 %925
      %v928 = vmul.f32 %v919, %v926
      %v929 = vmul.f32 %v923, %v926
      %v930 = vlaneseq
      %v931 = vshrl.u32 %v930, 7
      %v932 = vsub.s32 4, %v931
      %v933 = vrot.slane %v594, %v932
      %v934 = vlaneseq
      %v935 = vshrl.u32 %v934, 7
      %v936 = vsub.s32 4, %v935
      %v937 = vrot.slane %v595, %v936
      %938 = vset.pattern.permute.xlu0 4
      %939 = vperm.xlu0 %938, %v616
      %v940 = vpop.permute.xlu0 %939
      %v942 = vmul.f32 %v933, %v940
      %v943 = vmul.f32 %v937, %v940
      %v944 = vadd.f32 %v886, %v942
      %v945 = vadd.f32 %v887, %v943
      %v946 = vlaneseq
      %v947 = vshrl.u32 %v946, 7
      %v948 = vsub.s32 5, %v947
      %v949 = vrot.slane %v594, %v948
      %v950 = vlaneseq
      %v951 = vshrl.u32 %v950, 7
      %v952 = vsub.s32 5, %v951
      %v953 = vrot.slane %v595, %v952
      %954 = vset.pattern.permute.xlu0 5
      %955 = vperm.xlu0 %954, %v616
      %v956 = vpop.permute.xlu0 %955
      %v958 = vmul.f32 %v949, %v956
      %v959 = vmul.f32 %v953, %v956
      %v960 = vadd.f32 %v900, %v958
      %v961 = vadd.f32 %v901, %v959
      %v962 = vlaneseq
      %v963 = vshrl.u32 %v962, 7
      %v964 = vsub.s32 6, %v963
      %v965 = vrot.slane %v594, %v964
      %v966 = vlaneseq
      %v967 = vshrl.u32 %v966, 7
      %v968 = vsub.s32 6, %v967
      %v969 = vrot.slane %v595, %v968
      %970 = vset.pattern.permute.xlu0 6
      %971 = vperm.xlu0 %970, %v616
      %v972 = vpop.permute.xlu0 %971
      %v974 = vmul.f32 %v965, %v972
      %v975 = vmul.f32 %v969, %v972
      %v976 = vadd.f32 %v914, %v974
      %v977 = vadd.f32 %v915, %v975
      %v978 = vlaneseq
      %v979 = vshrl.u32 %v978, 7
      %v980 = vsub.s32 7, %v979
      %v981 = vrot.slane %v594, %v980
      %v982 = vlaneseq
      %v983 = vshrl.u32 %v982, 7
      %v984 = vsub.s32 7, %v983
      %v985 = vrot.slane %v595, %v984
      %986 = vset.pattern.permute.xlu0 7
      %987 = vperm.xlu0 %986, %v616
      %v988 = vpop.permute.xlu0 %987
      %v990 = vmul.f32 %v981, %v988
      %v991 = vmul.f32 %v985, %v988
      %v992 = vadd.f32 %v928, %v990
      %v993 = vadd.f32 %v929, %v991
      %v994 = vadd.f32 %v944, %v960
      %v995 = vadd.f32 %v945, %v961
      %v996 = vadd.f32 %v976, %v992
      %v997 = vadd.f32 %v977, %v993
      %v998 = vadd.f32 %v994, %v996
      %v999 = vadd.f32 %v995, %v997
      %v1000 = vadd.f32 %v871, %v998
      %v1001 = vadd.f32 %v872, %v999
      %v1002 = vld [vmem:[%s3] sm:$0xff]
      %v1003 = vld [vmem:[%s3 + $0x8] sm:$0xff]
      %v1004 = vld [vmem:[%s3 + $0x10] sm:$0xff]
      %1006 = vset.pattern.permute.xlu0 0
      %1007 = vperm.xlu0 %1006, %v1002
      %v1008 = vpop.permute.xlu0 %1007
      %v1010 = vmul.f32 %v620, %v1008
      %v1011 = vmul.f32 %v624, %v1008
      %1012 = vset.pattern.permute.xlu0 1
      %1013 = vperm.xlu0 %1012, %v1002
      %v1014 = vpop.permute.xlu0 %1013
      %v1016 = vmul.f32 %v635, %v1014
      %v1017 = vmul.f32 %v639, %v1014
      %1018 = vset.pattern.permute.xlu0 2
      %1019 = vperm.xlu0 %1018, %v1002
      %v1020 = vpop.permute.xlu0 %1019
      %v1022 = vmul.f32 %v649, %v1020
      %v1023 = vmul.f32 %v653, %v1020
      %1024 = vset.pattern.permute.xlu0 3
      %1025 = vperm.xlu0 %1024, %v1002
      %v1026 = vpop.permute.xlu0 %1025
      %v1028 = vmul.f32 %v663, %v1026
      %v1029 = vmul.f32 %v667, %v1026
      %1030 = vset.pattern.permute.xlu0 4
      %1031 = vperm.xlu0 %1030, %v1002
      %v1032 = vpop.permute.xlu0 %1031
      %v1034 = vmul.f32 %v677, %v1032
      %v1035 = vmul.f32 %v681, %v1032
      %v1036 = vadd.f32 %v1010, %v1034
      %v1037 = vadd.f32 %v1011, %v1035
      %1038 = vset.pattern.permute.xlu0 5
      %1039 = vperm.xlu0 %1038, %v1002
      %v1040 = vpop.permute.xlu0 %1039
      %v1042 = vmul.f32 %v693, %v1040
      %v1043 = vmul.f32 %v697, %v1040
      %v1044 = vadd.f32 %v1016, %v1042
      %v1045 = vadd.f32 %v1017, %v1043
      %1046 = vset.pattern.permute.xlu0 6
      %1047 = vperm.xlu0 %1046, %v1002
      %v1048 = vpop.permute.xlu0 %1047
      %v1050 = vmul.f32 %v709, %v1048
      %v1051 = vmul.f32 %v713, %v1048
      %v1052 = vadd.f32 %v1022, %v1050
      %v1053 = vadd.f32 %v1023, %v1051
      %1054 = vset.pattern.permute.xlu0 7
      %1055 = vperm.xlu0 %1054, %v1002
      %v1056 = vpop.permute.xlu0 %1055
      %v1058 = vmul.f32 %v725, %v1056
      %v1059 = vmul.f32 %v729, %v1056
      %v1060 = vadd.f32 %v1028, %v1058
      %v1061 = vadd.f32 %v1029, %v1059
      %v1062 = vadd.f32 %v1036, %v1044
      %v1063 = vadd.f32 %v1037, %v1045
      %v1064 = vadd.f32 %v1052, %v1060
      %v1065 = vadd.f32 %v1053, %v1061
      %v1066 = vadd.f32 %v1062, %v1064
      %v1067 = vadd.f32 %v1063, %v1065
      %1069 = vset.pattern.permute.xlu0 0
      %1070 = vperm.xlu0 %1069, %v1003
      %v1071 = vpop.permute.xlu0 %1070
      %v1073 = vmul.f32 %v747, %v1071
      %v1074 = vmul.f32 %v751, %v1071
      %1075 = vset.pattern.permute.xlu0 1
      %1076 = vperm.xlu0 %1075, %v1003
      %v1077 = vpop.permute.xlu0 %1076
      %v1079 = vmul.f32 %v762, %v1077
      %v1080 = vmul.f32 %v766, %v1077
      %1081 = vset.pattern.permute.xlu0 2
      %1082 = vperm.xlu0 %1081, %v1003
      %v1083 = vpop.permute.xlu0 %1082
      %v1085 = vmul.f32 %v776, %v1083
      %v1086 = vmul.f32 %v780, %v1083
      %1087 = vset.pattern.permute.xlu0 3
      %1088 = vperm.xlu0 %1087, %v1003
      %v1089 = vpop.permute.xlu0 %1088
      %v1091 = vmul.f32 %v790, %v1089
      %v1092 = vmul.f32 %v794, %v1089
      %1093 = vset.pattern.permute.xlu0 4
      %1094 = vperm.xlu0 %1093, %v1003
      %v1095 = vpop.permute.xlu0 %1094
      %v1097 = vmul.f32 %v804, %v1095
      %v1098 = vmul.f32 %v808, %v1095
      %v1099 = vadd.f32 %v1073, %v1097
      %v1100 = vadd.f32 %v1074, %v1098
      %1101 = vset.pattern.permute.xlu0 5
      %1102 = vperm.xlu0 %1101, %v1003
      %v1103 = vpop.permute.xlu0 %1102
      %v1105 = vmul.f32 %v820, %v1103
      %v1106 = vmul.f32 %v824, %v1103
      %v1107 = vadd.f32 %v1079, %v1105
      %v1108 = vadd.f32 %v1080, %v1106
      %1109 = vset.pattern.permute.xlu0 6
      %1110 = vperm.xlu0 %1109, %v1003
      %v1111 = vpop.permute.xlu0 %1110
      %v1113 = vmul.f32 %v836, %v1111
      %v1114 = vmul.f32 %v840, %v1111
      %v1115 = vadd.f32 %v1085, %v1113
      %v1116 = vadd.f32 %v1086, %v1114
      %1117 = vset.pattern.permute.xlu0 7
      %1118 = vperm.xlu0 %1117, %v1003
      %v1119 = vpop.permute.xlu0 %1118
      %v1121 = vmul.f32 %v852, %v1119
      %v1122 = vmul.f32 %v856, %v1119
      %v1123 = vadd.f32 %v1091, %v1121
      %v1124 = vadd.f32 %v1092, %v1122
      %v1125 = vadd.f32 %v1099, %v1107
      %v1126 = vadd.f32 %v1100, %v1108
      %v1127 = vadd.f32 %v1115, %v1123
      %v1128 = vadd.f32 %v1116, %v1124
      %v1129 = vadd.f32 %v1125, %v1127
      %v1130 = vadd.f32 %v1126, %v1128
      %v1131 = vadd.f32 %v1066, %v1129
      %v1132 = vadd.f32 %v1067, %v1130
      %1134 = vset.pattern.permute.xlu0 0
      %1135 = vperm.xlu0 %1134, %v1004
      %v1136 = vpop.permute.xlu0 %1135
      %v1138 = vmul.f32 %v876, %v1136
      %v1139 = vmul.f32 %v880, %v1136
      %1140 = vset.pattern.permute.xlu0 1
      %1141 = vperm.xlu0 %1140, %v1004
      %v1142 = vpop.permute.xlu0 %1141
      %v1144 = vmul.f32 %v891, %v1142
      %v1145 = vmul.f32 %v895, %v1142
      %1146 = vset.pattern.permute.xlu0 2
      %1147 = vperm.xlu0 %1146, %v1004
      %v1148 = vpop.permute.xlu0 %1147
      %v1150 = vmul.f32 %v905, %v1148
      %v1151 = vmul.f32 %v909, %v1148
      %1152 = vset.pattern.permute.xlu0 3
      %1153 = vperm.xlu0 %1152, %v1004
      %v1154 = vpop.permute.xlu0 %1153
      %v1156 = vmul.f32 %v919, %v1154
      %v1157 = vmul.f32 %v923, %v1154
      %1158 = vset.pattern.permute.xlu0 4
      %1159 = vperm.xlu0 %1158, %v1004
      %v1160 = vpop.permute.xlu0 %1159
      %v1162 = vmul.f32 %v933, %v1160
      %v1163 = vmul.f32 %v937, %v1160
      %v1164 = vadd.f32 %v1138, %v1162
      %v1165 = vadd.f32 %v1139, %v1163
      %1166 = vset.pattern.permute.xlu0 5
      %1167 = vperm.xlu0 %1166, %v1004
      %v1168 = vpop.permute.xlu0 %1167
      %v1170 = vmul.f32 %v949, %v1168
      %v1171 = vmul.f32 %v953, %v1168
      %v1172 = vadd.f32 %v1144, %v1170
      %v1173 = vadd.f32 %v1145, %v1171
      %1174 = vset.pattern.permute.xlu0 6
      %1175 = vperm.xlu0 %1174, %v1004
      %v1176 = vpop.permute.xlu0 %1175
      %v1178 = vmul.f32 %v965, %v1176
      %v1179 = vmul.f32 %v969, %v1176
      %v1180 = vadd.f32 %v1150, %v1178
      %v1181 = vadd.f32 %v1151, %v1179
      %1182 = vset.pattern.permute.xlu0 7
      %1183 = vperm.xlu0 %1182, %v1004
      %v1184 = vpop.permute.xlu0 %1183
      %v1186 = vmul.f32 %v981, %v1184
      %v1187 = vmul.f32 %v985, %v1184
      %v1188 = vadd.f32 %v1156, %v1186
      %v1189 = vadd.f32 %v1157, %v1187
      %v1190 = vadd.f32 %v1164, %v1172
      %v1191 = vadd.f32 %v1165, %v1173
      %v1192 = vadd.f32 %v1180, %v1188
      %v1193 = vadd.f32 %v1181, %v1189
      %v1194 = vadd.f32 %v1190, %v1192
      %v1195 = vadd.f32 %v1191, %v1193
      %v1196 = vadd.f32 %v1131, %v1194
      %v1197 = vadd.f32 %v1132, %v1195
      %v1198 = vsub.f32 0.0, %v1197
      %v1199 = vadd.f32 %v1000, %v1198
      %v1200 = vadd.f32 %v1001, %v1196
      %v1201 = vld [vmem:[%s4] sm:$0xff]
      %v1202 = vld [vmem:[%s4 + $0x8] sm:$0xff]
      %vm1203 = vcmask 392192
      %v1205 = vsel %vm1203, %v1201, 0
      %v1208 = vsel %vm1203, %v1202, 0
      %1210 = vmatprep.subr.mxu0 0.0
      %1211 = vmatpush1.msra.mxu0 %v604
      %1212 = vmatprep.subr.mxu0 0.0
      %1213 = vmatpush1.msra.mxu0 %v605
      %1214 = vmatprep.subr.mxu0 0.0
      %1215 = vmatpush1.msra.mxu0 %v574
      %1216 = vmatprep.subr.mxu0 0.0
      %1217 = vmatpush1.msra.mxu0 %v575
      %1218 = vmatprep.subr.mxu0 0.0
      %1219 = vmatpush1.msra.mxu0 %v612
      %1220 = vmatprep.subr.mxu0 0.0
      %1221 = vmatpush1.msra.mxu0 %v613
      %1222 = vmatprep.subr.mxu0 0.0
      %1223 = vmatpush1.msra.mxu0 0.0
      %1224 = vmatprep.subr.mxu0 0.0
      %1225 = vmatpush1.msra.mxu0 0.0
      %1226 = vmatprep.subr.mxu0 0.0
      %1227 = vmatpush1.msra.mxu0 0.0
      %1228 = vmatprep.subr.mxu0 0.0
      %1229 = vmatpush1.msra.mxu0 0.0
      %1230 = vmatprep.subr.mxu0 0.0
      %1231 = vmatpush1.msra.mxu0 0.0
      %1232 = vmatprep.subr.mxu0 0.0
      %1233 = vmatpush1.msra.mxu0 0.0
      %1234 = vmatprep.subr.mxu0 0.0
      %1235 = vmatpush1.msra.mxu0 0.0
      %1236 = vmatprep.subr.mxu0 0.0
      %1237 = vmatpush1.msra.mxu0 0.0
      %1238 = vmatprep.subr.mxu0 0.0
      %1239 = vmatpush1.msra.mxu0 0.0
      %1240 = vmatprep.subr.mxu0 0.0
      %1241 = vmatpush1.msra.mxu0 0.0
      %1242 = vmatprep.subr.mxu0 0.0
      %1243 = vmatpush1.msra.mxu0 0.0
      %1244 = vmatprep.subr.mxu0 0.0
      %1245 = vmatpush1.msra.mxu0 0.0
      %1246 = vmatprep.subr.mxu0 0.0
      %1247 = vmatpush1.msra.mxu0 0.0
      %1248 = vmatprep.subr.mxu0 0.0
      %1249 = vmatpush1.msra.mxu0 0.0
      %1250 = vmatprep.subr.mxu0 0.0
      %1251 = vmatpush1.msra.mxu0 0.0
      %1252 = vmatprep.subr.mxu0 0.0
      %1253 = vmatpush1.msra.mxu0 0.0
      %1254 = vmatprep.subr.mxu0 0.0
      %1255 = vmatpush1.msra.mxu0 0.0
      %1256 = vmatprep.subr.mxu0 0.0
      %1257 = vmatpush1.msra.mxu0 0.0
      %1258 = vmatprep.subr.mxu0 0.0
      %1259 = vmatpush1.msra.mxu0 0.0
      %1260 = vmatprep.subr.mxu0 0.0
      %1261 = vmatpush1.msra.mxu0 0.0
      %1262 = vmatprep.subr.mxu0 0.0
      %1263 = vmatpush1.msra.mxu0 0.0
      %1264 = vmatprep.subr.mxu0 0.0
      %1265 = vmatpush1.msra.mxu0 0.0
      %1266 = vmatprep.subr.mxu0 0.0
      %1267 = vmatpush1.msra.mxu0 0.0
      %1268 = vmatprep.subr.mxu0 0.0
      %1269 = vmatpush1.msra.mxu0 0.0
      %1270 = vmatprep.subr.mxu0 0.0
      %1271 = vmatpush1.msra.mxu0 0.0
      %1272 = vmatprep.subr.mxu0 0.0
      %1273 = vmatpush1.msra.mxu0 0.0
      %1274 = vmatprep.mubr.f32.mxu0 0.0
      %1275 = vmatmul.mubr.f32.gmra.mrb[0].mxu0 %v1205
      %v1276 = vpop.f32.mrb[0].mxu0
      %v1277 = vadd.f32 0.0, %v1276
      %v1278 = vpop.f32.mrb[0].mxu0
      %1279 = vmatprep.mubr.f32.mxu0 0.0
      %1280 = vmatmul.mubr.f32.gmra.mrb[0].mxu0 %v1208
      %v1281 = vpop.f32.mrb[0].mxu0
      %v1282 = vadd.f32 0.0, %v1281
      %v1283 = vpop.f32.mrb[0].mxu0
      %1284 = vdwg.mxu0
      %v1285 = vld [vmem:[%s5] sm:$0xff]
      %v1286 = vld [vmem:[%s5 + $0x8] sm:$0xff]
      %v1287 = vld [vmem:[%s5 + $0x10] sm:$0xff]
      %v1288 = vmul.f32 %v1199, %v1199
      %v1289 = vmul.f32 %v1200, %v1200
      %v1290 = vadd.f32 %v1288, %v1289
      %v1291 = vmax.f32 %v1290, 1e-12
      %v1292 = vrsqrt.pop %v1291
      %v1293 = vmul.f32 %v1290, %v1292
      %vm1294 = vcmask 195584
      %v1296 = vsel %vm1294, %v1285, 0
      %v1299 = vsel %vm1294, %v1286, 0
      %v1302 = vsel %vm1294, %v1287, 0
      %1304 = vmatprep.subr.mxu0 0.0
      %1305 = vmatpush1.msra.mxu0 %v1293
      %1306 = vmatprep.subr.mxu0 0.0
      %1307 = vmatpush1.msra.mxu0 %v1277
      %1308 = vmatprep.subr.mxu0 0.0
      %1309 = vmatpush1.msra.mxu0 %v1282
      %1310 = vmatprep.subr.mxu0 0.0
      %1311 = vmatpush1.msra.mxu0 0.0
      %1312 = vmatprep.subr.mxu0 0.0
      %1313 = vmatpush1.msra.mxu0 0.0
      %1314 = vmatprep.subr.mxu0 0.0
      %1315 = vmatpush1.msra.mxu0 0.0
      %1316 = vmatprep.subr.mxu0 0.0
      %1317 = vmatpush1.msra.mxu0 0.0
      %1318 = vmatprep.subr.mxu0 0.0
      %1319 = vmatpush1.msra.mxu0 0.0
      %1320 = vmatprep.subr.mxu0 0.0
      %1321 = vmatpush1.msra.mxu0 0.0
      %1322 = vmatprep.subr.mxu0 0.0
      %1323 = vmatpush1.msra.mxu0 0.0
      %1324 = vmatprep.subr.mxu0 0.0
      %1325 = vmatpush1.msra.mxu0 0.0
      %1326 = vmatprep.subr.mxu0 0.0
      %1327 = vmatpush1.msra.mxu0 0.0
      %1328 = vmatprep.subr.mxu0 0.0
      %1329 = vmatpush1.msra.mxu0 0.0
      %1330 = vmatprep.subr.mxu0 0.0
      %1331 = vmatpush1.msra.mxu0 0.0
      %1332 = vmatprep.subr.mxu0 0.0
      %1333 = vmatpush1.msra.mxu0 0.0
      %1334 = vmatprep.subr.mxu0 0.0
      %1335 = vmatpush1.msra.mxu0 0.0
      %1336 = vmatprep.subr.mxu0 0.0
      %1337 = vmatpush1.msra.mxu0 0.0
      %1338 = vmatprep.subr.mxu0 0.0
      %1339 = vmatpush1.msra.mxu0 0.0
      %1340 = vmatprep.subr.mxu0 0.0
      %1341 = vmatpush1.msra.mxu0 0.0
      %1342 = vmatprep.subr.mxu0 0.0
      %1343 = vmatpush1.msra.mxu0 0.0
      %1344 = vmatprep.subr.mxu0 0.0
      %1345 = vmatpush1.msra.mxu0 0.0
      %1346 = vmatprep.subr.mxu0 0.0
      %1347 = vmatpush1.msra.mxu0 0.0
      %1348 = vmatprep.subr.mxu0 0.0
      %1349 = vmatpush1.msra.mxu0 0.0
      %1350 = vmatprep.subr.mxu0 0.0
      %1351 = vmatpush1.msra.mxu0 0.0
      %1352 = vmatprep.subr.mxu0 0.0
      %1353 = vmatpush1.msra.mxu0 0.0
      %1354 = vmatprep.subr.mxu0 0.0
      %1355 = vmatpush1.msra.mxu0 0.0
      %1356 = vmatprep.subr.mxu0 0.0
      %1357 = vmatpush1.msra.mxu0 0.0
      %1358 = vmatprep.subr.mxu0 0.0
      %1359 = vmatpush1.msra.mxu0 0.0
      %1360 = vmatprep.subr.mxu0 0.0
      %1361 = vmatpush1.msra.mxu0 0.0
      %1362 = vmatprep.subr.mxu0 0.0
      %1363 = vmatpush1.msra.mxu0 0.0
      %1364 = vmatprep.subr.mxu0 0.0
      %1365 = vmatpush1.msra.mxu0 0.0
      %1366 = vmatprep.subr.mxu0 0.0
      %1367 = vmatpush1.msra.mxu0 0.0
      %1368 = vmatprep.mubr.f32.mxu0 0.0
      %1369 = vmatmul.mubr.f32.gmra.mrb[0].mxu0 %v1296
      %v1370 = vpop.f32.mrb[0].mxu0
      %v1371 = vadd.f32 0.0, %v1370
      %v1372 = vpop.f32.mrb[0].mxu0
      %1373 = vmatprep.mubr.f32.mxu0 0.0
      %1374 = vmatmul.mubr.f32.gmra.mrb[0].mxu0 %v1299
      %v1375 = vpop.f32.mrb[0].mxu0
      %v1376 = vadd.f32 0.0, %v1375
      %v1377 = vpop.f32.mrb[0].mxu0
      %1378 = vmatprep.mubr.f32.mxu0 0.0
      %1379 = vmatmul.mubr.f32.gmra.mrb[0].mxu0 %v1302
      %v1380 = vpop.f32.mrb[0].mxu0
      %v1381 = vadd.f32 0.0, %v1380
      %v1382 = vpop.f32.mrb[0].mxu0
      %1383 = vdwg.mxu0
      %v1384 = vadd.f32 %v1371, %v1376
      %v1385 = vadd.f32 %v1384, %v1381
      %v1386 = vrot.slane %v1385, 4
      %v1387 = vadd.f32 %v1385, %v1386
      %v1388 = vrot.slane %v1387, 2
      %v1389 = vadd.f32 %v1387, %v1388
      %v1390 = vrot.slane %v1389, 1
      %v1391 = vadd.f32 %v1389, %v1390
      %v1392 = vrcp.pop 24.0
      %v1393 = vmul.f32 %v1391, %v1392
      %v1394 = vsub.f32 %v1371, %v1393
      %v1395 = vsub.f32 %v1376, %v1393
      %v1396 = vsub.f32 %v1381, %v1393
      %v1397 = vmul.f32 %v1394, %v1394
      %v1398 = vmul.f32 %v1395, %v1395
      %v1399 = vmul.f32 %v1396, %v1396
      %v1400 = vadd.f32 %v1397, %v1398
      %v1401 = vadd.f32 %v1400, %v1399
      %v1402 = vrot.slane %v1401, 4
      %v1403 = vadd.f32 %v1401, %v1402
      %v1404 = vrot.slane %v1403, 2
      %v1405 = vadd.f32 %v1403, %v1404
      %v1406 = vrot.slane %v1405, 1
      %v1407 = vadd.f32 %v1405, %v1406
      %v1408 = vmul.f32 %v1407, %v1392
      %v1409 = vadd.f32 %v1408, 1e-05
      %v1410 = vrsqrt.pop %v1409
      %v1411 = vmul.f32 %v1394, %v1410
      %v1412 = vmul.f32 %v1395, %v1410
      %v1413 = vmul.f32 %v1396, %v1410
      %v1414 = vmul.f32 %v1411, %v1292
      %v1415 = vmul.f32 %v1199, %v1414
      %v1416 = vmul.f32 %v1200, %v1414
      %v1417 = vmul.f32 %v1415, %v1415
      %v1418 = vmul.f32 %v1416, %v1416
      %v1419 = vadd.f32 %v1417, %v1418
      %v1420 = vmax.f32 %v1419, 1e-08
      %v1421 = vrsqrt.pop %v1420
      %v1422 = vmul.f32 %v1419, %v1421
      %v1423 = vmax.f32 %v1422, 0.0001
      %1424 = vadd.xlane.f32.xlu0 %v1423
      %v1425 = vpop.xlane.xlu0 %1424
      %v1426 = vadd.f32 %v1425, 0.0
      %1427 = vadd.xlane.f32.xlu0 %v1412
      %v1428 = vpop.xlane.xlu0 %1427
      %1429 = vadd.xlane.f32.xlu0 %v1413
      %v1430 = vpop.xlane.xlu0 %1429
      %v1431 = vadd.f32 %v1428, 0.0
      %v1432 = vadd.f32 %v1430, 0.0
      %v1434 = vlaneseq
      %v1435 = vand.u32 %v1434, 127
      %v1436 = vlaneseq
      %v1437 = vshrl.u32 %v1436, 7
      %v1438 = vsub.s32 %v1435, %v1437
      %v1439 = vrot.slane %v1426, %v1438
      %v1443 = vadd.s32 %v1435, 4294967288
      %v1444 = vlaneseq
      %v1445 = vshrl.u32 %v1444, 7
      %v1446 = vsub.s32 %v1443, %v1445
      %v1447 = vrot.slane %v1431, %v1446
      %v1448 = vadd.s32 %v1435, 4294967280
      %v1449 = vlaneseq
      %v1450 = vshrl.u32 %v1449, 7
      %v1451 = vsub.s32 %v1448, %v1450
      %v1452 = vrot.slane %v1432, %v1451
      %vm1453 = vcmask 195712
      %v1454 = vsel %vm1453, %v1452, %v1447
      %vm1456 = vcmask 64512
      %v1457 = vsel %vm1456, %v1439, %v1454
      %v1458 = vmul.f32 %v1423, %v1423
      %1459 = vadd.xlane.f32.xlu0 %v1458
      %v1460 = vpop.xlane.xlu0 %1459
      %v1461 = vadd.f32 %v1460, 0.0
      %v1462 = vmul.f32 %v1412, %v1412
      %v1463 = vmul.f32 %v1413, %v1413
      %1464 = vadd.xlane.f32.xlu0 %v1462
      %v1465 = vpop.xlane.xlu0 %1464
      %1466 = vadd.xlane.f32.xlu0 %v1463
      %v1467 = vpop.xlane.xlu0 %1466
      %v1468 = vadd.f32 %v1465, 0.0
      %v1469 = vadd.f32 %v1467, 0.0
      %v1471 = vlaneseq
      %v1472 = vshrl.u32 %v1471, 7
      %v1473 = vsub.s32 %v1435, %v1472
      %v1474 = vrot.slane %v1461, %v1473
      %v1478 = vlaneseq
      %v1479 = vshrl.u32 %v1478, 7
      %v1480 = vsub.s32 %v1443, %v1479
      %v1481 = vrot.slane %v1468, %v1480
      %v1482 = vlaneseq
      %v1483 = vshrl.u32 %v1482, 7
      %v1484 = vsub.s32 %v1448, %v1483
      %v1485 = vrot.slane %v1469, %v1484
      %v1486 = vsel %vm1453, %v1485, %v1481
      %v1488 = vsel %vm1456, %v1474, %v1486
      %v1490 = vrot.slane %v1488, 7
      %vm1492 = vcmask 1040384
      %v1493 = vsel %vm1492, %v1457, %v1490
      %vm1494 = vcmask 189440
      %1495 = vst.msk [vmem:[%s557] sm:$0x3] %vm1494, %v1493
      %1496 = vst [vmem:[%s548] sm:$0xff] %v1415
      %1497 = vst [vmem:[%s548 + $0x8] sm:$0xff] %v1416
      %1498 = vst [vmem:[%s553] sm:$0xff] %v1412
      %1499 = vst [vmem:[%s553 + $0x8] sm:$0xff] %v1413
      %v1500 = vld [vmem:[%s6] sm:$0xff]
      %1502 = vset.pattern.permute.xlu0 0
      %1503 = vperm.xlu0 %1502, %v1500
      %v1504 = vpop.permute.xlu0 %1503
      %v1506 = vmul.f32 %v747, %v1504
      %v1507 = vmul.f32 %v751, %v1504
      %1508 = vset.pattern.permute.xlu0 1
      %1509 = vperm.xlu0 %1508, %v1500
      %v1510 = vpop.permute.xlu0 %1509
      %v1512 = vmul.f32 %v762, %v1510
      %v1513 = vmul.f32 %v766, %v1510
      %1514 = vset.pattern.permute.xlu0 2
      %1515 = vperm.xlu0 %1514, %v1500
      %v1516 = vpop.permute.xlu0 %1515
      %v1518 = vmul.f32 %v776, %v1516
      %v1519 = vmul.f32 %v780, %v1516
      %1520 = vset.pattern.permute.xlu0 3
      %1521 = vperm.xlu0 %1520, %v1500
      %v1522 = vpop.permute.xlu0 %1521
      %v1524 = vmul.f32 %v790, %v1522
      %v1525 = vmul.f32 %v794, %v1522
      %1526 = vset.pattern.permute.xlu0 4
      %1527 = vperm.xlu0 %1526, %v1500
      %v1528 = vpop.permute.xlu0 %1527
      %v1530 = vmul.f32 %v804, %v1528
      %v1531 = vmul.f32 %v808, %v1528
      %v1532 = vadd.f32 %v1506, %v1530
      %v1533 = vadd.f32 %v1507, %v1531
      %1534 = vset.pattern.permute.xlu0 5
      %1535 = vperm.xlu0 %1534, %v1500
      %v1536 = vpop.permute.xlu0 %1535
      %v1538 = vmul.f32 %v820, %v1536
      %v1539 = vmul.f32 %v824, %v1536
      %v1540 = vadd.f32 %v1512, %v1538
      %v1541 = vadd.f32 %v1513, %v1539
      %1542 = vset.pattern.permute.xlu0 6
      %1543 = vperm.xlu0 %1542, %v1500
      %v1544 = vpop.permute.xlu0 %1543
      %v1546 = vmul.f32 %v836, %v1544
      %v1547 = vmul.f32 %v840, %v1544
      %v1548 = vadd.f32 %v1518, %v1546
      %v1549 = vadd.f32 %v1519, %v1547
      %1550 = vset.pattern.permute.xlu0 7
      %1551 = vperm.xlu0 %1550, %v1500
      %v1552 = vpop.permute.xlu0 %1551
      %v1554 = vmul.f32 %v852, %v1552
      %v1555 = vmul.f32 %v856, %v1552
      %v1556 = vadd.f32 %v1524, %v1554
      %v1557 = vadd.f32 %v1525, %v1555
      %v1558 = vadd.f32 %v1532, %v1540
      %v1559 = vadd.f32 %v1533, %v1541
      %v1560 = vadd.f32 %v1548, %v1556
      %v1561 = vadd.f32 %v1549, %v1557
      %v1562 = vadd.f32 %v1558, %v1560
      %v1563 = vadd.f32 %v1559, %v1561
      %v1564 = vld [vmem:[%s7] sm:$0xff]
      %1566 = vset.pattern.permute.xlu0 0
      %1567 = vperm.xlu0 %1566, %v1564
      %v1568 = vpop.permute.xlu0 %1567
      %v1570 = vmul.f32 %v747, %v1568
      %v1571 = vmul.f32 %v751, %v1568
      %1572 = vset.pattern.permute.xlu0 1
      %1573 = vperm.xlu0 %1572, %v1564
      %v1574 = vpop.permute.xlu0 %1573
      %v1576 = vmul.f32 %v762, %v1574
      %v1577 = vmul.f32 %v766, %v1574
      %1578 = vset.pattern.permute.xlu0 2
      %1579 = vperm.xlu0 %1578, %v1564
      %v1580 = vpop.permute.xlu0 %1579
      %v1582 = vmul.f32 %v776, %v1580
      %v1583 = vmul.f32 %v780, %v1580
      %1584 = vset.pattern.permute.xlu0 3
      %1585 = vperm.xlu0 %1584, %v1564
      %v1586 = vpop.permute.xlu0 %1585
      %v1588 = vmul.f32 %v790, %v1586
      %v1589 = vmul.f32 %v794, %v1586
      %1590 = vset.pattern.permute.xlu0 4
      %1591 = vperm.xlu0 %1590, %v1564
      %v1592 = vpop.permute.xlu0 %1591
      %v1594 = vmul.f32 %v804, %v1592
      %v1595 = vmul.f32 %v808, %v1592
      %v1596 = vadd.f32 %v1570, %v1594
      %v1597 = vadd.f32 %v1571, %v1595
      %1598 = vset.pattern.permute.xlu0 5
      %1599 = vperm.xlu0 %1598, %v1564
      %v1600 = vpop.permute.xlu0 %1599
      %v1602 = vmul.f32 %v820, %v1600
      %v1603 = vmul.f32 %v824, %v1600
      %v1604 = vadd.f32 %v1576, %v1602
      %v1605 = vadd.f32 %v1577, %v1603
      %1606 = vset.pattern.permute.xlu0 6
      %1607 = vperm.xlu0 %1606, %v1564
      %v1608 = vpop.permute.xlu0 %1607
      %v1610 = vmul.f32 %v836, %v1608
      %v1611 = vmul.f32 %v840, %v1608
      %v1612 = vadd.f32 %v1582, %v1610
      %v1613 = vadd.f32 %v1583, %v1611
      %1614 = vset.pattern.permute.xlu0 7
      %1615 = vperm.xlu0 %1614, %v1564
      %v1616 = vpop.permute.xlu0 %1615
      %v1618 = vmul.f32 %v852, %v1616
      %v1619 = vmul.f32 %v856, %v1616
      %v1620 = vadd.f32 %v1588, %v1618
      %v1621 = vadd.f32 %v1589, %v1619
      %v1622 = vadd.f32 %v1596, %v1604
      %v1623 = vadd.f32 %v1597, %v1605
      %v1624 = vadd.f32 %v1612, %v1620
      %v1625 = vadd.f32 %v1613, %v1621
      %v1626 = vadd.f32 %v1622, %v1624
      %v1627 = vadd.f32 %v1623, %v1625
      %v1628 = vsub.f32 0.0, %v1627
      %v1629 = vadd.f32 %v1562, %v1628
      %v1630 = vadd.f32 %v1563, %v1626
      %v1631 = vld [vmem:[%s8] sm:$0xff]
      %v1632 = vld [vmem:[%s8 + $0x8] sm:$0xff]
      %vm1633 = vcmask 130048
      %v1635 = vsel %vm1633, %v1631, 0
      %v1638 = vsel %vm1633, %v1632, 0
      %1640 = vmatprep.subr.mxu0 0.0
      %1641 = vmatpush1.msra.mxu0 %v574
      %1642 = vmatprep.subr.mxu0 0.0
      %1643 = vmatpush1.msra.mxu0 %v575
      %1644 = vmatprep.subr.mxu0 0.0
      %1645 = vmatpush1.msra.mxu0 0.0
      %1646 = vmatprep.subr.mxu0 0.0
      %1647 = vmatpush1.msra.mxu0 0.0
      %1648 = vmatprep.subr.mxu0 0.0
      %1649 = vmatpush1.msra.mxu0 0.0
      %1650 = vmatprep.subr.mxu0 0.0
      %1651 = vmatpush1.msra.mxu0 0.0
      %1652 = vmatprep.subr.mxu0 0.0
      %1653 = vmatpush1.msra.mxu0 0.0
      %1654 = vmatprep.subr.mxu0 0.0
      %1655 = vmatpush1.msra.mxu0 0.0
      %1656 = vmatprep.subr.mxu0 0.0
      %1657 = vmatpush1.msra.mxu0 0.0
      %1658 = vmatprep.subr.mxu0 0.0
      %1659 = vmatpush1.msra.mxu0 0.0
      %1660 = vmatprep.subr.mxu0 0.0
      %1661 = vmatpush1.msra.mxu0 0.0
      %1662 = vmatprep.subr.mxu0 0.0
      %1663 = vmatpush1.msra.mxu0 0.0
      %1664 = vmatprep.subr.mxu0 0.0
      %1665 = vmatpush1.msra.mxu0 0.0
      %1666 = vmatprep.subr.mxu0 0.0
      %1667 = vmatpush1.msra.mxu0 0.0
      %1668 = vmatprep.subr.mxu0 0.0
      %1669 = vmatpush1.msra.mxu0 0.0
      %1670 = vmatprep.subr.mxu0 0.0
      %1671 = vmatpush1.msra.mxu0 0.0
      %1672 = vmatprep.subr.mxu0 0.0
      %1673 = vmatpush1.msra.mxu0 0.0
      %1674 = vmatprep.subr.mxu0 0.0
      %1675 = vmatpush1.msra.mxu0 0.0
      %1676 = vmatprep.subr.mxu0 0.0
      %1677 = vmatpush1.msra.mxu0 0.0
      %1678 = vmatprep.subr.mxu0 0.0
      %1679 = vmatpush1.msra.mxu0 0.0
      %1680 = vmatprep.subr.mxu0 0.0
      %1681 = vmatpush1.msra.mxu0 0.0
      %1682 = vmatprep.subr.mxu0 0.0
      %1683 = vmatpush1.msra.mxu0 0.0
      %1684 = vmatprep.subr.mxu0 0.0
      %1685 = vmatpush1.msra.mxu0 0.0
      %1686 = vmatprep.subr.mxu0 0.0
      %1687 = vmatpush1.msra.mxu0 0.0
      %1688 = vmatprep.subr.mxu0 0.0
      %1689 = vmatpush1.msra.mxu0 0.0
      %1690 = vmatprep.subr.mxu0 0.0
      %1691 = vmatpush1.msra.mxu0 0.0
      %1692 = vmatprep.subr.mxu0 0.0
      %1693 = vmatpush1.msra.mxu0 0.0
      %1694 = vmatprep.subr.mxu0 0.0
      %1695 = vmatpush1.msra.mxu0 0.0
      %1696 = vmatprep.subr.mxu0 0.0
      %1697 = vmatpush1.msra.mxu0 0.0
      %1698 = vmatprep.subr.mxu0 0.0
      %1699 = vmatpush1.msra.mxu0 0.0
      %1700 = vmatprep.subr.mxu0 0.0
      %1701 = vmatpush1.msra.mxu0 0.0
      %1702 = vmatprep.subr.mxu0 0.0
      %1703 = vmatpush1.msra.mxu0 0.0
      %1704 = vmatprep.mubr.f32.mxu0 0.0
      %1705 = vmatmul.mubr.f32.gmra.mrb[0].mxu0 %v1635
      %v1706 = vpop.f32.mrb[0].mxu0
      %v1707 = vadd.f32 0.0, %v1706
      %v1708 = vpop.f32.mrb[0].mxu0
      %1709 = vmatprep.mubr.f32.mxu0 0.0
      %1710 = vmatmul.mubr.f32.gmra.mrb[0].mxu0 %v1638
      %v1711 = vpop.f32.mrb[0].mxu0
      %v1712 = vadd.f32 0.0, %v1711
      %v1713 = vpop.f32.mrb[0].mxu0
      %1714 = vdwg.mxu0
      %v1715 = vld [vmem:[%s9] sm:$0xff]
      %v1716 = vld [vmem:[%s9 + $0x8] sm:$0xff]
      %v1717 = vld [vmem:[%s9 + $0x10] sm:$0xff]
      %v1718 = vmul.f32 %v1629, %v1629
      %v1719 = vmul.f32 %v1630, %v1630
      %v1720 = vadd.f32 %v1718, %v1719
      %v1721 = vmax.f32 %v1720, 1e-12
      %v1722 = vrsqrt.pop %v1721
      %v1723 = vmul.f32 %v1720, %v1722
      %v1725 = vsel %vm1294, %v1715, 0
      %v1728 = vsel %vm1294, %v1716, 0
      %v1731 = vsel %vm1294, %v1717, 0
      %1733 = vmatprep.subr.mxu0 0.0
      %1734 = vmatpush1.msra.mxu0 %v1723
      %1735 = vmatprep.subr.mxu0 0.0
      %1736 = vmatpush1.msra.mxu0 %v1707
      %1737 = vmatprep.subr.mxu0 0.0
      %1738 = vmatpush1.msra.mxu0 %v1712
      %1739 = vmatprep.subr.mxu0 0.0
      %1740 = vmatpush1.msra.mxu0 0.0
      %1741 = vmatprep.subr.mxu0 0.0
      %1742 = vmatpush1.msra.mxu0 0.0
      %1743 = vmatprep.subr.mxu0 0.0
      %1744 = vmatpush1.msra.mxu0 0.0
      %1745 = vmatprep.subr.mxu0 0.0
      %1746 = vmatpush1.msra.mxu0 0.0
      %1747 = vmatprep.subr.mxu0 0.0
      %1748 = vmatpush1.msra.mxu0 0.0
      %1749 = vmatprep.subr.mxu0 0.0
      %1750 = vmatpush1.msra.mxu0 0.0
      %1751 = vmatprep.subr.mxu0 0.0
      %1752 = vmatpush1.msra.mxu0 0.0
      %1753 = vmatprep.subr.mxu0 0.0
      %1754 = vmatpush1.msra.mxu0 0.0
      %1755 = vmatprep.subr.mxu0 0.0
      %1756 = vmatpush1.msra.mxu0 0.0
      %1757 = vmatprep.subr.mxu0 0.0
      %1758 = vmatpush1.msra.mxu0 0.0
      %1759 = vmatprep.subr.mxu0 0.0
      %1760 = vmatpush1.msra.mxu0 0.0
      %1761 = vmatprep.subr.mxu0 0.0
      %1762 = vmatpush1.msra.mxu0 0.0
      %1763 = vmatprep.subr.mxu0 0.0
      %1764 = vmatpush1.msra.mxu0 0.0
      %1765 = vmatprep.subr.mxu0 0.0
      %1766 = vmatpush1.msra.mxu0 0.0
      %1767 = vmatprep.subr.mxu0 0.0
      %1768 = vmatpush1.msra.mxu0 0.0
      %1769 = vmatprep.subr.mxu0 0.0
      %1770 = vmatpush1.msra.mxu0 0.0
      %1771 = vmatprep.subr.mxu0 0.0
      %1772 = vmatpush1.msra.mxu0 0.0
      %1773 = vmatprep.subr.mxu0 0.0
      %1774 = vmatpush1.msra.mxu0 0.0
      %1775 = vmatprep.subr.mxu0 0.0
      %1776 = vmatpush1.msra.mxu0 0.0
      %1777 = vmatprep.subr.mxu0 0.0
      %1778 = vmatpush1.msra.mxu0 0.0
      %1779 = vmatprep.subr.mxu0 0.0
      %1780 = vmatpush1.msra.mxu0 0.0
      %1781 = vmatprep.subr.mxu0 0.0
      %1782 = vmatpush1.msra.mxu0 0.0
      %1783 = vmatprep.subr.mxu0 0.0
      %1784 = vmatpush1.msra.mxu0 0.0
      %1785 = vmatprep.subr.mxu0 0.0
      %1786 = vmatpush1.msra.mxu0 0.0
      %1787 = vmatprep.subr.mxu0 0.0
      %1788 = vmatpush1.msra.mxu0 0.0
      %1789 = vmatprep.subr.mxu0 0.0
      %1790 = vmatpush1.msra.mxu0 0.0
      %1791 = vmatprep.subr.mxu0 0.0
      %1792 = vmatpush1.msra.mxu0 0.0
      %1793 = vmatprep.subr.mxu0 0.0
      %1794 = vmatpush1.msra.mxu0 0.0
      %1795 = vmatprep.subr.mxu0 0.0
      %1796 = vmatpush1.msra.mxu0 0.0
      %1797 = vmatprep.mubr.f32.mxu0 0.0
      %1798 = vmatmul.mubr.f32.gmra.mrb[0].mxu0 %v1725
      %v1799 = vpop.f32.mrb[0].mxu0
      %v1800 = vadd.f32 0.0, %v1799
      %v1801 = vpop.f32.mrb[0].mxu0
      %1802 = vmatprep.mubr.f32.mxu0 0.0
      %1803 = vmatmul.mubr.f32.gmra.mrb[0].mxu0 %v1728
      %v1804 = vpop.f32.mrb[0].mxu0
      %v1805 = vadd.f32 0.0, %v1804
      %v1806 = vpop.f32.mrb[0].mxu0
      %1807 = vmatprep.mubr.f32.mxu0 0.0
      %1808 = vmatmul.mubr.f32.gmra.mrb[0].mxu0 %v1731
      %v1809 = vpop.f32.mrb[0].mxu0
      %v1810 = vadd.f32 0.0, %v1809
      %v1811 = vpop.f32.mrb[0].mxu0
      %1812 = vdwg.mxu0
      %v1813 = vadd.f32 %v1800, %v1805
      %v1814 = vadd.f32 %v1813, %v1810
      %v1815 = vrot.slane %v1814, 4
      %v1816 = vadd.f32 %v1814, %v1815
      %v1817 = vrot.slane %v1816, 2
      %v1818 = vadd.f32 %v1816, %v1817
      %v1819 = vrot.slane %v1818, 1
      %v1820 = vadd.f32 %v1818, %v1819
      %v1821 = vmul.f32 %v1820, %v1392
      %v1822 = vsub.f32 %v1800, %v1821
      %v1823 = vsub.f32 %v1805, %v1821
      %v1824 = vsub.f32 %v1810, %v1821
      %v1825 = vmul.f32 %v1822, %v1822
      %v1826 = vmul.f32 %v1823, %v1823
      %v1827 = vmul.f32 %v1824, %v1824
      %v1828 = vadd.f32 %v1825, %v1826
      %v1829 = vadd.f32 %v1828, %v1827
      %v1830 = vrot.slane %v1829, 4
      %v1831 = vadd.f32 %v1829, %v1830
      %v1832 = vrot.slane %v1831, 2
      %v1833 = vadd.f32 %v1831, %v1832
      %v1834 = vrot.slane %v1833, 1
      %v1835 = vadd.f32 %v1833, %v1834
      %v1836 = vmul.f32 %v1835, %v1392
      %v1837 = vadd.f32 %v1836, 1e-05
      %v1838 = vrsqrt.pop %v1837
      %v1839 = vmul.f32 %v1822, %v1838
      %v1840 = vmul.f32 %v1823, %v1838
      %v1841 = vmul.f32 %v1824, %v1838
      %v1842 = vmul.f32 %v1839, %v1722
      %v1843 = vmul.f32 %v1629, %v1842
      %v1844 = vmul.f32 %v1630, %v1842
      %v1845 = vmul.f32 %v1843, %v1843
      %v1846 = vmul.f32 %v1844, %v1844
      %v1847 = vadd.f32 %v1845, %v1846
      %v1848 = vmax.f32 %v1847, 1e-08
      %v1849 = vrsqrt.pop %v1848
      %v1850 = vmul.f32 %v1847, %v1849
      %v1851 = vmax.f32 %v1850, 0.0001
      %1852 = vadd.xlane.f32.xlu0 %v1851
      %v1853 = vpop.xlane.xlu0 %1852
      %v1854 = vadd.f32 %v1853, 0.0
      %1855 = vadd.xlane.f32.xlu0 %v1840
      %v1856 = vpop.xlane.xlu0 %1855
      %1857 = vadd.xlane.f32.xlu0 %v1841
      %v1858 = vpop.xlane.xlu0 %1857
      %v1859 = vadd.f32 %v1856, 0.0
      %v1860 = vadd.f32 %v1858, 0.0
      %v1862 = vlaneseq
      %v1863 = vshrl.u32 %v1862, 7
      %v1864 = vsub.s32 %v1435, %v1863
      %v1865 = vrot.slane %v1854, %v1864
      %v1869 = vlaneseq
      %v1870 = vshrl.u32 %v1869, 7
      %v1871 = vsub.s32 %v1443, %v1870
      %v1872 = vrot.slane %v1859, %v1871
      %v1873 = vlaneseq
      %v1874 = vshrl.u32 %v1873, 7
      %v1875 = vsub.s32 %v1448, %v1874
      %v1876 = vrot.slane %v1860, %v1875
      %v1877 = vsel %vm1453, %v1876, %v1872
      %v1879 = vsel %vm1456, %v1865, %v1877
      %v1880 = vmul.f32 %v1851, %v1851
      %1881 = vadd.xlane.f32.xlu0 %v1880
      %v1882 = vpop.xlane.xlu0 %1881
      %v1883 = vadd.f32 %v1882, 0.0
      %v1884 = vmul.f32 %v1840, %v1840
      %v1885 = vmul.f32 %v1841, %v1841
      %1886 = vadd.xlane.f32.xlu0 %v1884
      %v1887 = vpop.xlane.xlu0 %1886
      %1888 = vadd.xlane.f32.xlu0 %v1885
      %v1889 = vpop.xlane.xlu0 %1888
      %v1890 = vadd.f32 %v1887, 0.0
      %v1891 = vadd.f32 %v1889, 0.0
      %v1893 = vlaneseq
      %v1894 = vshrl.u32 %v1893, 7
      %v1895 = vsub.s32 %v1435, %v1894
      %v1896 = vrot.slane %v1883, %v1895
      %v1900 = vlaneseq
      %v1901 = vshrl.u32 %v1900, 7
      %v1902 = vsub.s32 %v1443, %v1901
      %v1903 = vrot.slane %v1890, %v1902
      %v1904 = vlaneseq
      %v1905 = vshrl.u32 %v1904, 7
      %v1906 = vsub.s32 %v1448, %v1905
      %v1907 = vrot.slane %v1891, %v1906
      %v1908 = vsel %vm1453, %v1907, %v1903
      %v1910 = vsel %vm1456, %v1896, %v1908
      %v1912 = vrot.slane %v1910, 7
      %v1914 = vsel %vm1492, %v1879, %v1912
      %1915 = vst.msk [vmem:[%s571] sm:$0x3] %vm1494, %v1914
      %1916 = vst [vmem:[%s562] sm:$0xff] %v1843
      %1917 = vst [vmem:[%s562 + $0x8] sm:$0xff] %v1844
      %1918 = vst [vmem:[%s567] sm:$0xff] %v1840
      %1919 = vst [vmem:[%s567 + $0x8] sm:$0xff] %v1841
      %p1920 = scmp.lt.s32.totalorder %s27, 1
      %s1921 = scalar_select %p1920, %s27, 1
      %s1922 = smul.addr %s1921, 2
      %s1923 = smul.addr %s1922, 8
      %s1924 = scalar_lea.vmem %s10, %s1923
      %p1925 = scmp.lt.s32.totalorder %s27, 1
      %s1926 = scalar_select %p1925, %s27, 1
      %s1927 = smul.addr %s1926, 2
      %s1928 = smul.addr %s1927, 8
      %s1929 = scalar_lea.vmem %s11, %s1928
      %p1930 = scmp.lt.s32.totalorder %s27, 1
      %s1931 = scalar_select %p1930, %s27, 1
      %s1932 = smul.addr %s1931, 2
      %s1933 = scalar_lea.vmem %s12, %s1932
      %p1934 = scmp.lt.s32.totalorder %s27, 1
      %s1935 = scalar_select %p1934, %s27, 1
      %s1936 = smul.addr %s1935, 2
      %s1937 = smul.addr %s1936, 8
      %s1938 = scalar_lea.vmem %s13, %s1937
      %p1939 = scmp.lt.s32.totalorder %s27, 1
      %s1940 = scalar_select %p1939, %s27, 1
      %s1941 = smul.addr %s1940, 2
      %s1942 = smul.addr %s1941, 8
      %s1943 = scalar_lea.vmem %s14, %s1942
      %p1944 = scmp.lt.s32.totalorder %s27, 1
      %s1945 = scalar_select %p1944, %s27, 1
      %s1946 = smul.addr %s1945, 2
      %s1947 = scalar_lea.vmem %s15, %s1946
      // Predicated region
      $region61: #{basic_block1d.3} parent=59 // pred_check
        %p1948 = pneg %p265
      $region62: #{basic_block1d.3} parent=59 // pred_check_branch
        %1950 = sbr.rel (%p1948) target = $region64
      $region63: #{basic_block1d.3} parent=59 // pred_region
        _
      $region64: #{basic_block1d.3} parent=59 // pred_fallthru
        _
      // Predicated region
      $region65: #{basic_block1d.3} parent=59 // pred_check
        %p1951 = pneg %p291
      $region66: #{basic_block1d.3} parent=59 // pred_check_branch
        %1953 = sbr.rel (%p1951) target = $region68
      $region67: #{basic_block1d.3} parent=59 // pred_region
        _
      $region68: #{basic_block1d.3} parent=59 // pred_fallthru
        _
      // Predicated region
      $region69: #{basic_block1d.3} parent=59 // pred_check
        %p1954 = pneg %p317
      $region70: #{basic_block1d.3} parent=59 // pred_check_branch
        %1956 = sbr.rel (%p1954) target = $region72
      $region71: #{basic_block1d.3} parent=59 // pred_region
        _
      $region72: #{basic_block1d.3} parent=59 // pred_fallthru
        _
      // Predicated region
      $region73: #{basic_block1d.3} parent=59 // pred_check
        %p1957 = pneg %p343
      $region74: #{basic_block1d.3} parent=59 // pred_check_branch
        %1959 = sbr.rel (%p1957) target = $region76
      $region75: #{basic_block1d.3} parent=59 // pred_region
        _
      $region76: #{basic_block1d.3} parent=59 // pred_fallthru
        _
      // Predicated region
      $region77: #{basic_block1d.3} parent=59 // pred_check
        %p1960 = pneg %p369
      $region78: #{basic_block1d.3} parent=59 // pred_check_branch
        %1962 = sbr.rel (%p1960) target = $region80
      $region79: #{basic_block1d.3} parent=59 // pred_region
        _
      $region80: #{basic_block1d.3} parent=59 // pred_fallthru
        _
      // Predicated region
      $region81: #{basic_block1d.3} parent=59 // pred_check
        %p1963 = pneg %p395
      $region82: #{basic_block1d.3} parent=59 // pred_check_branch
        %1965 = sbr.rel (%p1963) target = $region84
      $region83: #{basic_block1d.3} parent=59 // pred_region
        _
      $region84: #{basic_block1d.3} parent=59 // pred_fallthru
        _
    $region60: #{basic_block1d.3} parent=5 // pred_fallthru
      _
    %p1966 = scmp.le.s32.totalorder 2, %s22
    // Predicated region
    $region85: #{basic_block1d.3} parent=5 // pred_check
      %p1967 = pneg %p1966
    $region86: #{basic_block1d.3} parent=5 // pred_check_branch
      %1969 = sbr.rel (%p1967) target = $region88
    $region87: #{basic_block1d.3} parent=5 // pred_region
      %s1970 = ssub.s32 %s22, 2
      // Predicated region
      $region89: #{basic_block1d.3} parent=87 // pred_check
        %p1971 = pneg %p271
      $region90: #{basic_block1d.3} parent=87 // pred_check_branch
        %1973 = sbr.rel (%p1971) target = $region92
      $region91: #{basic_block1d.3} parent=87 // pred_region
        %p1974 = scmp.lt.s32.totalorder %s28, 1
        %s1975 = scalar_select %p1974, %s28, 1
        %s1976 = smul.addr %s1975, 2
        %s1977 = smul.addr %s1976, 8
        %s1978 = scalar_lea.vmem %s10, %s1977
      $region92: #{basic_block1d.3} parent=87 // pred_fallthru
        _
      // Predicated region
      $region93: #{basic_block1d.3} parent=87 // pred_check
        %p1979 = pneg %p297
      $region94: #{basic_block1d.3} parent=87 // pred_check_branch
        %1981 = sbr.rel (%p1979) target = $region96
      $region95: #{basic_block1d.3} parent=87 // pred_region
        %p1982 = scmp.lt.s32.totalorder %s28, 1
        %s1983 = scalar_select %p1982, %s28, 1
        %s1984 = smul.addr %s1983, 2
        %s1985 = smul.addr %s1984, 8
        %s1986 = scalar_lea.vmem %s11, %s1985
      $region96: #{basic_block1d.3} parent=87 // pred_fallthru
        _
      // Predicated region
      $region97: #{basic_block1d.3} parent=87 // pred_check
        %p1987 = pneg %p323
      $region98: #{basic_block1d.3} parent=87 // pred_check_branch
        %1989 = sbr.rel (%p1987) target = $region100
      $region99: #{basic_block1d.3} parent=87 // pred_region
        %p1990 = scmp.lt.s32.totalorder %s28, 1
        %s1991 = scalar_select %p1990, %s28, 1
        %s1992 = smul.addr %s1991, 2
        %s1993 = scalar_lea.vmem %s12, %s1992
      $region100: #{basic_block1d.3} parent=87 // pred_fallthru
        _
      // Predicated region
      $region101: #{basic_block1d.3} parent=87 // pred_check
        %p1994 = pneg %p349
      $region102: #{basic_block1d.3} parent=87 // pred_check_branch
        %1996 = sbr.rel (%p1994) target = $region104
      $region103: #{basic_block1d.3} parent=87 // pred_region
        %p1997 = scmp.lt.s32.totalorder %s28, 1
        %s1998 = scalar_select %p1997, %s28, 1
        %s1999 = smul.addr %s1998, 2
        %s2000 = smul.addr %s1999, 8
        %s2001 = scalar_lea.vmem %s13, %s2000
      $region104: #{basic_block1d.3} parent=87 // pred_fallthru
        _
      // Predicated region
      $region105: #{basic_block1d.3} parent=87 // pred_check
        %p2002 = pneg %p375
      $region106: #{basic_block1d.3} parent=87 // pred_check_branch
        %2004 = sbr.rel (%p2002) target = $region108
      $region107: #{basic_block1d.3} parent=87 // pred_region
        %p2005 = scmp.lt.s32.totalorder %s28, 1
        %s2006 = scalar_select %p2005, %s28, 1
        %s2007 = smul.addr %s2006, 2
        %s2008 = smul.addr %s2007, 8
        %s2009 = scalar_lea.vmem %s14, %s2008
      $region108: #{basic_block1d.3} parent=87 // pred_fallthru
        _
      // Predicated region
      $region109: #{basic_block1d.3} parent=87 // pred_check
        %p2010 = pneg %p401
      $region110: #{basic_block1d.3} parent=87 // pred_check_branch
        %2012 = sbr.rel (%p2010) target = $region112
      $region111: #{basic_block1d.3} parent=87 // pred_region
        %p2013 = scmp.lt.s32.totalorder %s28, 1
        %s2014 = scalar_select %p2013, %s28, 1
        %s2015 = smul.addr %s2014, 2
        %s2016 = scalar_lea.vmem %s15, %s2015
      $region112: #{basic_block1d.3} parent=87 // pred_fallthru
        _
    $region88: #{basic_block1d.3} parent=5 // pred_fallthru
      _
  $region6: #{basic_block1d.3} parent=0 // loop_footer
    %s26 = sadd.s32 1, %s22
  $region7: #{basic_block1d.3} parent=0 // loop_footer_branch
    %21 = sbr.rel target = $region3
  $region8: #{basic_block1d.3} parent=0 // loop_exit
    _

</llo_original>
